<compile_context>
chip_gen: v6e
topology: v6e:2x2x1
jax: 0.10.0
libtpu: 0.0.40
codegen_flags: <defaults>
</compile_context>

<pallas_src>
import functools

import jax
import jax.numpy as jnp
from jax import lax
from jax.experimental import pallas as pl
from jax.experimental.pallas import tpu as pltpu


# ---------------------------------------------------------------------------
# helpers
# ---------------------------------------------------------------------------
def _const_spec(a):
    """BlockSpec covering a whole batch-invariant array (fetched once, reused per step)."""
    n = a.ndim
    return pl.BlockSpec(a.shape, lambda b: (0,) * n)


# ---------------------------------------------------------------------------
# Fused kernel: LayerNorm + PEA_PCA + sSE/cSE + residual + conv51 + conv52 + conv8 + skip.
# One grid step per batch element.
# ---------------------------------------------------------------------------
def _block_kernel(x_ref,
                  lnw_ref, lnb_ref, gamma_ref,
                  wq_ref, mkn_ref, tvec1_ref, onesca_ref, mvca_ref,
                  wsa_ref, onessa_ref, mvsap_ref,
                  wall_ref, ball_ref,
                  wsse_ref, wsq_ref, wex_ref, base_ref, sa2_ref, ca2_ref,
                  mask_ref,
                  w1a_ref, s1a_ref, b1a_ref, w1b_ref, s1b_ref, b1b_ref,
                  w2a_ref, s2a_ref, b2a_ref, w2b_ref, s2b_ref, b2b_ref,
                  w8_ref, b8_ref,
                  o_ref,
                  vpad_ref,
                  *, num_heads, head_dim, n_tok_blocks, H, W, D, mm_dtype):
    f32 = jnp.float32
    x = x_ref[0]                                                  # (N, C)
    N, C = x.shape
    d = head_dim
    m = n_tok_blocks                                              # N // C

    def dot(a, b):
        return jnp.dot(a.astype(mm_dtype), b.astype(mm_dtype), preferred_element_type=f32)

    # ================= attention half =================
    # nn.LayerNorm(hidden_size), eps=1e-5, biased variance
    mu = jnp.mean(x, axis=-1, keepdims=True)
    var = jnp.mean((x - mu) ** 2, axis=-1, keepdims=True)
    xn = (x - mu) * lax.rsqrt(var + 1e-5) * lnw_ref[...] + lnb_ref[...]

    # q = qkvv(xn) (bias=False); F.normalize over the token axis (dim=-1 of q_shared)
    q = dot(xn, wq_ref[...])                                      # (N, C)
    qn = q / jnp.maximum(jnp.sqrt(jnp.sum(q * q, axis=0, keepdims=True)), 1e-12)

    # ---- channel attention: all heads in one (d, N) @ (N, C) matmul ----
    # a_ca[j, h*d + i] == attn_CA[h, i, j]
    a_ca = dot(mkn_ref[...], qn) * tvec1_ref[...]                 # (d, C)
    # torch softmax(dim=-2) == softmax over i within each head block (per row j).
    # Row max is constant across the softmax axis -> numerically-stable, mathematically exact.
    a_ca = a_ca - jnp.max(a_ca, axis=-1, keepdims=True)
    e_ca = jnp.exp(a_ca)
    a_ca = e_ca / jnp.dot(e_ca, onesca_ref[...], preferred_element_type=f32)   # block sums over i
    a_ca = a_ca / (1e-9 + jnp.sum(a_ca, axis=0, keepdims=True))   # / attn_CA.sum(dim=-1)
    # TODO(synk): attn_drop_1 / attn_drop_2 are identity at inference (dropout skipped).
    x_ca = dot(mvca_ref[...], a_ca)                               # (N, C) final token layout

    # ---- spatial attention: all heads in one (N, C) @ (C, h*P) matmul ----
    a_sa = dot(qn, wsa_ref[...])                                  # (N, h*P), temperature2 folded
    a_sa = a_sa - jnp.max(a_sa, axis=0, keepdims=True)            # torch softmax(dim=-2): tokens
    e_sa = jnp.exp(a_sa)
    a_sa = e_sa / jnp.sum(e_sa, axis=0, keepdims=True)
    a_sa = a_sa / (1e-9 + jnp.dot(a_sa, onessa_ref[...], preferred_element_type=f32))
    # torch: x_SA = (attn_SA @ M_v_SA^T).permute(0,3,1,2).reshape(B, N, C).
    # The fixed permutation is folded into the precomputed mvsa_p weights: one matmul per
    # C-row token block (requires N % C == 0, true for all UNETR++/PECA_Net stages).
    x_sa = lax.dot_general(mvsap_ref[0], a_sa[0:C, :].astype(mm_dtype),
                           (((0,), (1,)), ((), ())), preferred_element_type=f32)
    for j in range(1, m):
        x_sa = x_sa + lax.dot_general(mvsap_ref[j], a_sa[j * C:(j + 1) * C, :].astype(mm_dtype),
                                      (((0,), (1,)), ((), ())), preferred_element_type=f32)

    # ---- out_proj1..4 as ONE matmul; columns ordered [SA1 | SA2 | CA1 | CA2] ----
    xcat = jnp.concatenate([x_sa, x_ca, xn], axis=-1)             # (N, 3C)
    proj = dot(xcat, wall_ref[...]) + ball_ref[...]               # (N, C)

    # sSE (on SA2 columns) and cSE (on CA2 columns) via whole-row masked reductions;
    # the gate is assembled with precomputed 0/1 column-group rows -> no lane slicing.
    g_s = jax.nn.sigmoid(jnp.sum(proj * wsse_ref[...], axis=-1, keepdims=True))  # (N, 1)
    zc = jnp.mean(proj, axis=0, keepdims=True)                    # (1, C)
    z1 = jnp.sum(wsq_ref[...] * zc, axis=-1, keepdims=True)       # (c8, 1)  squeeze
    z2 = jnp.sum(wex_ref[...] * z1, axis=0, keepdims=True)        # (1, C)   excite
    gate = base_ref[...] + sa2_ref[...] * g_s + ca2_ref[...] * jax.nn.sigmoid(z2)
    attn = x + gamma_ref[...] * (proj * gate)                     # residual: x + gamma*PEA_PCA(norm(x))

    # ================= conv half =================
    # TODO(synk): BatchNorm3d uses eval-mode running statistics (folded affine);
    #             training-mode batch statistics are not implemented. Conv bias=False (MONAI default).
    pad = W * D + D + 1                                           # largest |token offset| of a 3x3x3 tap
    offs = [dh * W * D + dw * D + dz
            for dh in (-1, 0, 1) for dw in (-1, 0, 1) for dz in (-1, 0, 1)]
    mask = mask_ref[...]                                          # (N, 27C) boundary-validity slab

    # persistent zero-padded VMEM scratch; only the interior is rewritten per conv.
    vpad_ref[...] = jnp.zeros((N + 2 * pad, C), f32)

    def conv3(v, w_ref):
        # 3x3x3 / stride 1 / zero padding 1 on the (H, W, D) volume: one in-VMEM im2col slab
        # (27 shifted token views, boundary-masked) and a single (N, 27C) @ (27C, C) matmul.
        vpad_ref[pad:pad + N, :] = v
        slab = jnp.concatenate([vpad_ref[pad + off:pad + off + N, :] for off in offs],
                               axis=-1) * mask                    # (N, 27C)
        return dot(slab, w_ref[...])                              # (N, C)

    def lrelu(a):
        return jnp.where(a >= 0, a, 0.01 * a)

    # conv51: UnetResBlock = conv -> BN -> lrelu -> conv -> BN (+residual) -> lrelu
    t1 = lrelu(conv3(attn, w1a_ref) * s1a_ref[...] + b1a_ref[...])
    r1 = lrelu(conv3(t1, w1b_ref) * s1b_ref[...] + b1b_ref[...] + attn)
    # conv52
    t2 = lrelu(conv3(r1, w2a_ref) * s2a_ref[...] + b2a_ref[...])
    r2 = lrelu(conv3(t2, w2b_ref) * s2b_ref[...] + b2b_ref[...] + r1)
    # conv8 (Dropout3d identity at inference) + outer skip connection, fused epilogue
    o_ref[0] = attn + dot(r2, w8_ref[...]) + b8_ref[...]


# ---------------------------------------------------------------------------
# Batch-invariant parameter preparation (hoisted out of the Pallas grid).
# ---------------------------------------------------------------------------
def prepare_kernel_constants(params, *, num_heads, H, W, D, mm_dtype=jnp.bfloat16):
    f32 = jnp.float32
    C = params["w_qkvv"].shape[0]
    N = H * W * D
    d = C // num_heads
    P = params["M_v_SA"].shape[1]
    c4, c8 = C // 4, C // 8
    m = N // C

    # ---- channel attention constants ----
    M_k = params["M_k"].astype(f32)                                          # (d, N)
    mkn = M_k / jnp.maximum(jnp.sqrt(jnp.sum(M_k * M_k, axis=-1, keepdims=True)), 1e-12)
    tvec1 = jnp.repeat(params["temperature"], d)[None, :].astype(f32)        # (1, C)
    head_c = jnp.arange(C) // d
    ones_ca = (head_c[:, None] == head_c[None, :]).astype(f32)               # (C, C)

    # ---- spatial attention constants (temperature2 folded into the key) ----
    mk_proj = jnp.dot(M_k, params["w_E"].T) + params["b_E"][None, :]         # (d, P)
    wsa = jnp.zeros((C, num_heads * P), f32)
    mvsa = jnp.zeros((num_heads * P, C), f32)
    for h in range(num_heads):
        wsa = wsa.at[h * d:(h + 1) * d, h * P:(h + 1) * P].set(mk_proj * params["temperature2"][h])
        mvsa = mvsa.at[h * P:(h + 1) * P, h * d:(h + 1) * d].set(params["M_v_SA"].T)
    head_p = jnp.arange(num_heads * P) // P
    ones_sa = (head_p[:, None] == head_p[None, :]).astype(f32)               # (hP, hP)

    # permutation-folded M_v_SA: reproduces torch's permute(0,3,1,2).reshape(B,N,C) exactly.
    c_idx = jnp.arange(C)
    hh_c, i_c = c_idx // d, c_idx % d
    mvsa_p = []
    for j in range(m):
        r_idx = (i_c * num_heads + hh_c) * m + j
        Pj = jnp.zeros((N, C), f32).at[r_idx, c_idx].set(1.0)                # (N, C) scatter matrix
        mvsa_p.append(jnp.dot(mvsa, Pj.T))                                   # (hP, N)
    mvsa_p = jnp.stack(mvsa_p, axis=0).astype(mm_dtype)                      # (m, hP, N)

    # ---- fused out_proj1..4: (3C, C), output columns [SA1 | SA2 | CA1 | CA2] ----
    w_all = jnp.zeros((3 * C, C), f32)
    w_all = w_all.at[0:C, 0:c4].set(params["w_out1"].T)                      # x_SA -> SA1
    w_all = w_all.at[2 * C:3 * C, c4:2 * c4].set(params["w_out3"].T)         # xn   -> SA2
    w_all = w_all.at[C:2 * C, 2 * c4:3 * c4].set(params["w_out2"].T)         # x_CA -> CA1
    w_all = w_all.at[2 * C:3 * C, 3 * c4:4 * c4].set(params["w_out4"].T)     # xn   -> CA2
    b_all = jnp.concatenate([params["b_out1"], params["b_out3"],
                             params["b_out2"], params["b_out4"]])[None, :].astype(f32)

    # ---- sSE / cSE weights expanded to full-row form + column-group gate rows ----
    col = jnp.arange(C)
    sa2_row = ((col >= c4) & (col < 2 * c4)).astype(f32)[None, :]
    ca2_row = (col >= 3 * c4).astype(f32)[None, :]
    base_row = 1.0 - sa2_row - ca2_row
    wsse_full = jnp.zeros((1, C), f32).at[0, c4:2 * c4].set(params["w_sse"])
    wsq_full = jnp.zeros((c8, C), f32).at[:, 3 * c4:].set(params["w_sq"])
    wex_full = jnp.zeros((c8, C), f32).at[:, 3 * c4:].set(params["w_ex"].T)

    # ---- conv constants ----
    def bn_affine(bnp):
        s = bnp["weight"] / jnp.sqrt(bnp["running_var"] + 1e-5)
        return s[None, :].astype(f32), (bnp["bias"] - bnp["running_mean"] * s)[None, :].astype(f32)

    def conv_w(w):   # (Co, Ci, 3, 3, 3) -> (27*Ci, Co), tap index = (kh*3 + kw)*3 + kd
        return jnp.transpose(w, (2, 3, 4, 1, 0)).reshape(27 * w.shape[1], w.shape[0]).astype(mm_dtype)

    # 3x3x3 neighbour-validity mask slab for zero padding, (N, 27*C); batch invariant.
    ih, iw, iz = jnp.meshgrid(jnp.arange(H), jnp.arange(W), jnp.arange(D), indexing="ij")
    cols = []
    for dh in (-1, 0, 1):
        for dw in (-1, 0, 1):
            for dz in (-1, 0, 1):
                ok = ((ih + dh >= 0) & (ih + dh < H) & (iw + dw >= 0) & (iw + dw < W)
                      & (iz + dz >= 0) & (iz + dz < D))
                cols.append(jnp.broadcast_to(ok.reshape(N, 1), (N, C)))
    maskslab = jnp.concatenate(cols, axis=1).astype(f32)                     # (N, 27C)

    kc = dict(
        ln_w=params["ln_w"][None, :].astype(f32), ln_b=params["ln_b"][None, :].astype(f32),
        gamma=params["gamma"][None, :].astype(f32),
        wq_t=params["w_qkvv"].T.astype(mm_dtype),
        mkn=mkn.astype(mm_dtype),
        tvec1=tvec1,
        ones_ca=ones_ca,
        mvca_t=params["M_v_CA"].T.astype(mm_dtype),
        wsa_bd=wsa.astype(mm_dtype),
        ones_sa=ones_sa,
        mvsa_p=mvsa_p,
        w_all=w_all.astype(mm_dtype), b_all=b_all,
        wsse_full=wsse_full, wsq_full=wsq_full, wex_full=wex_full,
        base_row=base_row, sa2_row=sa2_row, ca2_row=ca2_row,
        maskslab=maskslab,
        w8_t=params["w8"].T.astype(mm_dtype), b8=params["b8"][None, :].astype(f32),
    )
    for name in ("conv51", "conv52"):
        blk = params[name]
        s1, sh1 = bn_affine(blk["bn1"])
        s2, sh2 = bn_affine(blk["bn2"])
        kc[name] = dict(w1=conv_w(blk["w1"]), s1=s1, b1=sh1,
                        w2=conv_w(blk["w2"]), s2=s2, b2=sh2)
    return kc


# ---------------------------------------------------------------------------
# Full TransformerBlock forward
# ---------------------------------------------------------------------------
def transformer_block_forward(x, params, *, num_heads, mm_dtype=jnp.bfloat16):
    # mm_dtype=jnp.bfloat16 (default) uses the native MXU input type with f32 accumulation;
    # pass jnp.float32 for exact module numerics.  Elementwise math is always f32.
    B, C, H, W, D = x.shape
    N = H * W * D
    assert C % num_heads == 0
    # TODO(synk): folding torch's x_SA permute(0,3,1,2).reshape(B,N,C) into the mvsa_p weights
    #             assumes N % C == 0 (true for all UNETR++/PECA_Net stages).
    assert N % C == 0

    x_tok = jnp.transpose(x.reshape(B, C, N), (0, 2, 1)).astype(jnp.float32)   # (B, N, C); pos_embed=False
    kc = prepare_kernel_constants(params, num_heads=num_heads, H=H, W=W, D=D, mm_dtype=mm_dtype)

    c51, c52 = kc["conv51"], kc["conv52"]
    consts = [
        kc["ln_w"], kc["ln_b"], kc["gamma"],
        kc["wq_t"], kc["mkn"], kc["tvec1"], kc["ones_ca"], kc["mvca_t"],
        kc["wsa_bd"], kc["ones_sa"], kc["mvsa_p"],
        kc["w_all"], kc["b_all"],
        kc["wsse_full"], kc["wsq_full"], kc["wex_full"],
        kc["base_row"], kc["sa2_row"], kc["ca2_row"],
        kc["maskslab"],
        c51["w1"], c51["s1"], c51["b1"], c51["w2"], c51["s2"], c51["b2"],
        c52["w1"], c52["s1"], c52["b1"], c52["w2"], c52["s2"], c52["b2"],
        kc["w8_t"], kc["b8"],
    ]

    pad = W * D + D + 1
    tok = pl.BlockSpec((1, N, C), lambda b: (b, 0, 0))
    kernel = functools.partial(_block_kernel, num_heads=num_heads, head_dim=C // num_heads,
                               n_tok_blocks=N // C, H=H, W=W, D=D, mm_dtype=mm_dtype)
    # NOTE: batch axis is "parallel" (megacore-shardable on v7x). For B == 1 on v7x, add a
    # parallel token-tile axis; constants could also be single-buffered (pl.Buffered(1)) when
    # channel counts grow and VMEM gets tight.
    out_tok = pl.pallas_call(
        kernel,
        out_shape=jax.ShapeDtypeStruct((B, N, C), jnp.float32),
        grid=(B,),
        in_specs=[tok] + [_const_spec(a) for a in consts],
        out_specs=tok,
        scratch_shapes=[pltpu.VMEM((N + 2 * pad, C), jnp.float32)],
        compiler_params=pltpu.CompilerParams(dimension_semantics=("parallel",)),
    )(x_tok, *consts)

    return jnp.transpose(out_tok.reshape(B, H, W, D, C), (0, 4, 1, 2, 3))


# ---------------------------------------------------------------------------
# Deterministic synthetic parameters (module-like layout)
# ---------------------------------------------------------------------------
def init_params(key, *, input_size, hidden_size, proj_size, num_heads):
    C, Nin, P = hidden_size, input_size, proj_size
    d = C // num_heads
    c4, c8 = C // 4, C // 8
    ks = iter(jax.random.split(key, 40))

    def rnd(shape, s=0.02):
        return (s * jax.random.normal(next(ks), shape)).astype(jnp.float32)

    def bn():
        return dict(weight=jnp.ones((C,), jnp.float32), bias=jnp.zeros((C,), jnp.float32),
                    running_mean=jnp.zeros((C,), jnp.float32),
                    running_var=jnp.ones((C,), jnp.float32))

    def res_block():
        return dict(w1=rnd((C, C, 3, 3, 3), 0.05), bn1=bn(),
                    w2=rnd((C, C, 3, 3, 3), 0.05), bn2=bn())

    return dict(
        ln_w=jnp.ones((C,), jnp.float32), ln_b=jnp.zeros((C,), jnp.float32),
        gamma=1e-6 * jnp.ones((C,), jnp.float32),
        M_k=rnd((d, Nin), 0.01), M_v_CA=rnd((d, Nin), 0.01), M_v_SA=rnd((d, P), 0.01),
        temperature=jnp.ones((num_heads,), jnp.float32),
        temperature2=jnp.ones((num_heads,), jnp.float32),
        w_qkvv=rnd((C, C)),
        w_E=rnd((P, Nin)), b_E=rnd((P,)),
        w_out1=rnd((c4, C)), b_out1=rnd((c4,)),
        w_out2=rnd((c4, C)), b_out2=rnd((c4,)),
        w_out3=rnd((c4, C)), b_out3=rnd((c4,)),
        w_out4=rnd((c4, C)), b_out4=rnd((c4,)),
        w_sse=rnd((c4,)),
        w_sq=rnd((c8, c4)), w_ex=rnd((c4, c8)),
        conv51=res_block(), conv52=res_block(),
        w8=rnd((C, C)), b8=rnd((C,)),
    )


if __name__ == "__main__":
    # hidden_size=32, num_heads=4, proj_size=16, input_size=H*W*D=64
    B, C, H, W, D = 2, 32, 4, 4, 4
    num_heads, proj_size = 4, 16

    key = jax.random.PRNGKey(0)
    kx, kp = jax.random.split(key)
    x = jax.random.normal(kx, (B, C, H, W, D), dtype=jnp.float32)
    params = init_params(kp, input_size=H * W * D, hidden_size=C,
                         proj_size=proj_size, num_heads=num_heads)

    fwd = jax.jit(functools.partial(transformer_block_forward, num_heads=num_heads))
    out = fwd(x, params)
    jax.block_until_ready(out)
    assert out.shape == (B, C, H, W, D) and out.dtype == jnp.float32
    assert bool(jnp.all(jnp.isfinite(out)))
    print("KERNEL_OK")
</pallas_src>

<mosaic_0001>
module attributes {stable_mosaic.version = 11 : i64} {
  func.func @_block_kernel(%arg0: i32, %arg1: memref<1x64x32xf32, #tpu.memory_space<vmem>>, %arg2: memref<1x32xf32, #tpu.memory_space<vmem>>, %arg3: memref<1x32xf32, #tpu.memory_space<vmem>>, %arg4: memref<1x32xf32, #tpu.memory_space<vmem>>, %arg5: memref<32x32xbf16, #tpu.memory_space<vmem>>, %arg6: memref<8x64xbf16, #tpu.memory_space<vmem>>, %arg7: memref<1x32xf32, #tpu.memory_space<vmem>>, %arg8: memref<32x32xf32, #tpu.memory_space<vmem>>, %arg9: memref<64x8xbf16, #tpu.memory_space<vmem>>, %arg10: memref<32x64xbf16, #tpu.memory_space<vmem>>, %arg11: memref<64x64xf32, #tpu.memory_space<vmem>>, %arg12: memref<2x64x64xbf16, #tpu.memory_space<vmem>>, %arg13: memref<96x32xbf16, #tpu.memory_space<vmem>>, %arg14: memref<1x32xf32, #tpu.memory_space<vmem>>, %arg15: memref<1x32xf32, #tpu.memory_space<vmem>>, %arg16: memref<4x32xf32, #tpu.memory_space<vmem>>, %arg17: memref<4x32xf32, #tpu.memory_space<vmem>>, %arg18: memref<1x32xf32, #tpu.memory_space<vmem>>, %arg19: memref<1x32xf32, #tpu.memory_space<vmem>>, %arg20: memref<1x32xf32, #tpu.memory_space<vmem>>, %arg21: memref<64x864xf32, #tpu.memory_space<vmem>>, %arg22: memref<864x32xbf16, #tpu.memory_space<vmem>>, %arg23: memref<1x32xf32, #tpu.memory_space<vmem>>, %arg24: memref<1x32xf32, #tpu.memory_space<vmem>>, %arg25: memref<864x32xbf16, #tpu.memory_space<vmem>>, %arg26: memref<1x32xf32, #tpu.memory_space<vmem>>, %arg27: memref<1x32xf32, #tpu.memory_space<vmem>>, %arg28: memref<864x32xbf16, #tpu.memory_space<vmem>>, %arg29: memref<1x32xf32, #tpu.memory_space<vmem>>, %arg30: memref<1x32xf32, #tpu.memory_space<vmem>>, %arg31: memref<864x32xbf16, #tpu.memory_space<vmem>>, %arg32: memref<1x32xf32, #tpu.memory_space<vmem>>, %arg33: memref<1x32xf32, #tpu.memory_space<vmem>>, %arg34: memref<32x32xbf16, #tpu.memory_space<vmem>>, %arg35: memref<1x32xf32, #tpu.memory_space<vmem>>, %arg36: memref<1x64x32xf32, #tpu.memory_space<vmem>>, %arg37: memref<106x32xf32, #tpu.memory_space<vmem>>) attributes {dimension_semantics = [#tpu.dimension_semantics<parallel>], iteration_bounds = array<i64: 2>, scalar_prefetch = 0 : i64, scratch_operands = 1 : i64, tpu.core_type = #tpu.core_type<tc>, window_params = [{transform_indices = @transform_0, window_bounds = array<i64: 1, 64, 32>}, {pipeline_mode = #tpu.pipeline_mode<synchronous>, transform_indices = @transform_1, window_bounds = array<i64: 1, 32>}, {pipeline_mode = #tpu.pipeline_mode<synchronous>, transform_indices = @transform_2, window_bounds = array<i64: 1, 32>}, {pipeline_mode = #tpu.pipeline_mode<synchronous>, transform_indices = @transform_3, window_bounds = array<i64: 1, 32>}, {pipeline_mode = #tpu.pipeline_mode<synchronous>, transform_indices = @transform_4, window_bounds = array<i64: 32, 32>}, {pipeline_mode = #tpu.pipeline_mode<synchronous>, transform_indices = @transform_5, window_bounds = array<i64: 8, 64>}, {pipeline_mode = #tpu.pipeline_mode<synchronous>, transform_indices = @transform_6, window_bounds = array<i64: 1, 32>}, {pipeline_mode = #tpu.pipeline_mode<synchronous>, transform_indices = @transform_7, window_bounds = array<i64: 32, 32>}, {pipeline_mode = #tpu.pipeline_mode<synchronous>, transform_indices = @transform_8, window_bounds = array<i64: 64, 8>}, {pipeline_mode = #tpu.pipeline_mode<synchronous>, transform_indices = @transform_9, window_bounds = array<i64: 32, 64>}, {pipeline_mode = #tpu.pipeline_mode<synchronous>, transform_indices = @transform_10, window_bounds = array<i64: 64, 64>}, {pipeline_mode = #tpu.pipeline_mode<synchronous>, transform_indices = @transform_11, window_bounds = array<i64: 2, 64, 64>}, {pipeline_mode = #tpu.pipeline_mode<synchronous>, transform_indices = @transform_12, window_bounds = array<i64: 96, 32>}, {pipeline_mode = #tpu.pipeline_mode<synchronous>, transform_indices = @transform_13, window_bounds = array<i64: 1, 32>}, {pipeline_mode = #tpu.pipeline_mode<synchronous>, transform_indices = @transform_14, window_bounds = array<i64: 1, 32>}, {pipeline_mode = #tpu.pipeline_mode<synchronous>, transform_indices = @transform_15, window_bounds = array<i64: 4, 32>}, {pipeline_mode = #tpu.pipeline_mode<synchronous>, transform_indices = @transform_16, window_bounds = array<i64: 4, 32>}, {pipeline_mode = #tpu.pipeline_mode<synchronous>, transform_indices = @transform_17, window_bounds = array<i64: 1, 32>}, {pipeline_mode = #tpu.pipeline_mode<synchronous>, transform_indices = @transform_18, window_bounds = array<i64: 1, 32>}, {pipeline_mode = #tpu.pipeline_mode<synchronous>, transform_indices = @transform_19, window_bounds = array<i64: 1, 32>}, {pipeline_mode = #tpu.pipeline_mode<synchronous>, transform_indices = @transform_20, window_bounds = array<i64: 64, 864>}, {pipeline_mode = #tpu.pipeline_mode<synchronous>, transform_indices = @transform_21, window_bounds = array<i64: 864, 32>}, {pipeline_mode = #tpu.pipeline_mode<synchronous>, transform_indices = @transform_22, window_bounds = array<i64: 1, 32>}, {pipeline_mode = #tpu.pipeline_mode<synchronous>, transform_indices = @transform_23, window_bounds = array<i64: 1, 32>}, {pipeline_mode = #tpu.pipeline_mode<synchronous>, transform_indices = @transform_24, window_bounds = array<i64: 864, 32>}, {pipeline_mode = #tpu.pipeline_mode<synchronous>, transform_indices = @transform_25, window_bounds = array<i64: 1, 32>}, {pipeline_mode = #tpu.pipeline_mode<synchronous>, transform_indices = @transform_26, window_bounds = array<i64: 1, 32>}, {pipeline_mode = #tpu.pipeline_mode<synchronous>, transform_indices = @transform_27, window_bounds = array<i64: 864, 32>}, {pipeline_mode = #tpu.pipeline_mode<synchronous>, transform_indices = @transform_28, window_bounds = array<i64: 1, 32>}, {pipeline_mode = #tpu.pipeline_mode<synchronous>, transform_indices = @transform_29, window_bounds = array<i64: 1, 32>}, {pipeline_mode = #tpu.pipeline_mode<synchronous>, transform_indices = @transform_30, window_bounds = array<i64: 864, 32>}, {pipeline_mode = #tpu.pipeline_mode<synchronous>, transform_indices = @transform_31, window_bounds = array<i64: 1, 32>}, {pipeline_mode = #tpu.pipeline_mode<synchronous>, transform_indices = @transform_32, window_bounds = array<i64: 1, 32>}, {pipeline_mode = #tpu.pipeline_mode<synchronous>, transform_indices = @transform_33, window_bounds = array<i64: 32, 32>}, {pipeline_mode = #tpu.pipeline_mode<synchronous>, transform_indices = @transform_34, window_bounds = array<i64: 1, 32>}, {transform_indices = @transform_35, window_bounds = array<i64: 1, 64, 32>}]} {
    %c0 = arith.constant 0 : index
    %c0_0 = arith.constant 0 : index
    %c0_1 = arith.constant 0 : index
    %0 = vector.load %arg1[%c0, %c0_0, %c0_1] : memref<1x64x32xf32, #tpu.memory_space<vmem>>, vector<1x64x32xf32>
    %1 = vector.shape_cast %0 : vector<1x64x32xf32> to vector<64x32xf32>
    %cst = arith.constant dense<0.000000e+00> : vector<64xf32>
    %2 = vector.multi_reduction <add>, %1, %cst [1] : vector<64x32xf32> to vector<64xf32>
    %3 = vector.shape_cast %2 : vector<64xf32> to vector<64x1xf32>
    %cst_2 = arith.constant 3.200000e+01 : f32
    %4 = vector.broadcast %cst_2 : f32 to vector<64x1xf32>
    %5 = arith.divf %3, %4 : vector<64x1xf32>
    %6 = vector.broadcast %5 : vector<64x1xf32> to vector<64x32xf32>
    %7 = arith.subf %1, %6 : vector<64x32xf32>
    %8 = arith.mulf %7, %7 : vector<64x32xf32>
    %cst_3 = arith.constant dense<0.000000e+00> : vector<64xf32>
    %9 = vector.multi_reduction <add>, %8, %cst_3 [1] : vector<64x32xf32> to vector<64xf32>
    %10 = vector.shape_cast %9 : vector<64xf32> to vector<64x1xf32>
    %cst_4 = arith.constant 3.200000e+01 : f32
    %11 = vector.broadcast %cst_4 : f32 to vector<64x1xf32>
    %12 = arith.divf %10, %11 : vector<64x1xf32>
    %13 = vector.broadcast %5 : vector<64x1xf32> to vector<64x32xf32>
    %14 = arith.subf %1, %13 : vector<64x32xf32>
    %cst_5 = arith.constant 9.99999974E-6 : f32
    %15 = vector.broadcast %cst_5 : f32 to vector<64x1xf32>
    %16 = arith.addf %12, %15 : vector<64x1xf32>
    %17 = math.rsqrt %16 : vector<64x1xf32>
    %18 = vector.broadcast %17 : vector<64x1xf32> to vector<64x32xf32>
    %19 = arith.mulf %14, %18 : vector<64x32xf32>
    %c0_6 = arith.constant 0 : index
    %c0_7 = arith.constant 0 : index
    %20 = vector.load %arg2[%c0_6, %c0_7] : memref<1x32xf32, #tpu.memory_space<vmem>>, vector<1x32xf32>
    %21 = vector.broadcast %20 : vector<1x32xf32> to vector<64x32xf32>
    %22 = arith.mulf %19, %21 : vector<64x32xf32>
    %c0_8 = arith.constant 0 : index
    %c0_9 = arith.constant 0 : index
    %23 = vector.load %arg3[%c0_8, %c0_9] : memref<1x32xf32, #tpu.memory_space<vmem>>, vector<1x32xf32>
    %24 = vector.broadcast %23 : vector<1x32xf32> to vector<64x32xf32>
    %25 = arith.addf %22, %24 : vector<64x32xf32>
    %c0_10 = arith.constant 0 : index
    %c0_11 = arith.constant 0 : index
    %26 = vector.load %arg5[%c0_10, %c0_11] : memref<32x32xbf16, #tpu.memory_space<vmem>>, vector<32x32xbf16>
    %27 = arith.truncf %25 : vector<64x32xf32> to vector<64x32xbf16>
    %cst_12 = arith.constant dense<0.000000e+00> : vector<64x32xf32>
    %28 = tpu.matmul %27, %26, %cst_12 {dimension_numbers = #tpu.dot_dimension_numbers<[1], [0], [0], [1], [0, 0, 1, 1], [], []>} : vector<64x32xbf16>, vector<32x32xbf16>, vector<64x32xf32> -> vector<64x32xf32>
    %29 = arith.mulf %28, %28 : vector<64x32xf32>
    %cst_13 = arith.constant dense<0.000000e+00> : vector<32xf32>
    %30 = vector.multi_reduction <add>, %29, %cst_13 [0] : vector<64x32xf32> to vector<32xf32>
    %31 = vector.shape_cast %30 : vector<32xf32> to vector<1x32xf32>
    %32 = math.sqrt %31 : vector<1x32xf32>
    %cst_14 = arith.constant 9.99999996E-13 : f32
    %33 = vector.broadcast %cst_14 : f32 to vector<1x32xf32>
    %34 = arith.maximumf %32, %33 : vector<1x32xf32>
    %35 = vector.broadcast %34 : vector<1x32xf32> to vector<64x32xf32>
    %36 = arith.divf %28, %35 : vector<64x32xf32>
    %c0_15 = arith.constant 0 : index
    %c0_16 = arith.constant 0 : index
    %37 = vector.load %arg6[%c0_15, %c0_16] : memref<8x64xbf16, #tpu.memory_space<vmem>>, vector<8x64xbf16>
    %38 = arith.truncf %36 : vector<64x32xf32> to vector<64x32xbf16>
    %cst_17 = arith.constant dense<0.000000e+00> : vector<8x32xf32>
    %39 = tpu.matmul %37, %38, %cst_17 {dimension_numbers = #tpu.dot_dimension_numbers<[1], [0], [0], [1], [0, 0, 1, 1], [], []>} : vector<8x64xbf16>, vector<64x32xbf16>, vector<8x32xf32> -> vector<8x32xf32>
    %c0_18 = arith.constant 0 : index
    %c0_19 = arith.constant 0 : index
    %40 = vector.load %arg7[%c0_18, %c0_19] : memref<1x32xf32, #tpu.memory_space<vmem>>, vector<1x32xf32>
    %41 = vector.broadcast %40 : vector<1x32xf32> to vector<8x32xf32>
    %42 = arith.mulf %39, %41 : vector<8x32xf32>
    %cst_20 = arith.constant dense<0xFF800000> : vector<8xf32>
    %43 = vector.multi_reduction <maximumf>, %42, %cst_20 [1] : vector<8x32xf32> to vector<8xf32>
    %44 = vector.shape_cast %43 : vector<8xf32> to vector<8x1xf32>
    %45 = vector.broadcast %44 : vector<8x1xf32> to vector<8x32xf32>
    %46 = arith.subf %42, %45 : vector<8x32xf32>
    %47 = math.exp %46 : vector<8x32xf32>
    %c0_21 = arith.constant 0 : index
    %c0_22 = arith.constant 0 : index
    %48 = vector.load %arg8[%c0_21, %c0_22] : memref<32x32xf32, #tpu.memory_space<vmem>>, vector<32x32xf32>
    %cst_23 = arith.constant dense<0.000000e+00> : vector<8x32xf32>
    %49 = tpu.matmul %47, %48, %cst_23 {dimension_numbers = #tpu.dot_dimension_numbers<[1], [0], [0], [1], [0, 0, 1, 1], [], []>} : vector<8x32xf32>, vector<32x32xf32>, vector<8x32xf32> -> vector<8x32xf32>
    %50 = arith.divf %47, %49 : vector<8x32xf32>
    %cst_24 = arith.constant dense<0.000000e+00> : vector<32xf32>
    %51 = vector.multi_reduction <add>, %50, %cst_24 [0] : vector<8x32xf32> to vector<32xf32>
    %52 = vector.shape_cast %51 : vector<32xf32> to vector<1x32xf32>
    %cst_25 = arith.constant 9.99999971E-10 : f32
    %53 = vector.broadcast %cst_25 : f32 to vector<1x32xf32>
    %54 = arith.addf %53, %52 : vector<1x32xf32>
    %55 = vector.broadcast %54 : vector<1x32xf32> to vector<8x32xf32>
    %56 = arith.divf %50, %55 : vector<8x32xf32>
    %c0_26 = arith.constant 0 : index
    %c0_27 = arith.constant 0 : index
    %57 = vector.load %arg9[%c0_26, %c0_27] : memref<64x8xbf16, #tpu.memory_space<vmem>>, vector<64x8xbf16>
    %58 = arith.truncf %56 : vector<8x32xf32> to vector<8x32xbf16>
    %cst_28 = arith.constant dense<0.000000e+00> : vector<64x32xf32>
    %59 = tpu.matmul %57, %58, %cst_28 {dimension_numbers = #tpu.dot_dimension_numbers<[1], [0], [0], [1], [0, 0, 1, 1], [], []>} : vector<64x8xbf16>, vector<8x32xbf16>, vector<64x32xf32> -> vector<64x32xf32>
    %c0_29 = arith.constant 0 : index
    %c0_30 = arith.constant 0 : index
    %60 = vector.load %arg10[%c0_29, %c0_30] : memref<32x64xbf16, #tpu.memory_space<vmem>>, vector<32x64xbf16>
    %61 = arith.truncf %36 : vector<64x32xf32> to vector<64x32xbf16>
    %cst_31 = arith.constant dense<0.000000e+00> : vector<64x64xf32>
    %62 = tpu.matmul %61, %60, %cst_31 {dimension_numbers = #tpu.dot_dimension_numbers<[1], [0], [0], [1], [0, 0, 1, 1], [], []>} : vector<64x32xbf16>, vector<32x64xbf16>, vector<64x64xf32> -> vector<64x64xf32>
    %cst_32 = arith.constant dense<0xFF800000> : vector<64xf32>
    %63 = vector.multi_reduction <maximumf>, %62, %cst_32 [0] : vector<64x64xf32> to vector<64xf32>
    %64 = vector.shape_cast %63 : vector<64xf32> to vector<1x64xf32>
    %65 = vector.broadcast %64 : vector<1x64xf32> to vector<64x64xf32>
    %66 = arith.subf %62, %65 : vector<64x64xf32>
    %67 = math.exp %66 : vector<64x64xf32>
    %cst_33 = arith.constant dense<0.000000e+00> : vector<64xf32>
    %68 = vector.multi_reduction <add>, %67, %cst_33 [0] : vector<64x64xf32> to vector<64xf32>
    %69 = vector.shape_cast %68 : vector<64xf32> to vector<1x64xf32>
    %70 = vector.broadcast %69 : vector<1x64xf32> to vector<64x64xf32>
    %71 = arith.divf %67, %70 : vector<64x64xf32>
    %c0_34 = arith.constant 0 : index
    %c0_35 = arith.constant 0 : index
    %72 = vector.load %arg11[%c0_34, %c0_35] : memref<64x64xf32, #tpu.memory_space<vmem>>, vector<64x64xf32>
    %cst_36 = arith.constant dense<0.000000e+00> : vector<64x64xf32>
    %73 = tpu.matmul %71, %72, %cst_36 {dimension_numbers = #tpu.dot_dimension_numbers<[1], [0], [0], [1], [0, 0, 1, 1], [], []>} : vector<64x64xf32>, vector<64x64xf32>, vector<64x64xf32> -> vector<64x64xf32>
    %cst_37 = arith.constant 9.99999971E-10 : f32
    %74 = vector.broadcast %cst_37 : f32 to vector<64x64xf32>
    %75 = arith.addf %74, %73 : vector<64x64xf32>
    %76 = arith.divf %71, %75 : vector<64x64xf32>
    %c0_38 = arith.constant 0 : index
    %c0_39 = arith.constant 0 : index
    %c0_40 = arith.constant 0 : index
    %77 = vector.load %arg12[%c0_38, %c0_39, %c0_40] : memref<2x64x64xbf16, #tpu.memory_space<vmem>>, vector<1x64x64xbf16>
    %78 = vector.shape_cast %77 : vector<1x64x64xbf16> to vector<64x64xbf16>
    %79 = vector.extract_strided_slice %76 {offsets = [0, 0], sizes = [32, 64], strides = [1, 1]} : vector<64x64xf32> to vector<32x64xf32>
    %80 = arith.truncf %79 : vector<32x64xf32> to vector<32x64xbf16>
    %cst_41 = arith.constant dense<0.000000e+00> : vector<64x32xf32>
    %81 = tpu.matmul %78, %80, %cst_41 {dimension_numbers = #tpu.dot_dimension_numbers<[0], [1], [1], [0], [0, 1, 1, 0], [], []>} : vector<64x64xbf16>, vector<32x64xbf16>, vector<64x32xf32> -> vector<64x32xf32>
    %c1 = arith.constant 1 : index
    %c0_42 = arith.constant 0 : index
    %c0_43 = arith.constant 0 : index
    %82 = vector.load %arg12[%c1, %c0_42, %c0_43] : memref<2x64x64xbf16, #tpu.memory_space<vmem>>, vector<1x64x64xbf16>
    %83 = vector.shape_cast %82 : vector<1x64x64xbf16> to vector<64x64xbf16>
    %84 = vector.extract_strided_slice %76 {offsets = [32, 0], sizes = [32, 64], strides = [1, 1]} : vector<64x64xf32> to vector<32x64xf32>
    %85 = arith.truncf %84 : vector<32x64xf32> to vector<32x64xbf16>
    %cst_44 = arith.constant dense<0.000000e+00> : vector<64x32xf32>
    %86 = tpu.matmul %83, %85, %cst_44 {dimension_numbers = #tpu.dot_dimension_numbers<[0], [1], [1], [0], [0, 1, 1, 0], [], []>} : vector<64x64xbf16>, vector<32x64xbf16>, vector<64x32xf32> -> vector<64x32xf32>
    %87 = arith.addf %81, %86 : vector<64x32xf32>
    %88 = tpu.concatenate %87, %59, %25 in 1 : vector<64x32xf32>, vector<64x32xf32>, vector<64x32xf32> -> vector<64x96xf32>
    %c0_45 = arith.constant 0 : index
    %c0_46 = arith.constant 0 : index
    %89 = vector.load %arg13[%c0_45, %c0_46] : memref<96x32xbf16, #tpu.memory_space<vmem>>, vector<96x32xbf16>
    %90 = arith.truncf %88 : vector<64x96xf32> to vector<64x96xbf16>
    %cst_47 = arith.constant dense<0.000000e+00> : vector<64x32xf32>
    %91 = tpu.matmul %90, %89, %cst_47 {dimension_numbers = #tpu.dot_dimension_numbers<[1], [0], [0], [1], [0, 0, 1, 1], [], []>} : vector<64x96xbf16>, vector<96x32xbf16>, vector<64x32xf32> -> vector<64x32xf32>
    %c0_48 = arith.constant 0 : index
    %c0_49 = arith.constant 0 : index
    %92 = vector.load %arg14[%c0_48, %c0_49] : memref<1x32xf32, #tpu.memory_space<vmem>>, vector<1x32xf32>
    %93 = vector.broadcast %92 : vector<1x32xf32> to vector<64x32xf32>
    %94 = arith.addf %91, %93 : vector<64x32xf32>
    %c0_50 = arith.constant 0 : index
    %c0_51 = arith.constant 0 : index
    %95 = vector.load %arg15[%c0_50, %c0_51] : memref<1x32xf32, #tpu.memory_space<vmem>>, vector<1x32xf32>
    %96 = vector.broadcast %95 : vector<1x32xf32> to vector<64x32xf32>
    %97 = arith.mulf %94, %96 : vector<64x32xf32>
    %cst_52 = arith.constant dense<0.000000e+00> : vector<64xf32>
    %98 = vector.multi_reduction <add>, %97, %cst_52 [1] : vector<64x32xf32> to vector<64xf32>
    %99 = vector.shape_cast %98 : vector<64xf32> to vector<64x1xf32>
    %100 = arith.negf %99 : vector<64x1xf32>
    %101 = math.exp %100 : vector<64x1xf32>
    %cst_53 = arith.constant 1.000000e+00 : f32
    %102 = vector.broadcast %cst_53 : f32 to vector<64x1xf32>
    %103 = arith.addf %102, %101 : vector<64x1xf32>
    %104 = arith.divf %102, %103 : vector<64x1xf32>
    %cst_54 = arith.constant dense<0.000000e+00> : vector<32xf32>
    %105 = vector.multi_reduction <add>, %94, %cst_54 [0] : vector<64x32xf32> to vector<32xf32>
    %106 = vector.shape_cast %105 : vector<32xf32> to vector<1x32xf32>
    %cst_55 = arith.constant 6.400000e+01 : f32
    %107 = vector.broadcast %cst_55 : f32 to vector<1x32xf32>
    %108 = arith.divf %106, %107 : vector<1x32xf32>
    %c0_56 = arith.constant 0 : index
    %c0_57 = arith.constant 0 : index
    %109 = vector.load %arg16[%c0_56, %c0_57] : memref<4x32xf32, #tpu.memory_space<vmem>>, vector<4x32xf32>
    %110 = vector.broadcast %108 : vector<1x32xf32> to vector<4x32xf32>
    %111 = arith.mulf %109, %110 : vector<4x32xf32>
    %cst_58 = arith.constant dense<0.000000e+00> : vector<4xf32>
    %112 = vector.multi_reduction <add>, %111, %cst_58 [1] : vector<4x32xf32> to vector<4xf32>
    %113 = vector.shape_cast %112 : vector<4xf32> to vector<4x1xf32>
    %c0_59 = arith.constant 0 : index
    %c0_60 = arith.constant 0 : index
    %114 = vector.load %arg17[%c0_59, %c0_60] : memref<4x32xf32, #tpu.memory_space<vmem>>, vector<4x32xf32>
    %115 = vector.broadcast %113 : vector<4x1xf32> to vector<4x32xf32>
    %116 = arith.mulf %114, %115 : vector<4x32xf32>
    %cst_61 = arith.constant dense<0.000000e+00> : vector<32xf32>
    %117 = vector.multi_reduction <add>, %116, %cst_61 [0] : vector<4x32xf32> to vector<32xf32>
    %118 = vector.shape_cast %117 : vector<32xf32> to vector<1x32xf32>
    %c0_62 = arith.constant 0 : index
    %c0_63 = arith.constant 0 : index
    %119 = vector.load %arg18[%c0_62, %c0_63] : memref<1x32xf32, #tpu.memory_space<vmem>>, vector<1x32xf32>
    %c0_64 = arith.constant 0 : index
    %c0_65 = arith.constant 0 : index
    %120 = vector.load %arg19[%c0_64, %c0_65] : memref<1x32xf32, #tpu.memory_space<vmem>>, vector<1x32xf32>
    %121 = vector.broadcast %120 : vector<1x32xf32> to vector<64x32xf32>
    %122 = vector.broadcast %104 : vector<64x1xf32> to vector<64x32xf32>
    %123 = arith.mulf %121, %122 : vector<64x32xf32>
    %124 = vector.broadcast %119 : vector<1x32xf32> to vector<64x32xf32>
    %125 = arith.addf %124, %123 : vector<64x32xf32>
    %c0_66 = arith.constant 0 : index
    %c0_67 = arith.constant 0 : index
    %126 = vector.load %arg20[%c0_66, %c0_67] : memref<1x32xf32, #tpu.memory_space<vmem>>, vector<1x32xf32>
    %127 = arith.negf %118 : vector<1x32xf32>
    %128 = math.exp %127 : vector<1x32xf32>
    %cst_68 = arith.constant 1.000000e+00 : f32
    %129 = vector.broadcast %cst_68 : f32 to vector<1x32xf32>
    %130 = arith.addf %129, %128 : vector<1x32xf32>
    %131 = arith.divf %129, %130 : vector<1x32xf32>
    %132 = arith.mulf %126, %131 : vector<1x32xf32>
    %133 = vector.broadcast %132 : vector<1x32xf32> to vector<64x32xf32>
    %134 = arith.addf %125, %133 : vector<64x32xf32>
    %c0_69 = arith.constant 0 : index
    %c0_70 = arith.constant 0 : index
    %135 = vector.load %arg4[%c0_69, %c0_70] : memref<1x32xf32, #tpu.memory_space<vmem>>, vector<1x32xf32>
    %136 = arith.mulf %94, %134 : vector<64x32xf32>
    %137 = vector.broadcast %135 : vector<1x32xf32> to vector<64x32xf32>
    %138 = arith.mulf %137, %136 : vector<64x32xf32>
    %139 = arith.addf %1, %138 : vector<64x32xf32>
    %c0_71 = arith.constant 0 : index
    %c0_72 = arith.constant 0 : index
    %140 = vector.load %arg21[%c0_71, %c0_72] : memref<64x864xf32, #tpu.memory_space<vmem>>, vector<64x864xf32>
    %cst_73 = arith.constant 0.000000e+00 : f32
    %141 = vector.broadcast %cst_73 : f32 to vector<106x32xf32>
    %c0_74 = arith.constant 0 : index
    %c0_75 = arith.constant 0 : index
    %142 = vector.load %arg37[%c0_74, %c0_75] : memref<106x32xf32, #tpu.memory_space<vmem>>, vector<106x32xf32>
    tpu.vector_store %arg37[%c0_74, %c0_75], %141 {strides = array<i32>} : memref<106x32xf32, #tpu.memory_space<vmem>>, vector<106x32xf32>,
    %c21 = arith.constant 21 : index
    %c0_76 = arith.constant 0 : index
    %143 = vector.load %arg37[%c21, %c0_76] : memref<106x32xf32, #tpu.memory_space<vmem>>, vector<64x32xf32>
    tpu.vector_store %arg37[%c21, %c0_76], %139 {strides = array<i32>} : memref<106x32xf32, #tpu.memory_space<vmem>>, vector<64x32xf32>,
    %c0_77 = arith.constant 0 : index
    %c0_78 = arith.constant 0 : index
    %144 = vector.load %arg37[%c0_77, %c0_78] : memref<106x32xf32, #tpu.memory_space<vmem>>, vector<64x32xf32>
    %c1_79 = arith.constant 1 : index
    %c0_80 = arith.constant 0 : index
    %145 = vector.load %arg37[%c1_79, %c0_80] : memref<106x32xf32, #tpu.memory_space<vmem>>, vector<64x32xf32>
    %c2 = arith.constant 2 : index
    %c0_81 = arith.constant 0 : index
    %146 = vector.load %arg37[%c2, %c0_81] : memref<106x32xf32, #tpu.memory_space<vmem>>, vector<64x32xf32>
    %c4 = arith.constant 4 : index
    %c0_82 = arith.constant 0 : index
    %147 = vector.load %arg37[%c4, %c0_82] : memref<106x32xf32, #tpu.memory_space<vmem>>, vector<64x32xf32>
    %c5 = arith.constant 5 : index
    %c0_83 = arith.constant 0 : index
    %148 = vector.load %arg37[%c5, %c0_83] : memref<106x32xf32, #tpu.memory_space<vmem>>, vector<64x32xf32>
    %c6 = arith.constant 6 : index
    %c0_84 = arith.constant 0 : index
    %149 = vector.load %arg37[%c6, %c0_84] : memref<106x32xf32, #tpu.memory_space<vmem>>, vector<64x32xf32>
    %c8 = arith.constant 8 : index
    %c0_85 = arith.constant 0 : index
    %150 = vector.load %arg37[%c8, %c0_85] : memref<106x32xf32, #tpu.memory_space<vmem>>, vector<64x32xf32>
    %c9 = arith.constant 9 : index
    %c0_86 = arith.constant 0 : index
    %151 = vector.load %arg37[%c9, %c0_86] : memref<106x32xf32, #tpu.memory_space<vmem>>, vector<64x32xf32>
    %c10 = arith.constant 10 : index
    %c0_87 = arith.constant 0 : index
    %152 = vector.load %arg37[%c10, %c0_87] : memref<106x32xf32, #tpu.memory_space<vmem>>, vector<64x32xf32>
    %c16 = arith.constant 16 : index
    %c0_88 = arith.constant 0 : index
    %153 = vector.load %arg37[%c16, %c0_88] : memref<106x32xf32, #tpu.memory_space<vmem>>, vector<64x32xf32>
    %c17 = arith.constant 17 : index
    %c0_89 = arith.constant 0 : index
    %154 = vector.load %arg37[%c17, %c0_89] : memref<106x32xf32, #tpu.memory_space<vmem>>, vector<64x32xf32>
    %c18 = arith.constant 18 : index
    %c0_90 = arith.constant 0 : index
    %155 = vector.load %arg37[%c18, %c0_90] : memref<106x32xf32, #tpu.memory_space<vmem>>, vector<64x32xf32>
    %c20 = arith.constant 20 : index
    %c0_91 = arith.constant 0 : index
    %156 = vector.load %arg37[%c20, %c0_91] : memref<106x32xf32, #tpu.memory_space<vmem>>, vector<64x32xf32>
    %c21_92 = arith.constant 21 : index
    %c0_93 = arith.constant 0 : index
    %157 = vector.load %arg37[%c21_92, %c0_93] : memref<106x32xf32, #tpu.memory_space<vmem>>, vector<64x32xf32>
    %c22 = arith.constant 22 : index
    %c0_94 = arith.constant 0 : index
    %158 = vector.load %arg37[%c22, %c0_94] : memref<106x32xf32, #tpu.memory_space<vmem>>, vector<64x32xf32>
    %c24 = arith.constant 24 : index
    %c0_95 = arith.constant 0 : index
    %159 = vector.load %arg37[%c24, %c0_95] : memref<106x32xf32, #tpu.memory_space<vmem>>, vector<64x32xf32>
    %c25 = arith.constant 25 : index
    %c0_96 = arith.constant 0 : index
    %160 = vector.load %arg37[%c25, %c0_96] : memref<106x32xf32, #tpu.memory_space<vmem>>, vector<64x32xf32>
    %c26 = arith.constant 26 : index
    %c0_97 = arith.constant 0 : index
    %161 = vector.load %arg37[%c26, %c0_97] : memref<106x32xf32, #tpu.memory_space<vmem>>, vector<64x32xf32>
    %c32 = arith.constant 32 : index
    %c0_98 = arith.constant 0 : index
    %162 = vector.load %arg37[%c32, %c0_98] : memref<106x32xf32, #tpu.memory_space<vmem>>, vector<64x32xf32>
    %c33 = arith.constant 33 : index
    %c0_99 = arith.constant 0 : index
    %163 = vector.load %arg37[%c33, %c0_99] : memref<106x32xf32, #tpu.memory_space<vmem>>, vector<64x32xf32>
    %c34 = arith.constant 34 : index
    %c0_100 = arith.constant 0 : index
    %164 = vector.load %arg37[%c34, %c0_100] : memref<106x32xf32, #tpu.memory_space<vmem>>, vector<64x32xf32>
    %c36 = arith.constant 36 : index
    %c0_101 = arith.constant 0 : index
    %165 = vector.load %arg37[%c36, %c0_101] : memref<106x32xf32, #tpu.memory_space<vmem>>, vector<64x32xf32>
    %c37 = arith.constant 37 : index
    %c0_102 = arith.constant 0 : index
    %166 = vector.load %arg37[%c37, %c0_102] : memref<106x32xf32, #tpu.memory_space<vmem>>, vector<64x32xf32>
    %c38 = arith.constant 38 : index
    %c0_103 = arith.constant 0 : index
    %167 = vector.load %arg37[%c38, %c0_103] : memref<106x32xf32, #tpu.memory_space<vmem>>, vector<64x32xf32>
    %c40 = arith.constant 40 : index
    %c0_104 = arith.constant 0 : index
    %168 = vector.load %arg37[%c40, %c0_104] : memref<106x32xf32, #tpu.memory_space<vmem>>, vector<64x32xf32>
    %c41 = arith.constant 41 : index
    %c0_105 = arith.constant 0 : index
    %169 = vector.load %arg37[%c41, %c0_105] : memref<106x32xf32, #tpu.memory_space<vmem>>, vector<64x32xf32>
    %c42 = arith.constant 42 : index
    %c0_106 = arith.constant 0 : index
    %170 = vector.load %arg37[%c42, %c0_106] : memref<106x32xf32, #tpu.memory_space<vmem>>, vector<64x32xf32>
    %171 = tpu.concatenate %144, %145, %146, %147, %148, %149, %150, %151, %152, %153, %154, %155, %156, %157, %158, %159 in 1 : vector<64x32xf32>, vector<64x32xf32>, vector<64x32xf32>, vector<64x32xf32>, vector<64x32xf32>, vector<64x32xf32>, vector<64x32xf32>, vector<64x32xf32>, vector<64x32xf32>, vector<64x32xf32>, vector<64x32xf32>, vector<64x32xf32>, vector<64x32xf32>, vector<64x32xf32>, vector<64x32xf32>, vector<64x32xf32> -> vector<64x512xf32>
    %172 = tpu.concatenate %160, %161, %162, %163, %164, %165, %166, %167, %168, %169, %170 in 1 : vector<64x32xf32>, vector<64x32xf32>, vector<64x32xf32>, vector<64x32xf32>, vector<64x32xf32>, vector<64x32xf32>, vector<64x32xf32>, vector<64x32xf32>, vector<64x32xf32>, vector<64x32xf32>, vector<64x32xf32> -> vector<64x352xf32>
    %173 = tpu.concatenate %171, %172 in 1 : vector<64x512xf32>, vector<64x352xf32> -> vector<64x864xf32>
    %174 = arith.mulf %173, %140 : vector<64x864xf32>
    %c0_107 = arith.constant 0 : index
    %c0_108 = arith.constant 0 : index
    %175 = vector.load %arg22[%c0_107, %c0_108] : memref<864x32xbf16, #tpu.memory_space<vmem>>, vector<864x32xbf16>
    %176 = arith.truncf %174 : vector<64x864xf32> to vector<64x864xbf16>
    %cst_109 = arith.constant dense<0.000000e+00> : vector<64x32xf32>
    %177 = tpu.matmul %176, %175, %cst_109 {dimension_numbers = #tpu.dot_dimension_numbers<[1], [0], [0], [1], [0, 0, 1, 1], [], []>} : vector<64x864xbf16>, vector<864x32xbf16>, vector<64x32xf32> -> vector<64x32xf32>
    %c0_110 = arith.constant 0 : index
    %c0_111 = arith.constant 0 : index
    %178 = vector.load %arg23[%c0_110, %c0_111] : memref<1x32xf32, #tpu.memory_space<vmem>>, vector<1x32xf32>
    %179 = vector.broadcast %178 : vector<1x32xf32> to vector<64x32xf32>
    %180 = arith.mulf %177, %179 : vector<64x32xf32>
    %c0_112 = arith.constant 0 : index
    %c0_113 = arith.constant 0 : index
    %181 = vector.load %arg24[%c0_112, %c0_113] : memref<1x32xf32, #tpu.memory_space<vmem>>, vector<1x32xf32>
    %182 = vector.broadcast %181 : vector<1x32xf32> to vector<64x32xf32>
    %183 = arith.addf %180, %182 : vector<64x32xf32>
    %cst_114 = arith.constant 0.000000e+00 : f32
    %184 = vector.broadcast %cst_114 : f32 to vector<64x32xf32>
    %185 = arith.cmpf oge, %183, %184 : vector<64x32xf32>
    %cst_115 = arith.constant 0.00999999977 : f32
    %186 = vector.broadcast %cst_115 : f32 to vector<64x32xf32>
    %187 = arith.mulf %186, %183 : vector<64x32xf32>
    %188 = arith.select %185, %183, %187 : vector<64x32xi1>, vector<64x32xf32>
    %c21_116 = arith.constant 21 : index
    %c0_117 = arith.constant 0 : index
    %189 = vector.load %arg37[%c21_116, %c0_117] : memref<106x32xf32, #tpu.memory_space<vmem>>, vector<64x32xf32>
    tpu.vector_store %arg37[%c21_116, %c0_117], %188 {strides = array<i32>} : memref<106x32xf32, #tpu.memory_space<vmem>>, vector<64x32xf32>,
    %c0_118 = arith.constant 0 : index
    %c0_119 = arith.constant 0 : index
    %190 = vector.load %arg37[%c0_118, %c0_119] : memref<106x32xf32, #tpu.memory_space<vmem>>, vector<64x32xf32>
    %c1_120 = arith.constant 1 : index
    %c0_121 = arith.constant 0 : index
    %191 = vector.load %arg37[%c1_120, %c0_121] : memref<106x32xf32, #tpu.memory_space<vmem>>, vector<64x32xf32>
    %c2_122 = arith.constant 2 : index
    %c0_123 = arith.constant 0 : index
    %192 = vector.load %arg37[%c2_122, %c0_123] : memref<106x32xf32, #tpu.memory_space<vmem>>, vector<64x32xf32>
    %c4_124 = arith.constant 4 : index
    %c0_125 = arith.constant 0 : index
    %193 = vector.load %arg37[%c4_124, %c0_125] : memref<106x32xf32, #tpu.memory_space<vmem>>, vector<64x32xf32>
    %c5_126 = arith.constant 5 : index
    %c0_127 = arith.constant 0 : index
    %194 = vector.load %arg37[%c5_126, %c0_127] : memref<106x32xf32, #tpu.memory_space<vmem>>, vector<64x32xf32>
    %c6_128 = arith.constant 6 : index
    %c0_129 = arith.constant 0 : index
    %195 = vector.load %arg37[%c6_128, %c0_129] : memref<106x32xf32, #tpu.memory_space<vmem>>, vector<64x32xf32>
    %c8_130 = arith.constant 8 : index
    %c0_131 = arith.constant 0 : index
    %196 = vector.load %arg37[%c8_130, %c0_131] : memref<106x32xf32, #tpu.memory_space<vmem>>, vector<64x32xf32>
    %c9_132 = arith.constant 9 : index
    %c0_133 = arith.constant 0 : index
    %197 = vector.load %arg37[%c9_132, %c0_133] : memref<106x32xf32, #tpu.memory_space<vmem>>, vector<64x32xf32>
    %c10_134 = arith.constant 10 : index
    %c0_135 = arith.constant 0 : index
    %198 = vector.load %arg37[%c10_134, %c0_135] : memref<106x32xf32, #tpu.memory_space<vmem>>, vector<64x32xf32>
    %c16_136 = arith.constant 16 : index
    %c0_137 = arith.constant 0 : index
    %199 = vector.load %arg37[%c16_136, %c0_137] : memref<106x32xf32, #tpu.memory_space<vmem>>, vector<64x32xf32>
    %c17_138 = arith.constant 17 : index
    %c0_139 = arith.constant 0 : index
    %200 = vector.load %arg37[%c17_138, %c0_139] : memref<106x32xf32, #tpu.memory_space<vmem>>, vector<64x32xf32>
    %c18_140 = arith.constant 18 : index
    %c0_141 = arith.constant 0 : index
    %201 = vector.load %arg37[%c18_140, %c0_141] : memref<106x32xf32, #tpu.memory_space<vmem>>, vector<64x32xf32>
    %c20_142 = arith.constant 20 : index
    %c0_143 = arith.constant 0 : index
    %202 = vector.load %arg37[%c20_142, %c0_143] : memref<106x32xf32, #tpu.memory_space<vmem>>, vector<64x32xf32>
    %c21_144 = arith.constant 21 : index
    %c0_145 = arith.constant 0 : index
    %203 = vector.load %arg37[%c21_144, %c0_145] : memref<106x32xf32, #tpu.memory_space<vmem>>, vector<64x32xf32>
    %c22_146 = arith.constant 22 : index
    %c0_147 = arith.constant 0 : index
    %204 = vector.load %arg37[%c22_146, %c0_147] : memref<106x32xf32, #tpu.memory_space<vmem>>, vector<64x32xf32>
    %c24_148 = arith.constant 24 : index
    %c0_149 = arith.constant 0 : index
    %205 = vector.load %arg37[%c24_148, %c0_149] : memref<106x32xf32, #tpu.memory_space<vmem>>, vector<64x32xf32>
    %c25_150 = arith.constant 25 : index
    %c0_151 = arith.constant 0 : index
    %206 = vector.load %arg37[%c25_150, %c0_151] : memref<106x32xf32, #tpu.memory_space<vmem>>, vector<64x32xf32>
    %c26_152 = arith.constant 26 : index
    %c0_153 = arith.constant 0 : index
    %207 = vector.load %arg37[%c26_152, %c0_153] : memref<106x32xf32, #tpu.memory_space<vmem>>, vector<64x32xf32>
    %c32_154 = arith.constant 32 : index
    %c0_155 = arith.constant 0 : index
    %208 = vector.load %arg37[%c32_154, %c0_155] : memref<106x32xf32, #tpu.memory_space<vmem>>, vector<64x32xf32>
    %c33_156 = arith.constant 33 : index
    %c0_157 = arith.constant 0 : index
    %209 = vector.load %arg37[%c33_156, %c0_157] : memref<106x32xf32, #tpu.memory_space<vmem>>, vector<64x32xf32>
    %c34_158 = arith.constant 34 : index
    %c0_159 = arith.constant 0 : index
    %210 = vector.load %arg37[%c34_158, %c0_159] : memref<106x32xf32, #tpu.memory_space<vmem>>, vector<64x32xf32>
    %c36_160 = arith.constant 36 : index
    %c0_161 = arith.constant 0 : index
    %211 = vector.load %arg37[%c36_160, %c0_161] : memref<106x32xf32, #tpu.memory_space<vmem>>, vector<64x32xf32>
    %c37_162 = arith.constant 37 : index
    %c0_163 = arith.constant 0 : index
    %212 = vector.load %arg37[%c37_162, %c0_163] : memref<106x32xf32, #tpu.memory_space<vmem>>, vector<64x32xf32>
    %c38_164 = arith.constant 38 : index
    %c0_165 = arith.constant 0 : index
    %213 = vector.load %arg37[%c38_164, %c0_165] : memref<106x32xf32, #tpu.memory_space<vmem>>, vector<64x32xf32>
    %c40_166 = arith.constant 40 : index
    %c0_167 = arith.constant 0 : index
    %214 = vector.load %arg37[%c40_166, %c0_167] : memref<106x32xf32, #tpu.memory_space<vmem>>, vector<64x32xf32>
    %c41_168 = arith.constant 41 : index
    %c0_169 = arith.constant 0 : index
    %215 = vector.load %arg37[%c41_168, %c0_169] : memref<106x32xf32, #tpu.memory_space<vmem>>, vector<64x32xf32>
    %c42_170 = arith.constant 42 : index
    %c0_171 = arith.constant 0 : index
    %216 = vector.load %arg37[%c42_170, %c0_171] : memref<106x32xf32, #tpu.memory_space<vmem>>, vector<64x32xf32>
    %217 = tpu.concatenate %190, %191, %192, %193, %194, %195, %196, %197, %198, %199, %200, %201, %202, %203, %204, %205 in 1 : vector<64x32xf32>, vector<64x32xf32>, vector<64x32xf32>, vector<64x32xf32>, vector<64x32xf32>, vector<64x32xf32>, vector<64x32xf32>, vector<64x32xf32>, vector<64x32xf32>, vector<64x32xf32>, vector<64x32xf32>, vector<64x32xf32>, vector<64x32xf32>, vector<64x32xf32>, vector<64x32xf32>, vector<64x32xf32> -> vector<64x512xf32>
    %218 = tpu.concatenate %206, %207, %208, %209, %210, %211, %212, %213, %214, %215, %216 in 1 : vector<64x32xf32>, vector<64x32xf32>, vector<64x32xf32>, vector<64x32xf32>, vector<64x32xf32>, vector<64x32xf32>, vector<64x32xf32>, vector<64x32xf32>, vector<64x32xf32>, vector<64x32xf32>, vector<64x32xf32> -> vector<64x352xf32>
    %219 = tpu.concatenate %217, %218 in 1 : vector<64x512xf32>, vector<64x352xf32> -> vector<64x864xf32>
    %220 = arith.mulf %219, %140 : vector<64x864xf32>
    %c0_172 = arith.constant 0 : index
    %c0_173 = arith.constant 0 : index
    %221 = vector.load %arg25[%c0_172, %c0_173] : memref<864x32xbf16, #tpu.memory_space<vmem>>, vector<864x32xbf16>
    %222 = arith.truncf %220 : vector<64x864xf32> to vector<64x864xbf16>
    %cst_174 = arith.constant dense<0.000000e+00> : vector<64x32xf32>
    %223 = tpu.matmul %222, %221, %cst_174 {dimension_numbers = #tpu.dot_dimension_numbers<[1], [0], [0], [1], [0, 0, 1, 1], [], []>} : vector<64x864xbf16>, vector<864x32xbf16>, vector<64x32xf32> -> vector<64x32xf32>
    %c0_175 = arith.constant 0 : index
    %c0_176 = arith.constant 0 : index
    %224 = vector.load %arg26[%c0_175, %c0_176] : memref<1x32xf32, #tpu.memory_space<vmem>>, vector<1x32xf32>
    %225 = vector.broadcast %224 : vector<1x32xf32> to vector<64x32xf32>
    %226 = arith.mulf %223, %225 : vector<64x32xf32>
    %c0_177 = arith.constant 0 : index
    %c0_178 = arith.constant 0 : index
    %227 = vector.load %arg27[%c0_177, %c0_178] : memref<1x32xf32, #tpu.memory_space<vmem>>, vector<1x32xf32>
    %228 = vector.broadcast %227 : vector<1x32xf32> to vector<64x32xf32>
    %229 = arith.addf %226, %228 : vector<64x32xf32>
    %230 = arith.addf %229, %139 : vector<64x32xf32>
    %cst_179 = arith.constant 0.000000e+00 : f32
    %231 = vector.broadcast %cst_179 : f32 to vector<64x32xf32>
    %232 = arith.cmpf oge, %230, %231 : vector<64x32xf32>
    %cst_180 = arith.constant 0.00999999977 : f32
    %233 = vector.broadcast %cst_180 : f32 to vector<64x32xf32>
    %234 = arith.mulf %233, %230 : vector<64x32xf32>
    %235 = arith.select %232, %230, %234 : vector<64x32xi1>, vector<64x32xf32>
    %c21_181 = arith.constant 21 : index
    %c0_182 = arith.constant 0 : index
    %236 = vector.load %arg37[%c21_181, %c0_182] : memref<106x32xf32, #tpu.memory_space<vmem>>, vector<64x32xf32>
    tpu.vector_store %arg37[%c21_181, %c0_182], %235 {strides = array<i32>} : memref<106x32xf32, #tpu.memory_space<vmem>>, vector<64x32xf32>,
    %c0_183 = arith.constant 0 : index
    %c0_184 = arith.constant 0 : index
    %237 = vector.load %arg37[%c0_183, %c0_184] : memref<106x32xf32, #tpu.memory_space<vmem>>, vector<64x32xf32>
    %c1_185 = arith.constant 1 : index
    %c0_186 = arith.constant 0 : index
    %238 = vector.load %arg37[%c1_185, %c0_186] : memref<106x32xf32, #tpu.memory_space<vmem>>, vector<64x32xf32>
    %c2_187 = arith.constant 2 : index
    %c0_188 = arith.constant 0 : index
    %239 = vector.load %arg37[%c2_187, %c0_188] : memref<106x32xf32, #tpu.memory_space<vmem>>, vector<64x32xf32>
    %c4_189 = arith.constant 4 : index
    %c0_190 = arith.constant 0 : index
    %240 = vector.load %arg37[%c4_189, %c0_190] : memref<106x32xf32, #tpu.memory_space<vmem>>, vector<64x32xf32>
    %c5_191 = arith.constant 5 : index
    %c0_192 = arith.constant 0 : index
    %241 = vector.load %arg37[%c5_191, %c0_192] : memref<106x32xf32, #tpu.memory_space<vmem>>, vector<64x32xf32>
    %c6_193 = arith.constant 6 : index
    %c0_194 = arith.constant 0 : index
    %242 = vector.load %arg37[%c6_193, %c0_194] : memref<106x32xf32, #tpu.memory_space<vmem>>, vector<64x32xf32>
    %c8_195 = arith.constant 8 : index
    %c0_196 = arith.constant 0 : index
    %243 = vector.load %arg37[%c8_195, %c0_196] : memref<106x32xf32, #tpu.memory_space<vmem>>, vector<64x32xf32>
    %c9_197 = arith.constant 9 : index
    %c0_198 = arith.constant 0 : index
    %244 = vector.load %arg37[%c9_197, %c0_198] : memref<106x32xf32, #tpu.memory_space<vmem>>, vector<64x32xf32>
    %c10_199 = arith.constant 10 : index
    %c0_200 = arith.constant 0 : index
    %245 = vector.load %arg37[%c10_199, %c0_200] : memref<106x32xf32, #tpu.memory_space<vmem>>, vector<64x32xf32>
    %c16_201 = arith.constant 16 : index
    %c0_202 = arith.constant 0 : index
    %246 = vector.load %arg37[%c16_201, %c0_202] : memref<106x32xf32, #tpu.memory_space<vmem>>, vector<64x32xf32>
    %c17_203 = arith.constant 17 : index
    %c0_204 = arith.constant 0 : index
    %247 = vector.load %arg37[%c17_203, %c0_204] : memref<106x32xf32, #tpu.memory_space<vmem>>, vector<64x32xf32>
    %c18_205 = arith.constant 18 : index
    %c0_206 = arith.constant 0 : index
    %248 = vector.load %arg37[%c18_205, %c0_206] : memref<106x32xf32, #tpu.memory_space<vmem>>, vector<64x32xf32>
    %c20_207 = arith.constant 20 : index
    %c0_208 = arith.constant 0 : index
    %249 = vector.load %arg37[%c20_207, %c0_208] : memref<106x32xf32, #tpu.memory_space<vmem>>, vector<64x32xf32>
    %c21_209 = arith.constant 21 : index
    %c0_210 = arith.constant 0 : index
    %250 = vector.load %arg37[%c21_209, %c0_210] : memref<106x32xf32, #tpu.memory_space<vmem>>, vector<64x32xf32>
    %c22_211 = arith.constant 22 : index
    %c0_212 = arith.constant 0 : index
    %251 = vector.load %arg37[%c22_211, %c0_212] : memref<106x32xf32, #tpu.memory_space<vmem>>, vector<64x32xf32>
    %c24_213 = arith.constant 24 : index
    %c0_214 = arith.constant 0 : index
    %252 = vector.load %arg37[%c24_213, %c0_214] : memref<106x32xf32, #tpu.memory_space<vmem>>, vector<64x32xf32>
    %c25_215 = arith.constant 25 : index
    %c0_216 = arith.constant 0 : index
    %253 = vector.load %arg37[%c25_215, %c0_216] : memref<106x32xf32, #tpu.memory_space<vmem>>, vector<64x32xf32>
    %c26_217 = arith.constant 26 : index
    %c0_218 = arith.constant 0 : index
    %254 = vector.load %arg37[%c26_217, %c0_218] : memref<106x32xf32, #tpu.memory_space<vmem>>, vector<64x32xf32>
    %c32_219 = arith.constant 32 : index
    %c0_220 = arith.constant 0 : index
    %255 = vector.load %arg37[%c32_219, %c0_220] : memref<106x32xf32, #tpu.memory_space<vmem>>, vector<64x32xf32>
    %c33_221 = arith.constant 33 : index
    %c0_222 = arith.constant 0 : index
    %256 = vector.load %arg37[%c33_221, %c0_222] : memref<106x32xf32, #tpu.memory_space<vmem>>, vector<64x32xf32>
    %c34_223 = arith.constant 34 : index
    %c0_224 = arith.constant 0 : index
    %257 = vector.load %arg37[%c34_223, %c0_224] : memref<106x32xf32, #tpu.memory_space<vmem>>, vector<64x32xf32>
    %c36_225 = arith.constant 36 : index
    %c0_226 = arith.constant 0 : index
    %258 = vector.load %arg37[%c36_225, %c0_226] : memref<106x32xf32, #tpu.memory_space<vmem>>, vector<64x32xf32>
    %c37_227 = arith.constant 37 : index
    %c0_228 = arith.constant 0 : index
    %259 = vector.load %arg37[%c37_227, %c0_228] : memref<106x32xf32, #tpu.memory_space<vmem>>, vector<64x32xf32>
    %c38_229 = arith.constant 38 : index
    %c0_230 = arith.constant 0 : index
    %260 = vector.load %arg37[%c38_229, %c0_230] : memref<106x32xf32, #tpu.memory_space<vmem>>, vector<64x32xf32>
    %c40_231 = arith.constant 40 : index
    %c0_232 = arith.constant 0 : index
    %261 = vector.load %arg37[%c40_231, %c0_232] : memref<106x32xf32, #tpu.memory_space<vmem>>, vector<64x32xf32>
    %c41_233 = arith.constant 41 : index
    %c0_234 = arith.constant 0 : index
    %262 = vector.load %arg37[%c41_233, %c0_234] : memref<106x32xf32, #tpu.memory_space<vmem>>, vector<64x32xf32>
    %c42_235 = arith.constant 42 : index
    %c0_236 = arith.constant 0 : index
    %263 = vector.load %arg37[%c42_235, %c0_236] : memref<106x32xf32, #tpu.memory_space<vmem>>, vector<64x32xf32>
    %264 = tpu.concatenate %237, %238, %239, %240, %241, %242, %243, %244, %245, %246, %247, %248, %249, %250, %251, %252 in 1 : vector<64x32xf32>, vector<64x32xf32>, vector<64x32xf32>, vector<64x32xf32>, vector<64x32xf32>, vector<64x32xf32>, vector<64x32xf32>, vector<64x32xf32>, vector<64x32xf32>, vector<64x32xf32>, vector<64x32xf32>, vector<64x32xf32>, vector<64x32xf32>, vector<64x32xf32>, vector<64x32xf32>, vector<64x32xf32> -> vector<64x512xf32>
    %265 = tpu.concatenate %253, %254, %255, %256, %257, %258, %259, %260, %261, %262, %263 in 1 : vector<64x32xf32>, vector<64x32xf32>, vector<64x32xf32>, vector<64x32xf32>, vector<64x32xf32>, vector<64x32xf32>, vector<64x32xf32>, vector<64x32xf32>, vector<64x32xf32>, vector<64x32xf32>, vector<64x32xf32> -> vector<64x352xf32>
    %266 = tpu.concatenate %264, %265 in 1 : vector<64x512xf32>, vector<64x352xf32> -> vector<64x864xf32>
    %267 = arith.mulf %266, %140 : vector<64x864xf32>
    %c0_237 = arith.constant 0 : index
    %c0_238 = arith.constant 0 : index
    %268 = vector.load %arg28[%c0_237, %c0_238] : memref<864x32xbf16, #tpu.memory_space<vmem>>, vector<864x32xbf16>
    %269 = arith.truncf %267 : vector<64x864xf32> to vector<64x864xbf16>
    %cst_239 = arith.constant dense<0.000000e+00> : vector<64x32xf32>
    %270 = tpu.matmul %269, %268, %cst_239 {dimension_numbers = #tpu.dot_dimension_numbers<[1], [0], [0], [1], [0, 0, 1, 1], [], []>} : vector<64x864xbf16>, vector<864x32xbf16>, vector<64x32xf32> -> vector<64x32xf32>
    %c0_240 = arith.constant 0 : index
    %c0_241 = arith.constant 0 : index
    %271 = vector.load %arg29[%c0_240, %c0_241] : memref<1x32xf32, #tpu.memory_space<vmem>>, vector<1x32xf32>
    %272 = vector.broadcast %271 : vector<1x32xf32> to vector<64x32xf32>
    %273 = arith.mulf %270, %272 : vector<64x32xf32>
    %c0_242 = arith.constant 0 : index
    %c0_243 = arith.constant 0 : index
    %274 = vector.load %arg30[%c0_242, %c0_243] : memref<1x32xf32, #tpu.memory_space<vmem>>, vector<1x32xf32>
    %275 = vector.broadcast %274 : vector<1x32xf32> to vector<64x32xf32>
    %276 = arith.addf %273, %275 : vector<64x32xf32>
    %cst_244 = arith.constant 0.000000e+00 : f32
    %277 = vector.broadcast %cst_244 : f32 to vector<64x32xf32>
    %278 = arith.cmpf oge, %276, %277 : vector<64x32xf32>
    %cst_245 = arith.constant 0.00999999977 : f32
    %279 = vector.broadcast %cst_245 : f32 to vector<64x32xf32>
    %280 = arith.mulf %279, %276 : vector<64x32xf32>
    %281 = arith.select %278, %276, %280 : vector<64x32xi1>, vector<64x32xf32>
    %c21_246 = arith.constant 21 : index
    %c0_247 = arith.constant 0 : index
    %282 = vector.load %arg37[%c21_246, %c0_247] : memref<106x32xf32, #tpu.memory_space<vmem>>, vector<64x32xf32>
    tpu.vector_store %arg37[%c21_246, %c0_247], %281 {strides = array<i32>} : memref<106x32xf32, #tpu.memory_space<vmem>>, vector<64x32xf32>,
    %c0_248 = arith.constant 0 : index
    %c0_249 = arith.constant 0 : index
    %283 = vector.load %arg37[%c0_248, %c0_249] : memref<106x32xf32, #tpu.memory_space<vmem>>, vector<64x32xf32>
    %c1_250 = arith.constant 1 : index
    %c0_251 = arith.constant 0 : index
    %284 = vector.load %arg37[%c1_250, %c0_251] : memref<106x32xf32, #tpu.memory_space<vmem>>, vector<64x32xf32>
    %c2_252 = arith.constant 2 : index
    %c0_253 = arith.constant 0 : index
    %285 = vector.load %arg37[%c2_252, %c0_253] : memref<106x32xf32, #tpu.memory_space<vmem>>, vector<64x32xf32>
    %c4_254 = arith.constant 4 : index
    %c0_255 = arith.constant 0 : index
    %286 = vector.load %arg37[%c4_254, %c0_255] : memref<106x32xf32, #tpu.memory_space<vmem>>, vector<64x32xf32>
    %c5_256 = arith.constant 5 : index
    %c0_257 = arith.constant 0 : index
    %287 = vector.load %arg37[%c5_256, %c0_257] : memref<106x32xf32, #tpu.memory_space<vmem>>, vector<64x32xf32>
    %c6_258 = arith.constant 6 : index
    %c0_259 = arith.constant 0 : index
    %288 = vector.load %arg37[%c6_258, %c0_259] : memref<106x32xf32, #tpu.memory_space<vmem>>, vector<64x32xf32>
    %c8_260 = arith.constant 8 : index
    %c0_261 = arith.constant 0 : index
    %289 = vector.load %arg37[%c8_260, %c0_261] : memref<106x32xf32, #tpu.memory_space<vmem>>, vector<64x32xf32>
    %c9_262 = arith.constant 9 : index
    %c0_263 = arith.constant 0 : index
    %290 = vector.load %arg37[%c9_262, %c0_263] : memref<106x32xf32, #tpu.memory_space<vmem>>, vector<64x32xf32>
    %c10_264 = arith.constant 10 : index
    %c0_265 = arith.constant 0 : index
    %291 = vector.load %arg37[%c10_264, %c0_265] : memref<106x32xf32, #tpu.memory_space<vmem>>, vector<64x32xf32>
    %c16_266 = arith.constant 16 : index
    %c0_267 = arith.constant 0 : index
    %292 = vector.load %arg37[%c16_266, %c0_267] : memref<106x32xf32, #tpu.memory_space<vmem>>, vector<64x32xf32>
    %c17_268 = arith.constant 17 : index
    %c0_269 = arith.constant 0 : index
    %293 = vector.load %arg37[%c17_268, %c0_269] : memref<106x32xf32, #tpu.memory_space<vmem>>, vector<64x32xf32>
    %c18_270 = arith.constant 18 : index
    %c0_271 = arith.constant 0 : index
    %294 = vector.load %arg37[%c18_270, %c0_271] : memref<106x32xf32, #tpu.memory_space<vmem>>, vector<64x32xf32>
    %c20_272 = arith.constant 20 : index
    %c0_273 = arith.constant 0 : index
    %295 = vector.load %arg37[%c20_272, %c0_273] : memref<106x32xf32, #tpu.memory_space<vmem>>, vector<64x32xf32>
    %c21_274 = arith.constant 21 : index
    %c0_275 = arith.constant 0 : index
    %296 = vector.load %arg37[%c21_274, %c0_275] : memref<106x32xf32, #tpu.memory_space<vmem>>, vector<64x32xf32>
    %c22_276 = arith.constant 22 : index
    %c0_277 = arith.constant 0 : index
    %297 = vector.load %arg37[%c22_276, %c0_277] : memref<106x32xf32, #tpu.memory_space<vmem>>, vector<64x32xf32>
    %c24_278 = arith.constant 24 : index
    %c0_279 = arith.constant 0 : index
    %298 = vector.load %arg37[%c24_278, %c0_279] : memref<106x32xf32, #tpu.memory_space<vmem>>, vector<64x32xf32>
    %c25_280 = arith.constant 25 : index
    %c0_281 = arith.constant 0 : index
    %299 = vector.load %arg37[%c25_280, %c0_281] : memref<106x32xf32, #tpu.memory_space<vmem>>, vector<64x32xf32>
    %c26_282 = arith.constant 26 : index
    %c0_283 = arith.constant 0 : index
    %300 = vector.load %arg37[%c26_282, %c0_283] : memref<106x32xf32, #tpu.memory_space<vmem>>, vector<64x32xf32>
    %c32_284 = arith.constant 32 : index
    %c0_285 = arith.constant 0 : index
    %301 = vector.load %arg37[%c32_284, %c0_285] : memref<106x32xf32, #tpu.memory_space<vmem>>, vector<64x32xf32>
    %c33_286 = arith.constant 33 : index
    %c0_287 = arith.constant 0 : index
    %302 = vector.load %arg37[%c33_286, %c0_287] : memref<106x32xf32, #tpu.memory_space<vmem>>, vector<64x32xf32>
    %c34_288 = arith.constant 34 : index
    %c0_289 = arith.constant 0 : index
    %303 = vector.load %arg37[%c34_288, %c0_289] : memref<106x32xf32, #tpu.memory_space<vmem>>, vector<64x32xf32>
    %c36_290 = arith.constant 36 : index
    %c0_291 = arith.constant 0 : index
    %304 = vector.load %arg37[%c36_290, %c0_291] : memref<106x32xf32, #tpu.memory_space<vmem>>, vector<64x32xf32>
    %c37_292 = arith.constant 37 : index
    %c0_293 = arith.constant 0 : index
    %305 = vector.load %arg37[%c37_292, %c0_293] : memref<106x32xf32, #tpu.memory_space<vmem>>, vector<64x32xf32>
    %c38_294 = arith.constant 38 : index
    %c0_295 = arith.constant 0 : index
    %306 = vector.load %arg37[%c38_294, %c0_295] : memref<106x32xf32, #tpu.memory_space<vmem>>, vector<64x32xf32>
    %c40_296 = arith.constant 40 : index
    %c0_297 = arith.constant 0 : index
    %307 = vector.load %arg37[%c40_296, %c0_297] : memref<106x32xf32, #tpu.memory_space<vmem>>, vector<64x32xf32>
    %c41_298 = arith.constant 41 : index
    %c0_299 = arith.constant 0 : index
    %308 = vector.load %arg37[%c41_298, %c0_299] : memref<106x32xf32, #tpu.memory_space<vmem>>, vector<64x32xf32>
    %c42_300 = arith.constant 42 : index
    %c0_301 = arith.constant 0 : index
    %309 = vector.load %arg37[%c42_300, %c0_301] : memref<106x32xf32, #tpu.memory_space<vmem>>, vector<64x32xf32>
    %310 = tpu.concatenate %283, %284, %285, %286, %287, %288, %289, %290, %291, %292, %293, %294, %295, %296, %297, %298 in 1 : vector<64x32xf32>, vector<64x32xf32>, vector<64x32xf32>, vector<64x32xf32>, vector<64x32xf32>, vector<64x32xf32>, vector<64x32xf32>, vector<64x32xf32>, vector<64x32xf32>, vector<64x32xf32>, vector<64x32xf32>, vector<64x32xf32>, vector<64x32xf32>, vector<64x32xf32>, vector<64x32xf32>, vector<64x32xf32> -> vector<64x512xf32>
    %311 = tpu.concatenate %299, %300, %301, %302, %303, %304, %305, %306, %307, %308, %309 in 1 : vector<64x32xf32>, vector<64x32xf32>, vector<64x32xf32>, vector<64x32xf32>, vector<64x32xf32>, vector<64x32xf32>, vector<64x32xf32>, vector<64x32xf32>, vector<64x32xf32>, vector<64x32xf32>, vector<64x32xf32> -> vector<64x352xf32>
    %312 = tpu.concatenate %310, %311 in 1 : vector<64x512xf32>, vector<64x352xf32> -> vector<64x864xf32>
    %313 = arith.mulf %312, %140 : vector<64x864xf32>
    %c0_302 = arith.constant 0 : index
    %c0_303 = arith.constant 0 : index
    %314 = vector.load %arg31[%c0_302, %c0_303] : memref<864x32xbf16, #tpu.memory_space<vmem>>, vector<864x32xbf16>
    %315 = arith.truncf %313 : vector<64x864xf32> to vector<64x864xbf16>
    %cst_304 = arith.constant dense<0.000000e+00> : vector<64x32xf32>
    %316 = tpu.matmul %315, %314, %cst_304 {dimension_numbers = #tpu.dot_dimension_numbers<[1], [0], [0], [1], [0, 0, 1, 1], [], []>} : vector<64x864xbf16>, vector<864x32xbf16>, vector<64x32xf32> -> vector<64x32xf32>
    %c0_305 = arith.constant 0 : index
    %c0_306 = arith.constant 0 : index
    %317 = vector.load %arg32[%c0_305, %c0_306] : memref<1x32xf32, #tpu.memory_space<vmem>>, vector<1x32xf32>
    %318 = vector.broadcast %317 : vector<1x32xf32> to vector<64x32xf32>
    %319 = arith.mulf %316, %318 : vector<64x32xf32>
    %c0_307 = arith.constant 0 : index
    %c0_308 = arith.constant 0 : index
    %320 = vector.load %arg33[%c0_307, %c0_308] : memref<1x32xf32, #tpu.memory_space<vmem>>, vector<1x32xf32>
    %321 = vector.broadcast %320 : vector<1x32xf32> to vector<64x32xf32>
    %322 = arith.addf %319, %321 : vector<64x32xf32>
    %323 = arith.addf %322, %235 : vector<64x32xf32>
    %cst_309 = arith.constant 0.000000e+00 : f32
    %324 = vector.broadcast %cst_309 : f32 to vector<64x32xf32>
    %325 = arith.cmpf oge, %323, %324 : vector<64x32xf32>
    %cst_310 = arith.constant 0.00999999977 : f32
    %326 = vector.broadcast %cst_310 : f32 to vector<64x32xf32>
    %327 = arith.mulf %326, %323 : vector<64x32xf32>
    %328 = arith.select %325, %323, %327 : vector<64x32xi1>, vector<64x32xf32>
    %c0_311 = arith.constant 0 : index
    %c0_312 = arith.constant 0 : index
    %329 = vector.load %arg34[%c0_311, %c0_312] : memref<32x32xbf16, #tpu.memory_space<vmem>>, vector<32x32xbf16>
    %330 = arith.truncf %328 : vector<64x32xf32> to vector<64x32xbf16>
    %cst_313 = arith.constant dense<0.000000e+00> : vector<64x32xf32>
    %331 = tpu.matmul %330, %329, %cst_313 {dimension_numbers = #tpu.dot_dimension_numbers<[1], [0], [0], [1], [0, 0, 1, 1], [], []>} : vector<64x32xbf16>, vector<32x32xbf16>, vector<64x32xf32> -> vector<64x32xf32>
    %332 = arith.addf %139, %331 : vector<64x32xf32>
    %c0_314 = arith.constant 0 : index
    %c0_315 = arith.constant 0 : index
    %333 = vector.load %arg35[%c0_314, %c0_315] : memref<1x32xf32, #tpu.memory_space<vmem>>, vector<1x32xf32>
    %334 = vector.broadcast %333 : vector<1x32xf32> to vector<64x32xf32>
    %335 = arith.addf %332, %334 : vector<64x32xf32>
    %c0_316 = arith.constant 0 : index
    %c0_317 = arith.constant 0 : index
    %c0_318 = arith.constant 0 : index
    %336 = vector.load %arg36[%c0_316, %c0_317, %c0_318] : memref<1x64x32xf32, #tpu.memory_space<vmem>>, vector<1x64x32xf32>
    %337 = vector.shape_cast %336 : vector<1x64x32xf32> to vector<64x32xf32>
    %338 = vector.shape_cast %335 : vector<64x32xf32> to vector<1x64x32xf32>
    tpu.vector_store %arg36[%c0_316, %c0_317, %c0_318], %338 {strides = array<i32>} : memref<1x64x32xf32, #tpu.memory_space<vmem>>, vector<1x64x32xf32>,
    return
  }
  func.func @transform_0(%arg0: i32) -> (i32, i32, i32) {
    %c0_i32 = arith.constant 0 : i32
    %c0_i32_0 = arith.constant 0 : i32
    %c0_i32_1 = arith.constant 0 : i32
    return %arg0, %c0_i32, %c0_i32_0 : i32, i32, i32
  }
  func.func @transform_1(%arg0: i32) -> (i32, i32) {
    %c0_i32 = arith.constant 0 : i32
    %c0_i32_0 = arith.constant 0 : i32
    %c0_i32_1 = arith.constant 0 : i32
    return %c0_i32, %c0_i32_0 : i32, i32
  }
  func.func @transform_2(%arg0: i32) -> (i32, i32) {
    %c0_i32 = arith.constant 0 : i32
    %c0_i32_0 = arith.constant 0 : i32
    %c0_i32_1 = arith.constant 0 : i32
    return %c0_i32, %c0_i32_0 : i32, i32
  }
  func.func @transform_3(%arg0: i32) -> (i32, i32) {
    %c0_i32 = arith.constant 0 : i32
    %c0_i32_0 = arith.constant 0 : i32
    %c0_i32_1 = arith.constant 0 : i32
    return %c0_i32, %c0_i32_0 : i32, i32
  }
  func.func @transform_4(%arg0: i32) -> (i32, i32) {
    %c0_i32 = arith.constant 0 : i32
    %c0_i32_0 = arith.constant 0 : i32
    %c0_i32_1 = arith.constant 0 : i32
    return %c0_i32, %c0_i32_0 : i32, i32
  }
  func.func @transform_5(%arg0: i32) -> (i32, i32) {
    %c0_i32 = arith.constant 0 : i32
    %c0_i32_0 = arith.constant 0 : i32
    %c0_i32_1 = arith.constant 0 : i32
    return %c0_i32, %c0_i32_0 : i32, i32
  }
  func.func @transform_6(%arg0: i32) -> (i32, i32) {
    %c0_i32 = arith.constant 0 : i32
    %c0_i32_0 = arith.constant 0 : i32
    %c0_i32_1 = arith.constant 0 : i32
    return %c0_i32, %c0_i32_0 : i32, i32
  }
  func.func @transform_7(%arg0: i32) -> (i32, i32) {
    %c0_i32 = arith.constant 0 : i32
    %c0_i32_0 = arith.constant 0 : i32
    %c0_i32_1 = arith.constant 0 : i32
    return %c0_i32, %c0_i32_0 : i32, i32
  }
  func.func @transform_8(%arg0: i32) -> (i32, i32) {
    %c0_i32 = arith.constant 0 : i32
    %c0_i32_0 = arith.constant 0 : i32
    %c0_i32_1 = arith.constant 0 : i32
    return %c0_i32, %c0_i32_0 : i32, i32
  }
  func.func @transform_9(%arg0: i32) -> (i32, i32) {
    %c0_i32 = arith.constant 0 : i32
    %c0_i32_0 = arith.constant 0 : i32
    %c0_i32_1 = arith.constant 0 : i32
    return %c0_i32, %c0_i32_0 : i32, i32
  }
  func.func @transform_10(%arg0: i32) -> (i32, i32) {
    %c0_i32 = arith.constant 0 : i32
    %c0_i32_0 = arith.constant 0 : i32
    %c0_i32_1 = arith.constant 0 : i32
    return %c0_i32, %c0_i32_0 : i32, i32
  }
  func.func @transform_11(%arg0: i32) -> (i32, i32, i32) {
    %c0_i32 = arith.constant 0 : i32
    %c0_i32_0 = arith.constant 0 : i32
    %c0_i32_1 = arith.constant 0 : i32
    %c0_i32_2 = arith.constant 0 : i32
    return %c0_i32, %c0_i32_0, %c0_i32_1 : i32, i32, i32
  }
  func.func @transform_12(%arg0: i32) -> (i32, i32) {
    %c0_i32 = arith.constant 0 : i32
    %c0_i32_0 = arith.constant 0 : i32
    %c0_i32_1 = arith.constant 0 : i32
    return %c0_i32, %c0_i32_0 : i32, i32
  }
  func.func @transform_13(%arg0: i32) -> (i32, i32) {
    %c0_i32 = arith.constant 0 : i32
    %c0_i32_0 = arith.constant 0 : i32
    %c0_i32_1 = arith.constant 0 : i32
    return %c0_i32, %c0_i32_0 : i32, i32
  }
  func.func @transform_14(%arg0: i32) -> (i32, i32) {
    %c0_i32 = arith.constant 0 : i32
    %c0_i32_0 = arith.constant 0 : i32
    %c0_i32_1 = arith.constant 0 : i32
    return %c0_i32, %c0_i32_0 : i32, i32
  }
  func.func @transform_15(%arg0: i32) -> (i32, i32) {
    %c0_i32 = arith.constant 0 : i32
    %c0_i32_0 = arith.constant 0 : i32
    %c0_i32_1 = arith.constant 0 : i32
    return %c0_i32, %c0_i32_0 : i32, i32
  }
  func.func @transform_16(%arg0: i32) -> (i32, i32) {
    %c0_i32 = arith.constant 0 : i32
    %c0_i32_0 = arith.constant 0 : i32
    %c0_i32_1 = arith.constant 0 : i32
    return %c0_i32, %c0_i32_0 : i32, i32
  }
  func.func @transform_17(%arg0: i32) -> (i32, i32) {
    %c0_i32 = arith.constant 0 : i32
    %c0_i32_0 = arith.constant 0 : i32
    %c0_i32_1 = arith.constant 0 : i32
    return %c0_i32, %c0_i32_0 : i32, i32
  }
  func.func @transform_18(%arg0: i32) -> (i32, i32) {
    %c0_i32 = arith.constant 0 : i32
    %c0_i32_0 = arith.constant 0 : i32
    %c0_i32_1 = arith.constant 0 : i32
    return %c0_i32, %c0_i32_0 : i32, i32
  }
  func.func @transform_19(%arg0: i32) -> (i32, i32) {
    %c0_i32 = arith.constant 0 : i32
    %c0_i32_0 = arith.constant 0 : i32
    %c0_i32_1 = arith.constant 0 : i32
    return %c0_i32, %c0_i32_0 : i32, i32
  }
  func.func @transform_20(%arg0: i32) -> (i32, i32) {
    %c0_i32 = arith.constant 0 : i32
    %c0_i32_0 = arith.constant 0 : i32
    %c0_i32_1 = arith.constant 0 : i32
    return %c0_i32, %c0_i32_0 : i32, i32
  }
  func.func @transform_21(%arg0: i32) -> (i32, i32) {
    %c0_i32 = arith.constant 0 : i32
    %c0_i32_0 = arith.constant 0 : i32
    %c0_i32_1 = arith.constant 0 : i32
    return %c0_i32, %c0_i32_0 : i32, i32
  }
  func.func @transform_22(%arg0: i32) -> (i32, i32) {
    %c0_i32 = arith.constant 0 : i32
    %c0_i32_0 = arith.constant 0 : i32
    %c0_i32_1 = arith.constant 0 : i32
    return %c0_i32, %c0_i32_0 : i32, i32
  }
  func.func @transform_23(%arg0: i32) -> (i32, i32) {
    %c0_i32 = arith.constant 0 : i32
    %c0_i32_0 = arith.constant 0 : i32
    %c0_i32_1 = arith.constant 0 : i32
    return %c0_i32, %c0_i32_0 : i32, i32
  }
  func.func @transform_24(%arg0: i32) -> (i32, i32) {
    %c0_i32 = arith.constant 0 : i32
    %c0_i32_0 = arith.constant 0 : i32
    %c0_i32_1 = arith.constant 0 : i32
    return %c0_i32, %c0_i32_0 : i32, i32
  }
  func.func @transform_25(%arg0: i32) -> (i32, i32) {
    %c0_i32 = arith.constant 0 : i32
    %c0_i32_0 = arith.constant 0 : i32
    %c0_i32_1 = arith.constant 0 : i32
    return %c0_i32, %c0_i32_0 : i32, i32
  }
  func.func @transform_26(%arg0: i32) -> (i32, i32) {
    %c0_i32 = arith.constant 0 : i32
    %c0_i32_0 = arith.constant 0 : i32
    %c0_i32_1 = arith.constant 0 : i32
    return %c0_i32, %c0_i32_0 : i32, i32
  }
  func.func @transform_27(%arg0: i32) -> (i32, i32) {
    %c0_i32 = arith.constant 0 : i32
    %c0_i32_0 = arith.constant 0 : i32
    %c0_i32_1 = arith.constant 0 : i32
    return %c0_i32, %c0_i32_0 : i32, i32
  }
  func.func @transform_28(%arg0: i32) -> (i32, i32) {
    %c0_i32 = arith.constant 0 : i32
    %c0_i32_0 = arith.constant 0 : i32
    %c0_i32_1 = arith.constant 0 : i32
    return %c0_i32, %c0_i32_0 : i32, i32
  }
  func.func @transform_29(%arg0: i32) -> (i32, i32) {
    %c0_i32 = arith.constant 0 : i32
    %c0_i32_0 = arith.constant 0 : i32
    %c0_i32_1 = arith.constant 0 : i32
    return %c0_i32, %c0_i32_0 : i32, i32
  }
  func.func @transform_30(%arg0: i32) -> (i32, i32) {
    %c0_i32 = arith.constant 0 : i32
    %c0_i32_0 = arith.constant 0 : i32
    %c0_i32_1 = arith.constant 0 : i32
    return %c0_i32, %c0_i32_0 : i32, i32
  }
  func.func @transform_31(%arg0: i32) -> (i32, i32) {
    %c0_i32 = arith.constant 0 : i32
    %c0_i32_0 = arith.constant 0 : i32
    %c0_i32_1 = arith.constant 0 : i32
    return %c0_i32, %c0_i32_0 : i32, i32
  }
  func.func @transform_32(%arg0: i32) -> (i32, i32) {
    %c0_i32 = arith.constant 0 : i32
    %c0_i32_0 = arith.constant 0 : i32
    %c0_i32_1 = arith.constant 0 : i32
    return %c0_i32, %c0_i32_0 : i32, i32
  }
  func.func @transform_33(%arg0: i32) -> (i32, i32) {
    %c0_i32 = arith.constant 0 : i32
    %c0_i32_0 = arith.constant 0 : i32
    %c0_i32_1 = arith.constant 0 : i32
    return %c0_i32, %c0_i32_0 : i32, i32
  }
  func.func @transform_34(%arg0: i32) -> (i32, i32) {
    %c0_i32 = arith.constant 0 : i32
    %c0_i32_0 = arith.constant 0 : i32
    %c0_i32_1 = arith.constant 0 : i32
    return %c0_i32, %c0_i32_0 : i32, i32
  }
  func.func @transform_35(%arg0: i32) -> (i32, i32, i32) {
    %c0_i32 = arith.constant 0 : i32
    %c0_i32_0 = arith.constant 0 : i32
    %c0_i32_1 = arith.constant 0 : i32
    return %arg0, %c0_i32, %c0_i32_0 : i32, i32, i32
  }
}

</mosaic_0001>

<llo_original>
// kernel: transformer_block_forward.1
$region0: #{transformer_block_forward.1}
  #allocation0 [shape = 'u32[]', space=smem, size = 0x4, offset = 0x4, fixed_abs, tag = 'smem constant byte address 0x4 - core index']
  #allocation1 [shape = 'u32[144,128]{1,0:T(1,128)}', space=vmem, size = 0x12000, scoped, tag = 'internal scratch']
  #allocation2 [shape = 'f32[106,32]{1,0:T(8,128)}', space=vmem, size = 0xe000, scoped, tag = 'scratch operand']
  %s0 = inlined_call_operand.smem [shape: u32[36], index: -1, kind: input, shape index: {}]
  %s1 = sld [smem:[%s0]]
  %s2 = scalar_lea.smem %s0, 1
  %s3 = sld [smem:[%s2]]
  %s4 = scalar_lea.smem %s0, 2
  %s5 = sld [smem:[%s4]]
  %s6 = scalar_lea.smem %s0, 3
  %s7 = sld [smem:[%s6]]
  %s8 = scalar_lea.smem %s0, 4
  %s9 = sld [smem:[%s8]]
  %s10 = scalar_lea.smem %s0, 5
  %s11 = sld [smem:[%s10]]
  %s12 = scalar_lea.smem %s0, 6
  %s13 = sld [smem:[%s12]]
  %s14 = scalar_lea.smem %s0, 7
  %s15 = sld [smem:[%s14]]
  %s16 = scalar_lea.smem %s0, 8
  %s17 = sld [smem:[%s16]]
  %s18 = scalar_lea.smem %s0, 9
  %s19 = sld [smem:[%s18]]
  %s20 = scalar_lea.smem %s0, 10
  %s21 = sld [smem:[%s20]]
  %s22 = scalar_lea.smem %s0, 11
  %s23 = sld [smem:[%s22]]
  %s24 = scalar_lea.smem %s0, 12
  %s25 = sld [smem:[%s24]]
  %s26 = scalar_lea.smem %s0, 13
  %s27 = sld [smem:[%s26]]
  %s28 = scalar_lea.smem %s0, 14
  %s29 = sld [smem:[%s28]]
  %s30 = scalar_lea.smem %s0, 15
  %s31 = sld [smem:[%s30]]
  %s32 = scalar_lea.smem %s0, 16
  %s33 = sld [smem:[%s32]]
  %s34 = scalar_lea.smem %s0, 17
  %s35 = sld [smem:[%s34]]
  %s36 = scalar_lea.smem %s0, 18
  %s37 = sld [smem:[%s36]]
  %s38 = scalar_lea.smem %s0, 19
  %s39 = sld [smem:[%s38]]
  %s40 = scalar_lea.smem %s0, 20
  %s41 = sld [smem:[%s40]]
  %s42 = scalar_lea.smem %s0, 21
  %s43 = sld [smem:[%s42]]
  %s44 = scalar_lea.smem %s0, 22
  %s45 = sld [smem:[%s44]]
  %s46 = scalar_lea.smem %s0, 23
  %s47 = sld [smem:[%s46]]
  %s48 = scalar_lea.smem %s0, 24
  %s49 = sld [smem:[%s48]]
  %s50 = scalar_lea.smem %s0, 25
  %s51 = sld [smem:[%s50]]
  %s52 = scalar_lea.smem %s0, 26
  %s53 = sld [smem:[%s52]]
  %s54 = scalar_lea.smem %s0, 27
  %s55 = sld [smem:[%s54]]
  %s56 = scalar_lea.smem %s0, 28
  %s57 = sld [smem:[%s56]]
  %s58 = scalar_lea.smem %s0, 29
  %s59 = sld [smem:[%s58]]
  %s60 = scalar_lea.smem %s0, 30
  %s61 = sld [smem:[%s60]]
  %s62 = scalar_lea.smem %s0, 31
  %s63 = sld [smem:[%s62]]
  %s64 = scalar_lea.smem %s0, 32
  %s65 = sld [smem:[%s64]]
  %s66 = scalar_lea.smem %s0, 33
  %s67 = sld [smem:[%s66]]
  %s68 = scalar_lea.smem %s0, 34
  %s69 = sld [smem:[%s68]]
  %s70 = scalar_lea.smem %s0, 35
  %s71 = sld [smem:[%s70]]
  %s72 = sld [smem:[#allocation0]]
  $region173: #{transformer_block_forward.1} parent=0
    _
  %s74 = ssub.s32 1, %s72
  %s75 = scalar_select 0, %s74, %s72
  $region1: #{transformer_block_forward.1} parent=0
    #allocation3 [shape = 'u8[65536]{0}', space=vmem, size = 0x10000, scoped, tag = 'output window, operand 0']
    #allocation4 [shape = 's32[2]{0}', space=sflag, size = 0x8, scoped, tag = 'scoped memory for transformer_block_forward.1']
    %76 = vsyncpa [#allocation4], 0
    %s77 = scalar_lea.sflag [#allocation4], 1
    %78 = vsyncpa %s77, 0
    loop: start=0, step=1, limit=4
    $region2: #{transformer_block_forward.1} parent=1 // loop_pre_header
      _
    $region3: #{transformer_block_forward.1} parent=1 // loop_header
      %s80 = sphi 0, %s84
      %p81 = scmp.ge.s32.totalorder %s80, 4
      %s90 = sphi 0, %s92
      %s93 = sphi 0, %s90
      %s94 = sphi 0, %s93
      %s110 = sphi 0, %s94
      %s114 = sphi 0, %s114
      %s116 = sphi 0, %s114
      %s117 = sphi 0, %s116
      %s131 = sphi 0, %s117
      %s135 = sphi 0, %s135
      %s137 = sphi 0, %s135
      %s138 = sphi 0, %s137
      %s152 = sphi 0, %s138
      %s156 = sphi 0, %s156
      %s158 = sphi 0, %s156
      %s159 = sphi 0, %s158
      %s173 = sphi 0, %s159
      %s177 = sphi 0, %s177
      %s179 = sphi 0, %s177
      %s180 = sphi 0, %s179
      %s194 = sphi 0, %s180
      %s198 = sphi 0, %s198
      %s200 = sphi 0, %s198
      %s201 = sphi 0, %s200
      %s215 = sphi 0, %s201
      %s219 = sphi 0, %s219
      %s221 = sphi 0, %s219
      %s222 = sphi 0, %s221
      %s236 = sphi 0, %s222
      %s240 = sphi 0, %s240
      %s242 = sphi 0, %s240
      %s243 = sphi 0, %s242
      %s257 = sphi 0, %s243
      %s261 = sphi 0, %s261
      %s263 = sphi 0, %s261
      %s264 = sphi 0, %s263
      %s278 = sphi 0, %s264
      %s282 = sphi 0, %s282
      %s284 = sphi 0, %s282
      %s285 = sphi 0, %s284
      %s299 = sphi 0, %s285
      %s303 = sphi 0, %s303
      %s305 = sphi 0, %s303
      %s306 = sphi 0, %s305
      %s320 = sphi 0, %s306
      %s324 = sphi 0, %s324
      %s326 = sphi 0, %s324
      %s327 = sphi 0, %s326
      %s341 = sphi 0, %s327
      %s345 = sphi 0, %s345
      %s347 = sphi 0, %s345
      %s348 = sphi 0, %s347
      %s362 = sphi 0, %s348
      %s366 = sphi 0, %s366
      %s368 = sphi 0, %s366
      %s369 = sphi 0, %s368
      %s383 = sphi 0, %s369
      %s387 = sphi 0, %s387
      %s389 = sphi 0, %s387
      %s390 = sphi 0, %s389
      %s404 = sphi 0, %s390
      %s408 = sphi 0, %s408
      %s410 = sphi 0, %s408
      %s411 = sphi 0, %s410
      %s425 = sphi 0, %s411
      %s429 = sphi 0, %s429
      %s431 = sphi 0, %s429
      %s432 = sphi 0, %s431
      %s446 = sphi 0, %s432
      %s450 = sphi 0, %s450
      %s452 = sphi 0, %s450
      %s453 = sphi 0, %s452
      %s467 = sphi 0, %s453
      %s471 = sphi 0, %s471
      %s473 = sphi 0, %s471
      %s474 = sphi 0, %s473
      %s488 = sphi 0, %s474
      %s492 = sphi 0, %s492
      %s494 = sphi 0, %s492
      %s495 = sphi 0, %s494
      %s509 = sphi 0, %s495
      %s513 = sphi 0, %s513
      %s515 = sphi 0, %s513
      %s516 = sphi 0, %s515
      %s530 = sphi 0, %s516
      %s534 = sphi 0, %s534
      %s536 = sphi 0, %s534
      %s537 = sphi 0, %s536
      %s551 = sphi 0, %s537
      %s555 = sphi 0, %s555
      %s557 = sphi 0, %s555
      %s558 = sphi 0, %s557
      %s572 = sphi 0, %s558
      %s576 = sphi 0, %s576
      %s578 = sphi 0, %s576
      %s579 = sphi 0, %s578
      %s593 = sphi 0, %s579
      %s597 = sphi 0, %s597
      %s599 = sphi 0, %s597
      %s600 = sphi 0, %s599
      %s614 = sphi 0, %s600
      %s618 = sphi 0, %s618
      %s620 = sphi 0, %s618
      %s621 = sphi 0, %s620
      %s635 = sphi 0, %s621
      %s639 = sphi 0, %s639
      %s641 = sphi 0, %s639
      %s642 = sphi 0, %s641
      %s656 = sphi 0, %s642
      %s660 = sphi 0, %s660
      %s662 = sphi 0, %s660
      %s663 = sphi 0, %s662
      %s677 = sphi 0, %s663
      %s681 = sphi 0, %s681
      %s683 = sphi 0, %s681
      %s684 = sphi 0, %s683
      %s698 = sphi 0, %s684
      %s702 = sphi 0, %s702
      %s704 = sphi 0, %s702
      %s705 = sphi 0, %s704
      %s719 = sphi 0, %s705
      %s723 = sphi 0, %s723
      %s725 = sphi 0, %s723
      %s726 = sphi 0, %s725
      %s740 = sphi 0, %s726
      %s744 = sphi 0, %s744
      %s746 = sphi 0, %s744
      %s747 = sphi 0, %s746
      %s761 = sphi 0, %s747
      %s765 = sphi 0, %s765
      %s767 = sphi 0, %s765
      %s768 = sphi 0, %s767
      %s782 = sphi 0, %s768
      %s786 = sphi 0, %s786
      %s788 = sphi 0, %s786
      %s789 = sphi 0, %s788
      %s803 = sphi 0, %s789
      %s807 = sphi 0, %s807
      %s809 = sphi 0, %s807
      %s810 = sphi 0, %s809
      %s824 = sphi 0, %s810
      %s830 = sphi 0, %s832
      %s833 = sphi 0, %s830
      %s834 = sphi 0, %s833
      %s850 = sphi 0, %s834
    $region4: #{transformer_block_forward.1} parent=1 // loop_header_branch
      %83 = sbr.rel (%p81) target = $region8
    $region5: #{transformer_block_forward.1} parent=1 // loop_body
      %s85 = ssub.s32 %s80, 1
      %s86 = ssub.s32 %s80, 2
      %s87 = sadd.s32 %s80, 1
      %s88 = ssub.s32 %s80, %s87
      %p89 = scmp.eq.s32.totalorder %s88, 0
      %s91 = sadd.s32 %s90, 1
      %s92 = scalar_select %p89, %s90, %s91
      %p95 = pneg %p89
      %p96 = scmp.eq.s32.totalorder %s80, 1
      %p97 = por %p95, %p96
      %p98 = scmp.ne.s32.totalorder %s90, %s93
      %p99 = scmp.eq.s32.totalorder %s80, 0
      %p100 = por %p98, %p99
      %p101 = scmp.ne.s32.totalorder %s90, %s93
      %p102 = scmp.eq.s32.totalorder %s85, 1
      %p103 = por %p101, %p102
      %p104 = scmp.ne.s32.totalorder %s93, %s94
      %p105 = scmp.eq.s32.totalorder %s85, 0
      %p106 = por %p104, %p105
      %p107 = scmp.ne.s32.totalorder %s93, %s94
      %p108 = scmp.eq.s32.totalorder %s86, 1
      %p109 = por %p107, %p108
      %p111 = scmp.ne.s32.totalorder %s94, %s110
      %p112 = scmp.eq.s32.totalorder %s86, 0
      %p113 = por %p111, %p112
      %s115 = sadd.s32 %s114, 1
      %p118 = scmp.eq.s32.totalorder %s80, 1
      %p119 = scmp.ne.s32.totalorder %s114, %s116
      %p120 = scmp.eq.s32.totalorder %s80, 0
      %p121 = por %p119, %p120
      %p122 = scmp.ne.s32.totalorder %s114, %s116
      %p123 = scmp.eq.s32.totalorder %s85, 1
      %p124 = por %p122, %p123
      %p125 = scmp.ne.s32.totalorder %s116, %s117
      %p126 = scmp.eq.s32.totalorder %s85, 0
      %p127 = por %p125, %p126
      %p128 = scmp.ne.s32.totalorder %s116, %s117
      %p129 = scmp.eq.s32.totalorder %s86, 1
      %p130 = por %p128, %p129
      %p132 = scmp.ne.s32.totalorder %s117, %s131
      %p133 = scmp.eq.s32.totalorder %s86, 0
      %p134 = por %p132, %p133
      %s136 = sadd.s32 %s135, 1
      %p139 = scmp.eq.s32.totalorder %s80, 1
      %p140 = scmp.ne.s32.totalorder %s135, %s137
      %p141 = scmp.eq.s32.totalorder %s80, 0
      %p142 = por %p140, %p141
      %p143 = scmp.ne.s32.totalorder %s135, %s137
      %p144 = scmp.eq.s32.totalorder %s85, 1
      %p145 = por %p143, %p144
      %p146 = scmp.ne.s32.totalorder %s137, %s138
      %p147 = scmp.eq.s32.totalorder %s85, 0
      %p148 = por %p146, %p147
      %p149 = scmp.ne.s32.totalorder %s137, %s138
      %p150 = scmp.eq.s32.totalorder %s86, 1
      %p151 = por %p149, %p150
      %p153 = scmp.ne.s32.totalorder %s138, %s152
      %p154 = scmp.eq.s32.totalorder %s86, 0
      %p155 = por %p153, %p154
      %s157 = sadd.s32 %s156, 1
      %p160 = scmp.eq.s32.totalorder %s80, 1
      %p161 = scmp.ne.s32.totalorder %s156, %s158
      %p162 = scmp.eq.s32.totalorder %s80, 0
      %p163 = por %p161, %p162
      %p164 = scmp.ne.s32.totalorder %s156, %s158
      %p165 = scmp.eq.s32.totalorder %s85, 1
      %p166 = por %p164, %p165
      %p167 = scmp.ne.s32.totalorder %s158, %s159
      %p168 = scmp.eq.s32.totalorder %s85, 0
      %p169 = por %p167, %p168
      %p170 = scmp.ne.s32.totalorder %s158, %s159
      %p171 = scmp.eq.s32.totalorder %s86, 1
      %p172 = por %p170, %p171
      %p174 = scmp.ne.s32.totalorder %s159, %s173
      %p175 = scmp.eq.s32.totalorder %s86, 0
      %p176 = por %p174, %p175
      %s178 = sadd.s32 %s177, 1
      %p181 = scmp.eq.s32.totalorder %s80, 1
      %p182 = scmp.ne.s32.totalorder %s177, %s179
      %p183 = scmp.eq.s32.totalorder %s80, 0
      %p184 = por %p182, %p183
      %p185 = scmp.ne.s32.totalorder %s177, %s179
      %p186 = scmp.eq.s32.totalorder %s85, 1
      %p187 = por %p185, %p186
      %p188 = scmp.ne.s32.totalorder %s179, %s180
      %p189 = scmp.eq.s32.totalorder %s85, 0
      %p190 = por %p188, %p189
      %p191 = scmp.ne.s32.totalorder %s179, %s180
      %p192 = scmp.eq.s32.totalorder %s86, 1
      %p193 = por %p191, %p192
      %p195 = scmp.ne.s32.totalorder %s180, %s194
      %p196 = scmp.eq.s32.totalorder %s86, 0
      %p197 = por %p195, %p196
      %s199 = sadd.s32 %s198, 1
      %p202 = scmp.eq.s32.totalorder %s80, 1
      %p203 = scmp.ne.s32.totalorder %s198, %s200
      %p204 = scmp.eq.s32.totalorder %s80, 0
      %p205 = por %p203, %p204
      %p206 = scmp.ne.s32.totalorder %s198, %s200
      %p207 = scmp.eq.s32.totalorder %s85, 1
      %p208 = por %p206, %p207
      %p209 = scmp.ne.s32.totalorder %s200, %s201
      %p210 = scmp.eq.s32.totalorder %s85, 0
      %p211 = por %p209, %p210
      %p212 = scmp.ne.s32.totalorder %s200, %s201
      %p213 = scmp.eq.s32.totalorder %s86, 1
      %p214 = por %p212, %p213
      %p216 = scmp.ne.s32.totalorder %s201, %s215
      %p217 = scmp.eq.s32.totalorder %s86, 0
      %p218 = por %p216, %p217
      %s220 = sadd.s32 %s219, 1
      %p223 = scmp.eq.s32.totalorder %s80, 1
      %p224 = scmp.ne.s32.totalorder %s219, %s221
      %p225 = scmp.eq.s32.totalorder %s80, 0
      %p226 = por %p224, %p225
      %p227 = scmp.ne.s32.totalorder %s219, %s221
      %p228 = scmp.eq.s32.totalorder %s85, 1
      %p229 = por %p227, %p228
      %p230 = scmp.ne.s32.totalorder %s221, %s222
      %p231 = scmp.eq.s32.totalorder %s85, 0
      %p232 = por %p230, %p231
      %p233 = scmp.ne.s32.totalorder %s221, %s222
      %p234 = scmp.eq.s32.totalorder %s86, 1
      %p235 = por %p233, %p234
      %p237 = scmp.ne.s32.totalorder %s222, %s236
      %p238 = scmp.eq.s32.totalorder %s86, 0
      %p239 = por %p237, %p238
      %s241 = sadd.s32 %s240, 1
      %p244 = scmp.eq.s32.totalorder %s80, 1
      %p245 = scmp.ne.s32.totalorder %s240, %s242
      %p246 = scmp.eq.s32.totalorder %s80, 0
      %p247 = por %p245, %p246
      %p248 = scmp.ne.s32.totalorder %s240, %s242
      %p249 = scmp.eq.s32.totalorder %s85, 1
      %p250 = por %p248, %p249
      %p251 = scmp.ne.s32.totalorder %s242, %s243
      %p252 = scmp.eq.s32.totalorder %s85, 0
      %p253 = por %p251, %p252
      %p254 = scmp.ne.s32.totalorder %s242, %s243
      %p255 = scmp.eq.s32.totalorder %s86, 1
      %p256 = por %p254, %p255
      %p258 = scmp.ne.s32.totalorder %s243, %s257
      %p259 = scmp.eq.s32.totalorder %s86, 0
      %p260 = por %p258, %p259
      %s262 = sadd.s32 %s261, 1
      %p265 = scmp.eq.s32.totalorder %s80, 1
      %p266 = scmp.ne.s32.totalorder %s261, %s263
      %p267 = scmp.eq.s32.totalorder %s80, 0
      %p268 = por %p266, %p267
      %p269 = scmp.ne.s32.totalorder %s261, %s263
      %p270 = scmp.eq.s32.totalorder %s85, 1
      %p271 = por %p269, %p270
      %p272 = scmp.ne.s32.totalorder %s263, %s264
      %p273 = scmp.eq.s32.totalorder %s85, 0
      %p274 = por %p272, %p273
      %p275 = scmp.ne.s32.totalorder %s263, %s264
      %p276 = scmp.eq.s32.totalorder %s86, 1
      %p277 = por %p275, %p276
      %p279 = scmp.ne.s32.totalorder %s264, %s278
      %p280 = scmp.eq.s32.totalorder %s86, 0
      %p281 = por %p279, %p280
      %s283 = sadd.s32 %s282, 1
      %p286 = scmp.eq.s32.totalorder %s80, 1
      %p287 = scmp.ne.s32.totalorder %s282, %s284
      %p288 = scmp.eq.s32.totalorder %s80, 0
      %p289 = por %p287, %p288
      %p290 = scmp.ne.s32.totalorder %s282, %s284
      %p291 = scmp.eq.s32.totalorder %s85, 1
      %p292 = por %p290, %p291
      %p293 = scmp.ne.s32.totalorder %s284, %s285
      %p294 = scmp.eq.s32.totalorder %s85, 0
      %p295 = por %p293, %p294
      %p296 = scmp.ne.s32.totalorder %s284, %s285
      %p297 = scmp.eq.s32.totalorder %s86, 1
      %p298 = por %p296, %p297
      %p300 = scmp.ne.s32.totalorder %s285, %s299
      %p301 = scmp.eq.s32.totalorder %s86, 0
      %p302 = por %p300, %p301
      %s304 = sadd.s32 %s303, 1
      %p307 = scmp.eq.s32.totalorder %s80, 1
      %p308 = scmp.ne.s32.totalorder %s303, %s305
      %p309 = scmp.eq.s32.totalorder %s80, 0
      %p310 = por %p308, %p309
      %p311 = scmp.ne.s32.totalorder %s303, %s305
      %p312 = scmp.eq.s32.totalorder %s85, 1
      %p313 = por %p311, %p312
      %p314 = scmp.ne.s32.totalorder %s305, %s306
      %p315 = scmp.eq.s32.totalorder %s85, 0
      %p316 = por %p314, %p315
      %p317 = scmp.ne.s32.totalorder %s305, %s306
      %p318 = scmp.eq.s32.totalorder %s86, 1
      %p319 = por %p317, %p318
      %p321 = scmp.ne.s32.totalorder %s306, %s320
      %p322 = scmp.eq.s32.totalorder %s86, 0
      %p323 = por %p321, %p322
      %s325 = sadd.s32 %s324, 1
      %p328 = scmp.eq.s32.totalorder %s80, 1
      %p329 = scmp.ne.s32.totalorder %s324, %s326
      %p330 = scmp.eq.s32.totalorder %s80, 0
      %p331 = por %p329, %p330
      %p332 = scmp.ne.s32.totalorder %s324, %s326
      %p333 = scmp.eq.s32.totalorder %s85, 1
      %p334 = por %p332, %p333
      %p335 = scmp.ne.s32.totalorder %s326, %s327
      %p336 = scmp.eq.s32.totalorder %s85, 0
      %p337 = por %p335, %p336
      %p338 = scmp.ne.s32.totalorder %s326, %s327
      %p339 = scmp.eq.s32.totalorder %s86, 1
      %p340 = por %p338, %p339
      %p342 = scmp.ne.s32.totalorder %s327, %s341
      %p343 = scmp.eq.s32.totalorder %s86, 0
      %p344 = por %p342, %p343
      %s346 = sadd.s32 %s345, 1
      %p349 = scmp.eq.s32.totalorder %s80, 1
      %p350 = scmp.ne.s32.totalorder %s345, %s347
      %p351 = scmp.eq.s32.totalorder %s80, 0
      %p352 = por %p350, %p351
      %p353 = scmp.ne.s32.totalorder %s345, %s347
      %p354 = scmp.eq.s32.totalorder %s85, 1
      %p355 = por %p353, %p354
      %p356 = scmp.ne.s32.totalorder %s347, %s348
      %p357 = scmp.eq.s32.totalorder %s85, 0
      %p358 = por %p356, %p357
      %p359 = scmp.ne.s32.totalorder %s347, %s348
      %p360 = scmp.eq.s32.totalorder %s86, 1
      %p361 = por %p359, %p360
      %p363 = scmp.ne.s32.totalorder %s348, %s362
      %p364 = scmp.eq.s32.totalorder %s86, 0
      %p365 = por %p363, %p364
      %s367 = sadd.s32 %s366, 1
      %p370 = scmp.eq.s32.totalorder %s80, 1
      %p371 = scmp.ne.s32.totalorder %s366, %s368
      %p372 = scmp.eq.s32.totalorder %s80, 0
      %p373 = por %p371, %p372
      %p374 = scmp.ne.s32.totalorder %s366, %s368
      %p375 = scmp.eq.s32.totalorder %s85, 1
      %p376 = por %p374, %p375
      %p377 = scmp.ne.s32.totalorder %s368, %s369
      %p378 = scmp.eq.s32.totalorder %s85, 0
      %p379 = por %p377, %p378
      %p380 = scmp.ne.s32.totalorder %s368, %s369
      %p381 = scmp.eq.s32.totalorder %s86, 1
      %p382 = por %p380, %p381
      %p384 = scmp.ne.s32.totalorder %s369, %s383
      %p385 = scmp.eq.s32.totalorder %s86, 0
      %p386 = por %p384, %p385
      %s388 = sadd.s32 %s387, 1
      %p391 = scmp.eq.s32.totalorder %s80, 1
      %p392 = scmp.ne.s32.totalorder %s387, %s389
      %p393 = scmp.eq.s32.totalorder %s80, 0
      %p394 = por %p392, %p393
      %p395 = scmp.ne.s32.totalorder %s387, %s389
      %p396 = scmp.eq.s32.totalorder %s85, 1
      %p397 = por %p395, %p396
      %p398 = scmp.ne.s32.totalorder %s389, %s390
      %p399 = scmp.eq.s32.totalorder %s85, 0
      %p400 = por %p398, %p399
      %p401 = scmp.ne.s32.totalorder %s389, %s390
      %p402 = scmp.eq.s32.totalorder %s86, 1
      %p403 = por %p401, %p402
      %p405 = scmp.ne.s32.totalorder %s390, %s404
      %p406 = scmp.eq.s32.totalorder %s86, 0
      %p407 = por %p405, %p406
      %s409 = sadd.s32 %s408, 1
      %p412 = scmp.eq.s32.totalorder %s80, 1
      %p413 = scmp.ne.s32.totalorder %s408, %s410
      %p414 = scmp.eq.s32.totalorder %s80, 0
      %p415 = por %p413, %p414
      %p416 = scmp.ne.s32.totalorder %s408, %s410
      %p417 = scmp.eq.s32.totalorder %s85, 1
      %p418 = por %p416, %p417
      %p419 = scmp.ne.s32.totalorder %s410, %s411
      %p420 = scmp.eq.s32.totalorder %s85, 0
      %p421 = por %p419, %p420
      %p422 = scmp.ne.s32.totalorder %s410, %s411
      %p423 = scmp.eq.s32.totalorder %s86, 1
      %p424 = por %p422, %p423
      %p426 = scmp.ne.s32.totalorder %s411, %s425
      %p427 = scmp.eq.s32.totalorder %s86, 0
      %p428 = por %p426, %p427
      %s430 = sadd.s32 %s429, 1
      %p433 = scmp.eq.s32.totalorder %s80, 1
      %p434 = scmp.ne.s32.totalorder %s429, %s431
      %p435 = scmp.eq.s32.totalorder %s80, 0
      %p436 = por %p434, %p435
      %p437 = scmp.ne.s32.totalorder %s429, %s431
      %p438 = scmp.eq.s32.totalorder %s85, 1
      %p439 = por %p437, %p438
      %p440 = scmp.ne.s32.totalorder %s431, %s432
      %p441 = scmp.eq.s32.totalorder %s85, 0
      %p442 = por %p440, %p441
      %p443 = scmp.ne.s32.totalorder %s431, %s432
      %p444 = scmp.eq.s32.totalorder %s86, 1
      %p445 = por %p443, %p444
      %p447 = scmp.ne.s32.totalorder %s432, %s446
      %p448 = scmp.eq.s32.totalorder %s86, 0
      %p449 = por %p447, %p448
      %s451 = sadd.s32 %s450, 1
      %p454 = scmp.eq.s32.totalorder %s80, 1
      %p455 = scmp.ne.s32.totalorder %s450, %s452
      %p456 = scmp.eq.s32.totalorder %s80, 0
      %p457 = por %p455, %p456
      %p458 = scmp.ne.s32.totalorder %s450, %s452
      %p459 = scmp.eq.s32.totalorder %s85, 1
      %p460 = por %p458, %p459
      %p461 = scmp.ne.s32.totalorder %s452, %s453
      %p462 = scmp.eq.s32.totalorder %s85, 0
      %p463 = por %p461, %p462
      %p464 = scmp.ne.s32.totalorder %s452, %s453
      %p465 = scmp.eq.s32.totalorder %s86, 1
      %p466 = por %p464, %p465
      %p468 = scmp.ne.s32.totalorder %s453, %s467
      %p469 = scmp.eq.s32.totalorder %s86, 0
      %p470 = por %p468, %p469
      %s472 = sadd.s32 %s471, 1
      %p475 = scmp.eq.s32.totalorder %s80, 1
      %p476 = scmp.ne.s32.totalorder %s471, %s473
      %p477 = scmp.eq.s32.totalorder %s80, 0
      %p478 = por %p476, %p477
      %p479 = scmp.ne.s32.totalorder %s471, %s473
      %p480 = scmp.eq.s32.totalorder %s85, 1
      %p481 = por %p479, %p480
      %p482 = scmp.ne.s32.totalorder %s473, %s474
      %p483 = scmp.eq.s32.totalorder %s85, 0
      %p484 = por %p482, %p483
      %p485 = scmp.ne.s32.totalorder %s473, %s474
      %p486 = scmp.eq.s32.totalorder %s86, 1
      %p487 = por %p485, %p486
      %p489 = scmp.ne.s32.totalorder %s474, %s488
      %p490 = scmp.eq.s32.totalorder %s86, 0
      %p491 = por %p489, %p490
      %s493 = sadd.s32 %s492, 1
      %p496 = scmp.eq.s32.totalorder %s80, 1
      %p497 = scmp.ne.s32.totalorder %s492, %s494
      %p498 = scmp.eq.s32.totalorder %s80, 0
      %p499 = por %p497, %p498
      %p500 = scmp.ne.s32.totalorder %s492, %s494
      %p501 = scmp.eq.s32.totalorder %s85, 1
      %p502 = por %p500, %p501
      %p503 = scmp.ne.s32.totalorder %s494, %s495
      %p504 = scmp.eq.s32.totalorder %s85, 0
      %p505 = por %p503, %p504
      %p506 = scmp.ne.s32.totalorder %s494, %s495
      %p507 = scmp.eq.s32.totalorder %s86, 1
      %p508 = por %p506, %p507
      %p510 = scmp.ne.s32.totalorder %s495, %s509
      %p511 = scmp.eq.s32.totalorder %s86, 0
      %p512 = por %p510, %p511
      %s514 = sadd.s32 %s513, 1
      %p517 = scmp.eq.s32.totalorder %s80, 1
      %p518 = scmp.ne.s32.totalorder %s513, %s515
      %p519 = scmp.eq.s32.totalorder %s80, 0
      %p520 = por %p518, %p519
      %p521 = scmp.ne.s32.totalorder %s513, %s515
      %p522 = scmp.eq.s32.totalorder %s85, 1
      %p523 = por %p521, %p522
      %p524 = scmp.ne.s32.totalorder %s515, %s516
      %p525 = scmp.eq.s32.totalorder %s85, 0
      %p526 = por %p524, %p525
      %p527 = scmp.ne.s32.totalorder %s515, %s516
      %p528 = scmp.eq.s32.totalorder %s86, 1
      %p529 = por %p527, %p528
      %p531 = scmp.ne.s32.totalorder %s516, %s530
      %p532 = scmp.eq.s32.totalorder %s86, 0
      %p533 = por %p531, %p532
      %s535 = sadd.s32 %s534, 1
      %p538 = scmp.eq.s32.totalorder %s80, 1
      %p539 = scmp.ne.s32.totalorder %s534, %s536
      %p540 = scmp.eq.s32.totalorder %s80, 0
      %p541 = por %p539, %p540
      %p542 = scmp.ne.s32.totalorder %s534, %s536
      %p543 = scmp.eq.s32.totalorder %s85, 1
      %p544 = por %p542, %p543
      %p545 = scmp.ne.s32.totalorder %s536, %s537
      %p546 = scmp.eq.s32.totalorder %s85, 0
      %p547 = por %p545, %p546
      %p548 = scmp.ne.s32.totalorder %s536, %s537
      %p549 = scmp.eq.s32.totalorder %s86, 1
      %p550 = por %p548, %p549
      %p552 = scmp.ne.s32.totalorder %s537, %s551
      %p553 = scmp.eq.s32.totalorder %s86, 0
      %p554 = por %p552, %p553
      %s556 = sadd.s32 %s555, 1
      %p559 = scmp.eq.s32.totalorder %s80, 1
      %p560 = scmp.ne.s32.totalorder %s555, %s557
      %p561 = scmp.eq.s32.totalorder %s80, 0
      %p562 = por %p560, %p561
      %p563 = scmp.ne.s32.totalorder %s555, %s557
      %p564 = scmp.eq.s32.totalorder %s85, 1
      %p565 = por %p563, %p564
      %p566 = scmp.ne.s32.totalorder %s557, %s558
      %p567 = scmp.eq.s32.totalorder %s85, 0
      %p568 = por %p566, %p567
      %p569 = scmp.ne.s32.totalorder %s557, %s558
      %p570 = scmp.eq.s32.totalorder %s86, 1
      %p571 = por %p569, %p570
      %p573 = scmp.ne.s32.totalorder %s558, %s572
      %p574 = scmp.eq.s32.totalorder %s86, 0
      %p575 = por %p573, %p574
      %s577 = sadd.s32 %s576, 1
      %p580 = scmp.eq.s32.totalorder %s80, 1
      %p581 = scmp.ne.s32.totalorder %s576, %s578
      %p582 = scmp.eq.s32.totalorder %s80, 0
      %p583 = por %p581, %p582
      %p584 = scmp.ne.s32.totalorder %s576, %s578
      %p585 = scmp.eq.s32.totalorder %s85, 1
      %p586 = por %p584, %p585
      %p587 = scmp.ne.s32.totalorder %s578, %s579
      %p588 = scmp.eq.s32.totalorder %s85, 0
      %p589 = por %p587, %p588
      %p590 = scmp.ne.s32.totalorder %s578, %s579
      %p591 = scmp.eq.s32.totalorder %s86, 1
      %p592 = por %p590, %p591
      %p594 = scmp.ne.s32.totalorder %s579, %s593
      %p595 = scmp.eq.s32.totalorder %s86, 0
      %p596 = por %p594, %p595
      %s598 = sadd.s32 %s597, 1
      %p601 = scmp.eq.s32.totalorder %s80, 1
      %p602 = scmp.ne.s32.totalorder %s597, %s599
      %p603 = scmp.eq.s32.totalorder %s80, 0
      %p604 = por %p602, %p603
      %p605 = scmp.ne.s32.totalorder %s597, %s599
      %p606 = scmp.eq.s32.totalorder %s85, 1
      %p607 = por %p605, %p606
      %p608 = scmp.ne.s32.totalorder %s599, %s600
      %p609 = scmp.eq.s32.totalorder %s85, 0
      %p610 = por %p608, %p609
      %p611 = scmp.ne.s32.totalorder %s599, %s600
      %p612 = scmp.eq.s32.totalorder %s86, 1
      %p613 = por %p611, %p612
      %p615 = scmp.ne.s32.totalorder %s600, %s614
      %p616 = scmp.eq.s32.totalorder %s86, 0
      %p617 = por %p615, %p616
      %s619 = sadd.s32 %s618, 1
      %p622 = scmp.eq.s32.totalorder %s80, 1
      %p623 = scmp.ne.s32.totalorder %s618, %s620
      %p624 = scmp.eq.s32.totalorder %s80, 0
      %p625 = por %p623, %p624
      %p626 = scmp.ne.s32.totalorder %s618, %s620
      %p627 = scmp.eq.s32.totalorder %s85, 1
      %p628 = por %p626, %p627
      %p629 = scmp.ne.s32.totalorder %s620, %s621
      %p630 = scmp.eq.s32.totalorder %s85, 0
      %p631 = por %p629, %p630
      %p632 = scmp.ne.s32.totalorder %s620, %s621
      %p633 = scmp.eq.s32.totalorder %s86, 1
      %p634 = por %p632, %p633
      %p636 = scmp.ne.s32.totalorder %s621, %s635
      %p637 = scmp.eq.s32.totalorder %s86, 0
      %p638 = por %p636, %p637
      %s640 = sadd.s32 %s639, 1
      %p643 = scmp.eq.s32.totalorder %s80, 1
      %p644 = scmp.ne.s32.totalorder %s639, %s641
      %p645 = scmp.eq.s32.totalorder %s80, 0
      %p646 = por %p644, %p645
      %p647 = scmp.ne.s32.totalorder %s639, %s641
      %p648 = scmp.eq.s32.totalorder %s85, 1
      %p649 = por %p647, %p648
      %p650 = scmp.ne.s32.totalorder %s641, %s642
      %p651 = scmp.eq.s32.totalorder %s85, 0
      %p652 = por %p650, %p651
      %p653 = scmp.ne.s32.totalorder %s641, %s642
      %p654 = scmp.eq.s32.totalorder %s86, 1
      %p655 = por %p653, %p654
      %p657 = scmp.ne.s32.totalorder %s642, %s656
      %p658 = scmp.eq.s32.totalorder %s86, 0
      %p659 = por %p657, %p658
      %s661 = sadd.s32 %s660, 1
      %p664 = scmp.eq.s32.totalorder %s80, 1
      %p665 = scmp.ne.s32.totalorder %s660, %s662
      %p666 = scmp.eq.s32.totalorder %s80, 0
      %p667 = por %p665, %p666
      %p668 = scmp.ne.s32.totalorder %s660, %s662
      %p669 = scmp.eq.s32.totalorder %s85, 1
      %p670 = por %p668, %p669
      %p671 = scmp.ne.s32.totalorder %s662, %s663
      %p672 = scmp.eq.s32.totalorder %s85, 0
      %p673 = por %p671, %p672
      %p674 = scmp.ne.s32.totalorder %s662, %s663
      %p675 = scmp.eq.s32.totalorder %s86, 1
      %p676 = por %p674, %p675
      %p678 = scmp.ne.s32.totalorder %s663, %s677
      %p679 = scmp.eq.s32.totalorder %s86, 0
      %p680 = por %p678, %p679
      %s682 = sadd.s32 %s681, 1
      %p685 = scmp.eq.s32.totalorder %s80, 1
      %p686 = scmp.ne.s32.totalorder %s681, %s683
      %p687 = scmp.eq.s32.totalorder %s80, 0
      %p688 = por %p686, %p687
      %p689 = scmp.ne.s32.totalorder %s681, %s683
      %p690 = scmp.eq.s32.totalorder %s85, 1
      %p691 = por %p689, %p690
      %p692 = scmp.ne.s32.totalorder %s683, %s684
      %p693 = scmp.eq.s32.totalorder %s85, 0
      %p694 = por %p692, %p693
      %p695 = scmp.ne.s32.totalorder %s683, %s684
      %p696 = scmp.eq.s32.totalorder %s86, 1
      %p697 = por %p695, %p696
      %p699 = scmp.ne.s32.totalorder %s684, %s698
      %p700 = scmp.eq.s32.totalorder %s86, 0
      %p701 = por %p699, %p700
      %s703 = sadd.s32 %s702, 1
      %p706 = scmp.eq.s32.totalorder %s80, 1
      %p707 = scmp.ne.s32.totalorder %s702, %s704
      %p708 = scmp.eq.s32.totalorder %s80, 0
      %p709 = por %p707, %p708
      %p710 = scmp.ne.s32.totalorder %s702, %s704
      %p711 = scmp.eq.s32.totalorder %s85, 1
      %p712 = por %p710, %p711
      %p713 = scmp.ne.s32.totalorder %s704, %s705
      %p714 = scmp.eq.s32.totalorder %s85, 0
      %p715 = por %p713, %p714
      %p716 = scmp.ne.s32.totalorder %s704, %s705
      %p717 = scmp.eq.s32.totalorder %s86, 1
      %p718 = por %p716, %p717
      %p720 = scmp.ne.s32.totalorder %s705, %s719
      %p721 = scmp.eq.s32.totalorder %s86, 0
      %p722 = por %p720, %p721
      %s724 = sadd.s32 %s723, 1
      %p727 = scmp.eq.s32.totalorder %s80, 1
      %p728 = scmp.ne.s32.totalorder %s723, %s725
      %p729 = scmp.eq.s32.totalorder %s80, 0
      %p730 = por %p728, %p729
      %p731 = scmp.ne.s32.totalorder %s723, %s725
      %p732 = scmp.eq.s32.totalorder %s85, 1
      %p733 = por %p731, %p732
      %p734 = scmp.ne.s32.totalorder %s725, %s726
      %p735 = scmp.eq.s32.totalorder %s85, 0
      %p736 = por %p734, %p735
      %p737 = scmp.ne.s32.totalorder %s725, %s726
      %p738 = scmp.eq.s32.totalorder %s86, 1
      %p739 = por %p737, %p738
      %p741 = scmp.ne.s32.totalorder %s726, %s740
      %p742 = scmp.eq.s32.totalorder %s86, 0
      %p743 = por %p741, %p742
      %s745 = sadd.s32 %s744, 1
      %p748 = scmp.eq.s32.totalorder %s80, 1
      %p749 = scmp.ne.s32.totalorder %s744, %s746
      %p750 = scmp.eq.s32.totalorder %s80, 0
      %p751 = por %p749, %p750
      %p752 = scmp.ne.s32.totalorder %s744, %s746
      %p753 = scmp.eq.s32.totalorder %s85, 1
      %p754 = por %p752, %p753
      %p755 = scmp.ne.s32.totalorder %s746, %s747
      %p756 = scmp.eq.s32.totalorder %s85, 0
      %p757 = por %p755, %p756
      %p758 = scmp.ne.s32.totalorder %s746, %s747
      %p759 = scmp.eq.s32.totalorder %s86, 1
      %p760 = por %p758, %p759
      %p762 = scmp.ne.s32.totalorder %s747, %s761
      %p763 = scmp.eq.s32.totalorder %s86, 0
      %p764 = por %p762, %p763
      %s766 = sadd.s32 %s765, 1
      %p769 = scmp.eq.s32.totalorder %s80, 1
      %p770 = scmp.ne.s32.totalorder %s765, %s767
      %p771 = scmp.eq.s32.totalorder %s80, 0
      %p772 = por %p770, %p771
      %p773 = scmp.ne.s32.totalorder %s765, %s767
      %p774 = scmp.eq.s32.totalorder %s85, 1
      %p775 = por %p773, %p774
      %p776 = scmp.ne.s32.totalorder %s767, %s768
      %p777 = scmp.eq.s32.totalorder %s85, 0
      %p778 = por %p776, %p777
      %p779 = scmp.ne.s32.totalorder %s767, %s768
      %p780 = scmp.eq.s32.totalorder %s86, 1
      %p781 = por %p779, %p780
      %p783 = scmp.ne.s32.totalorder %s768, %s782
      %p784 = scmp.eq.s32.totalorder %s86, 0
      %p785 = por %p783, %p784
      %s787 = sadd.s32 %s786, 1
      %p790 = scmp.eq.s32.totalorder %s80, 1
      %p791 = scmp.ne.s32.totalorder %s786, %s788
      %p792 = scmp.eq.s32.totalorder %s80, 0
      %p793 = por %p791, %p792
      %p794 = scmp.ne.s32.totalorder %s786, %s788
      %p795 = scmp.eq.s32.totalorder %s85, 1
      %p796 = por %p794, %p795
      %p797 = scmp.ne.s32.totalorder %s788, %s789
      %p798 = scmp.eq.s32.totalorder %s85, 0
      %p799 = por %p797, %p798
      %p800 = scmp.ne.s32.totalorder %s788, %s789
      %p801 = scmp.eq.s32.totalorder %s86, 1
      %p802 = por %p800, %p801
      %p804 = scmp.ne.s32.totalorder %s789, %s803
      %p805 = scmp.eq.s32.totalorder %s86, 0
      %p806 = por %p804, %p805
      %s808 = sadd.s32 %s807, 1
      %p811 = scmp.eq.s32.totalorder %s80, 1
      %p812 = scmp.ne.s32.totalorder %s807, %s809
      %p813 = scmp.eq.s32.totalorder %s80, 0
      %p814 = por %p812, %p813
      %p815 = scmp.ne.s32.totalorder %s807, %s809
      %p816 = scmp.eq.s32.totalorder %s85, 1
      %p817 = por %p815, %p816
      %p818 = scmp.ne.s32.totalorder %s809, %s810
      %p819 = scmp.eq.s32.totalorder %s85, 0
      %p820 = por %p818, %p819
      %p821 = scmp.ne.s32.totalorder %s809, %s810
      %p822 = scmp.eq.s32.totalorder %s86, 1
      %p823 = por %p821, %p822
      %p825 = scmp.ne.s32.totalorder %s810, %s824
      %p826 = scmp.eq.s32.totalorder %s86, 0
      %p827 = por %p825, %p826
      %s828 = ssub.s32 %s80, %s87
      %p829 = scmp.eq.s32.totalorder %s828, 0
      %s831 = sadd.s32 %s830, 1
      %s832 = scalar_select %p829, %s830, %s831
      %p835 = pneg %p829
      %p836 = scmp.eq.s32.totalorder %s80, 1
      %p837 = por %p835, %p836
      %p838 = scmp.ne.s32.totalorder %s830, %s833
      %p839 = scmp.eq.s32.totalorder %s80, 0
      %p840 = por %p838, %p839
      %p841 = scmp.ne.s32.totalorder %s830, %s833
      %p842 = scmp.eq.s32.totalorder %s85, 1
      %p843 = por %p841, %p842
      %p844 = scmp.ne.s32.totalorder %s833, %s834
      %p845 = scmp.eq.s32.totalorder %s85, 0
      %p846 = por %p844, %p845
      %p847 = scmp.ne.s32.totalorder %s833, %s834
      %p848 = scmp.eq.s32.totalorder %s86, 1
      %p849 = por %p847, %p848
      %p851 = scmp.ne.s32.totalorder %s834, %s850
      %p852 = scmp.eq.s32.totalorder %s86, 0
      %p853 = por %p851, %p852
      %p854 = scmp.le.s32.totalorder 1, %s80
      %p855 = scmp.lt.s32.totalorder %s80, 3
      %p856 = pnand %p854, %p855
      %p857 = pneg %p856
      // Predicated region
      $region9: #{transformer_block_forward.1} parent=5 // pred_check
        _
      $region10: #{transformer_block_forward.1} parent=5 // pred_check_branch
        %859 = sbr.rel (%p856) target = $region12
      $region11: #{transformer_block_forward.1} parent=5 // pred_region
        %s860 = ssub.s32 %s80, 1
        // Predicated region
        $region13: #{transformer_block_forward.1} parent=11 // pred_check
          %p861 = pneg %p127
        $region14: #{transformer_block_forward.1} parent=11 // pred_check_branch
          %863 = sbr.rel (%p861) target = $region16
        $region15: #{transformer_block_forward.1} parent=11 // pred_region
          _
        $region16: #{transformer_block_forward.1} parent=11 // pred_fallthru
          _
        // Predicated region
        $region17: #{transformer_block_forward.1} parent=11 // pred_check
          %p864 = pneg %p148
        $region18: #{transformer_block_forward.1} parent=11 // pred_check_branch
          %866 = sbr.rel (%p864) target = $region20
        $region19: #{transformer_block_forward.1} parent=11 // pred_region
          _
        $region20: #{transformer_block_forward.1} parent=11 // pred_fallthru
          _
        // Predicated region
        $region21: #{transformer_block_forward.1} parent=11 // pred_check
          %p867 = pneg %p169
        $region22: #{transformer_block_forward.1} parent=11 // pred_check_branch
          %869 = sbr.rel (%p867) target = $region24
        $region23: #{transformer_block_forward.1} parent=11 // pred_region
          _
        $region24: #{transformer_block_forward.1} parent=11 // pred_fallthru
          _
        // Predicated region
        $region25: #{transformer_block_forward.1} parent=11 // pred_check
          %p870 = pneg %p190
        $region26: #{transformer_block_forward.1} parent=11 // pred_check_branch
          %872 = sbr.rel (%p870) target = $region28
        $region27: #{transformer_block_forward.1} parent=11 // pred_region
          _
        $region28: #{transformer_block_forward.1} parent=11 // pred_fallthru
          _
        // Predicated region
        $region29: #{transformer_block_forward.1} parent=11 // pred_check
          %p873 = pneg %p211
        $region30: #{transformer_block_forward.1} parent=11 // pred_check_branch
          %875 = sbr.rel (%p873) target = $region32
        $region31: #{transformer_block_forward.1} parent=11 // pred_region
          _
        $region32: #{transformer_block_forward.1} parent=11 // pred_fallthru
          _
        // Predicated region
        $region33: #{transformer_block_forward.1} parent=11 // pred_check
          %p876 = pneg %p232
        $region34: #{transformer_block_forward.1} parent=11 // pred_check_branch
          %878 = sbr.rel (%p876) target = $region36
        $region35: #{transformer_block_forward.1} parent=11 // pred_region
          _
        $region36: #{transformer_block_forward.1} parent=11 // pred_fallthru
          _
        // Predicated region
        $region37: #{transformer_block_forward.1} parent=11 // pred_check
          %p879 = pneg %p253
        $region38: #{transformer_block_forward.1} parent=11 // pred_check_branch
          %881 = sbr.rel (%p879) target = $region40
        $region39: #{transformer_block_forward.1} parent=11 // pred_region
          _
        $region40: #{transformer_block_forward.1} parent=11 // pred_fallthru
          _
        // Predicated region
        $region41: #{transformer_block_forward.1} parent=11 // pred_check
          %p882 = pneg %p274
        $region42: #{transformer_block_forward.1} parent=11 // pred_check_branch
          %884 = sbr.rel (%p882) target = $region44
        $region43: #{transformer_block_forward.1} parent=11 // pred_region
          _
        $region44: #{transformer_block_forward.1} parent=11 // pred_fallthru
          _
        // Predicated region
        $region45: #{transformer_block_forward.1} parent=11 // pred_check
          %p885 = pneg %p295
        $region46: #{transformer_block_forward.1} parent=11 // pred_check_branch
          %887 = sbr.rel (%p885) target = $region48
        $region47: #{transformer_block_forward.1} parent=11 // pred_region
          _
        $region48: #{transformer_block_forward.1} parent=11 // pred_fallthru
          _
        // Predicated region
        $region49: #{transformer_block_forward.1} parent=11 // pred_check
          %p888 = pneg %p316
        $region50: #{transformer_block_forward.1} parent=11 // pred_check_branch
          %890 = sbr.rel (%p888) target = $region52
        $region51: #{transformer_block_forward.1} parent=11 // pred_region
          _
        $region52: #{transformer_block_forward.1} parent=11 // pred_fallthru
          _
        // Predicated region
        $region53: #{transformer_block_forward.1} parent=11 // pred_check
          %p891 = pneg %p337
        $region54: #{transformer_block_forward.1} parent=11 // pred_check_branch
          %893 = sbr.rel (%p891) target = $region56
        $region55: #{transformer_block_forward.1} parent=11 // pred_region
          _
        $region56: #{transformer_block_forward.1} parent=11 // pred_fallthru
          _
        // Predicated region
        $region57: #{transformer_block_forward.1} parent=11 // pred_check
          %p894 = pneg %p358
        $region58: #{transformer_block_forward.1} parent=11 // pred_check_branch
          %896 = sbr.rel (%p894) target = $region60
        $region59: #{transformer_block_forward.1} parent=11 // pred_region
          _
        $region60: #{transformer_block_forward.1} parent=11 // pred_fallthru
          _
        // Predicated region
        $region61: #{transformer_block_forward.1} parent=11 // pred_check
          %p897 = pneg %p379
        $region62: #{transformer_block_forward.1} parent=11 // pred_check_branch
          %899 = sbr.rel (%p897) target = $region64
        $region63: #{transformer_block_forward.1} parent=11 // pred_region
          _
        $region64: #{transformer_block_forward.1} parent=11 // pred_fallthru
          _
        // Predicated region
        $region65: #{transformer_block_forward.1} parent=11 // pred_check
          %p900 = pneg %p400
        $region66: #{transformer_block_forward.1} parent=11 // pred_check_branch
          %902 = sbr.rel (%p900) target = $region68
        $region67: #{transformer_block_forward.1} parent=11 // pred_region
          _
        $region68: #{transformer_block_forward.1} parent=11 // pred_fallthru
          _
        // Predicated region
        $region69: #{transformer_block_forward.1} parent=11 // pred_check
          %p903 = pneg %p421
        $region70: #{transformer_block_forward.1} parent=11 // pred_check_branch
          %905 = sbr.rel (%p903) target = $region72
        $region71: #{transformer_block_forward.1} parent=11 // pred_region
          _
        $region72: #{transformer_block_forward.1} parent=11 // pred_fallthru
          _
        // Predicated region
        $region73: #{transformer_block_forward.1} parent=11 // pred_check
          %p906 = pneg %p442
        $region74: #{transformer_block_forward.1} parent=11 // pred_check_branch
          %908 = sbr.rel (%p906) target = $region76
        $region75: #{transformer_block_forward.1} parent=11 // pred_region
          _
        $region76: #{transformer_block_forward.1} parent=11 // pred_fallthru
          _
        // Predicated region
        $region77: #{transformer_block_forward.1} parent=11 // pred_check
          %p909 = pneg %p463
        $region78: #{transformer_block_forward.1} parent=11 // pred_check_branch
          %911 = sbr.rel (%p909) target = $region80
        $region79: #{transformer_block_forward.1} parent=11 // pred_region
          _
        $region80: #{transformer_block_forward.1} parent=11 // pred_fallthru
          _
        // Predicated region
        $region81: #{transformer_block_forward.1} parent=11 // pred_check
          %p912 = pneg %p484
        $region82: #{transformer_block_forward.1} parent=11 // pred_check_branch
          %914 = sbr.rel (%p912) target = $region84
        $region83: #{transformer_block_forward.1} parent=11 // pred_region
          _
        $region84: #{transformer_block_forward.1} parent=11 // pred_fallthru
          _
        // Predicated region
        $region85: #{transformer_block_forward.1} parent=11 // pred_check
          %p915 = pneg %p505
        $region86: #{transformer_block_forward.1} parent=11 // pred_check_branch
          %917 = sbr.rel (%p915) target = $region88
        $region87: #{transformer_block_forward.1} parent=11 // pred_region
          _
        $region88: #{transformer_block_forward.1} parent=11 // pred_fallthru
          _
        // Predicated region
        $region89: #{transformer_block_forward.1} parent=11 // pred_check
          %p918 = pneg %p526
        $region90: #{transformer_block_forward.1} parent=11 // pred_check_branch
          %920 = sbr.rel (%p918) target = $region92
        $region91: #{transformer_block_forward.1} parent=11 // pred_region
          _
        $region92: #{transformer_block_forward.1} parent=11 // pred_fallthru
          _
        // Predicated region
        $region93: #{transformer_block_forward.1} parent=11 // pred_check
          %p921 = pneg %p547
        $region94: #{transformer_block_forward.1} parent=11 // pred_check_branch
          %923 = sbr.rel (%p921) target = $region96
        $region95: #{transformer_block_forward.1} parent=11 // pred_region
          _
        $region96: #{transformer_block_forward.1} parent=11 // pred_fallthru
          _
        // Predicated region
        $region97: #{transformer_block_forward.1} parent=11 // pred_check
          %p924 = pneg %p568
        $region98: #{transformer_block_forward.1} parent=11 // pred_check_branch
          %926 = sbr.rel (%p924) target = $region100
        $region99: #{transformer_block_forward.1} parent=11 // pred_region
          _
        $region100: #{transformer_block_forward.1} parent=11 // pred_fallthru
          _
        // Predicated region
        $region101: #{transformer_block_forward.1} parent=11 // pred_check
          %p927 = pneg %p589
        $region102: #{transformer_block_forward.1} parent=11 // pred_check_branch
          %929 = sbr.rel (%p927) target = $region104
        $region103: #{transformer_block_forward.1} parent=11 // pred_region
          _
        $region104: #{transformer_block_forward.1} parent=11 // pred_fallthru
          _
        // Predicated region
        $region105: #{transformer_block_forward.1} parent=11 // pred_check
          %p930 = pneg %p610
        $region106: #{transformer_block_forward.1} parent=11 // pred_check_branch
          %932 = sbr.rel (%p930) target = $region108
        $region107: #{transformer_block_forward.1} parent=11 // pred_region
          _
        $region108: #{transformer_block_forward.1} parent=11 // pred_fallthru
          _
        // Predicated region
        $region109: #{transformer_block_forward.1} parent=11 // pred_check
          %p933 = pneg %p631
        $region110: #{transformer_block_forward.1} parent=11 // pred_check_branch
          %935 = sbr.rel (%p933) target = $region112
        $region111: #{transformer_block_forward.1} parent=11 // pred_region
          _
        $region112: #{transformer_block_forward.1} parent=11 // pred_fallthru
          _
        // Predicated region
        $region113: #{transformer_block_forward.1} parent=11 // pred_check
          %p936 = pneg %p652
        $region114: #{transformer_block_forward.1} parent=11 // pred_check_branch
          %938 = sbr.rel (%p936) target = $region116
        $region115: #{transformer_block_forward.1} parent=11 // pred_region
          _
        $region116: #{transformer_block_forward.1} parent=11 // pred_fallthru
          _
        // Predicated region
        $region117: #{transformer_block_forward.1} parent=11 // pred_check
          %p939 = pneg %p673
        $region118: #{transformer_block_forward.1} parent=11 // pred_check_branch
          %941 = sbr.rel (%p939) target = $region120
        $region119: #{transformer_block_forward.1} parent=11 // pred_region
          _
        $region120: #{transformer_block_forward.1} parent=11 // pred_fallthru
          _
        // Predicated region
        $region121: #{transformer_block_forward.1} parent=11 // pred_check
          %p942 = pneg %p694
        $region122: #{transformer_block_forward.1} parent=11 // pred_check_branch
          %944 = sbr.rel (%p942) target = $region124
        $region123: #{transformer_block_forward.1} parent=11 // pred_region
          _
        $region124: #{transformer_block_forward.1} parent=11 // pred_fallthru
          _
        // Predicated region
        $region125: #{transformer_block_forward.1} parent=11 // pred_check
          %p945 = pneg %p715
        $region126: #{transformer_block_forward.1} parent=11 // pred_check_branch
          %947 = sbr.rel (%p945) target = $region128
        $region127: #{transformer_block_forward.1} parent=11 // pred_region
          _
        $region128: #{transformer_block_forward.1} parent=11 // pred_fallthru
          _
        // Predicated region
        $region129: #{transformer_block_forward.1} parent=11 // pred_check
          %p948 = pneg %p736
        $region130: #{transformer_block_forward.1} parent=11 // pred_check_branch
          %950 = sbr.rel (%p948) target = $region132
        $region131: #{transformer_block_forward.1} parent=11 // pred_region
          _
        $region132: #{transformer_block_forward.1} parent=11 // pred_fallthru
          _
        // Predicated region
        $region133: #{transformer_block_forward.1} parent=11 // pred_check
          %p951 = pneg %p757
        $region134: #{transformer_block_forward.1} parent=11 // pred_check_branch
          %953 = sbr.rel (%p951) target = $region136
        $region135: #{transformer_block_forward.1} parent=11 // pred_region
          _
        $region136: #{transformer_block_forward.1} parent=11 // pred_fallthru
          _
        // Predicated region
        $region137: #{transformer_block_forward.1} parent=11 // pred_check
          %p954 = pneg %p778
        $region138: #{transformer_block_forward.1} parent=11 // pred_check_branch
          %956 = sbr.rel (%p954) target = $region140
        $region139: #{transformer_block_forward.1} parent=11 // pred_region
          _
        $region140: #{transformer_block_forward.1} parent=11 // pred_fallthru
          _
        // Predicated region
        $region141: #{transformer_block_forward.1} parent=11 // pred_check
          %p957 = pneg %p799
        $region142: #{transformer_block_forward.1} parent=11 // pred_check_branch
          %959 = sbr.rel (%p957) target = $region144
        $region143: #{transformer_block_forward.1} parent=11 // pred_region
          _
        $region144: #{transformer_block_forward.1} parent=11 // pred_fallthru
          _
        // Predicated region
        $region145: #{transformer_block_forward.1} parent=11 // pred_check
          %p960 = pneg %p820
        $region146: #{transformer_block_forward.1} parent=11 // pred_check_branch
          %962 = sbr.rel (%p960) target = $region148
        $region147: #{transformer_block_forward.1} parent=11 // pred_region
          _
        $region148: #{transformer_block_forward.1} parent=11 // pred_fallthru
          _
      $region12: #{transformer_block_forward.1} parent=5 // pred_fallthru
        _
      %p963 = scmp.lt.s32.totalorder %s80, 2
      // Predicated region
      $region149: #{transformer_block_forward.1} parent=5 // pred_check
        %p964 = pneg %p963
      $region150: #{transformer_block_forward.1} parent=5 // pred_check_branch
        %966 = sbr.rel (%p964) target = $region152
      $region151: #{transformer_block_forward.1} parent=5 // pred_region
        // Predicated region
        $region153: #{transformer_block_forward.1} parent=151 // pred_check
          %p967 = pneg %p100
        $region154: #{transformer_block_forward.1} parent=151 // pred_check_branch
          %969 = sbr.rel (%p967) target = $region156
        $region155: #{transformer_block_forward.1} parent=151 // pred_region
          %p970 = scmp.lt.s32.totalorder %s80, 1
          %s971 = scalar_select %p970, %s80, 1
          %s972 = smul.addr %s971, 8
          %s973 = smul.addr %s972, 8
          %s974 = scalar_lea.vmem %s1, %s973
        $region156: #{transformer_block_forward.1} parent=151 // pred_fallthru
          _
      $region152: #{transformer_block_forward.1} parent=5 // pred_fallthru
        _
      %p975 = scmp.le.s32.totalorder 1, %s80
      %p976 = scmp.lt.s32.totalorder %s80, 3
      %p977 = pnand %p975, %p976
      %p978 = pneg %p977
      // Predicated region
      $region157: #{transformer_block_forward.1} parent=5 // pred_check
        _
      $region158: #{transformer_block_forward.1} parent=5 // pred_check_branch
        %980 = sbr.rel (%p977) target = $region160
      $region159: #{transformer_block_forward.1} parent=5 // pred_region
        %s981 = ssub.s32 %s80, 1
        %p982 = scmp.lt.s32.totalorder %s85, 1
        %s983 = scalar_select %p982, %s85, 1
        %s984 = smul.addr %s983, 8
        %s985 = smul.addr %s984, 8
        %s986 = scalar_lea.vmem %s1, %s985
        %p987 = pneg %p106
        %p988 = pneg %p103
        %p989 = pneg %p127
        %p990 = pneg %p124
        %p991 = pneg %p148
        %p992 = pneg %p145
        %p993 = pneg %p169
        %p994 = pneg %p166
        %p995 = pneg %p190
        %p996 = pneg %p187
        %p997 = pneg %p211
        %p998 = pneg %p208
        %p999 = pneg %p232
        %p1000 = pneg %p229
        %p1001 = pneg %p253
        %p1002 = pneg %p250
        %p1003 = pneg %p274
        %p1004 = pneg %p271
        %p1005 = pneg %p295
        %p1006 = pneg %p292
        %p1007 = pneg %p316
        %p1008 = pneg %p313
        %p1009 = pneg %p337
        %p1010 = pneg %p334
        %p1011 = pneg %p358
        %p1012 = pneg %p355
        %p1013 = pneg %p379
        %p1014 = pneg %p376
        %p1015 = pneg %p400
        %p1016 = pneg %p397
        %p1017 = pneg %p421
        %p1018 = pneg %p418
        %p1019 = pneg %p442
        %p1020 = pneg %p439
        %p1021 = pneg %p463
        %p1022 = pneg %p460
        %p1023 = pneg %p484
        %p1024 = pneg %p481
        %p1025 = pneg %p505
        %p1026 = pneg %p502
        %p1027 = pneg %p526
        %p1028 = pneg %p523
        %p1029 = pneg %p547
        %p1030 = pneg %p544
        %p1031 = pneg %p568
        %p1032 = pneg %p565
        %p1033 = pneg %p589
        %p1034 = pneg %p586
        %p1035 = pneg %p610
        %p1036 = pneg %p607
        %p1037 = pneg %p631
        %p1038 = pneg %p628
        %p1039 = pneg %p652
        %p1040 = pneg %p649
        %p1041 = pneg %p673
        %p1042 = pneg %p670
        %p1043 = pneg %p694
        %p1044 = pneg %p691
        %p1045 = pneg %p715
        %p1046 = pneg %p712
        %p1047 = pneg %p736
        %p1048 = pneg %p733
        %p1049 = pneg %p757
        %p1050 = pneg %p754
        %p1051 = pneg %p778
        %p1052 = pneg %p775
        %p1053 = pneg %p799
        %p1054 = pneg %p796
        %p1055 = pneg %p820
        %p1056 = pneg %p817
        %p1057 = pneg %p846
        %p1058 = pneg %p843
        %s1059 = sand.u32 %s833, 1
        %s1060 = scalar_lea.sflag [#allocation4], %s1059
        %s1061 = sand.u32 %s833, 1
        %s1062 = smul.addr %s1061, 64
        %s1063 = scalar_lea.vmem [#allocation3], %s1062
        %p1064 = scmp.lt.s32.totalorder %s85, 1
        %s1065 = scalar_select %p1064, %s85, 1
        %s1066 = smul.addr %s1065, 8
        %s1067 = smul.addr %s1066, 8
        %s1068 = scalar_lea.vmem %s1, %s1067
        %v1070 = vld [vmem:[%s1068] sm:$0xff]
        %v1071 = vld [vmem:[%s1068 + $0x8] sm:$0xff]
        %v1072 = vld [vmem:[%s1068 + $0x10] sm:$0xff]
        %v1073 = vld [vmem:[%s1068 + $0x18] sm:$0xff]
        %v1074 = vld [vmem:[%s1068 + $0x20] sm:$0xff]
        %v1075 = vld [vmem:[%s1068 + $0x28] sm:$0xff]
        %v1076 = vld [vmem:[%s1068 + $0x30] sm:$0xff]
        %v1077 = vld [vmem:[%s1068 + $0x38] sm:$0xff]
        %vm1078 = vcmask 261120
        %v1079 = vsel %vm1078, %v1070, 0.0
        %1080 = vadd.xlane.f32.xlu0 %v1079
        %v1081 = vpop.xlane.xlu0 %1080
        %v1082 = vsel %vm1078, %v1071, 0.0
        %1083 = vadd.xlane.f32.xlu0 %v1082
        %v1084 = vpop.xlane.xlu0 %1083
        %v1085 = vsel %vm1078, %v1072, 0.0
        %1086 = vadd.xlane.f32.xlu0 %v1085
        %v1087 = vpop.xlane.xlu0 %1086
        %v1088 = vsel %vm1078, %v1073, 0.0
        %1089 = vadd.xlane.f32.xlu0 %v1088
        %v1090 = vpop.xlane.xlu0 %1089
        %v1091 = vsel %vm1078, %v1074, 0.0
        %1092 = vadd.xlane.f32.xlu0 %v1091
        %v1093 = vpop.xlane.xlu0 %1092
        %v1094 = vsel %vm1078, %v1075, 0.0
        %1095 = vadd.xlane.f32.xlu0 %v1094
        %v1096 = vpop.xlane.xlu0 %1095
        %v1097 = vsel %vm1078, %v1076, 0.0
        %1098 = vadd.xlane.f32.xlu0 %v1097
        %v1099 = vpop.xlane.xlu0 %1098
        %v1100 = vsel %vm1078, %v1077, 0.0
        %1101 = vadd.xlane.f32.xlu0 %v1100
        %v1102 = vpop.xlane.xlu0 %1101
        %v1103 = vrcp.pop 32.0
        %v1104 = vmul.f32 %v1081, %v1103
        %v1105 = vmul.f32 %v1084, %v1103
        %v1106 = vmul.f32 %v1087, %v1103
        %v1107 = vmul.f32 %v1090, %v1103
        %v1108 = vmul.f32 %v1093, %v1103
        %v1109 = vmul.f32 %v1096, %v1103
        %v1110 = vmul.f32 %v1099, %v1103
        %v1111 = vmul.f32 %v1102, %v1103
        %v1112 = vsub.f32 %v1070, %v1104
        %v1113 = vsub.f32 %v1071, %v1105
        %v1114 = vsub.f32 %v1072, %v1106
        %v1115 = vsub.f32 %v1073, %v1107
        %v1116 = vsub.f32 %v1074, %v1108
        %v1117 = vsub.f32 %v1075, %v1109
        %v1118 = vsub.f32 %v1076, %v1110
        %v1119 = vsub.f32 %v1077, %v1111
        %v1120 = vmul.f32 %v1112, %v1112
        %v1121 = vmul.f32 %v1113, %v1113
        %v1122 = vmul.f32 %v1114, %v1114
        %v1123 = vmul.f32 %v1115, %v1115
        %v1124 = vmul.f32 %v1116, %v1116
        %v1125 = vmul.f32 %v1117, %v1117
        %v1126 = vmul.f32 %v1118, %v1118
        %v1127 = vmul.f32 %v1119, %v1119
        %v1128 = vsel %vm1078, %v1120, 0.0
        %1129 = vadd.xlane.f32.xlu0 %v1128
        %v1130 = vpop.xlane.xlu0 %1129
        %v1131 = vsel %vm1078, %v1121, 0.0
        %1132 = vadd.xlane.f32.xlu0 %v1131
        %v1133 = vpop.xlane.xlu0 %1132
        %v1134 = vsel %vm1078, %v1122, 0.0
        %1135 = vadd.xlane.f32.xlu0 %v1134
        %v1136 = vpop.xlane.xlu0 %1135
        %v1137 = vsel %vm1078, %v1123, 0.0
        %1138 = vadd.xlane.f32.xlu0 %v1137
        %v1139 = vpop.xlane.xlu0 %1138
        %v1140 = vsel %vm1078, %v1124, 0.0
        %1141 = vadd.xlane.f32.xlu0 %v1140
        %v1142 = vpop.xlane.xlu0 %1141
        %v1143 = vsel %vm1078, %v1125, 0.0
        %1144 = vadd.xlane.f32.xlu0 %v1143
        %v1145 = vpop.xlane.xlu0 %1144
        %v1146 = vsel %vm1078, %v1126, 0.0
        %1147 = vadd.xlane.f32.xlu0 %v1146
        %v1148 = vpop.xlane.xlu0 %1147
        %v1149 = vsel %vm1078, %v1127, 0.0
        %1150 = vadd.xlane.f32.xlu0 %v1149
        %v1151 = vpop.xlane.xlu0 %1150
        %v1152 = vmul.f32 %v1130, %v1103
        %v1153 = vmul.f32 %v1133, %v1103
        %v1154 = vmul.f32 %v1136, %v1103
        %v1155 = vmul.f32 %v1139, %v1103
        %v1156 = vmul.f32 %v1142, %v1103
        %v1157 = vmul.f32 %v1145, %v1103
        %v1158 = vmul.f32 %v1148, %v1103
        %v1159 = vmul.f32 %v1151, %v1103
        %v1160 = vadd.f32 %v1152, 1e-05
        %v1161 = vadd.f32 %v1153, 1e-05
        %v1162 = vadd.f32 %v1154, 1e-05
        %v1163 = vadd.f32 %v1155, 1e-05
        %v1164 = vadd.f32 %v1156, 1e-05
        %v1165 = vadd.f32 %v1157, 1e-05
        %v1166 = vadd.f32 %v1158, 1e-05
        %v1167 = vadd.f32 %v1159, 1e-05
        %v1168 = vrsqrt.pop %v1160
        %v1169 = vrsqrt.pop %v1161
        %v1170 = vrsqrt.pop %v1162
        %v1171 = vrsqrt.pop %v1163
        %v1172 = vrsqrt.pop %v1164
        %v1173 = vrsqrt.pop %v1165
        %v1174 = vrsqrt.pop %v1166
        %v1175 = vrsqrt.pop %v1167
        %v1176 = vmul.f32 %v1112, %v1168
        %v1177 = vmul.f32 %v1113, %v1169
        %v1178 = vmul.f32 %v1114, %v1170
        %v1179 = vmul.f32 %v1115, %v1171
        %v1180 = vmul.f32 %v1116, %v1172
        %v1181 = vmul.f32 %v1117, %v1173
        %v1182 = vmul.f32 %v1118, %v1174
        %v1183 = vmul.f32 %v1119, %v1175
        %v1184 = vld [vmem:[%s3] sm:$0x1]
        %v1186 = vlaneseq
        %v1187 = vshrl.u32 %v1186, 7
        %v1188 = vsub.s32 0, %v1187
        %v1189 = vrot.slane %v1184, %v1188
        %v1191 = vmul.f32 %v1176, %v1189
        %v1192 = vmul.f32 %v1177, %v1189
        %v1193 = vmul.f32 %v1178, %v1189
        %v1194 = vmul.f32 %v1179, %v1189
        %v1195 = vmul.f32 %v1180, %v1189
        %v1196 = vmul.f32 %v1181, %v1189
        %v1197 = vmul.f32 %v1182, %v1189
        %v1198 = vmul.f32 %v1183, %v1189
        %v1199 = vld [vmem:[%s5] sm:$0x1]
        %v1201 = vlaneseq
        %v1202 = vshrl.u32 %v1201, 7
        %v1203 = vsub.s32 0, %v1202
        %v1204 = vrot.slane %v1199, %v1203
        %v1206 = vadd.f32 %v1191, %v1204
        %v1207 = vadd.f32 %v1192, %v1204
        %v1208 = vadd.f32 %v1193, %v1204
        %v1209 = vadd.f32 %v1194, %v1204
        %v1210 = vadd.f32 %v1195, %v1204
        %v1211 = vadd.f32 %v1196, %v1204
        %v1212 = vadd.f32 %v1197, %v1204
        %v1213 = vadd.f32 %v1198, %v1204
        %v1214 = vld [vmem:[%s9] sm:$0xf]
        %v1215 = vld [vmem:[%s9 + $0x4] sm:$0xf]
        %v1216 = vld [vmem:[%s9 + $0x8] sm:$0xf]
        %v1217 = vld [vmem:[%s9 + $0xc] sm:$0xf]
        %v1218 = vpack.c.bf16 %v1207, %v1206
        %v1219 = vpack.c.bf16 %v1209, %v1208
        %v1220 = vpack.c.bf16 %v1211, %v1210
        %v1221 = vpack.c.bf16 %v1213, %v1212
        %v1226 = vunpack.c.l.b16 %v1214
        %v1227 = vunpack.c.l.b16 %v1215
        %v1228 = vunpack.c.l.b16 %v1216
        %v1229 = vunpack.c.l.b16 %v1217
        %v1230 = vpack.c.b16 %v1227, %v1226
        %v1231 = vpack.c.b16 %v1229, %v1228
        %v1235 = vsel %vm1078, %v1218, 0
        %v1238 = vsel %vm1078, %v1219, 0
        %v1241 = vsel %vm1078, %v1220, 0
        %v1244 = vsel %vm1078, %v1221, 0
        %1246 = vmatprep.subr.bf16.mxu0 0
        %1247 = vmatpush1.bf16.msra.mxu0 0
        %1248 = vmatprep.subr.bf16.mxu0 0
        %1249 = vmatpush1.bf16.msra.mxu0 0
        %1250 = vmatprep.subr.bf16.mxu0 0
        %1251 = vmatpush1.bf16.msra.mxu0 0
        %1252 = vmatprep.subr.bf16.mxu0 0
        %1253 = vmatpush1.bf16.msra.mxu0 0
        %1254 = vmatprep.subr.bf16.mxu0 0
        %1255 = vmatpush1.bf16.msra.mxu0 0
        %1256 = vmatprep.subr.bf16.mxu0 0
        %1257 = vmatpush1.bf16.msra.mxu0 0
        %1258 = vmatprep.subr.bf16.mxu0 0
        %1259 = vmatpush1.bf16.msra.mxu0 %v1231
        %1260 = vmatprep.subr.bf16.mxu0 0
        %1261 = vmatpush1.bf16.msra.mxu0 %v1230
        %1262 = vmatprep.subr.bf16.mxu0 0
        %1263 = vmatpush2.bf16.msra.mxu0 0
        %1264 = vmatprep.subr.bf16.mxu0 0
        %1265 = vmatpush2.bf16.msra.mxu0 0
        %1266 = vmatprep.subr.bf16.mxu0 0
        %1267 = vmatpush2.bf16.msra.mxu0 0
        %1268 = vmatprep.subr.bf16.mxu0 0
        %1269 = vmatpush2.bf16.msra.mxu0 0
        %1270 = vmatprep.subr.bf16.mxu0 0
        %1271 = vmatpush2.bf16.msra.mxu0 0
        %1272 = vmatprep.subr.bf16.mxu0 0
        %1273 = vmatpush2.bf16.msra.mxu0 0
        %1274 = vmatprep.subr.bf16.mxu0 0
        %1275 = vmatpush2.bf16.msra.mxu0 0
        %1276 = vmatprep.subr.bf16.mxu0 0
        %1277 = vmatpush2.bf16.msra.mxu0 0
        %1278 = vmatprep.mubr.bf16.mxu0 0
        %1279 = vmatmul.mubr.bf16.gmra.mxu0 %v1235
        %v1280 = vpop.f32.mrf.mxu0
        %v1281 = vadd.f32 0.0, %v1280
        %v1282 = vpop.f32.mrf.mxu0
        %v1283 = vpop.f32.mrf.mxu0
        %v1284 = vadd.f32 0.0, %v1283
        %v1285 = vpop.f32.mrf.mxu0
        %1286 = vmatprep.mubr.bf16.mxu0 0
        %1287 = vmatmul.mubr.bf16.gmra.mxu0 %v1238
        %v1288 = vpop.f32.mrf.mxu0
        %v1289 = vadd.f32 0.0, %v1288
        %v1290 = vpop.f32.mrf.mxu0
        %v1291 = vpop.f32.mrf.mxu0
        %v1292 = vadd.f32 0.0, %v1291
        %v1293 = vpop.f32.mrf.mxu0
        %1294 = vmatprep.mubr.bf16.mxu0 0
        %1295 = vmatmul.mubr.bf16.gmra.mxu0 %v1241
        %v1296 = vpop.f32.mrf.mxu0
        %v1297 = vadd.f32 0.0, %v1296
        %v1298 = vpop.f32.mrf.mxu0
        %v1299 = vpop.f32.mrf.mxu0
        %v1300 = vadd.f32 0.0, %v1299
        %v1301 = vpop.f32.mrf.mxu0
        %1302 = vmatprep.mubr.bf16.mxu0 0
        %1303 = vmatmul.mubr.bf16.gmra.mxu0 %v1244
        %v1304 = vpop.f32.mrf.mxu0
        %v1305 = vadd.f32 0.0, %v1304
        %v1306 = vpop.f32.mrf.mxu0
        %v1307 = vpop.f32.mrf.mxu0
        %v1308 = vadd.f32 0.0, %v1307
        %v1309 = vpop.f32.mrf.mxu0
        %1310 = vdwg.mxu0
        %v1311 = vmul.f32 %v1281, %v1281
        %v1312 = vmul.f32 %v1284, %v1284
        %v1313 = vmul.f32 %v1289, %v1289
        %v1314 = vmul.f32 %v1292, %v1292
        %v1315 = vmul.f32 %v1297, %v1297
        %v1316 = vmul.f32 %v1300, %v1300
        %v1317 = vmul.f32 %v1305, %v1305
        %v1318 = vmul.f32 %v1308, %v1308
        %v1319 = vsel %vm1078, %v1311, 0.0
        %v1320 = vsel %vm1078, %v1312, 0.0
        %v1321 = vadd.f32 %v1319, %v1320
        %v1322 = vsel %vm1078, %v1313, 0.0
        %v1323 = vadd.f32 %v1321, %v1322
        %v1324 = vsel %vm1078, %v1314, 0.0
        %v1325 = vadd.f32 %v1323, %v1324
        %v1326 = vsel %vm1078, %v1315, 0.0
        %v1327 = vadd.f32 %v1325, %v1326
        %v1328 = vsel %vm1078, %v1316, 0.0
        %v1329 = vadd.f32 %v1327, %v1328
        %v1330 = vsel %vm1078, %v1317, 0.0
        %v1331 = vadd.f32 %v1329, %v1330
        %v1332 = vsel %vm1078, %v1318, 0.0
        %v1333 = vadd.f32 %v1331, %v1332
        %v1334 = vrot.slane %v1333, 4
        %v1335 = vadd.f32 %v1333, %v1334
        %v1336 = vrot.slane %v1335, 2
        %v1337 = vadd.f32 %v1335, %v1336
        %v1338 = vrot.slane %v1337, 1
        %v1339 = vadd.f32 %v1337, %v1338
        %v1340 = vrsqrt.pop %v1339
        %v1341 = vmul.f32 %v1339, %v1340
        %vm1342 = vcmp.eq.f32.partialorder %v1339, inf
        %v1343 = vsel %vm1342, %v1339, %v1341
        %vm1344 = vcmp.eq.f32.partialorder %v1339, 0.0
        %v1345 = vand.u32 %v1339, 2147483648
        %v1346 = vsel %vm1344, %v1345, %v1343
        %v1347 = vmax.f32 %v1346, 1e-12
        %v1348 = vrcp.pop %v1347
        %v1349 = vmul.f32 %v1281, %v1348
        %v1350 = vmul.f32 %v1284, %v1348
        %v1351 = vmul.f32 %v1289, %v1348
        %v1352 = vmul.f32 %v1292, %v1348
        %v1353 = vmul.f32 %v1297, %v1348
        %v1354 = vmul.f32 %v1300, %v1348
        %v1355 = vmul.f32 %v1305, %v1348
        %v1356 = vmul.f32 %v1308, %v1348
        %v1357 = vld [vmem:[%s11] sm:$0xf]
        %v1358 = vpack.c.bf16 %v1350, %v1349
        %v1359 = vpack.c.bf16 %v1352, %v1351
        %v1360 = vpack.c.bf16 %v1354, %v1353
        %v1361 = vpack.c.bf16 %v1356, %v1355
        %vm1362 = vcmask 523264
        %v1364 = vsel %vm1362, %v1357, 0
        %1366 = vmatprep.subr.bf16.mxu0 0
        %1367 = vmatpush1.bf16.msra.mxu0 0
        %1368 = vmatprep.subr.bf16.mxu0 0
        %1369 = vmatpush1.bf16.msra.mxu0 0
        %1370 = vmatprep.subr.bf16.mxu0 0
        %1371 = vmatpush1.bf16.msra.mxu0 0
        %1372 = vmatprep.subr.bf16.mxu0 0
        %1373 = vmatpush1.bf16.msra.mxu0 0
        %1374 = vmatprep.subr.bf16.mxu0 0
        %1375 = vmatpush1.bf16.msra.mxu0 %v1361
        %1376 = vmatprep.subr.bf16.mxu0 0
        %1377 = vmatpush1.bf16.msra.mxu0 %v1360
        %1378 = vmatprep.subr.bf16.mxu0 0
        %1379 = vmatpush1.bf16.msra.mxu0 %v1359
        %1380 = vmatprep.subr.bf16.mxu0 0
        %1381 = vmatpush1.bf16.msra.mxu0 %v1358
        %1382 = vmatprep.subr.bf16.mxu0 0
        %1383 = vmatpush2.bf16.msra.mxu0 0
        %1384 = vmatprep.subr.bf16.mxu0 0
        %1385 = vmatpush2.bf16.msra.mxu0 0
        %1386 = vmatprep.subr.bf16.mxu0 0
        %1387 = vmatpush2.bf16.msra.mxu0 0
        %1388 = vmatprep.subr.bf16.mxu0 0
        %1389 = vmatpush2.bf16.msra.mxu0 0
        %1390 = vmatprep.subr.bf16.mxu0 0
        %1391 = vmatpush2.bf16.msra.mxu0 0
        %1392 = vmatprep.subr.bf16.mxu0 0
        %1393 = vmatpush2.bf16.msra.mxu0 0
        %1394 = vmatprep.subr.bf16.mxu0 0
        %1395 = vmatpush2.bf16.msra.mxu0 0
        %1396 = vmatprep.subr.bf16.mxu0 0
        %1397 = vmatpush2.bf16.msra.mxu0 0
        %1398 = vmatprep.mubr.bf16.mxu0 0
        %1399 = vmatmul.mubr.bf16.gmra.mxu0 %v1364
        %v1400 = vpop.f32.mrf.mxu0
        %v1401 = vadd.f32 0.0, %v1400
        %v1402 = vpop.f32.mrf.mxu0
        %v1403 = vpop.f32.mrf.mxu0
        %v1404 = vpop.f32.mrf.mxu0
        %1405 = vdwg.mxu0
        %v1406 = vld [vmem:[%s13] sm:$0x1]
        %v1408 = vlaneseq
        %v1409 = vshrl.u32 %v1408, 7
        %v1410 = vsub.s32 0, %v1409
        %v1411 = vrot.slane %v1406, %v1410
        %v1413 = vmul.f32 %v1401, %v1411
        %v1414 = vsel %vm1078, %v1413, -inf
        %1415 = vmax.xlane.f32.xlu0 %v1414
        %v1416 = vpop.xlane.xlu0 %1415
        %v1417 = vsub.f32 %v1413, %v1416
        %v1418 = vmul.f32 %v1417, 1.442695
        %v1419 = vpow.pop %v1418
        %v1420 = vld [vmem:[%s15] sm:$0xff]
        %v1421 = vld [vmem:[%s15 + $0x8] sm:$0xff]
        %v1422 = vld [vmem:[%s15 + $0x10] sm:$0xff]
        %v1423 = vld [vmem:[%s15 + $0x18] sm:$0xff]
        %v1425 = vsel %vm1078, %v1419, 0
        %1427 = vmatprep.subr.mxu0 0.0
        %1428 = vmatpush1.msra.mxu0 0.0
        %1429 = vmatprep.subr.mxu0 0.0
        %1430 = vmatpush1.msra.mxu0 0.0
        %1431 = vmatprep.subr.mxu0 0.0
        %1432 = vmatpush1.msra.mxu0 0.0
        %1433 = vmatprep.subr.mxu0 0.0
        %1434 = vmatpush1.msra.mxu0 0.0
        %1435 = vmatprep.subr.mxu0 0.0
        %1436 = vmatpush1.msra.mxu0 0.0
        %1437 = vmatprep.subr.mxu0 0.0
        %1438 = vmatpush1.msra.mxu0 0.0
        %1439 = vmatprep.subr.mxu0 0.0
        %1440 = vmatpush1.msra.mxu0 0.0
        %1441 = vmatprep.subr.mxu0 0.0
        %1442 = vmatpush1.msra.mxu0 0.0
        %1443 = vmatprep.subr.mxu0 0.0
        %1444 = vmatpush1.msra.mxu0 0.0
        %1445 = vmatprep.subr.mxu0 0.0
        %1446 = vmatpush1.msra.mxu0 0.0
        %1447 = vmatprep.subr.mxu0 0.0
        %1448 = vmatpush1.msra.mxu0 0.0
        %1449 = vmatprep.subr.mxu0 0.0
        %1450 = vmatpush1.msra.mxu0 0.0
        %1451 = vmatprep.subr.mxu0 0.0
        %1452 = vmatpush1.msra.mxu0 %v1423
        %1453 = vmatprep.subr.mxu0 0.0
        %1454 = vmatpush1.msra.mxu0 %v1422
        %1455 = vmatprep.subr.mxu0 0.0
        %1456 = vmatpush1.msra.mxu0 %v1421
        %1457 = vmatprep.subr.mxu0 0.0
        %1458 = vmatpush1.msra.mxu0 %v1420
        %1459 = vmatprep.subr.mxu0 0.0
        %1460 = vmatpush2.msra.mxu0 0.0
        %1461 = vmatprep.subr.mxu0 0.0
        %1462 = vmatpush2.msra.mxu0 0.0
        %1463 = vmatprep.subr.mxu0 0.0
        %1464 = vmatpush2.msra.mxu0 0.0
        %1465 = vmatprep.subr.mxu0 0.0
        %1466 = vmatpush2.msra.mxu0 0.0
        %1467 = vmatprep.subr.mxu0 0.0
        %1468 = vmatpush2.msra.mxu0 0.0
        %1469 = vmatprep.subr.mxu0 0.0
        %1470 = vmatpush2.msra.mxu0 0.0
        %1471 = vmatprep.subr.mxu0 0.0
        %1472 = vmatpush2.msra.mxu0 0.0
        %1473 = vmatprep.subr.mxu0 0.0
        %1474 = vmatpush2.msra.mxu0 0.0
        %1475 = vmatprep.subr.mxu0 0.0
        %1476 = vmatpush2.msra.mxu0 0.0
        %1477 = vmatprep.subr.mxu0 0.0
        %1478 = vmatpush2.msra.mxu0 0.0
        %1479 = vmatprep.subr.mxu0 0.0
        %1480 = vmatpush2.msra.mxu0 0.0
        %1481 = vmatprep.subr.mxu0 0.0
        %1482 = vmatpush2.msra.mxu0 0.0
        %1483 = vmatprep.subr.mxu0 0.0
        %1484 = vmatpush2.msra.mxu0 0.0
        %1485 = vmatprep.subr.mxu0 0.0
        %1486 = vmatpush2.msra.mxu0 0.0
        %1487 = vmatprep.subr.mxu0 0.0
        %1488 = vmatpush2.msra.mxu0 0.0
        %1489 = vmatprep.subr.mxu0 0.0
        %1490 = vmatpush2.msra.mxu0 0.0
        %1491 = vmatprep.mubr.f32.mxu0 0.0
        %1492 = vmatmul.mubr.f32.gmra.mxu0 %v1425
        %v1493 = vpop.f32.mrf.mxu0
        %v1494 = vadd.f32 0.0, %v1493
        %v1495 = vpop.f32.mrf.mxu0
        %1496 = vdwg.mxu0
        %v1497 = vrcp.pop %v1494
        %v1498 = vmul.f32 %v1419, %v1497
        %v1499 = vsel %vm1078, %v1498, 0.0
        %v1500 = vrot.slane %v1499, 4
        %v1501 = vadd.f32 %v1499, %v1500
        %v1502 = vrot.slane %v1501, 2
        %v1503 = vadd.f32 %v1501, %v1502
        %v1504 = vrot.slane %v1503, 1
        %v1505 = vadd.f32 %v1503, %v1504
        %v1506 = vadd.f32 %v1505, 1e-09
        %v1507 = vrcp.pop %v1506
        %v1508 = vmul.f32 %v1498, %v1507
        %v1509 = vld [vmem:[%s17] sm:$0xf]
        %v1510 = vld [vmem:[%s17 + $0x4] sm:$0xf]
        %v1511 = vld [vmem:[%s17 + $0x8] sm:$0xf]
        %v1512 = vld [vmem:[%s17 + $0xc] sm:$0xf]
        %v1513 = vld [vmem:[%s17 + $0x10] sm:$0xf]
        %v1514 = vld [vmem:[%s17 + $0x14] sm:$0xf]
        %v1515 = vld [vmem:[%s17 + $0x18] sm:$0xf]
        %v1516 = vld [vmem:[%s17 + $0x1c] sm:$0xf]
        %v1517 = vpack.c.bf16 %v1508, %v1508
        %v1526 = vunpack.c.l.b16 %v1509
        %v1527 = vunpack.c.l.b16 %v1510
        %v1528 = vunpack.c.l.b16 %v1511
        %v1529 = vunpack.c.l.b16 %v1512
        %v1530 = vunpack.c.l.b16 %v1513
        %v1531 = vunpack.c.l.b16 %v1514
        %v1532 = vunpack.c.l.b16 %v1515
        %v1533 = vunpack.c.l.b16 %v1516
        %v1534 = vpack.c.b16 %v1527, %v1526
        %v1535 = vpack.c.b16 %v1529, %v1528
        %v1536 = vpack.c.b16 %v1531, %v1530
        %v1537 = vpack.c.b16 %v1533, %v1532
        %vm1538 = vcmask 64512
        %v1540 = vsel %vm1538, %v1534, 0
        %v1543 = vsel %vm1538, %v1535, 0
        %v1546 = vsel %vm1538, %v1536, 0
        %v1549 = vsel %vm1538, %v1537, 0
        %vm1551 = vcmask 1043456
        %v1553 = vsel %vm1551, %v1517, 0
        %1555 = vmatprep.subr.bf16.mxu0 0
        %1556 = vmatpush1.bf16.msra.mxu0 0
        %1557 = vmatprep.subr.bf16.mxu0 0
        %1558 = vmatpush1.bf16.msra.mxu0 0
        %1559 = vmatprep.subr.bf16.mxu0 0
        %1560 = vmatpush1.bf16.msra.mxu0 0
        %1561 = vmatprep.subr.bf16.mxu0 0
        %1562 = vmatpush1.bf16.msra.mxu0 0
        %1563 = vmatprep.subr.bf16.mxu0 0
        %1564 = vmatpush1.bf16.msra.mxu0 0
        %1565 = vmatprep.subr.bf16.mxu0 0
        %1566 = vmatpush1.bf16.msra.mxu0 0
        %1567 = vmatprep.subr.bf16.mxu0 0
        %1568 = vmatpush1.bf16.msra.mxu0 0
        %1569 = vmatprep.subr.bf16.mxu0 0
        %1570 = vmatpush1.bf16.msra.mxu0 %v1553
        %1571 = vmatprep.subr.bf16.mxu0 0
        %1572 = vmatpush2.bf16.msra.mxu0 0
        %1573 = vmatprep.subr.bf16.mxu0 0
        %1574 = vmatpush2.bf16.msra.mxu0 0
        %1575 = vmatprep.subr.bf16.mxu0 0
        %1576 = vmatpush2.bf16.msra.mxu0 0
        %1577 = vmatprep.subr.bf16.mxu0 0
        %1578 = vmatpush2.bf16.msra.mxu0 0
        %1579 = vmatprep.subr.bf16.mxu0 0
        %1580 = vmatpush2.bf16.msra.mxu0 0
        %1581 = vmatprep.subr.bf16.mxu0 0
        %1582 = vmatpush2.bf16.msra.mxu0 0
        %1583 = vmatprep.subr.bf16.mxu0 0
        %1584 = vmatpush2.bf16.msra.mxu0 0
        %1585 = vmatprep.subr.bf16.mxu0 0
        %1586 = vmatpush2.bf16.msra.mxu0 0
        %1587 = vmatprep.mubr.bf16.mxu0 0
        %1588 = vmatmul.mubr.bf16.gmra.mxu0 %v1540
        %v1589 = vpop.f32.mrf.mxu0
        %v1590 = vadd.f32 0.0, %v1589
        %v1591 = vpop.f32.mrf.mxu0
        %v1592 = vpop.f32.mrf.mxu0
        %v1593 = vadd.f32 0.0, %v1592
        %v1594 = vpop.f32.mrf.mxu0
        %1595 = vmatprep.mubr.bf16.mxu0 0
        %1596 = vmatmul.mubr.bf16.gmra.mxu0 %v1543
        %v1597 = vpop.f32.mrf.mxu0
        %v1598 = vadd.f32 0.0, %v1597
        %v1599 = vpop.f32.mrf.mxu0
        %v1600 = vpop.f32.mrf.mxu0
        %v1601 = vadd.f32 0.0, %v1600
        %v1602 = vpop.f32.mrf.mxu0
        %1603 = vmatprep.mubr.bf16.mxu0 0
        %1604 = vmatmul.mubr.bf16.gmra.mxu0 %v1546
        %v1605 = vpop.f32.mrf.mxu0
        %v1606 = vadd.f32 0.0, %v1605
        %v1607 = vpop.f32.mrf.mxu0
        %v1608 = vpop.f32.mrf.mxu0
        %v1609 = vadd.f32 0.0, %v1608
        %v1610 = vpop.f32.mrf.mxu0
        %1611 = vmatprep.mubr.bf16.mxu0 0
        %1612 = vmatmul.mubr.bf16.gmra.mxu0 %v1549
        %v1613 = vpop.f32.mrf.mxu0
        %v1614 = vadd.f32 0.0, %v1613
        %v1615 = vpop.f32.mrf.mxu0
        %v1616 = vpop.f32.mrf.mxu0
        %v1617 = vadd.f32 0.0, %v1616
        %v1618 = vpop.f32.mrf.mxu0
        %1619 = vdwg.mxu0
        %v1620 = vld [vmem:[%s19] sm:$0xf]
        %v1621 = vld [vmem:[%s19 + $0x4] sm:$0xf]
        %v1622 = vld [vmem:[%s19 + $0x8] sm:$0xf]
        %v1623 = vld [vmem:[%s19 + $0xc] sm:$0xf]
        %v1628 = vunpack.c.l.b16 %v1620
        %v1629 = vunpack.c.l.b16 %v1621
        %v1630 = vunpack.c.l.b16 %v1622
        %v1631 = vunpack.c.l.b16 %v1623
        %v1632 = vpack.c.b16 %v1629, %v1628
        %v1633 = vpack.c.b16 %v1631, %v1630
        %v1637 = vsel %vm1078, %v1358, 0
        %v1640 = vsel %vm1078, %v1359, 0
        %v1643 = vsel %vm1078, %v1360, 0
        %v1646 = vsel %vm1078, %v1361, 0
        %1648 = vmatprep.subr.bf16.mxu0 0
        %1649 = vmatpush1.bf16.msra.mxu0 0
        %1650 = vmatprep.subr.bf16.mxu0 0
        %1651 = vmatpush1.bf16.msra.mxu0 0
        %1652 = vmatprep.subr.bf16.mxu0 0
        %1653 = vmatpush1.bf16.msra.mxu0 0
        %1654 = vmatprep.subr.bf16.mxu0 0
        %1655 = vmatpush1.bf16.msra.mxu0 0
        %1656 = vmatprep.subr.bf16.mxu0 0
        %1657 = vmatpush1.bf16.msra.mxu0 0
        %1658 = vmatprep.subr.bf16.mxu0 0
        %1659 = vmatpush1.bf16.msra.mxu0 0
        %1660 = vmatprep.subr.bf16.mxu0 0
        %1661 = vmatpush1.bf16.msra.mxu0 %v1633
        %1662 = vmatprep.subr.bf16.mxu0 0
        %1663 = vmatpush1.bf16.msra.mxu0 %v1632
        %1664 = vmatprep.subr.bf16.mxu0 0
        %1665 = vmatpush2.bf16.msra.mxu0 0
        %1666 = vmatprep.subr.bf16.mxu0 0
        %1667 = vmatpush2.bf16.msra.mxu0 0
        %1668 = vmatprep.subr.bf16.mxu0 0
        %1669 = vmatpush2.bf16.msra.mxu0 0
        %1670 = vmatprep.subr.bf16.mxu0 0
        %1671 = vmatpush2.bf16.msra.mxu0 0
        %1672 = vmatprep.subr.bf16.mxu0 0
        %1673 = vmatpush2.bf16.msra.mxu0 0
        %1674 = vmatprep.subr.bf16.mxu0 0
        %1675 = vmatpush2.bf16.msra.mxu0 0
        %1676 = vmatprep.subr.bf16.mxu0 0
        %1677 = vmatpush2.bf16.msra.mxu0 0
        %1678 = vmatprep.subr.bf16.mxu0 0
        %1679 = vmatpush2.bf16.msra.mxu0 0
        %1680 = vmatprep.mubr.bf16.mxu0 0
        %1681 = vmatmul.mubr.bf16.gmra.mxu0 %v1637
        %v1682 = vpop.f32.mrf.mxu0
        %v1683 = vadd.f32 0.0, %v1682
        %v1684 = vpop.f32.mrf.mxu0
        %v1685 = vpop.f32.mrf.mxu0
        %v1686 = vadd.f32 0.0, %v1685
        %v1687 = vpop.f32.mrf.mxu0
        %1688 = vmatprep.mubr.bf16.mxu0 0
        %1689 = vmatmul.mubr.bf16.gmra.mxu0 %v1640
        %v1690 = vpop.f32.mrf.mxu0
        %v1691 = vadd.f32 0.0, %v1690
        %v1692 = vpop.f32.mrf.mxu0
        %v1693 = vpop.f32.mrf.mxu0
        %v1694 = vadd.f32 0.0, %v1693
        %v1695 = vpop.f32.mrf.mxu0
        %1696 = vmatprep.mubr.bf16.mxu0 0
        %1697 = vmatmul.mubr.bf16.gmra.mxu0 %v1643
        %v1698 = vpop.f32.mrf.mxu0
        %v1699 = vadd.f32 0.0, %v1698
        %v1700 = vpop.f32.mrf.mxu0
        %v1701 = vpop.f32.mrf.mxu0
        %v1702 = vadd.f32 0.0, %v1701
        %v1703 = vpop.f32.mrf.mxu0
        %1704 = vmatprep.mubr.bf16.mxu0 0
        %1705 = vmatmul.mubr.bf16.gmra.mxu0 %v1646
        %v1706 = vpop.f32.mrf.mxu0
        %v1707 = vadd.f32 0.0, %v1706
        %v1708 = vpop.f32.mrf.mxu0
        %v1709 = vpop.f32.mrf.mxu0
        %v1710 = vadd.f32 0.0, %v1709
        %v1711 = vpop.f32.mrf.mxu0
        %1712 = vdwg.mxu0
        %v1713 = vsel %vm1362, %v1683, -inf
        %v1714 = vsel %vm1362, %v1686, -inf
        %v1715 = vsel %vm1362, %v1691, -inf
        %v1716 = vsel %vm1362, %v1694, -inf
        %v1717 = vsel %vm1362, %v1699, -inf
        %v1718 = vmax.f32 %v1713, %v1717
        %v1719 = vsel %vm1362, %v1702, -inf
        %v1720 = vmax.f32 %v1714, %v1719
        %v1721 = vsel %vm1362, %v1707, -inf
        %v1722 = vmax.f32 %v1715, %v1721
        %v1723 = vsel %vm1362, %v1710, -inf
        %v1724 = vmax.f32 %v1716, %v1723
        %v1725 = vmax.f32 %v1718, %v1720
        %v1726 = vmax.f32 %v1722, %v1724
        %v1727 = vmax.f32 %v1725, %v1726
        %v1728 = vrot.slane %v1727, 4
        %v1729 = vmax.f32 %v1727, %v1728
        %v1730 = vrot.slane %v1729, 2
        %v1731 = vmax.f32 %v1729, %v1730
        %v1732 = vrot.slane %v1731, 1
        %v1733 = vmax.f32 %v1731, %v1732
        %v1734 = vsub.f32 %v1683, %v1733
        %v1735 = vsub.f32 %v1686, %v1733
        %v1736 = vsub.f32 %v1691, %v1733
        %v1737 = vsub.f32 %v1694, %v1733
        %v1738 = vsub.f32 %v1699, %v1733
        %v1739 = vsub.f32 %v1702, %v1733
        %v1740 = vsub.f32 %v1707, %v1733
        %v1741 = vsub.f32 %v1710, %v1733
        %v1742 = vmul.f32 %v1734, 1.442695
        %v1743 = vpow.pop %v1742
        %v1744 = vmul.f32 %v1735, 1.442695
        %v1745 = vpow.pop %v1744
        %v1746 = vmul.f32 %v1736, 1.442695
        %v1747 = vpow.pop %v1746
        %v1748 = vmul.f32 %v1737, 1.442695
        %v1749 = vpow.pop %v1748
        %v1750 = vmul.f32 %v1738, 1.442695
        %v1751 = vpow.pop %v1750
        %v1752 = vmul.f32 %v1739, 1.442695
        %v1753 = vpow.pop %v1752
        %v1754 = vmul.f32 %v1740, 1.442695
        %v1755 = vpow.pop %v1754
        %v1756 = vmul.f32 %v1741, 1.442695
        %v1757 = vpow.pop %v1756
        %v1758 = vsel %vm1362, %v1743, 0.0
        %v1759 = vsel %vm1362, %v1745, 0.0
        %v1760 = vadd.f32 %v1758, %v1759
        %v1761 = vsel %vm1362, %v1747, 0.0
        %v1762 = vadd.f32 %v1760, %v1761
        %v1763 = vsel %vm1362, %v1749, 0.0
        %v1764 = vadd.f32 %v1762, %v1763
        %v1765 = vsel %vm1362, %v1751, 0.0
        %v1766 = vadd.f32 %v1764, %v1765
        %v1767 = vsel %vm1362, %v1753, 0.0
        %v1768 = vadd.f32 %v1766, %v1767
        %v1769 = vsel %vm1362, %v1755, 0.0
        %v1770 = vadd.f32 %v1768, %v1769
        %v1771 = vsel %vm1362, %v1757, 0.0
        %v1772 = vadd.f32 %v1770, %v1771
        %v1773 = vrot.slane %v1772, 4
        %v1774 = vadd.f32 %v1772, %v1773
        %v1775 = vrot.slane %v1774, 2
        %v1776 = vadd.f32 %v1774, %v1775
        %v1777 = vrot.slane %v1776, 1
        %v1778 = vadd.f32 %v1776, %v1777
        %v1779 = vrcp.pop %v1778
        %v1780 = vmul.f32 %v1743, %v1779
        %v1781 = vmul.f32 %v1745, %v1779
        %v1782 = vmul.f32 %v1747, %v1779
        %v1783 = vmul.f32 %v1749, %v1779
        %v1784 = vmul.f32 %v1751, %v1779
        %v1785 = vmul.f32 %v1753, %v1779
        %v1786 = vmul.f32 %v1755, %v1779
        %v1787 = vmul.f32 %v1757, %v1779
        %v1788 = vld [vmem:[%s21] sm:$0xff]
        %v1789 = vld [vmem:[%s21 + $0x8] sm:$0xff]
        %v1790 = vld [vmem:[%s21 + $0x10] sm:$0xff]
        %v1791 = vld [vmem:[%s21 + $0x18] sm:$0xff]
        %v1792 = vld [vmem:[%s21 + $0x20] sm:$0xff]
        %v1793 = vld [vmem:[%s21 + $0x28] sm:$0xff]
        %v1794 = vld [vmem:[%s21 + $0x30] sm:$0xff]
        %v1795 = vld [vmem:[%s21 + $0x38] sm:$0xff]
        %v1797 = vsel %vm1362, %v1780, 0
        %v1800 = vsel %vm1362, %v1781, 0
        %v1803 = vsel %vm1362, %v1782, 0
        %v1806 = vsel %vm1362, %v1783, 0
        %v1809 = vsel %vm1362, %v1784, 0
        %v1812 = vsel %vm1362, %v1785, 0
        %v1815 = vsel %vm1362, %v1786, 0
        %v1818 = vsel %vm1362, %v1787, 0
        %1820 = vmatprep.subr.mxu0 0.0
        %1821 = vmatpush1.msra.mxu0 0.0
        %1822 = vmatprep.subr.mxu0 0.0
        %1823 = vmatpush1.msra.mxu0 0.0
        %1824 = vmatprep.subr.mxu0 0.0
        %1825 = vmatpush1.msra.mxu0 0.0
        %1826 = vmatprep.subr.mxu0 0.0
        %1827 = vmatpush1.msra.mxu0 0.0
        %1828 = vmatprep.subr.mxu0 0.0
        %1829 = vmatpush1.msra.mxu0 0.0
        %1830 = vmatprep.subr.mxu0 0.0
        %1831 = vmatpush1.msra.mxu0 0.0
        %1832 = vmatprep.subr.mxu0 0.0
        %1833 = vmatpush1.msra.mxu0 0.0
        %1834 = vmatprep.subr.mxu0 0.0
        %1835 = vmatpush1.msra.mxu0 0.0
        %1836 = vmatprep.subr.mxu0 0.0
        %1837 = vmatpush1.msra.mxu0 %v1795
        %1838 = vmatprep.subr.mxu0 0.0
        %1839 = vmatpush1.msra.mxu0 %v1794
        %1840 = vmatprep.subr.mxu0 0.0
        %1841 = vmatpush1.msra.mxu0 %v1793
        %1842 = vmatprep.subr.mxu0 0.0
        %1843 = vmatpush1.msra.mxu0 %v1792
        %1844 = vmatprep.subr.mxu0 0.0
        %1845 = vmatpush1.msra.mxu0 %v1791
        %1846 = vmatprep.subr.mxu0 0.0
        %1847 = vmatpush1.msra.mxu0 %v1790
        %1848 = vmatprep.subr.mxu0 0.0
        %1849 = vmatpush1.msra.mxu0 %v1789
        %1850 = vmatprep.subr.mxu0 0.0
        %1851 = vmatpush1.msra.mxu0 %v1788
        %1852 = vmatprep.subr.mxu0 0.0
        %1853 = vmatpush2.msra.mxu0 0.0
        %1854 = vmatprep.subr.mxu0 0.0
        %1855 = vmatpush2.msra.mxu0 0.0
        %1856 = vmatprep.subr.mxu0 0.0
        %1857 = vmatpush2.msra.mxu0 0.0
        %1858 = vmatprep.subr.mxu0 0.0
        %1859 = vmatpush2.msra.mxu0 0.0
        %1860 = vmatprep.subr.mxu0 0.0
        %1861 = vmatpush2.msra.mxu0 0.0
        %1862 = vmatprep.subr.mxu0 0.0
        %1863 = vmatpush2.msra.mxu0 0.0
        %1864 = vmatprep.subr.mxu0 0.0
        %1865 = vmatpush2.msra.mxu0 0.0
        %1866 = vmatprep.subr.mxu0 0.0
        %1867 = vmatpush2.msra.mxu0 0.0
        %1868 = vmatprep.subr.mxu0 0.0
        %1869 = vmatpush2.msra.mxu0 0.0
        %1870 = vmatprep.subr.mxu0 0.0
        %1871 = vmatpush2.msra.mxu0 0.0
        %1872 = vmatprep.subr.mxu0 0.0
        %1873 = vmatpush2.msra.mxu0 0.0
        %1874 = vmatprep.subr.mxu0 0.0
        %1875 = vmatpush2.msra.mxu0 0.0
        %1876 = vmatprep.subr.mxu0 0.0
        %1877 = vmatpush2.msra.mxu0 0.0
        %1878 = vmatprep.subr.mxu0 0.0
        %1879 = vmatpush2.msra.mxu0 0.0
        %1880 = vmatprep.subr.mxu0 0.0
        %1881 = vmatpush2.msra.mxu0 0.0
        %1882 = vmatprep.subr.mxu0 0.0
        %1883 = vmatpush2.msra.mxu0 0.0
        %1884 = vmatprep.mubr.f32.mxu0 0.0
        %1885 = vmatmul.mubr.f32.gmra.mxu0 %v1797
        %v1886 = vpop.f32.mrf.mxu0
        %v1887 = vadd.f32 1e-09, %v1886
        %v1888 = vpop.f32.mrf.mxu0
        %1889 = vmatprep.mubr.f32.mxu0 0.0
        %1890 = vmatmul.mubr.f32.gmra.mxu0 %v1800
        %v1891 = vpop.f32.mrf.mxu0
        %v1892 = vadd.f32 1e-09, %v1891
        %v1893 = vpop.f32.mrf.mxu0
        %1894 = vmatprep.mubr.f32.mxu0 0.0
        %1895 = vmatmul.mubr.f32.gmra.mxu0 %v1803
        %v1896 = vpop.f32.mrf.mxu0
        %v1897 = vadd.f32 1e-09, %v1896
        %v1898 = vpop.f32.mrf.mxu0
        %1899 = vmatprep.mubr.f32.mxu0 0.0
        %1900 = vmatmul.mubr.f32.gmra.mxu0 %v1806
        %v1901 = vpop.f32.mrf.mxu0
        %v1902 = vadd.f32 1e-09, %v1901
        %v1903 = vpop.f32.mrf.mxu0
        %1904 = vmatprep.mubr.f32.mxu0 0.0
        %1905 = vmatmul.mubr.f32.gmra.mxu0 %v1809
        %v1906 = vpop.f32.mrf.mxu0
        %v1907 = vadd.f32 1e-09, %v1906
        %v1908 = vpop.f32.mrf.mxu0
        %1909 = vmatprep.mubr.f32.mxu0 0.0
        %1910 = vmatmul.mubr.f32.gmra.mxu0 %v1812
        %v1911 = vpop.f32.mrf.mxu0
        %v1912 = vadd.f32 1e-09, %v1911
        %v1913 = vpop.f32.mrf.mxu0
        %1914 = vmatprep.mubr.f32.mxu0 0.0
        %1915 = vmatmul.mubr.f32.gmra.mxu0 %v1815
        %v1916 = vpop.f32.mrf.mxu0
        %v1917 = vadd.f32 1e-09, %v1916
        %v1918 = vpop.f32.mrf.mxu0
        %1919 = vmatprep.mubr.f32.mxu0 0.0
        %1920 = vmatmul.mubr.f32.gmra.mxu0 %v1818
        %v1921 = vpop.f32.mrf.mxu0
        %v1922 = vadd.f32 1e-09, %v1921
        %v1923 = vpop.f32.mrf.mxu0
        %1924 = vdwg.mxu0
        %v1925 = vrcp.pop %v1887
        %v1926 = vmul.f32 %v1780, %v1925
        %v1927 = vrcp.pop %v1892
        %v1928 = vmul.f32 %v1781, %v1927
        %v1929 = vrcp.pop %v1897
        %v1930 = vmul.f32 %v1782, %v1929
        %v1931 = vrcp.pop %v1902
        %v1932 = vmul.f32 %v1783, %v1931
        %v1933 = vrcp.pop %v1907
        %v1934 = vmul.f32 %v1784, %v1933
        %v1935 = vrcp.pop %v1912
        %v1936 = vmul.f32 %v1785, %v1935
        %v1937 = vrcp.pop %v1917
        %v1938 = vmul.f32 %v1786, %v1937
        %v1939 = vrcp.pop %v1922
        %v1940 = vmul.f32 %v1787, %v1939
        %v1941 = vld [vmem:[%s23] sm:$0xf]
        %v1942 = vld [vmem:[%s23 + $0x4] sm:$0xf]
        %v1943 = vld [vmem:[%s23 + $0x8] sm:$0xf]
        %v1944 = vld [vmem:[%s23 + $0xc] sm:$0xf]
        %v1945 = vld [vmem:[%s23 + $0x10] sm:$0xf]
        %v1946 = vld [vmem:[%s23 + $0x14] sm:$0xf]
        %v1947 = vld [vmem:[%s23 + $0x18] sm:$0xf]
        %v1948 = vld [vmem:[%s23 + $0x1c] sm:$0xf]
        %v1949 = vpack.c.bf16 %v1928, %v1926
        %v1950 = vpack.c.bf16 %v1932, %v1930
        %s1951 = scalar_lea.vmem %s23, 32
        %v1952 = vld [vmem:[%s1951] sm:$0xf]
        %v1953 = vld [vmem:[%s1951 + $0x4] sm:$0xf]
        %v1954 = vld [vmem:[%s1951 + $0x8] sm:$0xf]
        %v1955 = vld [vmem:[%s1951 + $0xc] sm:$0xf]
        %v1956 = vld [vmem:[%s1951 + $0x10] sm:$0xf]
        %v1957 = vld [vmem:[%s1951 + $0x14] sm:$0xf]
        %v1958 = vld [vmem:[%s1951 + $0x18] sm:$0xf]
        %v1959 = vld [vmem:[%s1951 + $0x1c] sm:$0xf]
        %v1960 = vpack.c.bf16 %v1936, %v1934
        %v1961 = vpack.c.bf16 %v1940, %v1938
        %v1970 = vunpack.c.l.b16 %v1952
        %v1971 = vunpack.c.l.b16 %v1953
        %v1972 = vunpack.c.l.b16 %v1954
        %v1973 = vunpack.c.l.b16 %v1955
        %v1974 = vunpack.c.l.b16 %v1956
        %v1975 = vunpack.c.l.b16 %v1957
        %v1976 = vunpack.c.l.b16 %v1958
        %v1977 = vunpack.c.l.b16 %v1959
        %v1978 = vpack.c.b16 %v1971, %v1970
        %v1979 = vpack.c.b16 %v1973, %v1972
        %v1980 = vpack.c.b16 %v1975, %v1974
        %v1981 = vpack.c.b16 %v1977, %v1976
        %1986 = vxpose.xlu0.c.b16.start [1/8] %v1978, 128
        %1987 = vxpose.xlu0.c.b16.cont [2/8] %v1979, 128
        %1988 = vxpose.xlu0.c.b16.cont [3/8] %v1980, 128
        %1989 = vxpose.xlu0.c.b16.cont [4/8] %v1981, 128
        %1990 = vxpose.xlu0.c.b16.cont [5/8] 0, 128
        %1991 = vxpose.xlu0.c.b16.cont [6/8] 0, 128
        %1992 = vxpose.xlu0.c.b16.cont [7/8] 0, 128
        %1993 = vxpose.xlu0.c.b16.end [8/8] 0, 128
        %v1994 = vpop.trf.xlu0
        %v1995 = vpop.trf.xlu0
        %v1996 = vpop.trf.xlu0
        %v1997 = vpop.trf.xlu0
        %v1998 = vpop.trf.xlu0
        %v1999 = vpop.trf.xlu0
        %v2000 = vpop.trf.xlu0
        %v2001 = vpop.trf.xlu0
        %v2003 = vsel %vm1362, %v1994, 0
        %v2006 = vsel %vm1362, %v1995, 0
        %v2009 = vsel %vm1362, %v1996, 0
        %v2012 = vsel %vm1362, %v1997, 0
        %v2015 = vsel %vm1362, %v1960, 0
        %v2018 = vsel %vm1362, %v1961, 0
        %2020 = vmatprep.subr.bf16.mxu0 0
        %2021 = vmatpush1.bf16.xpose.msra.mxu0 0
        %2022 = vmatprep.subr.bf16.mxu0 0
        %2023 = vmatpush1.bf16.xpose.msra.mxu0 0
        %2024 = vmatprep.subr.bf16.mxu0 0
        %2025 = vmatpush1.bf16.xpose.msra.mxu0 0
        %2026 = vmatprep.subr.bf16.mxu0 0
        %2027 = vmatpush1.bf16.xpose.msra.mxu0 0
        %2028 = vmatprep.subr.bf16.mxu0 0
        %2029 = vmatpush1.bf16.xpose.msra.mxu0 0
        %2030 = vmatprep.subr.bf16.mxu0 0
        %2031 = vmatpush1.bf16.xpose.msra.mxu0 0
        %2032 = vmatprep.subr.bf16.mxu0 0
        %2033 = vmatpush1.bf16.xpose.msra.mxu0 %v2018
        %2034 = vmatprep.subr.bf16.mxu0 0
        %2035 = vmatpush1.bf16.xpose.msra.mxu0 %v2015
        %2036 = vmatprep.subr.bf16.mxu0 0
        %2037 = vmatpush2.bf16.xpose.msra.mxu0 0
        %2038 = vmatprep.subr.bf16.mxu0 0
        %2039 = vmatpush2.bf16.xpose.msra.mxu0 0
        %2040 = vmatprep.subr.bf16.mxu0 0
        %2041 = vmatpush2.bf16.xpose.msra.mxu0 0
        %2042 = vmatprep.subr.bf16.mxu0 0
        %2043 = vmatpush2.bf16.xpose.msra.mxu0 0
        %2044 = vmatprep.subr.bf16.mxu0 0
        %2045 = vmatpush2.bf16.xpose.msra.mxu0 0
        %2046 = vmatprep.subr.bf16.mxu0 0
        %2047 = vmatpush2.bf16.xpose.msra.mxu0 0
        %2048 = vmatprep.subr.bf16.mxu0 0
        %2049 = vmatpush2.bf16.xpose.msra.mxu0 0
        %2050 = vmatprep.subr.bf16.mxu0 0
        %2051 = vmatpush2.bf16.xpose.msra.mxu0 0
        %2052 = vmatprep.mubr.bf16.mxu0 0
        %2053 = vmatmul.mubr.bf16.gmra.mxu0 %v2003
        %v2054 = vpop.f32.mrf.mxu0
        %v2055 = vadd.f32 0.0, %v2054
        %v2056 = vpop.f32.mrf.mxu0
        %v2057 = vpop.f32.mrf.mxu0
        %v2058 = vadd.f32 0.0, %v2057
        %v2059 = vpop.f32.mrf.mxu0
        %2060 = vmatprep.mubr.bf16.mxu0 0
        %2061 = vmatmul.mubr.bf16.gmra.mxu0 %v2006
        %v2062 = vpop.f32.mrf.mxu0
        %v2063 = vadd.f32 0.0, %v2062
        %v2064 = vpop.f32.mrf.mxu0
        %v2065 = vpop.f32.mrf.mxu0
        %v2066 = vadd.f32 0.0, %v2065
        %v2067 = vpop.f32.mrf.mxu0
        %2068 = vmatprep.mubr.bf16.mxu0 0
        %2069 = vmatmul.mubr.bf16.gmra.mxu0 %v2009
        %v2070 = vpop.f32.mrf.mxu0
        %v2071 = vadd.f32 0.0, %v2070
        %v2072 = vpop.f32.mrf.mxu0
        %v2073 = vpop.f32.mrf.mxu0
        %v2074 = vadd.f32 0.0, %v2073
        %v2075 = vpop.f32.mrf.mxu0
        %2076 = vmatprep.mubr.bf16.mxu0 0
        %2077 = vmatmul.mubr.bf16.gmra.mxu0 %v2012
        %v2078 = vpop.f32.mrf.mxu0
        %v2079 = vadd.f32 0.0, %v2078
        %v2080 = vpop.f32.mrf.mxu0
        %v2081 = vpop.f32.mrf.mxu0
        %v2082 = vadd.f32 0.0, %v2081
        %v2083 = vpop.f32.mrf.mxu0
        %2084 = vdwg.mxu0
        %v2093 = vunpack.c.l.b16 %v1941
        %v2094 = vunpack.c.l.b16 %v1942
        %v2095 = vunpack.c.l.b16 %v1943
        %v2096 = vunpack.c.l.b16 %v1944
        %v2097 = vunpack.c.l.b16 %v1945
        %v2098 = vunpack.c.l.b16 %v1946
        %v2099 = vunpack.c.l.b16 %v1947
        %v2100 = vunpack.c.l.b16 %v1948
        %v2101 = vpack.c.b16 %v2094, %v2093
        %v2102 = vpack.c.b16 %v2096, %v2095
        %v2103 = vpack.c.b16 %v2098, %v2097
        %v2104 = vpack.c.b16 %v2100, %v2099
        %2109 = vxpose.xlu0.c.b16.start [1/8] %v2101, 128
        %2110 = vxpose.xlu0.c.b16.cont [2/8] %v2102, 128
        %2111 = vxpose.xlu0.c.b16.cont [3/8] %v2103, 128
        %2112 = vxpose.xlu0.c.b16.cont [4/8] %v2104, 128
        %2113 = vxpose.xlu0.c.b16.cont [5/8] 0, 128
        %2114 = vxpose.xlu0.c.b16.cont [6/8] 0, 128
        %2115 = vxpose.xlu0.c.b16.cont [7/8] 0, 128
        %2116 = vxpose.xlu0.c.b16.end [8/8] 0, 128
        %v2117 = vpop.trf.xlu0
        %v2118 = vpop.trf.xlu0
        %v2119 = vpop.trf.xlu0
        %v2120 = vpop.trf.xlu0
        %v2121 = vpop.trf.xlu0
        %v2122 = vpop.trf.xlu0
        %v2123 = vpop.trf.xlu0
        %v2124 = vpop.trf.xlu0
        %v2126 = vsel %vm1362, %v2117, 0
        %v2129 = vsel %vm1362, %v2118, 0
        %v2132 = vsel %vm1362, %v2119, 0
        %v2135 = vsel %vm1362, %v2120, 0
        %v2138 = vsel %vm1362, %v1949, 0
        %v2141 = vsel %vm1362, %v1950, 0
        %2143 = vmatprep.subr.bf16.mxu0 0
        %2144 = vmatpush1.bf16.xpose.msra.mxu0 0
        %2145 = vmatprep.subr.bf16.mxu0 0
        %2146 = vmatpush1.bf16.xpose.msra.mxu0 0
        %2147 = vmatprep.subr.bf16.mxu0 0
        %2148 = vmatpush1.bf16.xpose.msra.mxu0 0
        %2149 = vmatprep.subr.bf16.mxu0 0
        %2150 = vmatpush1.bf16.xpose.msra.mxu0 0
        %2151 = vmatprep.subr.bf16.mxu0 0
        %2152 = vmatpush1.bf16.xpose.msra.mxu0 0
        %2153 = vmatprep.subr.bf16.mxu0 0
        %2154 = vmatpush1.bf16.xpose.msra.mxu0 0
        %2155 = vmatprep.subr.bf16.mxu0 0
        %2156 = vmatpush1.bf16.xpose.msra.mxu0 %v2141
        %2157 = vmatprep.subr.bf16.mxu0 0
        %2158 = vmatpush1.bf16.xpose.msra.mxu0 %v2138
        %2159 = vmatprep.subr.bf16.mxu0 0
        %2160 = vmatpush2.bf16.xpose.msra.mxu0 0
        %2161 = vmatprep.subr.bf16.mxu0 0
        %2162 = vmatpush2.bf16.xpose.msra.mxu0 0
        %2163 = vmatprep.subr.bf16.mxu0 0
        %2164 = vmatpush2.bf16.xpose.msra.mxu0 0
        %2165 = vmatprep.subr.bf16.mxu0 0
        %2166 = vmatpush2.bf16.xpose.msra.mxu0 0
        %2167 = vmatprep.subr.bf16.mxu0 0
        %2168 = vmatpush2.bf16.xpose.msra.mxu0 0
        %2169 = vmatprep.subr.bf16.mxu0 0
        %2170 = vmatpush2.bf16.xpose.msra.mxu0 0
        %2171 = vmatprep.subr.bf16.mxu0 0
        %2172 = vmatpush2.bf16.xpose.msra.mxu0 0
        %2173 = vmatprep.subr.bf16.mxu0 0
        %2174 = vmatpush2.bf16.xpose.msra.mxu0 0
        %2175 = vmatprep.mubr.bf16.mxu0 0
        %2176 = vmatmul.mubr.bf16.gmra.mxu0 %v2126
        %v2177 = vpop.f32.mrf.mxu0
        %v2178 = vadd.f32 %v2055, %v2177
        %v2179 = vpop.f32.mrf.mxu0
        %v2180 = vpop.f32.mrf.mxu0
        %v2181 = vadd.f32 %v2058, %v2180
        %v2182 = vpop.f32.mrf.mxu0
        %2183 = vmatprep.mubr.bf16.mxu0 0
        %2184 = vmatmul.mubr.bf16.gmra.mxu0 %v2129
        %v2185 = vpop.f32.mrf.mxu0
        %v2186 = vadd.f32 %v2063, %v2185
        %v2187 = vpop.f32.mrf.mxu0
        %v2188 = vpop.f32.mrf.mxu0
        %v2189 = vadd.f32 %v2066, %v2188
        %v2190 = vpop.f32.mrf.mxu0
        %2191 = vmatprep.mubr.bf16.mxu0 0
        %2192 = vmatmul.mubr.bf16.gmra.mxu0 %v2132
        %v2193 = vpop.f32.mrf.mxu0
        %v2194 = vadd.f32 %v2071, %v2193
        %v2195 = vpop.f32.mrf.mxu0
        %v2196 = vpop.f32.mrf.mxu0
        %v2197 = vadd.f32 %v2074, %v2196
        %v2198 = vpop.f32.mrf.mxu0
        %2199 = vmatprep.mubr.bf16.mxu0 0
        %2200 = vmatmul.mubr.bf16.gmra.mxu0 %v2135
        %v2201 = vpop.f32.mrf.mxu0
        %v2202 = vadd.f32 %v2079, %v2201
        %v2203 = vpop.f32.mrf.mxu0
        %v2204 = vpop.f32.mrf.mxu0
        %v2205 = vadd.f32 %v2082, %v2204
        %v2206 = vpop.f32.mrf.mxu0
        %2207 = vdwg.mxu0
        %2216 = vrot.lane.b32.xlu0 %v1590, 32
        %v2217 = vpop.permute.xlu0 %2216
        %2218 = vrot.lane.b32.xlu0 %v1593, 32
        %v2219 = vpop.permute.xlu0 %2218
        %2220 = vrot.lane.b32.xlu0 %v1598, 32
        %v2221 = vpop.permute.xlu0 %2220
        %2222 = vrot.lane.b32.xlu0 %v1601, 32
        %v2223 = vpop.permute.xlu0 %2222
        %2224 = vrot.lane.b32.xlu0 %v1606, 32
        %v2225 = vpop.permute.xlu0 %2224
        %2226 = vrot.lane.b32.xlu0 %v1609, 32
        %v2227 = vpop.permute.xlu0 %2226
        %2228 = vrot.lane.b32.xlu0 %v1614, 32
        %v2229 = vpop.permute.xlu0 %2228
        %2230 = vrot.lane.b32.xlu0 %v1617, 32
        %v2231 = vpop.permute.xlu0 %2230
        %2248 = vrot.lane.b32.xlu0 %v1206, 64
        %v2249 = vpop.permute.xlu0 %2248
        %2250 = vrot.lane.b32.xlu0 %v1207, 64
        %v2251 = vpop.permute.xlu0 %2250
        %2252 = vrot.lane.b32.xlu0 %v1208, 64
        %v2253 = vpop.permute.xlu0 %2252
        %2254 = vrot.lane.b32.xlu0 %v1209, 64
        %v2255 = vpop.permute.xlu0 %2254
        %2256 = vrot.lane.b32.xlu0 %v1210, 64
        %v2257 = vpop.permute.xlu0 %2256
        %2258 = vrot.lane.b32.xlu0 %v1211, 64
        %v2259 = vpop.permute.xlu0 %2258
        %2260 = vrot.lane.b32.xlu0 %v1212, 64
        %v2261 = vpop.permute.xlu0 %2260
        %2262 = vrot.lane.b32.xlu0 %v1213, 64
        %v2263 = vpop.permute.xlu0 %2262
        %v2272 = vsel %vm1078, %v2178, %v2217
        %v2273 = vsel %vm1078, %v2181, %v2219
        %v2274 = vsel %vm1078, %v2186, %v2221
        %v2275 = vsel %vm1078, %v2189, %v2223
        %v2276 = vsel %vm1078, %v2194, %v2225
        %v2277 = vsel %vm1078, %v2197, %v2227
        %v2278 = vsel %vm1078, %v2202, %v2229
        %v2279 = vsel %vm1078, %v2205, %v2231
        %v2280 = vsel %vm1362, %v2272, %v2249
        %v2281 = vsel %vm1362, %v2273, %v2251
        %v2282 = vsel %vm1362, %v2274, %v2253
        %v2283 = vsel %vm1362, %v2275, %v2255
        %v2284 = vsel %vm1362, %v2276, %v2257
        %v2285 = vsel %vm1362, %v2277, %v2259
        %v2286 = vsel %vm1362, %v2278, %v2261
        %v2287 = vsel %vm1362, %v2279, %v2263
        %v2288 = vld [vmem:[%s25] sm:$0xf]
        %v2289 = vld [vmem:[%s25 + $0x4] sm:$0xf]
        %v2290 = vld [vmem:[%s25 + $0x8] sm:$0xf]
        %v2291 = vld [vmem:[%s25 + $0xc] sm:$0xf]
        %v2292 = vld [vmem:[%s25 + $0x10] sm:$0xf]
        %v2293 = vld [vmem:[%s25 + $0x14] sm:$0xf]
        %v2294 = vld [vmem:[%s25 + $0x18] sm:$0xf]
        %v2295 = vld [vmem:[%s25 + $0x1c] sm:$0xf]
        %v2296 = vld [vmem:[%s25 + $0x20] sm:$0xf]
        %v2297 = vld [vmem:[%s25 + $0x24] sm:$0xf]
        %v2298 = vld [vmem:[%s25 + $0x28] sm:$0xf]
        %v2299 = vld [vmem:[%s25 + $0x2c] sm:$0xf]
        %v2300 = vpack.c.bf16 %v2281, %v2280
        %v2301 = vpack.c.bf16 %v2283, %v2282
        %v2302 = vpack.c.bf16 %v2285, %v2284
        %v2303 = vpack.c.bf16 %v2287, %v2286
        %v2304 = vld [vmem:[%s27] sm:$0x1]
        %v2306 = vlaneseq
        %v2307 = vshrl.u32 %v2306, 7
        %v2308 = vsub.s32 0, %v2307
        %v2309 = vrot.slane %v2304, %v2308
        %v2323 = vunpack.c.l.b16 %v2288
        %v2324 = vunpack.c.l.b16 %v2289
        %v2325 = vunpack.c.l.b16 %v2290
        %v2326 = vunpack.c.l.b16 %v2291
        %v2327 = vunpack.c.l.b16 %v2292
        %v2328 = vunpack.c.l.b16 %v2293
        %v2329 = vunpack.c.l.b16 %v2294
        %v2330 = vunpack.c.l.b16 %v2295
        %v2331 = vunpack.c.l.b16 %v2296
        %v2332 = vunpack.c.l.b16 %v2297
        %v2333 = vunpack.c.l.b16 %v2298
        %v2334 = vunpack.c.l.b16 %v2299
        %v2335 = vpack.c.b16 %v2324, %v2323
        %v2336 = vpack.c.b16 %v2326, %v2325
        %v2337 = vpack.c.b16 %v2328, %v2327
        %v2338 = vpack.c.b16 %v2330, %v2329
        %v2339 = vpack.c.b16 %v2332, %v2331
        %v2340 = vpack.c.b16 %v2334, %v2333
        %vm2347 = vcmask 785408
        %v2349 = vsel %vm2347, %v2300, 0
        %v2352 = vsel %vm2347, %v2301, 0
        %v2355 = vsel %vm2347, %v2302, 0
        %v2358 = vsel %vm2347, %v2303, 0
        %2360 = vmatprep.subr.bf16.mxu0 0
        %2361 = vmatpush1.bf16.msra.mxu0 0
        %2362 = vmatprep.subr.bf16.mxu0 0
        %2363 = vmatpush1.bf16.msra.mxu0 0
        %2364 = vmatprep.subr.bf16.mxu0 0
        %2365 = vmatpush1.bf16.msra.mxu0 %v2340
        %2366 = vmatprep.subr.bf16.mxu0 0
        %2367 = vmatpush1.bf16.msra.mxu0 %v2339
        %2368 = vmatprep.subr.bf16.mxu0 0
        %2369 = vmatpush1.bf16.msra.mxu0 %v2338
        %2370 = vmatprep.subr.bf16.mxu0 0
        %2371 = vmatpush1.bf16.msra.mxu0 %v2337
        %2372 = vmatprep.subr.bf16.mxu0 0
        %2373 = vmatpush1.bf16.msra.mxu0 %v2336
        %2374 = vmatprep.subr.bf16.mxu0 0
        %2375 = vmatpush1.bf16.msra.mxu0 %v2335
        %2376 = vmatprep.subr.bf16.mxu0 0
        %2377 = vmatpush2.bf16.msra.mxu0 0
        %2378 = vmatprep.subr.bf16.mxu0 0
        %2379 = vmatpush2.bf16.msra.mxu0 0
        %2380 = vmatprep.subr.bf16.mxu0 0
        %2381 = vmatpush2.bf16.msra.mxu0 0
        %2382 = vmatprep.subr.bf16.mxu0 0
        %2383 = vmatpush2.bf16.msra.mxu0 0
        %2384 = vmatprep.subr.bf16.mxu0 0
        %2385 = vmatpush2.bf16.msra.mxu0 0
        %2386 = vmatprep.subr.bf16.mxu0 0
        %2387 = vmatpush2.bf16.msra.mxu0 0
        %2388 = vmatprep.subr.bf16.mxu0 0
        %2389 = vmatpush2.bf16.msra.mxu0 0
        %2390 = vmatprep.subr.bf16.mxu0 0
        %2391 = vmatpush2.bf16.msra.mxu0 0
        %2392 = vmatprep.mubr.bf16.mxu0 0
        %2393 = vmatmul.mubr.bf16.gmra.mxu0 %v2349
        %v2394 = vpop.f32.mrf.mxu0
        %v2395 = vadd.f32 %v2309, %v2394
        %v2396 = vpop.f32.mrf.mxu0
        %v2397 = vpop.f32.mrf.mxu0
        %v2398 = vadd.f32 %v2309, %v2397
        %v2399 = vpop.f32.mrf.mxu0
        %2400 = vmatprep.mubr.bf16.mxu0 0
        %2401 = vmatmul.mubr.bf16.gmra.mxu0 %v2352
        %v2402 = vpop.f32.mrf.mxu0
        %v2403 = vadd.f32 %v2309, %v2402
        %v2404 = vpop.f32.mrf.mxu0
        %v2405 = vpop.f32.mrf.mxu0
        %v2406 = vadd.f32 %v2309, %v2405
        %v2407 = vpop.f32.mrf.mxu0
        %2408 = vmatprep.mubr.bf16.mxu0 0
        %2409 = vmatmul.mubr.bf16.gmra.mxu0 %v2355
        %v2410 = vpop.f32.mrf.mxu0
        %v2411 = vadd.f32 %v2309, %v2410
        %v2412 = vpop.f32.mrf.mxu0
        %v2413 = vpop.f32.mrf.mxu0
        %v2414 = vadd.f32 %v2309, %v2413
        %v2415 = vpop.f32.mrf.mxu0
        %2416 = vmatprep.mubr.bf16.mxu0 0
        %2417 = vmatmul.mubr.bf16.gmra.mxu0 %v2358
        %v2418 = vpop.f32.mrf.mxu0
        %v2419 = vadd.f32 %v2309, %v2418
        %v2420 = vpop.f32.mrf.mxu0
        %v2421 = vpop.f32.mrf.mxu0
        %v2422 = vadd.f32 %v2309, %v2421
        %v2423 = vpop.f32.mrf.mxu0
        %2424 = vdwg.mxu0
        %v2425 = vld [vmem:[%s29] sm:$0x1]
        %v2427 = vlaneseq
        %v2428 = vshrl.u32 %v2427, 7
        %v2429 = vsub.s32 0, %v2428
        %v2430 = vrot.slane %v2425, %v2429
        %v2432 = vmul.f32 %v2395, %v2430
        %v2433 = vmul.f32 %v2398, %v2430
        %v2434 = vmul.f32 %v2403, %v2430
        %v2435 = vmul.f32 %v2406, %v2430
        %v2436 = vmul.f32 %v2411, %v2430
        %v2437 = vmul.f32 %v2414, %v2430
        %v2438 = vmul.f32 %v2419, %v2430
        %v2439 = vmul.f32 %v2422, %v2430
        %v2440 = vsel %vm1078, %v2432, 0.0
        %2441 = vadd.xlane.f32.xlu0 %v2440
        %v2442 = vpop.xlane.xlu0 %2441
        %v2443 = vsel %vm1078, %v2433, 0.0
        %2444 = vadd.xlane.f32.xlu0 %v2443
        %v2445 = vpop.xlane.xlu0 %2444
        %v2446 = vsel %vm1078, %v2434, 0.0
        %2447 = vadd.xlane.f32.xlu0 %v2446
        %v2448 = vpop.xlane.xlu0 %2447
        %v2449 = vsel %vm1078, %v2435, 0.0
        %2450 = vadd.xlane.f32.xlu0 %v2449
        %v2451 = vpop.xlane.xlu0 %2450
        %v2452 = vsel %vm1078, %v2436, 0.0
        %2453 = vadd.xlane.f32.xlu0 %v2452
        %v2454 = vpop.xlane.xlu0 %2453
        %v2455 = vsel %vm1078, %v2437, 0.0
        %2456 = vadd.xlane.f32.xlu0 %v2455
        %v2457 = vpop.xlane.xlu0 %2456
        %v2458 = vsel %vm1078, %v2438, 0.0
        %2459 = vadd.xlane.f32.xlu0 %v2458
        %v2460 = vpop.xlane.xlu0 %2459
        %v2461 = vsel %vm1078, %v2439, 0.0
        %2462 = vadd.xlane.f32.xlu0 %v2461
        %v2463 = vpop.xlane.xlu0 %2462
        %v2464 = vxor.u32 %v2442, 2147483648
        %v2465 = vxor.u32 %v2445, 2147483648
        %v2466 = vxor.u32 %v2448, 2147483648
        %v2467 = vxor.u32 %v2451, 2147483648
        %v2468 = vxor.u32 %v2454, 2147483648
        %v2469 = vxor.u32 %v2457, 2147483648
        %v2470 = vxor.u32 %v2460, 2147483648
        %v2471 = vxor.u32 %v2463, 2147483648
        %v2472 = vmul.f32 %v2464, 1.442695
        %v2473 = vpow.pop %v2472
        %v2474 = vmul.f32 %v2465, 1.442695
        %v2475 = vpow.pop %v2474
        %v2476 = vmul.f32 %v2466, 1.442695
        %v2477 = vpow.pop %v2476
        %v2478 = vmul.f32 %v2467, 1.442695
        %v2479 = vpow.pop %v2478
        %v2480 = vmul.f32 %v2468, 1.442695
        %v2481 = vpow.pop %v2480
        %v2482 = vmul.f32 %v2469, 1.442695
        %v2483 = vpow.pop %v2482
        %v2484 = vmul.f32 %v2470, 1.442695
        %v2485 = vpow.pop %v2484
        %v2486 = vmul.f32 %v2471, 1.442695
        %v2487 = vpow.pop %v2486
        %v2488 = vadd.f32 %v2473, 1.0
        %v2489 = vadd.f32 %v2475, 1.0
        %v2490 = vadd.f32 %v2477, 1.0
        %v2491 = vadd.f32 %v2479, 1.0
        %v2492 = vadd.f32 %v2481, 1.0
        %v2493 = vadd.f32 %v2483, 1.0
        %v2494 = vadd.f32 %v2485, 1.0
        %v2495 = vadd.f32 %v2487, 1.0
        %v2496 = vrcp.pop %v2488
        %v2497 = vmul.f32 1.0, %v2496
        %v2498 = vrcp.pop %v2489
        %v2499 = vmul.f32 1.0, %v2498
        %v2500 = vrcp.pop %v2490
        %v2501 = vmul.f32 1.0, %v2500
        %v2502 = vrcp.pop %v2491
        %v2503 = vmul.f32 1.0, %v2502
        %v2504 = vrcp.pop %v2492
        %v2505 = vmul.f32 1.0, %v2504
        %v2506 = vrcp.pop %v2493
        %v2507 = vmul.f32 1.0, %v2506
        %v2508 = vrcp.pop %v2494
        %v2509 = vmul.f32 1.0, %v2508
        %v2510 = vrcp.pop %v2495
        %v2511 = vmul.f32 1.0, %v2510
        %v2512 = vsel %vm1078, %v2395, 0.0
        %v2513 = vsel %vm1078, %v2398, 0.0
        %v2514 = vadd.f32 %v2512, %v2513
        %v2515 = vsel %vm1078, %v2403, 0.0
        %v2516 = vadd.f32 %v2514, %v2515
        %v2517 = vsel %vm1078, %v2406, 0.0
        %v2518 = vadd.f32 %v2516, %v2517
        %v2519 = vsel %vm1078, %v2411, 0.0
        %v2520 = vadd.f32 %v2518, %v2519
        %v2521 = vsel %vm1078, %v2414, 0.0
        %v2522 = vadd.f32 %v2520, %v2521
        %v2523 = vsel %vm1078, %v2419, 0.0
        %v2524 = vadd.f32 %v2522, %v2523
        %v2525 = vsel %vm1078, %v2422, 0.0
        %v2526 = vadd.f32 %v2524, %v2525
        %v2527 = vrot.slane %v2526, 4
        %v2528 = vadd.f32 %v2526, %v2527
        %v2529 = vrot.slane %v2528, 2
        %v2530 = vadd.f32 %v2528, %v2529
        %v2531 = vrot.slane %v2530, 1
        %v2532 = vadd.f32 %v2530, %v2531
        %v2533 = vrcp.pop 64.0
        %v2534 = vmul.f32 %v2532, %v2533
        %v2535 = vld [vmem:[%s31] sm:$0xf]
        %v2536 = vmul.f32 %v2535, %v2534
        %vm2537 = vcmask 257024
        %v2538 = vsel %vm2537, %v2536, 0.0
        %2539 = vadd.xlane.f32.xlu0 %v2538
        %v2540 = vpop.xlane.xlu0 %2539
        %v2541 = vld [vmem:[%s33] sm:$0xf]
        %v2542 = vmul.f32 %v2541, %v2540
        %v2543 = vsel %vm2537, %v2542, 0.0
        %v2544 = vrot.slane %v2543, 4
        %v2545 = vadd.f32 %v2543, %v2544
        %v2546 = vrot.slane %v2545, 2
        %v2547 = vadd.f32 %v2545, %v2546
        %v2548 = vrot.slane %v2547, 1
        %v2549 = vadd.f32 %v2547, %v2548
        %v2550 = vld [vmem:[%s35] sm:$0x1]
        %v2551 = vld [vmem:[%s37] sm:$0x1]
        %v2553 = vlaneseq
        %v2554 = vshrl.u32 %v2553, 7
        %v2555 = vsub.s32 0, %v2554
        %v2556 = vrot.slane %v2551, %v2555
        %v2558 = vmul.f32 %v2556, %v2497
        %v2559 = vmul.f32 %v2556, %v2499
        %v2560 = vmul.f32 %v2556, %v2501
        %v2561 = vmul.f32 %v2556, %v2503
        %v2562 = vmul.f32 %v2556, %v2505
        %v2563 = vmul.f32 %v2556, %v2507
        %v2564 = vmul.f32 %v2556, %v2509
        %v2565 = vmul.f32 %v2556, %v2511
        %v2567 = vlaneseq
        %v2568 = vshrl.u32 %v2567, 7
        %v2569 = vsub.s32 0, %v2568
        %v2570 = vrot.slane %v2550, %v2569
        %v2572 = vadd.f32 %v2570, %v2558
        %v2573 = vadd.f32 %v2570, %v2559
        %v2574 = vadd.f32 %v2570, %v2560
        %v2575 = vadd.f32 %v2570, %v2561
        %v2576 = vadd.f32 %v2570, %v2562
        %v2577 = vadd.f32 %v2570, %v2563
        %v2578 = vadd.f32 %v2570, %v2564
        %v2579 = vadd.f32 %v2570, %v2565
        %v2580 = vld [vmem:[%s39] sm:$0x1]
        %v2581 = vxor.u32 %v2549, 2147483648
        %v2582 = vmul.f32 %v2581, 1.442695
        %v2583 = vpow.pop %v2582
        %v2584 = vadd.f32 %v2583, 1.0
        %v2585 = vrcp.pop %v2584
        %v2586 = vmul.f32 1.0, %v2585
        %v2587 = vmul.f32 %v2580, %v2586
        %v2589 = vlaneseq
        %v2590 = vshrl.u32 %v2589, 7
        %v2591 = vsub.s32 0, %v2590
        %v2592 = vrot.slane %v2587, %v2591
        %v2594 = vadd.f32 %v2572, %v2592
        %v2595 = vadd.f32 %v2573, %v2592
        %v2596 = vadd.f32 %v2574, %v2592
        %v2597 = vadd.f32 %v2575, %v2592
        %v2598 = vadd.f32 %v2576, %v2592
        %v2599 = vadd.f32 %v2577, %v2592
        %v2600 = vadd.f32 %v2578, %v2592
        %v2601 = vadd.f32 %v2579, %v2592
        %v2602 = vld [vmem:[%s7] sm:$0x1]
        %v2603 = vmul.f32 %v2395, %v2594
        %v2604 = vmul.f32 %v2398, %v2595
        %v2605 = vmul.f32 %v2403, %v2596
        %v2606 = vmul.f32 %v2406, %v2597
        %v2607 = vmul.f32 %v2411, %v2598
        %v2608 = vmul.f32 %v2414, %v2599
        %v2609 = vmul.f32 %v2419, %v2600
        %v2610 = vmul.f32 %v2422, %v2601
        %v2612 = vlaneseq
        %v2613 = vshrl.u32 %v2612, 7
        %v2614 = vsub.s32 0, %v2613
        %v2615 = vrot.slane %v2602, %v2614
        %v2617 = vmul.f32 %v2615, %v2603
        %v2618 = vmul.f32 %v2615, %v2604
        %v2619 = vmul.f32 %v2615, %v2605
        %v2620 = vmul.f32 %v2615, %v2606
        %v2621 = vmul.f32 %v2615, %v2607
        %v2622 = vmul.f32 %v2615, %v2608
        %v2623 = vmul.f32 %v2615, %v2609
        %v2624 = vmul.f32 %v2615, %v2610
        %v2625 = vadd.f32 %v1070, %v2617
        %v2626 = vadd.f32 %v1071, %v2618
        %v2627 = vadd.f32 %v1072, %v2619
        %v2628 = vadd.f32 %v1073, %v2620
        %v2629 = vadd.f32 %v1074, %v2621
        %v2630 = vadd.f32 %v1075, %v2622
        %v2631 = vadd.f32 %v1076, %v2623
        %v2632 = vadd.f32 %v1077, %v2624
        %v2633 = vld [vmem:[%s41] sm:$0xff]
        %v2634 = vld [vmem:[%s41 + $0x8] sm:$0xff]
        %v2635 = vld [vmem:[%s41 + $0x10] sm:$0xff]
        %v2636 = vld [vmem:[%s41 + $0x18] sm:$0xff]
        %v2637 = vld [vmem:[%s41 + $0x20] sm:$0xff]
        %v2638 = vld [vmem:[%s41 + $0x28] sm:$0xff]
        %v2639 = vld [vmem:[%s41 + $0x30] sm:$0xff]
        %v2640 = vld [vmem:[%s41 + $0x38] sm:$0xff]
        %v2641 = vld [vmem:[%s41 + $0x40] sm:$0xff]
        %v2642 = vld [vmem:[%s41 + $0x48] sm:$0xff]
        %v2643 = vld [vmem:[%s41 + $0x50] sm:$0xff]
        %v2644 = vld [vmem:[%s41 + $0x58] sm:$0xff]
        %v2645 = vld [vmem:[%s41 + $0x60] sm:$0xff]
        %v2646 = vld [vmem:[%s41 + $0x68] sm:$0xff]
        %v2647 = vld [vmem:[%s41 + $0x70] sm:$0xff]
        %v2648 = vld [vmem:[%s41 + $0x78] sm:$0xff]
        %v2649 = vld [vmem:[%s41 + $0x80] sm:$0xff]
        %v2650 = vld [vmem:[%s41 + $0x88] sm:$0xff]
        %v2651 = vld [vmem:[%s41 + $0x90] sm:$0xff]
        %v2652 = vld [vmem:[%s41 + $0x98] sm:$0xff]
        %v2653 = vld [vmem:[%s41 + $0xa0] sm:$0xff]
        %v2654 = vld [vmem:[%s41 + $0xa8] sm:$0xff]
        %v2655 = vld [vmem:[%s41 + $0xb0] sm:$0xff]
        %v2656 = vld [vmem:[%s41 + $0xb8] sm:$0xff]
        %v2657 = vld [vmem:[%s41 + $0xc0] sm:$0xff]
        %v2658 = vld [vmem:[%s41 + $0xc8] sm:$0xff]
        %v2659 = vld [vmem:[%s41 + $0xd0] sm:$0xff]
        %v2660 = vld [vmem:[%s41 + $0xd8] sm:$0xff]
        %v2661 = vld [vmem:[%s41 + $0xe0] sm:$0xff]
        %v2662 = vld [vmem:[%s41 + $0xe8] sm:$0xff]
        %v2663 = vld [vmem:[%s41 + $0xf0] sm:$0xff]
        %v2664 = vld [vmem:[%s41 + $0xf8] sm:$0xff]
        %v2665 = vld [vmem:[%s41 + $0x100] sm:$0xff]
        %v2666 = vld [vmem:[%s41 + $0x108] sm:$0xff]
        %v2667 = vld [vmem:[%s41 + $0x110] sm:$0xff]
        %v2668 = vld [vmem:[%s41 + $0x118] sm:$0xff]
        %v2669 = vld [vmem:[%s41 + $0x120] sm:$0xff]
        %v2670 = vld [vmem:[%s41 + $0x128] sm:$0xff]
        %v2671 = vld [vmem:[%s41 + $0x130] sm:$0xff]
        %v2672 = vld [vmem:[%s41 + $0x138] sm:$0xff]
        %v2673 = vld [vmem:[%s41 + $0x140] sm:$0xff]
        %v2674 = vld [vmem:[%s41 + $0x148] sm:$0xff]
        %v2675 = vld [vmem:[%s41 + $0x150] sm:$0xff]
        %v2676 = vld [vmem:[%s41 + $0x158] sm:$0xff]
        %v2677 = vld [vmem:[%s41 + $0x160] sm:$0xff]
        %v2678 = vld [vmem:[%s41 + $0x168] sm:$0xff]
        %v2679 = vld [vmem:[%s41 + $0x170] sm:$0xff]
        %v2680 = vld [vmem:[%s41 + $0x178] sm:$0xff]
        %v2681 = vld [vmem:[%s41 + $0x180] sm:$0xff]
        %v2682 = vld [vmem:[%s41 + $0x188] sm:$0xff]
        %v2683 = vld [vmem:[%s41 + $0x190] sm:$0xff]
        %v2684 = vld [vmem:[%s41 + $0x198] sm:$0xff]
        %v2685 = vld [vmem:[%s41 + $0x1a0] sm:$0xff]
        %v2686 = vld [vmem:[%s41 + $0x1a8] sm:$0xff]
        %v2687 = vld [vmem:[%s41 + $0x1b0] sm:$0xff]
        %v2688 = vld [vmem:[%s41 + $0x1b8] sm:$0xff]
        %2689 = vst.msk [vmem:[#allocation2] sm:$0xff] %vm1078, 0.0
        %2690 = vst.msk [vmem:[#allocation2 + $0x8] sm:$0xff] %vm1078, 0.0
        %2691 = vst.msk [vmem:[#allocation2 + $0x10] sm:$0xff] %vm1078, 0.0
        %2692 = vst.msk [vmem:[#allocation2 + $0x18] sm:$0xff] %vm1078, 0.0
        %2693 = vst.msk [vmem:[#allocation2 + $0x20] sm:$0xff] %vm1078, 0.0
        %2694 = vst.msk [vmem:[#allocation2 + $0x28] sm:$0xff] %vm1078, 0.0
        %2695 = vst.msk [vmem:[#allocation2 + $0x30] sm:$0xff] %vm1078, 0.0
        %2696 = vst.msk [vmem:[#allocation2 + $0x38] sm:$0xff] %vm1078, 0.0
        %2697 = vst.msk [vmem:[#allocation2 + $0x40] sm:$0xff] %vm1078, 0.0
        %2698 = vst.msk [vmem:[#allocation2 + $0x48] sm:$0xff] %vm1078, 0.0
        %2699 = vst.msk [vmem:[#allocation2 + $0x50] sm:$0xff] %vm1078, 0.0
        %2700 = vst.msk [vmem:[#allocation2 + $0x58] sm:$0xff] %vm1078, 0.0
        %2701 = vst.msk [vmem:[#allocation2 + $0x60] sm:$0xff] %vm1078, 0.0
        %vm2702 = vcmask 254976
        %2703 = vst.msk [vmem:[#allocation2 + $0x68] sm:$0x3] %vm2702, 0.0
        %2704 = vst.msk [vmem:[#allocation2 + $0x15] sm:$0xff] %vm1078, %v2625
        %2705 = vst.msk [vmem:[#allocation2 + $0x1d] sm:$0xff] %vm1078, %v2626
        %2706 = vst.msk [vmem:[#allocation2 + $0x25] sm:$0xff] %vm1078, %v2627
        %2707 = vst.msk [vmem:[#allocation2 + $0x2d] sm:$0xff] %vm1078, %v2628
        %2708 = vst.msk [vmem:[#allocation2 + $0x35] sm:$0xff] %vm1078, %v2629
        %2709 = vst.msk [vmem:[#allocation2 + $0x3d] sm:$0xff] %vm1078, %v2630
        %2710 = vst.msk [vmem:[#allocation2 + $0x45] sm:$0xff] %vm1078, %v2631
        %2711 = vst.msk [vmem:[#allocation2 + $0x4d] sm:$0xff] %vm1078, %v2632
        %v2712 = vld [vmem:[#allocation2] sm:$0xff]
        %v2713 = vld [vmem:[#allocation2 + $0x8] sm:$0xff]
        %v2714 = vld [vmem:[#allocation2 + $0x10] sm:$0xff]
        %v2715 = vld [vmem:[#allocation2 + $0x18] sm:$0xff]
        %v2716 = vld [vmem:[#allocation2 + $0x20] sm:$0xff]
        %v2717 = vld [vmem:[#allocation2 + $0x28] sm:$0xff]
        %v2718 = vld [vmem:[#allocation2 + $0x30] sm:$0xff]
        %v2719 = vld [vmem:[#allocation2 + $0x38] sm:$0xff]
        %v2720 = vld [vmem:[#allocation2 + $0x1] sm:$0xff]
        %v2721 = vld [vmem:[#allocation2 + $0x9] sm:$0xff]
        %v2722 = vld [vmem:[#allocation2 + $0x11] sm:$0xff]
        %v2723 = vld [vmem:[#allocation2 + $0x19] sm:$0xff]
        %v2724 = vld [vmem:[#allocation2 + $0x21] sm:$0xff]
        %v2725 = vld [vmem:[#allocation2 + $0x29] sm:$0xff]
        %v2726 = vld [vmem:[#allocation2 + $0x31] sm:$0xff]
        %v2727 = vld [vmem:[#allocation2 + $0x39] sm:$0xff]
        %v2728 = vld [vmem:[#allocation2 + $0x2] sm:$0xff]
        %v2729 = vld [vmem:[#allocation2 + $0xa] sm:$0xff]
        %v2730 = vld [vmem:[#allocation2 + $0x12] sm:$0xff]
        %v2731 = vld [vmem:[#allocation2 + $0x1a] sm:$0xff]
        %v2732 = vld [vmem:[#allocation2 + $0x22] sm:$0xff]
        %v2733 = vld [vmem:[#allocation2 + $0x2a] sm:$0xff]
        %v2734 = vld [vmem:[#allocation2 + $0x32] sm:$0xff]
        %v2735 = vld [vmem:[#allocation2 + $0x3a] sm:$0xff]
        %v2736 = vld [vmem:[#allocation2 + $0x4] sm:$0xff]
        %v2737 = vld [vmem:[#allocation2 + $0xc] sm:$0xff]
        %v2738 = vld [vmem:[#allocation2 + $0x14] sm:$0xff]
        %v2739 = vld [vmem:[#allocation2 + $0x1c] sm:$0xff]
        %v2740 = vld [vmem:[#allocation2 + $0x24] sm:$0xff]
        %v2741 = vld [vmem:[#allocation2 + $0x2c] sm:$0xff]
        %v2742 = vld [vmem:[#allocation2 + $0x34] sm:$0xff]
        %v2743 = vld [vmem:[#allocation2 + $0x3c] sm:$0xff]
        %v2744 = vld [vmem:[#allocation2 + $0x5] sm:$0xff]
        %v2745 = vld [vmem:[#allocation2 + $0xd] sm:$0xff]
        %v2746 = vld [vmem:[#allocation2 + $0x15] sm:$0xff]
        %v2747 = vld [vmem:[#allocation2 + $0x1d] sm:$0xff]
        %v2748 = vld [vmem:[#allocation2 + $0x25] sm:$0xff]
        %v2749 = vld [vmem:[#allocation2 + $0x2d] sm:$0xff]
        %v2750 = vld [vmem:[#allocation2 + $0x35] sm:$0xff]
        %v2751 = vld [vmem:[#allocation2 + $0x3d] sm:$0xff]
        %v2752 = vld [vmem:[#allocation2 + $0x6] sm:$0xff]
        %v2753 = vld [vmem:[#allocation2 + $0xe] sm:$0xff]
        %v2754 = vld [vmem:[#allocation2 + $0x16] sm:$0xff]
        %v2755 = vld [vmem:[#allocation2 + $0x1e] sm:$0xff]
        %v2756 = vld [vmem:[#allocation2 + $0x26] sm:$0xff]
        %v2757 = vld [vmem:[#allocation2 + $0x2e] sm:$0xff]
        %v2758 = vld [vmem:[#allocation2 + $0x36] sm:$0xff]
        %v2759 = vld [vmem:[#allocation2 + $0x3e] sm:$0xff]
        %v2760 = vld [vmem:[#allocation2 + $0x40] sm:$0xff]
        %v2761 = vld [vmem:[#allocation2 + $0x41] sm:$0xff]
        %v2762 = vld [vmem:[#allocation2 + $0x42] sm:$0xff]
        %v2763 = vld [vmem:[#allocation2 + $0x48] sm:$0xff]
        %v2764 = vld [vmem:[#allocation2 + $0x49] sm:$0xff]
        %v2765 = vld [vmem:[#allocation2 + $0x4a] sm:$0xff]
        %v2766 = vld [vmem:[#allocation2 + $0x44] sm:$0xff]
        %v2767 = vld [vmem:[#allocation2 + $0x4c] sm:$0xff]
        %v2768 = vld [vmem:[#allocation2 + $0x45] sm:$0xff]
        %v2769 = vld [vmem:[#allocation2 + $0x4d] sm:$0xff]
        %v2770 = vld [vmem:[#allocation2 + $0x46] sm:$0xff]
        %v2771 = vld [vmem:[#allocation2 + $0x4e] sm:$0xff]
        %v2772 = vld [vmem:[#allocation2 + $0x50] sm:$0xff]
        %v2773 = vld [vmem:[#allocation2 + $0x51] sm:$0xff]
        %v2774 = vld [vmem:[#allocation2 + $0x52] sm:$0xff]
        %v2775 = vld [vmem:[#allocation2 + $0x58] sm:$0xff]
        %v2776 = vld [vmem:[#allocation2 + $0x59] sm:$0xff]
        %v2777 = vld [vmem:[#allocation2 + $0x5a] sm:$0xff]
        %v2778 = vld [vmem:[#allocation2 + $0x54] sm:$0xff]
        %v2779 = vld [vmem:[#allocation2 + $0x5c] sm:$0xff]
        %v2780 = vld [vmem:[#allocation2 + $0x55] sm:$0xff]
        %v2781 = vld [vmem:[#allocation2 + $0x5d] sm:$0xff]
        %v2782 = vld [vmem:[#allocation2 + $0x56] sm:$0xff]
        %v2783 = vld [vmem:[#allocation2 + $0x5e] sm:$0xff]
        %v2784 = vld [vmem:[#allocation2 + $0x60] sm:$0xff]
        %v2785 = vld [vmem:[#allocation2 + $0x61] sm:$0xff]
        %v2786 = vld [vmem:[#allocation2 + $0x62] sm:$0xff]
        %2795 = vrot.lane.b32.xlu0 %v2720, 32
        %v2796 = vpop.permute.xlu0 %2795
        %2797 = vrot.lane.b32.xlu0 %v2721, 32
        %v2798 = vpop.permute.xlu0 %2797
        %2799 = vrot.lane.b32.xlu0 %v2722, 32
        %v2800 = vpop.permute.xlu0 %2799
        %2801 = vrot.lane.b32.xlu0 %v2723, 32
        %v2802 = vpop.permute.xlu0 %2801
        %2803 = vrot.lane.b32.xlu0 %v2724, 32
        %v2804 = vpop.permute.xlu0 %2803
        %2805 = vrot.lane.b32.xlu0 %v2725, 32
        %v2806 = vpop.permute.xlu0 %2805
        %2807 = vrot.lane.b32.xlu0 %v2726, 32
        %v2808 = vpop.permute.xlu0 %2807
        %2809 = vrot.lane.b32.xlu0 %v2727, 32
        %v2810 = vpop.permute.xlu0 %2809
        %2827 = vrot.lane.b32.xlu0 %v2728, 64
        %v2828 = vpop.permute.xlu0 %2827
        %2829 = vrot.lane.b32.xlu0 %v2729, 64
        %v2830 = vpop.permute.xlu0 %2829
        %2831 = vrot.lane.b32.xlu0 %v2730, 64
        %v2832 = vpop.permute.xlu0 %2831
        %2833 = vrot.lane.b32.xlu0 %v2731, 64
        %v2834 = vpop.permute.xlu0 %2833
        %2835 = vrot.lane.b32.xlu0 %v2732, 64
        %v2836 = vpop.permute.xlu0 %2835
        %2837 = vrot.lane.b32.xlu0 %v2733, 64
        %v2838 = vpop.permute.xlu0 %2837
        %2839 = vrot.lane.b32.xlu0 %v2734, 64
        %v2840 = vpop.permute.xlu0 %2839
        %2841 = vrot.lane.b32.xlu0 %v2735, 64
        %v2842 = vpop.permute.xlu0 %2841
        %2859 = vrot.lane.b32.xlu0 %v2736, 96
        %v2860 = vpop.permute.xlu0 %2859
        %2861 = vrot.lane.b32.xlu0 %v2737, 96
        %v2862 = vpop.permute.xlu0 %2861
        %2863 = vrot.lane.b32.xlu0 %v2738, 96
        %v2864 = vpop.permute.xlu0 %2863
        %2865 = vrot.lane.b32.xlu0 %v2739, 96
        %v2866 = vpop.permute.xlu0 %2865
        %2867 = vrot.lane.b32.xlu0 %v2740, 96
        %v2868 = vpop.permute.xlu0 %2867
        %2869 = vrot.lane.b32.xlu0 %v2741, 96
        %v2870 = vpop.permute.xlu0 %2869
        %2871 = vrot.lane.b32.xlu0 %v2742, 96
        %v2872 = vpop.permute.xlu0 %2871
        %2873 = vrot.lane.b32.xlu0 %v2743, 96
        %v2874 = vpop.permute.xlu0 %2873
        %2891 = vrot.lane.b32.xlu0 %v2752, 32
        %v2892 = vpop.permute.xlu0 %2891
        %2893 = vrot.lane.b32.xlu0 %v2753, 32
        %v2894 = vpop.permute.xlu0 %2893
        %2895 = vrot.lane.b32.xlu0 %v2754, 32
        %v2896 = vpop.permute.xlu0 %2895
        %2897 = vrot.lane.b32.xlu0 %v2755, 32
        %v2898 = vpop.permute.xlu0 %2897
        %2899 = vrot.lane.b32.xlu0 %v2756, 32
        %v2900 = vpop.permute.xlu0 %2899
        %2901 = vrot.lane.b32.xlu0 %v2757, 32
        %v2902 = vpop.permute.xlu0 %2901
        %2903 = vrot.lane.b32.xlu0 %v2758, 32
        %v2904 = vpop.permute.xlu0 %2903
        %2905 = vrot.lane.b32.xlu0 %v2759, 32
        %v2906 = vpop.permute.xlu0 %2905
        %2923 = vrot.lane.b32.xlu0 %v2713, 64
        %v2924 = vpop.permute.xlu0 %2923
        %2925 = vrot.lane.b32.xlu0 %v2714, 64
        %v2926 = vpop.permute.xlu0 %2925
        %2927 = vrot.lane.b32.xlu0 %v2715, 64
        %v2928 = vpop.permute.xlu0 %2927
        %2929 = vrot.lane.b32.xlu0 %v2716, 64
        %v2930 = vpop.permute.xlu0 %2929
        %2931 = vrot.lane.b32.xlu0 %v2717, 64
        %v2932 = vpop.permute.xlu0 %2931
        %2933 = vrot.lane.b32.xlu0 %v2718, 64
        %v2934 = vpop.permute.xlu0 %2933
        %2935 = vrot.lane.b32.xlu0 %v2719, 64
        %v2936 = vpop.permute.xlu0 %2935
        %2937 = vrot.lane.b32.xlu0 %v2760, 64
        %v2938 = vpop.permute.xlu0 %2937
        %2948 = vrot.lane.b32.xlu0 %v2721, 96
        %v2949 = vpop.permute.xlu0 %2948
        %2950 = vrot.lane.b32.xlu0 %v2722, 96
        %v2951 = vpop.permute.xlu0 %2950
        %2952 = vrot.lane.b32.xlu0 %v2723, 96
        %v2953 = vpop.permute.xlu0 %2952
        %2954 = vrot.lane.b32.xlu0 %v2724, 96
        %v2955 = vpop.permute.xlu0 %2954
        %2956 = vrot.lane.b32.xlu0 %v2725, 96
        %v2957 = vpop.permute.xlu0 %2956
        %2958 = vrot.lane.b32.xlu0 %v2726, 96
        %v2959 = vpop.permute.xlu0 %2958
        %2960 = vrot.lane.b32.xlu0 %v2727, 96
        %v2961 = vpop.permute.xlu0 %2960
        %2962 = vrot.lane.b32.xlu0 %v2761, 96
        %v2963 = vpop.permute.xlu0 %2962
        %2973 = vrot.lane.b32.xlu0 %v2714, 32
        %v2974 = vpop.permute.xlu0 %2973
        %2975 = vrot.lane.b32.xlu0 %v2715, 32
        %v2976 = vpop.permute.xlu0 %2975
        %2977 = vrot.lane.b32.xlu0 %v2716, 32
        %v2978 = vpop.permute.xlu0 %2977
        %2979 = vrot.lane.b32.xlu0 %v2717, 32
        %v2980 = vpop.permute.xlu0 %2979
        %2981 = vrot.lane.b32.xlu0 %v2718, 32
        %v2982 = vpop.permute.xlu0 %2981
        %2983 = vrot.lane.b32.xlu0 %v2719, 32
        %v2984 = vpop.permute.xlu0 %2983
        %2985 = vrot.lane.b32.xlu0 %v2760, 32
        %v2986 = vpop.permute.xlu0 %2985
        %2987 = vrot.lane.b32.xlu0 %v2763, 32
        %v2988 = vpop.permute.xlu0 %2987
        %2998 = vrot.lane.b32.xlu0 %v2722, 64
        %v2999 = vpop.permute.xlu0 %2998
        %3000 = vrot.lane.b32.xlu0 %v2723, 64
        %v3001 = vpop.permute.xlu0 %3000
        %3002 = vrot.lane.b32.xlu0 %v2724, 64
        %v3003 = vpop.permute.xlu0 %3002
        %3004 = vrot.lane.b32.xlu0 %v2725, 64
        %v3005 = vpop.permute.xlu0 %3004
        %3006 = vrot.lane.b32.xlu0 %v2726, 64
        %v3007 = vpop.permute.xlu0 %3006
        %3008 = vrot.lane.b32.xlu0 %v2727, 64
        %v3009 = vpop.permute.xlu0 %3008
        %3010 = vrot.lane.b32.xlu0 %v2761, 64
        %v3011 = vpop.permute.xlu0 %3010
        %3012 = vrot.lane.b32.xlu0 %v2764, 64
        %v3013 = vpop.permute.xlu0 %3012
        %3024 = vrot.lane.b32.xlu0 %v2730, 96
        %v3025 = vpop.permute.xlu0 %3024
        %3026 = vrot.lane.b32.xlu0 %v2731, 96
        %v3027 = vpop.permute.xlu0 %3026
        %3028 = vrot.lane.b32.xlu0 %v2732, 96
        %v3029 = vpop.permute.xlu0 %3028
        %3030 = vrot.lane.b32.xlu0 %v2733, 96
        %v3031 = vpop.permute.xlu0 %3030
        %3032 = vrot.lane.b32.xlu0 %v2734, 96
        %v3033 = vpop.permute.xlu0 %3032
        %3034 = vrot.lane.b32.xlu0 %v2735, 96
        %v3035 = vpop.permute.xlu0 %3034
        %3036 = vrot.lane.b32.xlu0 %v2762, 96
        %v3037 = vpop.permute.xlu0 %3036
        %3038 = vrot.lane.b32.xlu0 %v2765, 96
        %v3039 = vpop.permute.xlu0 %3038
        %3056 = vrot.lane.b32.xlu0 %v2746, 32
        %v3057 = vpop.permute.xlu0 %3056
        %3058 = vrot.lane.b32.xlu0 %v2747, 32
        %v3059 = vpop.permute.xlu0 %3058
        %3060 = vrot.lane.b32.xlu0 %v2748, 32
        %v3061 = vpop.permute.xlu0 %3060
        %3062 = vrot.lane.b32.xlu0 %v2749, 32
        %v3063 = vpop.permute.xlu0 %3062
        %3064 = vrot.lane.b32.xlu0 %v2750, 32
        %v3065 = vpop.permute.xlu0 %3064
        %3066 = vrot.lane.b32.xlu0 %v2751, 32
        %v3067 = vpop.permute.xlu0 %3066
        %3068 = vrot.lane.b32.xlu0 %v2768, 32
        %v3069 = vpop.permute.xlu0 %3068
        %3070 = vrot.lane.b32.xlu0 %v2769, 32
        %v3071 = vpop.permute.xlu0 %3070
        %3082 = vrot.lane.b32.xlu0 %v2754, 64
        %v3083 = vpop.permute.xlu0 %3082
        %3084 = vrot.lane.b32.xlu0 %v2755, 64
        %v3085 = vpop.permute.xlu0 %3084
        %3086 = vrot.lane.b32.xlu0 %v2756, 64
        %v3087 = vpop.permute.xlu0 %3086
        %3088 = vrot.lane.b32.xlu0 %v2757, 64
        %v3089 = vpop.permute.xlu0 %3088
        %3090 = vrot.lane.b32.xlu0 %v2758, 64
        %v3091 = vpop.permute.xlu0 %3090
        %3092 = vrot.lane.b32.xlu0 %v2759, 64
        %v3093 = vpop.permute.xlu0 %3092
        %3094 = vrot.lane.b32.xlu0 %v2770, 64
        %v3095 = vpop.permute.xlu0 %3094
        %3096 = vrot.lane.b32.xlu0 %v2771, 64
        %v3097 = vpop.permute.xlu0 %3096
        %3107 = vrot.lane.b32.xlu0 %v2715, 96
        %v3108 = vpop.permute.xlu0 %3107
        %3109 = vrot.lane.b32.xlu0 %v2716, 96
        %v3110 = vpop.permute.xlu0 %3109
        %3111 = vrot.lane.b32.xlu0 %v2717, 96
        %v3112 = vpop.permute.xlu0 %3111
        %3113 = vrot.lane.b32.xlu0 %v2718, 96
        %v3114 = vpop.permute.xlu0 %3113
        %3115 = vrot.lane.b32.xlu0 %v2719, 96
        %v3116 = vpop.permute.xlu0 %3115
        %3117 = vrot.lane.b32.xlu0 %v2760, 96
        %v3118 = vpop.permute.xlu0 %3117
        %3119 = vrot.lane.b32.xlu0 %v2763, 96
        %v3120 = vpop.permute.xlu0 %3119
        %3121 = vrot.lane.b32.xlu0 %v2772, 96
        %v3122 = vpop.permute.xlu0 %3121
        %v3131 = vsel %vm1078, %v2712, %v2796
        %v3132 = vsel %vm1078, %v2713, %v2798
        %v3133 = vsel %vm1078, %v2714, %v2800
        %v3134 = vsel %vm1078, %v2715, %v2802
        %v3135 = vsel %vm1078, %v2716, %v2804
        %v3136 = vsel %vm1078, %v2717, %v2806
        %v3137 = vsel %vm1078, %v2718, %v2808
        %v3138 = vsel %vm1078, %v2719, %v2810
        %v3139 = vsel %vm1362, %v3131, %v2828
        %v3140 = vsel %vm1362, %v3132, %v2830
        %v3141 = vsel %vm1362, %v3133, %v2832
        %v3142 = vsel %vm1362, %v3134, %v2834
        %v3143 = vsel %vm1362, %v3135, %v2836
        %v3144 = vsel %vm1362, %v3136, %v2838
        %v3145 = vsel %vm1362, %v3137, %v2840
        %v3146 = vsel %vm1362, %v3138, %v2842
        %v3147 = vsel %vm2347, %v3139, %v2860
        %v3148 = vsel %vm2347, %v3140, %v2862
        %v3149 = vsel %vm2347, %v3141, %v2864
        %v3150 = vsel %vm2347, %v3142, %v2866
        %v3151 = vsel %vm2347, %v3143, %v2868
        %v3152 = vsel %vm2347, %v3144, %v2870
        %v3153 = vsel %vm2347, %v3145, %v2872
        %v3154 = vsel %vm2347, %v3146, %v2874
        %v3155 = vsel %vm1078, %v2744, %v2892
        %v3156 = vsel %vm1078, %v2745, %v2894
        %v3157 = vsel %vm1078, %v2746, %v2896
        %v3158 = vsel %vm1078, %v2747, %v2898
        %v3159 = vsel %vm1078, %v2748, %v2900
        %v3160 = vsel %vm1078, %v2749, %v2902
        %v3161 = vsel %vm1078, %v2750, %v2904
        %v3162 = vsel %vm1078, %v2751, %v2906
        %v3163 = vsel %vm1362, %v3155, %v2924
        %v3164 = vsel %vm1362, %v3156, %v2926
        %v3165 = vsel %vm1362, %v3157, %v2928
        %v3166 = vsel %vm1362, %v3158, %v2930
        %v3167 = vsel %vm1362, %v3159, %v2932
        %v3168 = vsel %vm1362, %v3160, %v2934
        %v3169 = vsel %vm1362, %v3161, %v2936
        %v3170 = vsel %vm1362, %v3162, %v2938
        %v3171 = vsel %vm2347, %v3163, %v2949
        %v3172 = vsel %vm2347, %v3164, %v2951
        %v3173 = vsel %vm2347, %v3165, %v2953
        %v3174 = vsel %vm2347, %v3166, %v2955
        %v3175 = vsel %vm2347, %v3167, %v2957
        %v3176 = vsel %vm2347, %v3168, %v2959
        %v3177 = vsel %vm2347, %v3169, %v2961
        %v3178 = vsel %vm2347, %v3170, %v2963
        %v3179 = vsel %vm1078, %v2729, %v2974
        %v3180 = vsel %vm1078, %v2730, %v2976
        %v3181 = vsel %vm1078, %v2731, %v2978
        %v3182 = vsel %vm1078, %v2732, %v2980
        %v3183 = vsel %vm1078, %v2733, %v2982
        %v3184 = vsel %vm1078, %v2734, %v2984
        %v3185 = vsel %vm1078, %v2735, %v2986
        %v3186 = vsel %vm1078, %v2762, %v2988
        %v3187 = vsel %vm1362, %v3179, %v2999
        %v3188 = vsel %vm1362, %v3180, %v3001
        %v3189 = vsel %vm1362, %v3181, %v3003
        %v3190 = vsel %vm1362, %v3182, %v3005
        %v3191 = vsel %vm1362, %v3183, %v3007
        %v3192 = vsel %vm1362, %v3184, %v3009
        %v3193 = vsel %vm1362, %v3185, %v3011
        %v3194 = vsel %vm1362, %v3186, %v3013
        %v3195 = vsel %vm2347, %v3187, %v3025
        %v3196 = vsel %vm2347, %v3188, %v3027
        %v3197 = vsel %vm2347, %v3189, %v3029
        %v3198 = vsel %vm2347, %v3190, %v3031
        %v3199 = vsel %vm2347, %v3191, %v3033
        %v3200 = vsel %vm2347, %v3192, %v3035
        %v3201 = vsel %vm2347, %v3193, %v3037
        %v3202 = vsel %vm2347, %v3194, %v3039
        %v3203 = vsel %vm1078, %v2738, %v3057
        %v3204 = vsel %vm1078, %v2739, %v3059
        %v3205 = vsel %vm1078, %v2740, %v3061
        %v3206 = vsel %vm1078, %v2741, %v3063
        %v3207 = vsel %vm1078, %v2742, %v3065
        %v3208 = vsel %vm1078, %v2743, %v3067
        %v3209 = vsel %vm1078, %v2766, %v3069
        %v3210 = vsel %vm1078, %v2767, %v3071
        %v3211 = vsel %vm1362, %v3203, %v3083
        %v3212 = vsel %vm1362, %v3204, %v3085
        %v3213 = vsel %vm1362, %v3205, %v3087
        %v3214 = vsel %vm1362, %v3206, %v3089
        %v3215 = vsel %vm1362, %v3207, %v3091
        %v3216 = vsel %vm1362, %v3208, %v3093
        %v3217 = vsel %vm1362, %v3209, %v3095
        %v3218 = vsel %vm1362, %v3210, %v3097
        %v3219 = vsel %vm2347, %v3211, %v3108
        %v3220 = vsel %vm2347, %v3212, %v3110
        %v3221 = vsel %vm2347, %v3213, %v3112
        %v3222 = vsel %vm2347, %v3214, %v3114
        %v3223 = vsel %vm2347, %v3215, %v3116
        %v3224 = vsel %vm2347, %v3216, %v3118
        %v3225 = vsel %vm2347, %v3217, %v3120
        %v3226 = vsel %vm2347, %v3218, %v3122
        %3228 = vrot.lane.b32.xlu0 %v2731, 32
        %v3229 = vpop.permute.xlu0 %3228
        %3230 = vrot.lane.b32.xlu0 %v2732, 32
        %v3231 = vpop.permute.xlu0 %3230
        %3232 = vrot.lane.b32.xlu0 %v2733, 32
        %v3233 = vpop.permute.xlu0 %3232
        %3234 = vrot.lane.b32.xlu0 %v2734, 32
        %v3235 = vpop.permute.xlu0 %3234
        %3236 = vrot.lane.b32.xlu0 %v2735, 32
        %v3237 = vpop.permute.xlu0 %3236
        %3238 = vrot.lane.b32.xlu0 %v2762, 32
        %v3239 = vpop.permute.xlu0 %3238
        %3240 = vrot.lane.b32.xlu0 %v2765, 32
        %v3241 = vpop.permute.xlu0 %3240
        %3242 = vrot.lane.b32.xlu0 %v2774, 32
        %v3243 = vpop.permute.xlu0 %3242
        %3253 = vrot.lane.b32.xlu0 %v2763, 64
        %v3254 = vpop.permute.xlu0 %3253
        %3255 = vrot.lane.b32.xlu0 %v2772, 64
        %v3256 = vpop.permute.xlu0 %3255
        %3257 = vrot.lane.b32.xlu0 %v2775, 64
        %v3258 = vpop.permute.xlu0 %3257
        %3264 = vrot.lane.b32.xlu0 %v2764, 96
        %v3265 = vpop.permute.xlu0 %3264
        %3266 = vrot.lane.b32.xlu0 %v2773, 96
        %v3267 = vpop.permute.xlu0 %3266
        %3268 = vrot.lane.b32.xlu0 %v2776, 96
        %v3269 = vpop.permute.xlu0 %3268
        %3277 = vrot.lane.b32.xlu0 %v2740, 32
        %v3278 = vpop.permute.xlu0 %3277
        %3279 = vrot.lane.b32.xlu0 %v2741, 32
        %v3280 = vpop.permute.xlu0 %3279
        %3281 = vrot.lane.b32.xlu0 %v2742, 32
        %v3282 = vpop.permute.xlu0 %3281
        %3283 = vrot.lane.b32.xlu0 %v2743, 32
        %v3284 = vpop.permute.xlu0 %3283
        %3285 = vrot.lane.b32.xlu0 %v2766, 32
        %v3286 = vpop.permute.xlu0 %3285
        %3287 = vrot.lane.b32.xlu0 %v2767, 32
        %v3288 = vpop.permute.xlu0 %3287
        %3289 = vrot.lane.b32.xlu0 %v2778, 32
        %v3290 = vpop.permute.xlu0 %3289
        %3291 = vrot.lane.b32.xlu0 %v2779, 32
        %v3292 = vpop.permute.xlu0 %3291
        %3303 = vrot.lane.b32.xlu0 %v2748, 64
        %v3304 = vpop.permute.xlu0 %3303
        %3305 = vrot.lane.b32.xlu0 %v2749, 64
        %v3306 = vpop.permute.xlu0 %3305
        %3307 = vrot.lane.b32.xlu0 %v2750, 64
        %v3308 = vpop.permute.xlu0 %3307
        %3309 = vrot.lane.b32.xlu0 %v2751, 64
        %v3310 = vpop.permute.xlu0 %3309
        %3311 = vrot.lane.b32.xlu0 %v2768, 64
        %v3312 = vpop.permute.xlu0 %3311
        %3313 = vrot.lane.b32.xlu0 %v2769, 64
        %v3314 = vpop.permute.xlu0 %3313
        %3315 = vrot.lane.b32.xlu0 %v2780, 64
        %v3316 = vpop.permute.xlu0 %3315
        %3317 = vrot.lane.b32.xlu0 %v2781, 64
        %v3318 = vpop.permute.xlu0 %3317
        %3329 = vrot.lane.b32.xlu0 %v2756, 96
        %v3330 = vpop.permute.xlu0 %3329
        %3331 = vrot.lane.b32.xlu0 %v2757, 96
        %v3332 = vpop.permute.xlu0 %3331
        %3333 = vrot.lane.b32.xlu0 %v2758, 96
        %v3334 = vpop.permute.xlu0 %3333
        %3335 = vrot.lane.b32.xlu0 %v2759, 96
        %v3336 = vpop.permute.xlu0 %3335
        %3337 = vrot.lane.b32.xlu0 %v2770, 96
        %v3338 = vpop.permute.xlu0 %3337
        %3339 = vrot.lane.b32.xlu0 %v2771, 96
        %v3340 = vpop.permute.xlu0 %3339
        %3341 = vrot.lane.b32.xlu0 %v2782, 96
        %v3342 = vpop.permute.xlu0 %3341
        %3343 = vrot.lane.b32.xlu0 %v2783, 96
        %v3344 = vpop.permute.xlu0 %3343
        %3354 = vrot.lane.b32.xlu0 %v2761, 32
        %v3355 = vpop.permute.xlu0 %3354
        %3356 = vrot.lane.b32.xlu0 %v2764, 32
        %v3357 = vpop.permute.xlu0 %3356
        %3358 = vrot.lane.b32.xlu0 %v2773, 32
        %v3359 = vpop.permute.xlu0 %3358
        %3360 = vrot.lane.b32.xlu0 %v2776, 32
        %v3361 = vpop.permute.xlu0 %3360
        %3362 = vrot.lane.b32.xlu0 %v2785, 32
        %v3363 = vpop.permute.xlu0 %3362
        %3371 = vrot.lane.b32.xlu0 %v2762, 64
        %v3372 = vpop.permute.xlu0 %3371
        %3373 = vrot.lane.b32.xlu0 %v2765, 64
        %v3374 = vpop.permute.xlu0 %3373
        %3375 = vrot.lane.b32.xlu0 %v2774, 64
        %v3376 = vpop.permute.xlu0 %3375
        %3377 = vrot.lane.b32.xlu0 %v2777, 64
        %v3378 = vpop.permute.xlu0 %3377
        %3379 = vrot.lane.b32.xlu0 %v2786, 64
        %v3380 = vpop.permute.xlu0 %3379
        %v3386 = vsel %vm1078, %v2723, %v3229
        %v3387 = vsel %vm1078, %v2724, %v3231
        %v3388 = vsel %vm1078, %v2725, %v3233
        %v3389 = vsel %vm1078, %v2726, %v3235
        %v3390 = vsel %vm1078, %v2727, %v3237
        %v3391 = vsel %vm1078, %v2761, %v3239
        %v3392 = vsel %vm1078, %v2764, %v3241
        %v3393 = vsel %vm1078, %v2773, %v3243
        %v3394 = vsel %vm1362, %v3386, %v2930
        %v3395 = vsel %vm1362, %v3387, %v2932
        %v3396 = vsel %vm1362, %v3388, %v2934
        %v3397 = vsel %vm1362, %v3389, %v2936
        %v3398 = vsel %vm1362, %v3390, %v2938
        %v3399 = vsel %vm1362, %v3391, %v3254
        %v3400 = vsel %vm1362, %v3392, %v3256
        %v3401 = vsel %vm1362, %v3393, %v3258
        %v3402 = vsel %vm2347, %v3394, %v2955
        %v3403 = vsel %vm2347, %v3395, %v2957
        %v3404 = vsel %vm2347, %v3396, %v2959
        %v3405 = vsel %vm2347, %v3397, %v2961
        %v3406 = vsel %vm2347, %v3398, %v2963
        %v3407 = vsel %vm2347, %v3399, %v3265
        %v3408 = vsel %vm2347, %v3400, %v3267
        %v3409 = vsel %vm2347, %v3401, %v3269
        %v3410 = vsel %vm1078, %v2732, %v3278
        %v3411 = vsel %vm1078, %v2733, %v3280
        %v3412 = vsel %vm1078, %v2734, %v3282
        %v3413 = vsel %vm1078, %v2735, %v3284
        %v3414 = vsel %vm1078, %v2762, %v3286
        %v3415 = vsel %vm1078, %v2765, %v3288
        %v3416 = vsel %vm1078, %v2774, %v3290
        %v3417 = vsel %vm1078, %v2777, %v3292
        %v3418 = vsel %vm1362, %v3410, %v3304
        %v3419 = vsel %vm1362, %v3411, %v3306
        %v3420 = vsel %vm1362, %v3412, %v3308
        %v3421 = vsel %vm1362, %v3413, %v3310
        %v3422 = vsel %vm1362, %v3414, %v3312
        %v3423 = vsel %vm1362, %v3415, %v3314
        %v3424 = vsel %vm1362, %v3416, %v3316
        %v3425 = vsel %vm1362, %v3417, %v3318
        %v3426 = vsel %vm2347, %v3418, %v3330
        %v3427 = vsel %vm2347, %v3419, %v3332
        %v3428 = vsel %vm2347, %v3420, %v3334
        %v3429 = vsel %vm2347, %v3421, %v3336
        %v3430 = vsel %vm2347, %v3422, %v3338
        %v3431 = vsel %vm2347, %v3423, %v3340
        %v3432 = vsel %vm2347, %v3424, %v3342
        %v3433 = vsel %vm2347, %v3425, %v3344
        %v3434 = vsel %vm1078, %v2760, %v3355
        %v3435 = vsel %vm1078, %v2763, %v3357
        %v3436 = vsel %vm1078, %v2772, %v3359
        %v3437 = vsel %vm1078, %v2775, %v3361
        %v3438 = vsel %vm1078, %v2784, %v3363
        %v3439 = vsel %vm1362, %v3434, %v3372
        %v3440 = vsel %vm1362, %v3435, %v3374
        %v3441 = vsel %vm1362, %v3436, %v3376
        %v3442 = vsel %vm1362, %v3437, %v3378
        %v3443 = vsel %vm1362, %v3438, %v3380
        %v3444 = vmul.f32 %v3147, %v2633
        %v3445 = vmul.f32 %v3171, %v2634
        %v3446 = vmul.f32 %v3195, %v2635
        %v3447 = vmul.f32 %v3219, %v2636
        %v3448 = vmul.f32 %v3402, %v2637
        %v3449 = vmul.f32 %v3426, %v2638
        %v3450 = vmul.f32 %v3144, %v2639
        %v3451 = vmul.f32 %v3148, %v2640
        %v3452 = vmul.f32 %v3172, %v2641
        %v3453 = vmul.f32 %v3196, %v2642
        %v3454 = vmul.f32 %v3220, %v2643
        %v3455 = vmul.f32 %v3403, %v2644
        %v3456 = vmul.f32 %v3427, %v2645
        %v3457 = vmul.f32 %v3145, %v2646
        %v3458 = vmul.f32 %v3149, %v2647
        %v3459 = vmul.f32 %v3173, %v2648
        %v3460 = vmul.f32 %v3197, %v2649
        %v3461 = vmul.f32 %v3221, %v2650
        %v3462 = vmul.f32 %v3404, %v2651
        %v3463 = vmul.f32 %v3428, %v2652
        %v3464 = vmul.f32 %v3146, %v2653
        %v3465 = vmul.f32 %v3150, %v2654
        %v3466 = vmul.f32 %v3174, %v2655
        %v3467 = vmul.f32 %v3198, %v2656
        %v3468 = vmul.f32 %v3222, %v2657
        %v3469 = vmul.f32 %v3405, %v2658
        %v3470 = vmul.f32 %v3429, %v2659
        %v3471 = vmul.f32 %v3439, %v2660
        %v3472 = vmul.f32 %v3151, %v2661
        %v3473 = vmul.f32 %v3175, %v2662
        %v3474 = vmul.f32 %v3199, %v2663
        %v3475 = vmul.f32 %v3223, %v2664
        %v3476 = vmul.f32 %v3406, %v2665
        %v3477 = vmul.f32 %v3430, %v2666
        %v3478 = vmul.f32 %v3440, %v2667
        %v3479 = vmul.f32 %v3152, %v2668
        %v3480 = vmul.f32 %v3176, %v2669
        %v3481 = vmul.f32 %v3200, %v2670
        %v3482 = vmul.f32 %v3224, %v2671
        %v3483 = vmul.f32 %v3407, %v2672
        %v3484 = vmul.f32 %v3431, %v2673
        %v3485 = vmul.f32 %v3441, %v2674
        %v3486 = vmul.f32 %v3153, %v2675
        %v3487 = vmul.f32 %v3177, %v2676
        %v3488 = vmul.f32 %v3201, %v2677
        %v3489 = vmul.f32 %v3225, %v2678
        %v3490 = vmul.f32 %v3408, %v2679
        %v3491 = vmul.f32 %v3432, %v2680
        %v3492 = vmul.f32 %v3442, %v2681
        %v3493 = vmul.f32 %v3154, %v2682
        %v3494 = vmul.f32 %v3178, %v2683
        %v3495 = vmul.f32 %v3202, %v2684
        %v3496 = vmul.f32 %v3226, %v2685
        %v3497 = vmul.f32 %v3409, %v2686
        %v3498 = vmul.f32 %v3433, %v2687
        %v3499 = vmul.f32 %v3443, %v2688
        %v3500 = vld [vmem:[%s43] sm:$0xf]
        %v3501 = vld [vmem:[%s43 + $0x4] sm:$0xf]
        %v3502 = vld [vmem:[%s43 + $0x8] sm:$0xf]
        %v3503 = vld [vmem:[%s43 + $0xc] sm:$0xf]
        %v3504 = vld [vmem:[%s43 + $0x10] sm:$0xf]
        %v3505 = vld [vmem:[%s43 + $0x14] sm:$0xf]
        %v3506 = vld [vmem:[%s43 + $0x18] sm:$0xf]
        %v3507 = vld [vmem:[%s43 + $0x1c] sm:$0xf]
        %v3508 = vld [vmem:[%s43 + $0x20] sm:$0xf]
        %v3509 = vld [vmem:[%s43 + $0x24] sm:$0xf]
        %v3510 = vld [vmem:[%s43 + $0x28] sm:$0xf]
        %v3511 = vld [vmem:[%s43 + $0x2c] sm:$0xf]
        %v3512 = vld [vmem:[%s43 + $0x30] sm:$0xf]
        %v3513 = vld [vmem:[%s43 + $0x34] sm:$0xf]
        %v3514 = vld [vmem:[%s43 + $0x38] sm:$0xf]
        %v3515 = vld [vmem:[%s43 + $0x3c] sm:$0xf]
        %v3516 = vld [vmem:[%s43 + $0x40] sm:$0xf]
        %v3517 = vld [vmem:[%s43 + $0x44] sm:$0xf]
        %v3518 = vld [vmem:[%s43 + $0x48] sm:$0xf]
        %v3519 = vld [vmem:[%s43 + $0x4c] sm:$0xf]
        %v3520 = vld [vmem:[%s43 + $0x50] sm:$0xf]
        %v3521 = vld [vmem:[%s43 + $0x54] sm:$0xf]
        %v3522 = vld [vmem:[%s43 + $0x58] sm:$0xf]
        %v3523 = vld [vmem:[%s43 + $0x5c] sm:$0xf]
        %v3524 = vld [vmem:[%s43 + $0x60] sm:$0xf]
        %v3525 = vld [vmem:[%s43 + $0x64] sm:$0xf]
        %v3526 = vld [vmem:[%s43 + $0x68] sm:$0xf]
        %v3527 = vld [vmem:[%s43 + $0x6c] sm:$0xf]
        %v3528 = vld [vmem:[%s43 + $0x70] sm:$0xf]
        %v3529 = vld [vmem:[%s43 + $0x74] sm:$0xf]
        %v3530 = vld [vmem:[%s43 + $0x78] sm:$0xf]
        %v3531 = vld [vmem:[%s43 + $0x7c] sm:$0xf]
        %v3532 = vld [vmem:[%s43 + $0x80] sm:$0xf]
        %v3533 = vld [vmem:[%s43 + $0x84] sm:$0xf]
        %v3534 = vld [vmem:[%s43 + $0x88] sm:$0xf]
        %v3535 = vld [vmem:[%s43 + $0x8c] sm:$0xf]
        %v3536 = vld [vmem:[%s43 + $0x90] sm:$0xf]
        %v3537 = vld [vmem:[%s43 + $0x94] sm:$0xf]
        %v3538 = vld [vmem:[%s43 + $0x98] sm:$0xf]
        %v3539 = vld [vmem:[%s43 + $0x9c] sm:$0xf]
        %v3540 = vld [vmem:[%s43 + $0xa0] sm:$0xf]
        %v3541 = vld [vmem:[%s43 + $0xa4] sm:$0xf]
        %v3542 = vld [vmem:[%s43 + $0xa8] sm:$0xf]
        %v3543 = vld [vmem:[%s43 + $0xac] sm:$0xf]
        %v3544 = vld [vmem:[%s43 + $0xb0] sm:$0xf]
        %v3545 = vld [vmem:[%s43 + $0xb4] sm:$0xf]
        %v3546 = vld [vmem:[%s43 + $0xb8] sm:$0xf]
        %v3547 = vld [vmem:[%s43 + $0xbc] sm:$0xf]
        %v3548 = vld [vmem:[%s43 + $0xc0] sm:$0xf]
        %v3549 = vld [vmem:[%s43 + $0xc4] sm:$0xf]
        %v3550 = vld [vmem:[%s43 + $0xc8] sm:$0xf]
        %v3551 = vld [vmem:[%s43 + $0xcc] sm:$0xf]
        %v3552 = vld [vmem:[%s43 + $0xd0] sm:$0xf]
        %v3553 = vld [vmem:[%s43 + $0xd4] sm:$0xf]
        %v3554 = vld [vmem:[%s43 + $0xd8] sm:$0xf]
        %v3555 = vld [vmem:[%s43 + $0xdc] sm:$0xf]
        %v3556 = vld [vmem:[%s43 + $0xe0] sm:$0xf]
        %v3557 = vld [vmem:[%s43 + $0xe4] sm:$0xf]
        %v3558 = vld [vmem:[%s43 + $0xe8] sm:$0xf]
        %v3559 = vld [vmem:[%s43 + $0xec] sm:$0xf]
        %v3560 = vld [vmem:[%s43 + $0xf0] sm:$0xf]
        %v3561 = vld [vmem:[%s43 + $0xf4] sm:$0xf]
        %v3562 = vld [vmem:[%s43 + $0xf8] sm:$0xf]
        %v3563 = vld [vmem:[%s43 + $0xfc] sm:$0xf]
        %v3564 = vld [vmem:[%s43 + $0x100] sm:$0xf]
        %v3565 = vld [vmem:[%s43 + $0x104] sm:$0xf]
        %v3566 = vld [vmem:[%s43 + $0x108] sm:$0xf]
        %v3567 = vld [vmem:[%s43 + $0x10c] sm:$0xf]
        %v3568 = vld [vmem:[%s43 + $0x110] sm:$0xf]
        %v3569 = vld [vmem:[%s43 + $0x114] sm:$0xf]
        %v3570 = vld [vmem:[%s43 + $0x118] sm:$0xf]
        %v3571 = vld [vmem:[%s43 + $0x11c] sm:$0xf]
        %v3572 = vld [vmem:[%s43 + $0x120] sm:$0xf]
        %v3573 = vld [vmem:[%s43 + $0x124] sm:$0xf]
        %v3574 = vld [vmem:[%s43 + $0x128] sm:$0xf]
        %v3575 = vld [vmem:[%s43 + $0x12c] sm:$0xf]
        %v3576 = vld [vmem:[%s43 + $0x130] sm:$0xf]
        %v3577 = vld [vmem:[%s43 + $0x134] sm:$0xf]
        %v3578 = vld [vmem:[%s43 + $0x138] sm:$0xf]
        %v3579 = vld [vmem:[%s43 + $0x13c] sm:$0xf]
        %v3580 = vld [vmem:[%s43 + $0x140] sm:$0xf]
        %v3581 = vld [vmem:[%s43 + $0x144] sm:$0xf]
        %v3582 = vld [vmem:[%s43 + $0x148] sm:$0xf]
        %v3583 = vld [vmem:[%s43 + $0x14c] sm:$0xf]
        %v3584 = vld [vmem:[%s43 + $0x150] sm:$0xf]
        %v3585 = vld [vmem:[%s43 + $0x154] sm:$0xf]
        %v3586 = vld [vmem:[%s43 + $0x158] sm:$0xf]
        %v3587 = vld [vmem:[%s43 + $0x15c] sm:$0xf]
        %v3588 = vld [vmem:[%s43 + $0x160] sm:$0xf]
        %v3589 = vld [vmem:[%s43 + $0x164] sm:$0xf]
        %v3590 = vld [vmem:[%s43 + $0x168] sm:$0xf]
        %v3591 = vld [vmem:[%s43 + $0x16c] sm:$0xf]
        %v3592 = vld [vmem:[%s43 + $0x170] sm:$0xf]
        %v3593 = vld [vmem:[%s43 + $0x174] sm:$0xf]
        %v3594 = vld [vmem:[%s43 + $0x178] sm:$0xf]
        %v3595 = vld [vmem:[%s43 + $0x17c] sm:$0xf]
        %v3596 = vld [vmem:[%s43 + $0x180] sm:$0xf]
        %v3597 = vld [vmem:[%s43 + $0x184] sm:$0xf]
        %v3598 = vld [vmem:[%s43 + $0x188] sm:$0xf]
        %v3599 = vld [vmem:[%s43 + $0x18c] sm:$0xf]
        %v3600 = vld [vmem:[%s43 + $0x190] sm:$0xf]
        %v3601 = vld [vmem:[%s43 + $0x194] sm:$0xf]
        %v3602 = vld [vmem:[%s43 + $0x198] sm:$0xf]
        %v3603 = vld [vmem:[%s43 + $0x19c] sm:$0xf]
        %v3604 = vld [vmem:[%s43 + $0x1a0] sm:$0xf]
        %v3605 = vld [vmem:[%s43 + $0x1a4] sm:$0xf]
        %v3606 = vld [vmem:[%s43 + $0x1a8] sm:$0xf]
        %v3607 = vld [vmem:[%s43 + $0x1ac] sm:$0xf]
        %v3608 = vpack.c.bf16 %v3451, %v3444
        %v3609 = vpack.c.bf16 %v3452, %v3445
        %v3610 = vpack.c.bf16 %v3453, %v3446
        %v3611 = vpack.c.bf16 %v3454, %v3447
        %v3612 = vpack.c.bf16 %v3455, %v3448
        %v3613 = vpack.c.bf16 %v3456, %v3449
        %v3614 = vpack.c.bf16 %v3457, %v3450
        %v3615 = vpack.c.bf16 %v3465, %v3458
        %v3616 = vpack.c.bf16 %v3466, %v3459
        %v3617 = vpack.c.bf16 %v3467, %v3460
        %v3618 = vpack.c.bf16 %v3468, %v3461
        %v3619 = vpack.c.bf16 %v3469, %v3462
        %v3620 = vpack.c.bf16 %v3470, %v3463
        %v3621 = vpack.c.bf16 %v3471, %v3464
        %v3622 = vpack.c.bf16 %v3479, %v3472
        %v3623 = vpack.c.bf16 %v3480, %v3473
        %v3624 = vpack.c.bf16 %v3481, %v3474
        %v3625 = vpack.c.bf16 %v3482, %v3475
        %v3626 = vpack.c.bf16 %v3483, %v3476
        %v3627 = vpack.c.bf16 %v3484, %v3477
        %v3628 = vpack.c.bf16 %v3485, %v3478
        %v3629 = vpack.c.bf16 %v3493, %v3486
        %v3630 = vpack.c.bf16 %v3494, %v3487
        %v3631 = vpack.c.bf16 %v3495, %v3488
        %v3632 = vpack.c.bf16 %v3496, %v3489
        %v3633 = vpack.c.bf16 %v3497, %v3490
        %v3634 = vpack.c.bf16 %v3498, %v3491
        %v3635 = vpack.c.bf16 %v3499, %v3492
        %v3744 = vunpack.c.l.b16 %v3500
        %v3745 = vunpack.c.l.b16 %v3501
        %v3746 = vunpack.c.l.b16 %v3502
        %v3747 = vunpack.c.l.b16 %v3503
        %v3748 = vunpack.c.l.b16 %v3504
        %v3749 = vunpack.c.l.b16 %v3505
        %v3750 = vunpack.c.l.b16 %v3506
        %v3751 = vunpack.c.l.b16 %v3507
        %v3752 = vunpack.c.l.b16 %v3508
        %v3753 = vunpack.c.l.b16 %v3509
        %v3754 = vunpack.c.l.b16 %v3510
        %v3755 = vunpack.c.l.b16 %v3511
        %v3756 = vunpack.c.l.b16 %v3512
        %v3757 = vunpack.c.l.b16 %v3513
        %v3758 = vunpack.c.l.b16 %v3514
        %v3759 = vunpack.c.l.b16 %v3515
        %v3760 = vunpack.c.l.b16 %v3516
        %v3761 = vunpack.c.l.b16 %v3517
        %v3762 = vunpack.c.l.b16 %v3518
        %v3763 = vunpack.c.l.b16 %v3519
        %v3764 = vunpack.c.l.b16 %v3520
        %v3765 = vunpack.c.l.b16 %v3521
        %v3766 = vunpack.c.l.b16 %v3522
        %v3767 = vunpack.c.l.b16 %v3523
        %v3768 = vunpack.c.l.b16 %v3524
        %v3769 = vunpack.c.l.b16 %v3525
        %v3770 = vunpack.c.l.b16 %v3526
        %v3771 = vunpack.c.l.b16 %v3527
        %v3772 = vunpack.c.l.b16 %v3528
        %v3773 = vunpack.c.l.b16 %v3529
        %v3774 = vunpack.c.l.b16 %v3530
        %v3775 = vunpack.c.l.b16 %v3531
        %v3776 = vunpack.c.l.b16 %v3532
        %v3777 = vunpack.c.l.b16 %v3533
        %v3778 = vunpack.c.l.b16 %v3534
        %v3779 = vunpack.c.l.b16 %v3535
        %v3780 = vunpack.c.l.b16 %v3536
        %v3781 = vunpack.c.l.b16 %v3537
        %v3782 = vunpack.c.l.b16 %v3538
        %v3783 = vunpack.c.l.b16 %v3539
        %v3784 = vunpack.c.l.b16 %v3540
        %v3785 = vunpack.c.l.b16 %v3541
        %v3786 = vunpack.c.l.b16 %v3542
        %v3787 = vunpack.c.l.b16 %v3543
        %v3788 = vunpack.c.l.b16 %v3544
        %v3789 = vunpack.c.l.b16 %v3545
        %v3790 = vunpack.c.l.b16 %v3546
        %v3791 = vunpack.c.l.b16 %v3547
        %v3792 = vunpack.c.l.b16 %v3548
        %v3793 = vunpack.c.l.b16 %v3549
        %v3794 = vunpack.c.l.b16 %v3550
        %v3795 = vunpack.c.l.b16 %v3551
        %v3796 = vunpack.c.l.b16 %v3552
        %v3797 = vunpack.c.l.b16 %v3553
        %v3798 = vunpack.c.l.b16 %v3554
        %v3799 = vunpack.c.l.b16 %v3555
        %v3800 = vunpack.c.l.b16 %v3556
        %v3801 = vunpack.c.l.b16 %v3557
        %v3802 = vunpack.c.l.b16 %v3558
        %v3803 = vunpack.c.l.b16 %v3559
        %v3804 = vunpack.c.l.b16 %v3560
        %v3805 = vunpack.c.l.b16 %v3561
        %v3806 = vunpack.c.l.b16 %v3562
        %v3807 = vunpack.c.l.b16 %v3563
        %v3808 = vunpack.c.l.b16 %v3564
        %v3809 = vunpack.c.l.b16 %v3565
        %v3810 = vunpack.c.l.b16 %v3566
        %v3811 = vunpack.c.l.b16 %v3567
        %v3812 = vunpack.c.l.b16 %v3568
        %v3813 = vunpack.c.l.b16 %v3569
        %v3814 = vunpack.c.l.b16 %v3570
        %v3815 = vunpack.c.l.b16 %v3571
        %v3816 = vunpack.c.l.b16 %v3572
        %v3817 = vunpack.c.l.b16 %v3573
        %v3818 = vunpack.c.l.b16 %v3574
        %v3819 = vunpack.c.l.b16 %v3575
        %v3820 = vunpack.c.l.b16 %v3576
        %v3821 = vunpack.c.l.b16 %v3577
        %v3822 = vunpack.c.l.b16 %v3578
        %v3823 = vunpack.c.l.b16 %v3579
        %v3824 = vunpack.c.l.b16 %v3580
        %v3825 = vunpack.c.l.b16 %v3581
        %v3826 = vunpack.c.l.b16 %v3582
        %v3827 = vunpack.c.l.b16 %v3583
        %v3828 = vunpack.c.l.b16 %v3584
        %v3829 = vunpack.c.l.b16 %v3585
        %v3830 = vunpack.c.l.b16 %v3586
        %v3831 = vunpack.c.l.b16 %v3587
        %v3832 = vunpack.c.l.b16 %v3588
        %v3833 = vunpack.c.l.b16 %v3589
        %v3834 = vunpack.c.l.b16 %v3590
        %v3835 = vunpack.c.l.b16 %v3591
        %v3836 = vunpack.c.l.b16 %v3592
        %v3837 = vunpack.c.l.b16 %v3593
        %v3838 = vunpack.c.l.b16 %v3594
        %v3839 = vunpack.c.l.b16 %v3595
        %v3840 = vunpack.c.l.b16 %v3596
        %v3841 = vunpack.c.l.b16 %v3597
        %v3842 = vunpack.c.l.b16 %v3598
        %v3843 = vunpack.c.l.b16 %v3599
        %v3844 = vunpack.c.l.b16 %v3600
        %v3845 = vunpack.c.l.b16 %v3601
        %v3846 = vunpack.c.l.b16 %v3602
        %v3847 = vunpack.c.l.b16 %v3603
        %v3848 = vunpack.c.l.b16 %v3604
        %v3849 = vunpack.c.l.b16 %v3605
        %v3850 = vunpack.c.l.b16 %v3606
        %v3851 = vunpack.c.l.b16 %v3607
        %v3852 = vpack.c.b16 %v3745, %v3744
        %v3853 = vpack.c.b16 %v3747, %v3746
        %v3854 = vpack.c.b16 %v3749, %v3748
        %v3855 = vpack.c.b16 %v3751, %v3750
        %v3856 = vpack.c.b16 %v3753, %v3752
        %v3857 = vpack.c.b16 %v3755, %v3754
        %v3858 = vpack.c.b16 %v3757, %v3756
        %v3859 = vpack.c.b16 %v3759, %v3758
        %v3860 = vpack.c.b16 %v3761, %v3760
        %v3861 = vpack.c.b16 %v3763, %v3762
        %v3862 = vpack.c.b16 %v3765, %v3764
        %v3863 = vpack.c.b16 %v3767, %v3766
        %v3864 = vpack.c.b16 %v3769, %v3768
        %v3865 = vpack.c.b16 %v3771, %v3770
        %v3866 = vpack.c.b16 %v3773, %v3772
        %v3867 = vpack.c.b16 %v3775, %v3774
        %v3868 = vpack.c.b16 %v3777, %v3776
        %v3869 = vpack.c.b16 %v3779, %v3778
        %v3870 = vpack.c.b16 %v3781, %v3780
        %v3871 = vpack.c.b16 %v3783, %v3782
        %v3872 = vpack.c.b16 %v3785, %v3784
        %v3873 = vpack.c.b16 %v3787, %v3786
        %v3874 = vpack.c.b16 %v3789, %v3788
        %v3875 = vpack.c.b16 %v3791, %v3790
        %v3876 = vpack.c.b16 %v3793, %v3792
        %v3877 = vpack.c.b16 %v3795, %v3794
        %v3878 = vpack.c.b16 %v3797, %v3796
        %v3879 = vpack.c.b16 %v3799, %v3798
        %v3880 = vpack.c.b16 %v3801, %v3800
        %v3881 = vpack.c.b16 %v3803, %v3802
        %v3882 = vpack.c.b16 %v3805, %v3804
        %v3883 = vpack.c.b16 %v3807, %v3806
        %v3884 = vpack.c.b16 %v3809, %v3808
        %v3885 = vpack.c.b16 %v3811, %v3810
        %v3886 = vpack.c.b16 %v3813, %v3812
        %v3887 = vpack.c.b16 %v3815, %v3814
        %v3888 = vpack.c.b16 %v3817, %v3816
        %v3889 = vpack.c.b16 %v3819, %v3818
        %v3890 = vpack.c.b16 %v3821, %v3820
        %v3891 = vpack.c.b16 %v3823, %v3822
        %v3892 = vpack.c.b16 %v3825, %v3824
        %v3893 = vpack.c.b16 %v3827, %v3826
        %v3894 = vpack.c.b16 %v3829, %v3828
        %v3895 = vpack.c.b16 %v3831, %v3830
        %v3896 = vpack.c.b16 %v3833, %v3832
        %v3897 = vpack.c.b16 %v3835, %v3834
        %v3898 = vpack.c.b16 %v3837, %v3836
        %v3899 = vpack.c.b16 %v3839, %v3838
        %v3900 = vpack.c.b16 %v3841, %v3840
        %v3901 = vpack.c.b16 %v3843, %v3842
        %v3902 = vpack.c.b16 %v3845, %v3844
        %v3903 = vpack.c.b16 %v3847, %v3846
        %v3904 = vpack.c.b16 %v3849, %v3848
        %v3905 = vpack.c.b16 %v3851, %v3850
        %v3961 = vsel %vm2347, %v3614, 0
        %v3964 = vsel %vm2347, %v3621, 0
        %v3967 = vsel %vm2347, %v3628, 0
        %v3970 = vsel %vm2347, %v3635, 0
        %3972 = vmatprep.subr.bf16.mxu0 0
        %3973 = vmatpush1.bf16.msra.mxu0 %v3859
        %3974 = vmatprep.subr.bf16.mxu0 0
        %3975 = vmatpush1.bf16.msra.mxu0 %v3858
        %3976 = vmatprep.subr.bf16.mxu0 0
        %3977 = vmatpush1.bf16.msra.mxu0 %v3857
        %3978 = vmatprep.subr.bf16.mxu0 0
        %3979 = vmatpush1.bf16.msra.mxu0 %v3856
        %3980 = vmatprep.subr.bf16.mxu0 0
        %3981 = vmatpush1.bf16.msra.mxu0 %v3855
        %3982 = vmatprep.subr.bf16.mxu0 0
        %3983 = vmatpush1.bf16.msra.mxu0 %v3854
        %3984 = vmatprep.subr.bf16.mxu0 0
        %3985 = vmatpush1.bf16.msra.mxu0 %v3853
        %3986 = vmatprep.subr.bf16.mxu0 0
        %3987 = vmatpush1.bf16.msra.mxu0 %v3852
        %3988 = vmatprep.subr.bf16.mxu0 0
        %3989 = vmatpush2.bf16.msra.mxu0 %v3867
        %3990 = vmatprep.subr.bf16.mxu0 0
        %3991 = vmatpush2.bf16.msra.mxu0 %v3866
        %3992 = vmatprep.subr.bf16.mxu0 0
        %3993 = vmatpush2.bf16.msra.mxu0 %v3865
        %3994 = vmatprep.subr.bf16.mxu0 0
        %3995 = vmatpush2.bf16.msra.mxu0 %v3864
        %3996 = vmatprep.subr.bf16.mxu0 0
        %3997 = vmatpush2.bf16.msra.mxu0 %v3863
        %3998 = vmatprep.subr.bf16.mxu0 0
        %3999 = vmatpush2.bf16.msra.mxu0 %v3862
        %4000 = vmatprep.subr.bf16.mxu0 0
        %4001 = vmatpush2.bf16.msra.mxu0 %v3861
        %4002 = vmatprep.subr.bf16.mxu0 0
        %4003 = vmatpush2.bf16.msra.mxu0 %v3860
        %4004 = vmatprep.mubr.bf16.mxu0 %v3609
        %4005 = vmatmul.mubr.bf16.gmra.mxu0 %v3608
        %v4006 = vpop.f32.mrf.mxu0
        %v4007 = vadd.f32 0.0, %v4006
        %v4008 = vpop.f32.mrf.mxu0
        %v4009 = vpop.f32.mrf.mxu0
        %v4010 = vadd.f32 0.0, %v4009
        %v4011 = vpop.f32.mrf.mxu0
        %4012 = vmatprep.mubr.bf16.mxu0 %v3616
        %4013 = vmatmul.mubr.bf16.gmra.mxu0 %v3615
        %v4014 = vpop.f32.mrf.mxu0
        %v4015 = vadd.f32 0.0, %v4014
        %v4016 = vpop.f32.mrf.mxu0
        %v4017 = vpop.f32.mrf.mxu0
        %v4018 = vadd.f32 0.0, %v4017
        %v4019 = vpop.f32.mrf.mxu0
        %4020 = vmatprep.mubr.bf16.mxu0 %v3623
        %4021 = vmatmul.mubr.bf16.gmra.mxu0 %v3622
        %v4022 = vpop.f32.mrf.mxu0
        %v4023 = vadd.f32 0.0, %v4022
        %v4024 = vpop.f32.mrf.mxu0
        %v4025 = vpop.f32.mrf.mxu0
        %v4026 = vadd.f32 0.0, %v4025
        %v4027 = vpop.f32.mrf.mxu0
        %4028 = vmatprep.mubr.bf16.mxu0 %v3630
        %4029 = vmatmul.mubr.bf16.gmra.mxu0 %v3629
        %v4030 = vpop.f32.mrf.mxu0
        %v4031 = vadd.f32 0.0, %v4030
        %v4032 = vpop.f32.mrf.mxu0
        %v4033 = vpop.f32.mrf.mxu0
        %v4034 = vadd.f32 0.0, %v4033
        %v4035 = vpop.f32.mrf.mxu0
        %4036 = vdwg.mxu0
        %4037 = vmatprep.subr.bf16.mxu0 0
        %4038 = vmatpush1.bf16.msra.mxu0 %v3875
        %4039 = vmatprep.subr.bf16.mxu0 0
        %4040 = vmatpush1.bf16.msra.mxu0 %v3874
        %4041 = vmatprep.subr.bf16.mxu0 0
        %4042 = vmatpush1.bf16.msra.mxu0 %v3873
        %4043 = vmatprep.subr.bf16.mxu0 0
        %4044 = vmatpush1.bf16.msra.mxu0 %v3872
        %4045 = vmatprep.subr.bf16.mxu0 0
        %4046 = vmatpush1.bf16.msra.mxu0 %v3871
        %4047 = vmatprep.subr.bf16.mxu0 0
        %4048 = vmatpush1.bf16.msra.mxu0 %v3870
        %4049 = vmatprep.subr.bf16.mxu0 0
        %4050 = vmatpush1.bf16.msra.mxu0 %v3869
        %4051 = vmatprep.subr.bf16.mxu0 0
        %4052 = vmatpush1.bf16.msra.mxu0 %v3868
        %4053 = vmatprep.subr.bf16.mxu0 0
        %4054 = vmatpush2.bf16.msra.mxu0 %v3883
        %4055 = vmatprep.subr.bf16.mxu0 0
        %4056 = vmatpush2.bf16.msra.mxu0 %v3882
        %4057 = vmatprep.subr.bf16.mxu0 0
        %4058 = vmatpush2.bf16.msra.mxu0 %v3881
        %4059 = vmatprep.subr.bf16.mxu0 0
        %4060 = vmatpush2.bf16.msra.mxu0 %v3880
        %4061 = vmatprep.subr.bf16.mxu0 0
        %4062 = vmatpush2.bf16.msra.mxu0 %v3879
        %4063 = vmatprep.subr.bf16.mxu0 0
        %4064 = vmatpush2.bf16.msra.mxu0 %v3878
        %4065 = vmatprep.subr.bf16.mxu0 0
        %4066 = vmatpush2.bf16.msra.mxu0 %v3877
        %4067 = vmatprep.subr.bf16.mxu0 0
        %4068 = vmatpush2.bf16.msra.mxu0 %v3876
        %4069 = vmatprep.mubr.bf16.mxu0 %v3611
        %4070 = vmatmul.mubr.bf16.gmra.mxu0 %v3610
        %v4071 = vpop.f32.mrf.mxu0
        %v4072 = vadd.f32 %v4007, %v4071
        %v4073 = vpop.f32.mrf.mxu0
        %v4074 = vpop.f32.mrf.mxu0
        %v4075 = vadd.f32 %v4010, %v4074
        %v4076 = vpop.f32.mrf.mxu0
        %4077 = vmatprep.mubr.bf16.mxu0 %v3618
        %4078 = vmatmul.mubr.bf16.gmra.mxu0 %v3617
        %v4079 = vpop.f32.mrf.mxu0
        %v4080 = vadd.f32 %v4015, %v4079
        %v4081 = vpop.f32.mrf.mxu0
        %v4082 = vpop.f32.mrf.mxu0
        %v4083 = vadd.f32 %v4018, %v4082
        %v4084 = vpop.f32.mrf.mxu0
        %4085 = vmatprep.mubr.bf16.mxu0 %v3625
        %4086 = vmatmul.mubr.bf16.gmra.mxu0 %v3624
        %v4087 = vpop.f32.mrf.mxu0
        %v4088 = vadd.f32 %v4023, %v4087
        %v4089 = vpop.f32.mrf.mxu0
        %v4090 = vpop.f32.mrf.mxu0
        %v4091 = vadd.f32 %v4026, %v4090
        %v4092 = vpop.f32.mrf.mxu0
        %4093 = vmatprep.mubr.bf16.mxu0 %v3632
        %4094 = vmatmul.mubr.bf16.gmra.mxu0 %v3631
        %v4095 = vpop.f32.mrf.mxu0
        %v4096 = vadd.f32 %v4031, %v4095
        %v4097 = vpop.f32.mrf.mxu0
        %v4098 = vpop.f32.mrf.mxu0
        %v4099 = vadd.f32 %v4034, %v4098
        %v4100 = vpop.f32.mrf.mxu0
        %4101 = vdwg.mxu0
        %4102 = vmatprep.subr.bf16.mxu0 0
        %4103 = vmatpush1.bf16.msra.mxu0 %v3891
        %4104 = vmatprep.subr.bf16.mxu0 0
        %4105 = vmatpush1.bf16.msra.mxu0 %v3890
        %4106 = vmatprep.subr.bf16.mxu0 0
        %4107 = vmatpush1.bf16.msra.mxu0 %v3889
        %4108 = vmatprep.subr.bf16.mxu0 0
        %4109 = vmatpush1.bf16.msra.mxu0 %v3888
        %4110 = vmatprep.subr.bf16.mxu0 0
        %4111 = vmatpush1.bf16.msra.mxu0 %v3887
        %4112 = vmatprep.subr.bf16.mxu0 0
        %4113 = vmatpush1.bf16.msra.mxu0 %v3886
        %4114 = vmatprep.subr.bf16.mxu0 0
        %4115 = vmatpush1.bf16.msra.mxu0 %v3885
        %4116 = vmatprep.subr.bf16.mxu0 0
        %4117 = vmatpush1.bf16.msra.mxu0 %v3884
        %4118 = vmatprep.subr.bf16.mxu0 0
        %4119 = vmatpush2.bf16.msra.mxu0 %v3899
        %4120 = vmatprep.subr.bf16.mxu0 0
        %4121 = vmatpush2.bf16.msra.mxu0 %v3898
        %4122 = vmatprep.subr.bf16.mxu0 0
        %4123 = vmatpush2.bf16.msra.mxu0 %v3897
        %4124 = vmatprep.subr.bf16.mxu0 0
        %4125 = vmatpush2.bf16.msra.mxu0 %v3896
        %4126 = vmatprep.subr.bf16.mxu0 0
        %4127 = vmatpush2.bf16.msra.mxu0 %v3895
        %4128 = vmatprep.subr.bf16.mxu0 0
        %4129 = vmatpush2.bf16.msra.mxu0 %v3894
        %4130 = vmatprep.subr.bf16.mxu0 0
        %4131 = vmatpush2.bf16.msra.mxu0 %v3893
        %4132 = vmatprep.subr.bf16.mxu0 0
        %4133 = vmatpush2.bf16.msra.mxu0 %v3892
        %4134 = vmatprep.mubr.bf16.mxu0 %v3613
        %4135 = vmatmul.mubr.bf16.gmra.mxu0 %v3612
        %v4136 = vpop.f32.mrf.mxu0
        %v4137 = vadd.f32 %v4072, %v4136
        %v4138 = vpop.f32.mrf.mxu0
        %v4139 = vpop.f32.mrf.mxu0
        %v4140 = vadd.f32 %v4075, %v4139
        %v4141 = vpop.f32.mrf.mxu0
        %4142 = vmatprep.mubr.bf16.mxu0 %v3620
        %4143 = vmatmul.mubr.bf16.gmra.mxu0 %v3619
        %v4144 = vpop.f32.mrf.mxu0
        %v4145 = vadd.f32 %v4080, %v4144
        %v4146 = vpop.f32.mrf.mxu0
        %v4147 = vpop.f32.mrf.mxu0
        %v4148 = vadd.f32 %v4083, %v4147
        %v4149 = vpop.f32.mrf.mxu0
        %4150 = vmatprep.mubr.bf16.mxu0 %v3627
        %4151 = vmatmul.mubr.bf16.gmra.mxu0 %v3626
        %v4152 = vpop.f32.mrf.mxu0
        %v4153 = vadd.f32 %v4088, %v4152
        %v4154 = vpop.f32.mrf.mxu0
        %v4155 = vpop.f32.mrf.mxu0
        %v4156 = vadd.f32 %v4091, %v4155
        %v4157 = vpop.f32.mrf.mxu0
        %4158 = vmatprep.mubr.bf16.mxu0 %v3634
        %4159 = vmatmul.mubr.bf16.gmra.mxu0 %v3633
        %v4160 = vpop.f32.mrf.mxu0
        %v4161 = vadd.f32 %v4096, %v4160
        %v4162 = vpop.f32.mrf.mxu0
        %v4163 = vpop.f32.mrf.mxu0
        %v4164 = vadd.f32 %v4099, %v4163
        %v4165 = vpop.f32.mrf.mxu0
        %4166 = vdwg.mxu0
        %4167 = vmatprep.subr.bf16.mxu0 0
        %4168 = vmatpush1.bf16.msra.mxu0 0
        %4169 = vmatprep.subr.bf16.mxu0 0
        %4170 = vmatpush1.bf16.msra.mxu0 0
        %4171 = vmatprep.subr.bf16.mxu0 0
        %4172 = vmatpush1.bf16.msra.mxu0 %v3905
        %4173 = vmatprep.subr.bf16.mxu0 0
        %4174 = vmatpush1.bf16.msra.mxu0 %v3904
        %4175 = vmatprep.subr.bf16.mxu0 0
        %4176 = vmatpush1.bf16.msra.mxu0 %v3903
        %4177 = vmatprep.subr.bf16.mxu0 0
        %4178 = vmatpush1.bf16.msra.mxu0 %v3902
        %4179 = vmatprep.subr.bf16.mxu0 0
        %4180 = vmatpush1.bf16.msra.mxu0 %v3901
        %4181 = vmatprep.subr.bf16.mxu0 0
        %4182 = vmatpush1.bf16.msra.mxu0 %v3900
        %4183 = vmatprep.subr.bf16.mxu0 0
        %4184 = vmatpush2.bf16.msra.mxu0 0
        %4185 = vmatprep.subr.bf16.mxu0 0
        %4186 = vmatpush2.bf16.msra.mxu0 0
        %4187 = vmatprep.subr.bf16.mxu0 0
        %4188 = vmatpush2.bf16.msra.mxu0 0
        %4189 = vmatprep.subr.bf16.mxu0 0
        %4190 = vmatpush2.bf16.msra.mxu0 0
        %4191 = vmatprep.subr.bf16.mxu0 0
        %4192 = vmatpush2.bf16.msra.mxu0 0
        %4193 = vmatprep.subr.bf16.mxu0 0
        %4194 = vmatpush2.bf16.msra.mxu0 0
        %4195 = vmatprep.subr.bf16.mxu0 0
        %4196 = vmatpush2.bf16.msra.mxu0 0
        %4197 = vmatprep.subr.bf16.mxu0 0
        %4198 = vmatpush2.bf16.msra.mxu0 0
        %4199 = vmatprep.mubr.bf16.mxu0 0
        %4200 = vmatmul.mubr.bf16.gmra.mxu0 %v3961
        %v4201 = vpop.f32.mrf.mxu0
        %v4202 = vadd.f32 %v4137, %v4201
        %v4203 = vpop.f32.mrf.mxu0
        %v4204 = vpop.f32.mrf.mxu0
        %v4205 = vadd.f32 %v4140, %v4204
        %v4206 = vpop.f32.mrf.mxu0
        %4207 = vmatprep.mubr.bf16.mxu0 0
        %4208 = vmatmul.mubr.bf16.gmra.mxu0 %v3964
        %v4209 = vpop.f32.mrf.mxu0
        %v4210 = vadd.f32 %v4145, %v4209
        %v4211 = vpop.f32.mrf.mxu0
        %v4212 = vpop.f32.mrf.mxu0
        %v4213 = vadd.f32 %v4148, %v4212
        %v4214 = vpop.f32.mrf.mxu0
        %4215 = vmatprep.mubr.bf16.mxu0 0
        %4216 = vmatmul.mubr.bf16.gmra.mxu0 %v3967
        %v4217 = vpop.f32.mrf.mxu0
        %v4218 = vadd.f32 %v4153, %v4217
        %v4219 = vpop.f32.mrf.mxu0
        %v4220 = vpop.f32.mrf.mxu0
        %v4221 = vadd.f32 %v4156, %v4220
        %v4222 = vpop.f32.mrf.mxu0
        %4223 = vmatprep.mubr.bf16.mxu0 0
        %4224 = vmatmul.mubr.bf16.gmra.mxu0 %v3970
        %v4225 = vpop.f32.mrf.mxu0
        %v4226 = vadd.f32 %v4161, %v4225
        %v4227 = vpop.f32.mrf.mxu0
        %v4228 = vpop.f32.mrf.mxu0
        %v4229 = vadd.f32 %v4164, %v4228
        %v4230 = vpop.f32.mrf.mxu0
        %4231 = vdwg.mxu0
        %v4232 = vld [vmem:[%s45] sm:$0x1]
        %v4234 = vlaneseq
        %v4235 = vshrl.u32 %v4234, 7
        %v4236 = vsub.s32 0, %v4235
        %v4237 = vrot.slane %v4232, %v4236
        %v4239 = vmul.f32 %v4202, %v4237
        %v4240 = vmul.f32 %v4205, %v4237
        %v4241 = vmul.f32 %v4210, %v4237
        %v4242 = vmul.f32 %v4213, %v4237
        %v4243 = vmul.f32 %v4218, %v4237
        %v4244 = vmul.f32 %v4221, %v4237
        %v4245 = vmul.f32 %v4226, %v4237
        %v4246 = vmul.f32 %v4229, %v4237
        %v4247 = vld [vmem:[%s47] sm:$0x1]
        %v4249 = vlaneseq
        %v4250 = vshrl.u32 %v4249, 7
        %v4251 = vsub.s32 0, %v4250
        %v4252 = vrot.slane %v4247, %v4251
        %v4254 = vadd.f32 %v4239, %v4252
        %v4255 = vadd.f32 %v4240, %v4252
        %v4256 = vadd.f32 %v4241, %v4252
        %v4257 = vadd.f32 %v4242, %v4252
        %v4258 = vadd.f32 %v4243, %v4252
        %v4259 = vadd.f32 %v4244, %v4252
        %v4260 = vadd.f32 %v4245, %v4252
        %v4261 = vadd.f32 %v4246, %v4252
        %vm4262 = vcmp.ge.f32.partialorder %v4254, 0.0
        %vm4263 = vcmp.ge.f32.partialorder %v4255, 0.0
        %vm4264 = vcmp.ge.f32.partialorder %v4256, 0.0
        %vm4265 = vcmp.ge.f32.partialorder %v4257, 0.0
        %vm4266 = vcmp.ge.f32.partialorder %v4258, 0.0
        %vm4267 = vcmp.ge.f32.partialorder %v4259, 0.0
        %vm4268 = vcmp.ge.f32.partialorder %v4260, 0.0
        %vm4269 = vcmp.ge.f32.partialorder %v4261, 0.0
        %v4270 = vmul.f32 %v4254, 0.01
        %v4271 = vmul.f32 %v4255, 0.01
        %v4272 = vmul.f32 %v4256, 0.01
        %v4273 = vmul.f32 %v4257, 0.01
        %v4274 = vmul.f32 %v4258, 0.01
        %v4275 = vmul.f32 %v4259, 0.01
        %v4276 = vmul.f32 %v4260, 0.01
        %v4277 = vmul.f32 %v4261, 0.01
        %v4278 = vsel %vm4262, %v4254, %v4270
        %v4279 = vsel %vm4263, %v4255, %v4271
        %v4280 = vsel %vm4264, %v4256, %v4272
        %v4281 = vsel %vm4265, %v4257, %v4273
        %v4282 = vsel %vm4266, %v4258, %v4274
        %v4283 = vsel %vm4267, %v4259, %v4275
        %v4284 = vsel %vm4268, %v4260, %v4276
        %v4285 = vsel %vm4269, %v4261, %v4277
        %4286 = vst.msk [vmem:[#allocation2 + $0x15] sm:$0xff] %vm1078, %v4278
        %4287 = vst.msk [vmem:[#allocation2 + $0x1d] sm:$0xff] %vm1078, %v4279
        %4288 = vst.msk [vmem:[#allocation2 + $0x25] sm:$0xff] %vm1078, %v4280
        %4289 = vst.msk [vmem:[#allocation2 + $0x2d] sm:$0xff] %vm1078, %v4281
        %4290 = vst.msk [vmem:[#allocation2 + $0x35] sm:$0xff] %vm1078, %v4282
        %4291 = vst.msk [vmem:[#allocation2 + $0x3d] sm:$0xff] %vm1078, %v4283
        %4292 = vst.msk [vmem:[#allocation2 + $0x45] sm:$0xff] %vm1078, %v4284
        %4293 = vst.msk [vmem:[#allocation2 + $0x4d] sm:$0xff] %vm1078, %v4285
        %v4294 = vld [vmem:[#allocation2] sm:$0xff]
        %v4295 = vld [vmem:[#allocation2 + $0x8] sm:$0xff]
        %v4296 = vld [vmem:[#allocation2 + $0x10] sm:$0xff]
        %v4297 = vld [vmem:[#allocation2 + $0x18] sm:$0xff]
        %v4298 = vld [vmem:[#allocation2 + $0x20] sm:$0xff]
        %v4299 = vld [vmem:[#allocation2 + $0x28] sm:$0xff]
        %v4300 = vld [vmem:[#allocation2 + $0x30] sm:$0xff]
        %v4301 = vld [vmem:[#allocation2 + $0x38] sm:$0xff]
        %v4302 = vld [vmem:[#allocation2 + $0x1] sm:$0xff]
        %v4303 = vld [vmem:[#allocation2 + $0x9] sm:$0xff]
        %v4304 = vld [vmem:[#allocation2 + $0x11] sm:$0xff]
        %v4305 = vld [vmem:[#allocation2 + $0x19] sm:$0xff]
        %v4306 = vld [vmem:[#allocation2 + $0x21] sm:$0xff]
        %v4307 = vld [vmem:[#allocation2 + $0x29] sm:$0xff]
        %v4308 = vld [vmem:[#allocation2 + $0x31] sm:$0xff]
        %v4309 = vld [vmem:[#allocation2 + $0x39] sm:$0xff]
        %v4310 = vld [vmem:[#allocation2 + $0x2] sm:$0xff]
        %v4311 = vld [vmem:[#allocation2 + $0xa] sm:$0xff]
        %v4312 = vld [vmem:[#allocation2 + $0x12] sm:$0xff]
        %v4313 = vld [vmem:[#allocation2 + $0x1a] sm:$0xff]
        %v4314 = vld [vmem:[#allocation2 + $0x22] sm:$0xff]
        %v4315 = vld [vmem:[#allocation2 + $0x2a] sm:$0xff]
        %v4316 = vld [vmem:[#allocation2 + $0x32] sm:$0xff]
        %v4317 = vld [vmem:[#allocation2 + $0x3a] sm:$0xff]
        %v4318 = vld [vmem:[#allocation2 + $0x4] sm:$0xff]
        %v4319 = vld [vmem:[#allocation2 + $0xc] sm:$0xff]
        %v4320 = vld [vmem:[#allocation2 + $0x14] sm:$0xff]
        %v4321 = vld [vmem:[#allocation2 + $0x1c] sm:$0xff]
        %v4322 = vld [vmem:[#allocation2 + $0x24] sm:$0xff]
        %v4323 = vld [vmem:[#allocation2 + $0x2c] sm:$0xff]
        %v4324 = vld [vmem:[#allocation2 + $0x34] sm:$0xff]
        %v4325 = vld [vmem:[#allocation2 + $0x3c] sm:$0xff]
        %v4326 = vld [vmem:[#allocation2 + $0x5] sm:$0xff]
        %v4327 = vld [vmem:[#allocation2 + $0xd] sm:$0xff]
        %v4328 = vld [vmem:[#allocation2 + $0x15] sm:$0xff]
        %v4329 = vld [vmem:[#allocation2 + $0x1d] sm:$0xff]
        %v4330 = vld [vmem:[#allocation2 + $0x25] sm:$0xff]
        %v4331 = vld [vmem:[#allocation2 + $0x2d] sm:$0xff]
        %v4332 = vld [vmem:[#allocation2 + $0x35] sm:$0xff]
        %v4333 = vld [vmem:[#allocation2 + $0x3d] sm:$0xff]
        %v4334 = vld [vmem:[#allocation2 + $0x6] sm:$0xff]
        %v4335 = vld [vmem:[#allocation2 + $0xe] sm:$0xff]
        %v4336 = vld [vmem:[#allocation2 + $0x16] sm:$0xff]
        %v4337 = vld [vmem:[#allocation2 + $0x1e] sm:$0xff]
        %v4338 = vld [vmem:[#allocation2 + $0x26] sm:$0xff]
        %v4339 = vld [vmem:[#allocation2 + $0x2e] sm:$0xff]
        %v4340 = vld [vmem:[#allocation2 + $0x36] sm:$0xff]
        %v4341 = vld [vmem:[#allocation2 + $0x3e] sm:$0xff]
        %v4342 = vld [vmem:[#allocation2 + $0x40] sm:$0xff]
        %v4343 = vld [vmem:[#allocation2 + $0x41] sm:$0xff]
        %v4344 = vld [vmem:[#allocation2 + $0x42] sm:$0xff]
        %v4345 = vld [vmem:[#allocation2 + $0x48] sm:$0xff]
        %v4346 = vld [vmem:[#allocation2 + $0x49] sm:$0xff]
        %v4347 = vld [vmem:[#allocation2 + $0x4a] sm:$0xff]
        %v4348 = vld [vmem:[#allocation2 + $0x44] sm:$0xff]
        %v4349 = vld [vmem:[#allocation2 + $0x4c] sm:$0xff]
        %v4350 = vld [vmem:[#allocation2 + $0x45] sm:$0xff]
        %v4351 = vld [vmem:[#allocation2 + $0x4d] sm:$0xff]
        %v4352 = vld [vmem:[#allocation2 + $0x46] sm:$0xff]
        %v4353 = vld [vmem:[#allocation2 + $0x4e] sm:$0xff]
        %v4354 = vld [vmem:[#allocation2 + $0x50] sm:$0xff]
        %v4355 = vld [vmem:[#allocation2 + $0x51] sm:$0xff]
        %v4356 = vld [vmem:[#allocation2 + $0x52] sm:$0xff]
        %v4357 = vld [vmem:[#allocation2 + $0x58] sm:$0xff]
        %v4358 = vld [vmem:[#allocation2 + $0x59] sm:$0xff]
        %v4359 = vld [vmem:[#allocation2 + $0x5a] sm:$0xff]
        %v4360 = vld [vmem:[#allocation2 + $0x54] sm:$0xff]
        %v4361 = vld [vmem:[#allocation2 + $0x5c] sm:$0xff]
        %v4362 = vld [vmem:[#allocation2 + $0x55] sm:$0xff]
        %v4363 = vld [vmem:[#allocation2 + $0x5d] sm:$0xff]
        %v4364 = vld [vmem:[#allocation2 + $0x56] sm:$0xff]
        %v4365 = vld [vmem:[#allocation2 + $0x5e] sm:$0xff]
        %v4366 = vld [vmem:[#allocation2 + $0x60] sm:$0xff]
        %v4367 = vld [vmem:[#allocation2 + $0x61] sm:$0xff]
        %v4368 = vld [vmem:[#allocation2 + $0x62] sm:$0xff]
        %4377 = vrot.lane.b32.xlu0 %v4302, 32
        %v4378 = vpop.permute.xlu0 %4377
        %4379 = vrot.lane.b32.xlu0 %v4303, 32
        %v4380 = vpop.permute.xlu0 %4379
        %4381 = vrot.lane.b32.xlu0 %v4304, 32
        %v4382 = vpop.permute.xlu0 %4381
        %4383 = vrot.lane.b32.xlu0 %v4305, 32
        %v4384 = vpop.permute.xlu0 %4383
        %4385 = vrot.lane.b32.xlu0 %v4306, 32
        %v4386 = vpop.permute.xlu0 %4385
        %4387 = vrot.lane.b32.xlu0 %v4307, 32
        %v4388 = vpop.permute.xlu0 %4387
        %4389 = vrot.lane.b32.xlu0 %v4308, 32
        %v4390 = vpop.permute.xlu0 %4389
        %4391 = vrot.lane.b32.xlu0 %v4309, 32
        %v4392 = vpop.permute.xlu0 %4391
        %4409 = vrot.lane.b32.xlu0 %v4310, 64
        %v4410 = vpop.permute.xlu0 %4409
        %4411 = vrot.lane.b32.xlu0 %v4311, 64
        %v4412 = vpop.permute.xlu0 %4411
        %4413 = vrot.lane.b32.xlu0 %v4312, 64
        %v4414 = vpop.permute.xlu0 %4413
        %4415 = vrot.lane.b32.xlu0 %v4313, 64
        %v4416 = vpop.permute.xlu0 %4415
        %4417 = vrot.lane.b32.xlu0 %v4314, 64
        %v4418 = vpop.permute.xlu0 %4417
        %4419 = vrot.lane.b32.xlu0 %v4315, 64
        %v4420 = vpop.permute.xlu0 %4419
        %4421 = vrot.lane.b32.xlu0 %v4316, 64
        %v4422 = vpop.permute.xlu0 %4421
        %4423 = vrot.lane.b32.xlu0 %v4317, 64
        %v4424 = vpop.permute.xlu0 %4423
        %4441 = vrot.lane.b32.xlu0 %v4318, 96
        %v4442 = vpop.permute.xlu0 %4441
        %4443 = vrot.lane.b32.xlu0 %v4319, 96
        %v4444 = vpop.permute.xlu0 %4443
        %4445 = vrot.lane.b32.xlu0 %v4320, 96
        %v4446 = vpop.permute.xlu0 %4445
        %4447 = vrot.lane.b32.xlu0 %v4321, 96
        %v4448 = vpop.permute.xlu0 %4447
        %4449 = vrot.lane.b32.xlu0 %v4322, 96
        %v4450 = vpop.permute.xlu0 %4449
        %4451 = vrot.lane.b32.xlu0 %v4323, 96
        %v4452 = vpop.permute.xlu0 %4451
        %4453 = vrot.lane.b32.xlu0 %v4324, 96
        %v4454 = vpop.permute.xlu0 %4453
        %4455 = vrot.lane.b32.xlu0 %v4325, 96
        %v4456 = vpop.permute.xlu0 %4455
        %4473 = vrot.lane.b32.xlu0 %v4334, 32
        %v4474 = vpop.permute.xlu0 %4473
        %4475 = vrot.lane.b32.xlu0 %v4335, 32
        %v4476 = vpop.permute.xlu0 %4475
        %4477 = vrot.lane.b32.xlu0 %v4336, 32
        %v4478 = vpop.permute.xlu0 %4477
        %4479 = vrot.lane.b32.xlu0 %v4337, 32
        %v4480 = vpop.permute.xlu0 %4479
        %4481 = vrot.lane.b32.xlu0 %v4338, 32
        %v4482 = vpop.permute.xlu0 %4481
        %4483 = vrot.lane.b32.xlu0 %v4339, 32
        %v4484 = vpop.permute.xlu0 %4483
        %4485 = vrot.lane.b32.xlu0 %v4340, 32
        %v4486 = vpop.permute.xlu0 %4485
        %4487 = vrot.lane.b32.xlu0 %v4341, 32
        %v4488 = vpop.permute.xlu0 %4487
        %4505 = vrot.lane.b32.xlu0 %v4295, 64
        %v4506 = vpop.permute.xlu0 %4505
        %4507 = vrot.lane.b32.xlu0 %v4296, 64
        %v4508 = vpop.permute.xlu0 %4507
        %4509 = vrot.lane.b32.xlu0 %v4297, 64
        %v4510 = vpop.permute.xlu0 %4509
        %4511 = vrot.lane.b32.xlu0 %v4298, 64
        %v4512 = vpop.permute.xlu0 %4511
        %4513 = vrot.lane.b32.xlu0 %v4299, 64
        %v4514 = vpop.permute.xlu0 %4513
        %4515 = vrot.lane.b32.xlu0 %v4300, 64
        %v4516 = vpop.permute.xlu0 %4515
        %4517 = vrot.lane.b32.xlu0 %v4301, 64
        %v4518 = vpop.permute.xlu0 %4517
        %4519 = vrot.lane.b32.xlu0 %v4342, 64
        %v4520 = vpop.permute.xlu0 %4519
        %4530 = vrot.lane.b32.xlu0 %v4303, 96
        %v4531 = vpop.permute.xlu0 %4530
        %4532 = vrot.lane.b32.xlu0 %v4304, 96
        %v4533 = vpop.permute.xlu0 %4532
        %4534 = vrot.lane.b32.xlu0 %v4305, 96
        %v4535 = vpop.permute.xlu0 %4534
        %4536 = vrot.lane.b32.xlu0 %v4306, 96
        %v4537 = vpop.permute.xlu0 %4536
        %4538 = vrot.lane.b32.xlu0 %v4307, 96
        %v4539 = vpop.permute.xlu0 %4538
        %4540 = vrot.lane.b32.xlu0 %v4308, 96
        %v4541 = vpop.permute.xlu0 %4540
        %4542 = vrot.lane.b32.xlu0 %v4309, 96
        %v4543 = vpop.permute.xlu0 %4542
        %4544 = vrot.lane.b32.xlu0 %v4343, 96
        %v4545 = vpop.permute.xlu0 %4544
        %4555 = vrot.lane.b32.xlu0 %v4296, 32
        %v4556 = vpop.permute.xlu0 %4555
        %4557 = vrot.lane.b32.xlu0 %v4297, 32
        %v4558 = vpop.permute.xlu0 %4557
        %4559 = vrot.lane.b32.xlu0 %v4298, 32
        %v4560 = vpop.permute.xlu0 %4559
        %4561 = vrot.lane.b32.xlu0 %v4299, 32
        %v4562 = vpop.permute.xlu0 %4561
        %4563 = vrot.lane.b32.xlu0 %v4300, 32
        %v4564 = vpop.permute.xlu0 %4563
        %4565 = vrot.lane.b32.xlu0 %v4301, 32
        %v4566 = vpop.permute.xlu0 %4565
        %4567 = vrot.lane.b32.xlu0 %v4342, 32
        %v4568 = vpop.permute.xlu0 %4567
        %4569 = vrot.lane.b32.xlu0 %v4345, 32
        %v4570 = vpop.permute.xlu0 %4569
        %4580 = vrot.lane.b32.xlu0 %v4304, 64
        %v4581 = vpop.permute.xlu0 %4580
        %4582 = vrot.lane.b32.xlu0 %v4305, 64
        %v4583 = vpop.permute.xlu0 %4582
        %4584 = vrot.lane.b32.xlu0 %v4306, 64
        %v4585 = vpop.permute.xlu0 %4584
        %4586 = vrot.lane.b32.xlu0 %v4307, 64
        %v4587 = vpop.permute.xlu0 %4586
        %4588 = vrot.lane.b32.xlu0 %v4308, 64
        %v4589 = vpop.permute.xlu0 %4588
        %4590 = vrot.lane.b32.xlu0 %v4309, 64
        %v4591 = vpop.permute.xlu0 %4590
        %4592 = vrot.lane.b32.xlu0 %v4343, 64
        %v4593 = vpop.permute.xlu0 %4592
        %4594 = vrot.lane.b32.xlu0 %v4346, 64
        %v4595 = vpop.permute.xlu0 %4594
        %4606 = vrot.lane.b32.xlu0 %v4312, 96
        %v4607 = vpop.permute.xlu0 %4606
        %4608 = vrot.lane.b32.xlu0 %v4313, 96
        %v4609 = vpop.permute.xlu0 %4608
        %4610 = vrot.lane.b32.xlu0 %v4314, 96
        %v4611 = vpop.permute.xlu0 %4610
        %4612 = vrot.lane.b32.xlu0 %v4315, 96
        %v4613 = vpop.permute.xlu0 %4612
        %4614 = vrot.lane.b32.xlu0 %v4316, 96
        %v4615 = vpop.permute.xlu0 %4614
        %4616 = vrot.lane.b32.xlu0 %v4317, 96
        %v4617 = vpop.permute.xlu0 %4616
        %4618 = vrot.lane.b32.xlu0 %v4344, 96
        %v4619 = vpop.permute.xlu0 %4618
        %4620 = vrot.lane.b32.xlu0 %v4347, 96
        %v4621 = vpop.permute.xlu0 %4620
        %4638 = vrot.lane.b32.xlu0 %v4328, 32
        %v4639 = vpop.permute.xlu0 %4638
        %4640 = vrot.lane.b32.xlu0 %v4329, 32
        %v4641 = vpop.permute.xlu0 %4640
        %4642 = vrot.lane.b32.xlu0 %v4330, 32
        %v4643 = vpop.permute.xlu0 %4642
        %4644 = vrot.lane.b32.xlu0 %v4331, 32
        %v4645 = vpop.permute.xlu0 %4644
        %4646 = vrot.lane.b32.xlu0 %v4332, 32
        %v4647 = vpop.permute.xlu0 %4646
        %4648 = vrot.lane.b32.xlu0 %v4333, 32
        %v4649 = vpop.permute.xlu0 %4648
        %4650 = vrot.lane.b32.xlu0 %v4350, 32
        %v4651 = vpop.permute.xlu0 %4650
        %4652 = vrot.lane.b32.xlu0 %v4351, 32
        %v4653 = vpop.permute.xlu0 %4652
        %4664 = vrot.lane.b32.xlu0 %v4336, 64
        %v4665 = vpop.permute.xlu0 %4664
        %4666 = vrot.lane.b32.xlu0 %v4337, 64
        %v4667 = vpop.permute.xlu0 %4666
        %4668 = vrot.lane.b32.xlu0 %v4338, 64
        %v4669 = vpop.permute.xlu0 %4668
        %4670 = vrot.lane.b32.xlu0 %v4339, 64
        %v4671 = vpop.permute.xlu0 %4670
        %4672 = vrot.lane.b32.xlu0 %v4340, 64
        %v4673 = vpop.permute.xlu0 %4672
        %4674 = vrot.lane.b32.xlu0 %v4341, 64
        %v4675 = vpop.permute.xlu0 %4674
        %4676 = vrot.lane.b32.xlu0 %v4352, 64
        %v4677 = vpop.permute.xlu0 %4676
        %4678 = vrot.lane.b32.xlu0 %v4353, 64
        %v4679 = vpop.permute.xlu0 %4678
        %4689 = vrot.lane.b32.xlu0 %v4297, 96
        %v4690 = vpop.permute.xlu0 %4689
        %4691 = vrot.lane.b32.xlu0 %v4298, 96
        %v4692 = vpop.permute.xlu0 %4691
        %4693 = vrot.lane.b32.xlu0 %v4299, 96
        %v4694 = vpop.permute.xlu0 %4693
        %4695 = vrot.lane.b32.xlu0 %v4300, 96
        %v4696 = vpop.permute.xlu0 %4695
        %4697 = vrot.lane.b32.xlu0 %v4301, 96
        %v4698 = vpop.permute.xlu0 %4697
        %4699 = vrot.lane.b32.xlu0 %v4342, 96
        %v4700 = vpop.permute.xlu0 %4699
        %4701 = vrot.lane.b32.xlu0 %v4345, 96
        %v4702 = vpop.permute.xlu0 %4701
        %4703 = vrot.lane.b32.xlu0 %v4354, 96
        %v4704 = vpop.permute.xlu0 %4703
        %v4713 = vsel %vm1078, %v4294, %v4378
        %v4714 = vsel %vm1078, %v4295, %v4380
        %v4715 = vsel %vm1078, %v4296, %v4382
        %v4716 = vsel %vm1078, %v4297, %v4384
        %v4717 = vsel %vm1078, %v4298, %v4386
        %v4718 = vsel %vm1078, %v4299, %v4388
        %v4719 = vsel %vm1078, %v4300, %v4390
        %v4720 = vsel %vm1078, %v4301, %v4392
        %v4721 = vsel %vm1362, %v4713, %v4410
        %v4722 = vsel %vm1362, %v4714, %v4412
        %v4723 = vsel %vm1362, %v4715, %v4414
        %v4724 = vsel %vm1362, %v4716, %v4416
        %v4725 = vsel %vm1362, %v4717, %v4418
        %v4726 = vsel %vm1362, %v4718, %v4420
        %v4727 = vsel %vm1362, %v4719, %v4422
        %v4728 = vsel %vm1362, %v4720, %v4424
        %v4729 = vsel %vm2347, %v4721, %v4442
        %v4730 = vsel %vm2347, %v4722, %v4444
        %v4731 = vsel %vm2347, %v4723, %v4446
        %v4732 = vsel %vm2347, %v4724, %v4448
        %v4733 = vsel %vm2347, %v4725, %v4450
        %v4734 = vsel %vm2347, %v4726, %v4452
        %v4735 = vsel %vm2347, %v4727, %v4454
        %v4736 = vsel %vm2347, %v4728, %v4456
        %v4737 = vsel %vm1078, %v4326, %v4474
        %v4738 = vsel %vm1078, %v4327, %v4476
        %v4739 = vsel %vm1078, %v4328, %v4478
        %v4740 = vsel %vm1078, %v4329, %v4480
        %v4741 = vsel %vm1078, %v4330, %v4482
        %v4742 = vsel %vm1078, %v4331, %v4484
        %v4743 = vsel %vm1078, %v4332, %v4486
        %v4744 = vsel %vm1078, %v4333, %v4488
        %v4745 = vsel %vm1362, %v4737, %v4506
        %v4746 = vsel %vm1362, %v4738, %v4508
        %v4747 = vsel %vm1362, %v4739, %v4510
        %v4748 = vsel %vm1362, %v4740, %v4512
        %v4749 = vsel %vm1362, %v4741, %v4514
        %v4750 = vsel %vm1362, %v4742, %v4516
        %v4751 = vsel %vm1362, %v4743, %v4518
        %v4752 = vsel %vm1362, %v4744, %v4520
        %v4753 = vsel %vm2347, %v4745, %v4531
        %v4754 = vsel %vm2347, %v4746, %v4533
        %v4755 = vsel %vm2347, %v4747, %v4535
        %v4756 = vsel %vm2347, %v4748, %v4537
        %v4757 = vsel %vm2347, %v4749, %v4539
        %v4758 = vsel %vm2347, %v4750, %v4541
        %v4759 = vsel %vm2347, %v4751, %v4543
        %v4760 = vsel %vm2347, %v4752, %v4545
        %v4761 = vsel %vm1078, %v4311, %v4556
        %v4762 = vsel %vm1078, %v4312, %v4558
        %v4763 = vsel %vm1078, %v4313, %v4560
        %v4764 = vsel %vm1078, %v4314, %v4562
        %v4765 = vsel %vm1078, %v4315, %v4564
        %v4766 = vsel %vm1078, %v4316, %v4566
        %v4767 = vsel %vm1078, %v4317, %v4568
        %v4768 = vsel %vm1078, %v4344, %v4570
        %v4769 = vsel %vm1362, %v4761, %v4581
        %v4770 = vsel %vm1362, %v4762, %v4583
        %v4771 = vsel %vm1362, %v4763, %v4585
        %v4772 = vsel %vm1362, %v4764, %v4587
        %v4773 = vsel %vm1362, %v4765, %v4589
        %v4774 = vsel %vm1362, %v4766, %v4591
        %v4775 = vsel %vm1362, %v4767, %v4593
        %v4776 = vsel %vm1362, %v4768, %v4595
        %v4777 = vsel %vm2347, %v4769, %v4607
        %v4778 = vsel %vm2347, %v4770, %v4609
        %v4779 = vsel %vm2347, %v4771, %v4611
        %v4780 = vsel %vm2347, %v4772, %v4613
        %v4781 = vsel %vm2347, %v4773, %v4615
        %v4782 = vsel %vm2347, %v4774, %v4617
        %v4783 = vsel %vm2347, %v4775, %v4619
        %v4784 = vsel %vm2347, %v4776, %v4621
        %v4785 = vsel %vm1078, %v4320, %v4639
        %v4786 = vsel %vm1078, %v4321, %v4641
        %v4787 = vsel %vm1078, %v4322, %v4643
        %v4788 = vsel %vm1078, %v4323, %v4645
        %v4789 = vsel %vm1078, %v4324, %v4647
        %v4790 = vsel %vm1078, %v4325, %v4649
        %v4791 = vsel %vm1078, %v4348, %v4651
        %v4792 = vsel %vm1078, %v4349, %v4653
        %v4793 = vsel %vm1362, %v4785, %v4665
        %v4794 = vsel %vm1362, %v4786, %v4667
        %v4795 = vsel %vm1362, %v4787, %v4669
        %v4796 = vsel %vm1362, %v4788, %v4671
        %v4797 = vsel %vm1362, %v4789, %v4673
        %v4798 = vsel %vm1362, %v4790, %v4675
        %v4799 = vsel %vm1362, %v4791, %v4677
        %v4800 = vsel %vm1362, %v4792, %v4679
        %v4801 = vsel %vm2347, %v4793, %v4690
        %v4802 = vsel %vm2347, %v4794, %v4692
        %v4803 = vsel %vm2347, %v4795, %v4694
        %v4804 = vsel %vm2347, %v4796, %v4696
        %v4805 = vsel %vm2347, %v4797, %v4698
        %v4806 = vsel %vm2347, %v4798, %v4700
        %v4807 = vsel %vm2347, %v4799, %v4702
        %v4808 = vsel %vm2347, %v4800, %v4704
        %4810 = vrot.lane.b32.xlu0 %v4313, 32
        %v4811 = vpop.permute.xlu0 %4810
        %4812 = vrot.lane.b32.xlu0 %v4314, 32
        %v4813 = vpop.permute.xlu0 %4812
        %4814 = vrot.lane.b32.xlu0 %v4315, 32
        %v4815 = vpop.permute.xlu0 %4814
        %4816 = vrot.lane.b32.xlu0 %v4316, 32
        %v4817 = vpop.permute.xlu0 %4816
        %4818 = vrot.lane.b32.xlu0 %v4317, 32
        %v4819 = vpop.permute.xlu0 %4818
        %4820 = vrot.lane.b32.xlu0 %v4344, 32
        %v4821 = vpop.permute.xlu0 %4820
        %4822 = vrot.lane.b32.xlu0 %v4347, 32
        %v4823 = vpop.permute.xlu0 %4822
        %4824 = vrot.lane.b32.xlu0 %v4356, 32
        %v4825 = vpop.permute.xlu0 %4824
        %4835 = vrot.lane.b32.xlu0 %v4345, 64
        %v4836 = vpop.permute.xlu0 %4835
        %4837 = vrot.lane.b32.xlu0 %v4354, 64
        %v4838 = vpop.permute.xlu0 %4837
        %4839 = vrot.lane.b32.xlu0 %v4357, 64
        %v4840 = vpop.permute.xlu0 %4839
        %4846 = vrot.lane.b32.xlu0 %v4346, 96
        %v4847 = vpop.permute.xlu0 %4846
        %4848 = vrot.lane.b32.xlu0 %v4355, 96
        %v4849 = vpop.permute.xlu0 %4848
        %4850 = vrot.lane.b32.xlu0 %v4358, 96
        %v4851 = vpop.permute.xlu0 %4850
        %4859 = vrot.lane.b32.xlu0 %v4322, 32
        %v4860 = vpop.permute.xlu0 %4859
        %4861 = vrot.lane.b32.xlu0 %v4323, 32
        %v4862 = vpop.permute.xlu0 %4861
        %4863 = vrot.lane.b32.xlu0 %v4324, 32
        %v4864 = vpop.permute.xlu0 %4863
        %4865 = vrot.lane.b32.xlu0 %v4325, 32
        %v4866 = vpop.permute.xlu0 %4865
        %4867 = vrot.lane.b32.xlu0 %v4348, 32
        %v4868 = vpop.permute.xlu0 %4867
        %4869 = vrot.lane.b32.xlu0 %v4349, 32
        %v4870 = vpop.permute.xlu0 %4869
        %4871 = vrot.lane.b32.xlu0 %v4360, 32
        %v4872 = vpop.permute.xlu0 %4871
        %4873 = vrot.lane.b32.xlu0 %v4361, 32
        %v4874 = vpop.permute.xlu0 %4873
        %4885 = vrot.lane.b32.xlu0 %v4330, 64
        %v4886 = vpop.permute.xlu0 %4885
        %4887 = vrot.lane.b32.xlu0 %v4331, 64
        %v4888 = vpop.permute.xlu0 %4887
        %4889 = vrot.lane.b32.xlu0 %v4332, 64
        %v4890 = vpop.permute.xlu0 %4889
        %4891 = vrot.lane.b32.xlu0 %v4333, 64
        %v4892 = vpop.permute.xlu0 %4891
        %4893 = vrot.lane.b32.xlu0 %v4350, 64
        %v4894 = vpop.permute.xlu0 %4893
        %4895 = vrot.lane.b32.xlu0 %v4351, 64
        %v4896 = vpop.permute.xlu0 %4895
        %4897 = vrot.lane.b32.xlu0 %v4362, 64
        %v4898 = vpop.permute.xlu0 %4897
        %4899 = vrot.lane.b32.xlu0 %v4363, 64
        %v4900 = vpop.permute.xlu0 %4899
        %4911 = vrot.lane.b32.xlu0 %v4338, 96
        %v4912 = vpop.permute.xlu0 %4911
        %4913 = vrot.lane.b32.xlu0 %v4339, 96
        %v4914 = vpop.permute.xlu0 %4913
        %4915 = vrot.lane.b32.xlu0 %v4340, 96
        %v4916 = vpop.permute.xlu0 %4915
        %4917 = vrot.lane.b32.xlu0 %v4341, 96
        %v4918 = vpop.permute.xlu0 %4917
        %4919 = vrot.lane.b32.xlu0 %v4352, 96
        %v4920 = vpop.permute.xlu0 %4919
        %4921 = vrot.lane.b32.xlu0 %v4353, 96
        %v4922 = vpop.permute.xlu0 %4921
        %4923 = vrot.lane.b32.xlu0 %v4364, 96
        %v4924 = vpop.permute.xlu0 %4923
        %4925 = vrot.lane.b32.xlu0 %v4365, 96
        %v4926 = vpop.permute.xlu0 %4925
        %4936 = vrot.lane.b32.xlu0 %v4343, 32
        %v4937 = vpop.permute.xlu0 %4936
        %4938 = vrot.lane.b32.xlu0 %v4346, 32
        %v4939 = vpop.permute.xlu0 %4938
        %4940 = vrot.lane.b32.xlu0 %v4355, 32
        %v4941 = vpop.permute.xlu0 %4940
        %4942 = vrot.lane.b32.xlu0 %v4358, 32
        %v4943 = vpop.permute.xlu0 %4942
        %4944 = vrot.lane.b32.xlu0 %v4367, 32
        %v4945 = vpop.permute.xlu0 %4944
        %4953 = vrot.lane.b32.xlu0 %v4344, 64
        %v4954 = vpop.permute.xlu0 %4953
        %4955 = vrot.lane.b32.xlu0 %v4347, 64
        %v4956 = vpop.permute.xlu0 %4955
        %4957 = vrot.lane.b32.xlu0 %v4356, 64
        %v4958 = vpop.permute.xlu0 %4957
        %4959 = vrot.lane.b32.xlu0 %v4359, 64
        %v4960 = vpop.permute.xlu0 %4959
        %4961 = vrot.lane.b32.xlu0 %v4368, 64
        %v4962 = vpop.permute.xlu0 %4961
        %v4968 = vsel %vm1078, %v4305, %v4811
        %v4969 = vsel %vm1078, %v4306, %v4813
        %v4970 = vsel %vm1078, %v4307, %v4815
        %v4971 = vsel %vm1078, %v4308, %v4817
        %v4972 = vsel %vm1078, %v4309, %v4819
        %v4973 = vsel %vm1078, %v4343, %v4821
        %v4974 = vsel %vm1078, %v4346, %v4823
        %v4975 = vsel %vm1078, %v4355, %v4825
        %v4976 = vsel %vm1362, %v4968, %v4512
        %v4977 = vsel %vm1362, %v4969, %v4514
        %v4978 = vsel %vm1362, %v4970, %v4516
        %v4979 = vsel %vm1362, %v4971, %v4518
        %v4980 = vsel %vm1362, %v4972, %v4520
        %v4981 = vsel %vm1362, %v4973, %v4836
        %v4982 = vsel %vm1362, %v4974, %v4838
        %v4983 = vsel %vm1362, %v4975, %v4840
        %v4984 = vsel %vm2347, %v4976, %v4537
        %v4985 = vsel %vm2347, %v4977, %v4539
        %v4986 = vsel %vm2347, %v4978, %v4541
        %v4987 = vsel %vm2347, %v4979, %v4543
        %v4988 = vsel %vm2347, %v4980, %v4545
        %v4989 = vsel %vm2347, %v4981, %v4847
        %v4990 = vsel %vm2347, %v4982, %v4849
        %v4991 = vsel %vm2347, %v4983, %v4851
        %v4992 = vsel %vm1078, %v4314, %v4860
        %v4993 = vsel %vm1078, %v4315, %v4862
        %v4994 = vsel %vm1078, %v4316, %v4864
        %v4995 = vsel %vm1078, %v4317, %v4866
        %v4996 = vsel %vm1078, %v4344, %v4868
        %v4997 = vsel %vm1078, %v4347, %v4870
        %v4998 = vsel %vm1078, %v4356, %v4872
        %v4999 = vsel %vm1078, %v4359, %v4874
        %v5000 = vsel %vm1362, %v4992, %v4886
        %v5001 = vsel %vm1362, %v4993, %v4888
        %v5002 = vsel %vm1362, %v4994, %v4890
        %v5003 = vsel %vm1362, %v4995, %v4892
        %v5004 = vsel %vm1362, %v4996, %v4894
        %v5005 = vsel %vm1362, %v4997, %v4896
        %v5006 = vsel %vm1362, %v4998, %v4898
        %v5007 = vsel %vm1362, %v4999, %v4900
        %v5008 = vsel %vm2347, %v5000, %v4912
        %v5009 = vsel %vm2347, %v5001, %v4914
        %v5010 = vsel %vm2347, %v5002, %v4916
        %v5011 = vsel %vm2347, %v5003, %v4918
        %v5012 = vsel %vm2347, %v5004, %v4920
        %v5013 = vsel %vm2347, %v5005, %v4922
        %v5014 = vsel %vm2347, %v5006, %v4924
        %v5015 = vsel %vm2347, %v5007, %v4926
        %v5016 = vsel %vm1078, %v4342, %v4937
        %v5017 = vsel %vm1078, %v4345, %v4939
        %v5018 = vsel %vm1078, %v4354, %v4941
        %v5019 = vsel %vm1078, %v4357, %v4943
        %v5020 = vsel %vm1078, %v4366, %v4945
        %v5021 = vsel %vm1362, %v5016, %v4954
        %v5022 = vsel %vm1362, %v5017, %v4956
        %v5023 = vsel %vm1362, %v5018, %v4958
        %v5024 = vsel %vm1362, %v5019, %v4960
        %v5025 = vsel %vm1362, %v5020, %v4962
        %v5026 = vmul.f32 %v4729, %v2633
        %v5027 = vmul.f32 %v4753, %v2634
        %v5028 = vmul.f32 %v4777, %v2635
        %v5029 = vmul.f32 %v4801, %v2636
        %v5030 = vmul.f32 %v4984, %v2637
        %v5031 = vmul.f32 %v5008, %v2638
        %v5032 = vmul.f32 %v4726, %v2639
        %v5033 = vmul.f32 %v4730, %v2640
        %v5034 = vmul.f32 %v4754, %v2641
        %v5035 = vmul.f32 %v4778, %v2642
        %v5036 = vmul.f32 %v4802, %v2643
        %v5037 = vmul.f32 %v4985, %v2644
        %v5038 = vmul.f32 %v5009, %v2645
        %v5039 = vmul.f32 %v4727, %v2646
        %v5040 = vmul.f32 %v4731, %v2647
        %v5041 = vmul.f32 %v4755, %v2648
        %v5042 = vmul.f32 %v4779, %v2649
        %v5043 = vmul.f32 %v4803, %v2650
        %v5044 = vmul.f32 %v4986, %v2651
        %v5045 = vmul.f32 %v5010, %v2652
        %v5046 = vmul.f32 %v4728, %v2653
        %v5047 = vmul.f32 %v4732, %v2654
        %v5048 = vmul.f32 %v4756, %v2655
        %v5049 = vmul.f32 %v4780, %v2656
        %v5050 = vmul.f32 %v4804, %v2657
        %v5051 = vmul.f32 %v4987, %v2658
        %v5052 = vmul.f32 %v5011, %v2659
        %v5053 = vmul.f32 %v5021, %v2660
        %v5054 = vmul.f32 %v4733, %v2661
        %v5055 = vmul.f32 %v4757, %v2662
        %v5056 = vmul.f32 %v4781, %v2663
        %v5057 = vmul.f32 %v4805, %v2664
        %v5058 = vmul.f32 %v4988, %v2665
        %v5059 = vmul.f32 %v5012, %v2666
        %v5060 = vmul.f32 %v5022, %v2667
        %v5061 = vmul.f32 %v4734, %v2668
        %v5062 = vmul.f32 %v4758, %v2669
        %v5063 = vmul.f32 %v4782, %v2670
        %v5064 = vmul.f32 %v4806, %v2671
        %v5065 = vmul.f32 %v4989, %v2672
        %v5066 = vmul.f32 %v5013, %v2673
        %v5067 = vmul.f32 %v5023, %v2674
        %v5068 = vmul.f32 %v4735, %v2675
        %v5069 = vmul.f32 %v4759, %v2676
        %v5070 = vmul.f32 %v4783, %v2677
        %v5071 = vmul.f32 %v4807, %v2678
        %v5072 = vmul.f32 %v4990, %v2679
        %v5073 = vmul.f32 %v5014, %v2680
        %v5074 = vmul.f32 %v5024, %v2681
        %v5075 = vmul.f32 %v4736, %v2682
        %v5076 = vmul.f32 %v4760, %v2683
        %v5077 = vmul.f32 %v4784, %v2684
        %v5078 = vmul.f32 %v4808, %v2685
        %v5079 = vmul.f32 %v4991, %v2686
        %v5080 = vmul.f32 %v5015, %v2687
        %v5081 = vmul.f32 %v5025, %v2688
        %v5082 = vld [vmem:[%s49] sm:$0xf]
        %v5083 = vld [vmem:[%s49 + $0x4] sm:$0xf]
        %v5084 = vld [vmem:[%s49 + $0x8] sm:$0xf]
        %v5085 = vld [vmem:[%s49 + $0xc] sm:$0xf]
        %v5086 = vld [vmem:[%s49 + $0x10] sm:$0xf]
        %v5087 = vld [vmem:[%s49 + $0x14] sm:$0xf]
        %v5088 = vld [vmem:[%s49 + $0x18] sm:$0xf]
        %v5089 = vld [vmem:[%s49 + $0x1c] sm:$0xf]
        %v5090 = vld [vmem:[%s49 + $0x20] sm:$0xf]
        %v5091 = vld [vmem:[%s49 + $0x24] sm:$0xf]
        %v5092 = vld [vmem:[%s49 + $0x28] sm:$0xf]
        %v5093 = vld [vmem:[%s49 + $0x2c] sm:$0xf]
        %v5094 = vld [vmem:[%s49 + $0x30] sm:$0xf]
        %v5095 = vld [vmem:[%s49 + $0x34] sm:$0xf]
        %v5096 = vld [vmem:[%s49 + $0x38] sm:$0xf]
        %v5097 = vld [vmem:[%s49 + $0x3c] sm:$0xf]
        %v5098 = vld [vmem:[%s49 + $0x40] sm:$0xf]
        %v5099 = vld [vmem:[%s49 + $0x44] sm:$0xf]
        %v5100 = vld [vmem:[%s49 + $0x48] sm:$0xf]
        %v5101 = vld [vmem:[%s49 + $0x4c] sm:$0xf]
        %v5102 = vld [vmem:[%s49 + $0x50] sm:$0xf]
        %v5103 = vld [vmem:[%s49 + $0x54] sm:$0xf]
        %v5104 = vld [vmem:[%s49 + $0x58] sm:$0xf]
        %v5105 = vld [vmem:[%s49 + $0x5c] sm:$0xf]
        %v5106 = vld [vmem:[%s49 + $0x60] sm:$0xf]
        %v5107 = vld [vmem:[%s49 + $0x64] sm:$0xf]
        %v5108 = vld [vmem:[%s49 + $0x68] sm:$0xf]
        %v5109 = vld [vmem:[%s49 + $0x6c] sm:$0xf]
        %v5110 = vld [vmem:[%s49 + $0x70] sm:$0xf]
        %v5111 = vld [vmem:[%s49 + $0x74] sm:$0xf]
        %v5112 = vld [vmem:[%s49 + $0x78] sm:$0xf]
        %v5113 = vld [vmem:[%s49 + $0x7c] sm:$0xf]
        %v5114 = vld [vmem:[%s49 + $0x80] sm:$0xf]
        %v5115 = vld [vmem:[%s49 + $0x84] sm:$0xf]
        %v5116 = vld [vmem:[%s49 + $0x88] sm:$0xf]
        %v5117 = vld [vmem:[%s49 + $0x8c] sm:$0xf]
        %v5118 = vld [vmem:[%s49 + $0x90] sm:$0xf]
        %v5119 = vld [vmem:[%s49 + $0x94] sm:$0xf]
        %v5120 = vld [vmem:[%s49 + $0x98] sm:$0xf]
        %v5121 = vld [vmem:[%s49 + $0x9c] sm:$0xf]
        %v5122 = vld [vmem:[%s49 + $0xa0] sm:$0xf]
        %v5123 = vld [vmem:[%s49 + $0xa4] sm:$0xf]
        %v5124 = vld [vmem:[%s49 + $0xa8] sm:$0xf]
        %v5125 = vld [vmem:[%s49 + $0xac] sm:$0xf]
        %v5126 = vld [vmem:[%s49 + $0xb0] sm:$0xf]
        %v5127 = vld [vmem:[%s49 + $0xb4] sm:$0xf]
        %v5128 = vld [vmem:[%s49 + $0xb8] sm:$0xf]
        %v5129 = vld [vmem:[%s49 + $0xbc] sm:$0xf]
        %v5130 = vld [vmem:[%s49 + $0xc0] sm:$0xf]
        %v5131 = vld [vmem:[%s49 + $0xc4] sm:$0xf]
        %v5132 = vld [vmem:[%s49 + $0xc8] sm:$0xf]
        %v5133 = vld [vmem:[%s49 + $0xcc] sm:$0xf]
        %v5134 = vld [vmem:[%s49 + $0xd0] sm:$0xf]
        %v5135 = vld [vmem:[%s49 + $0xd4] sm:$0xf]
        %v5136 = vld [vmem:[%s49 + $0xd8] sm:$0xf]
        %v5137 = vld [vmem:[%s49 + $0xdc] sm:$0xf]
        %v5138 = vld [vmem:[%s49 + $0xe0] sm:$0xf]
        %v5139 = vld [vmem:[%s49 + $0xe4] sm:$0xf]
        %v5140 = vld [vmem:[%s49 + $0xe8] sm:$0xf]
        %v5141 = vld [vmem:[%s49 + $0xec] sm:$0xf]
        %v5142 = vld [vmem:[%s49 + $0xf0] sm:$0xf]
        %v5143 = vld [vmem:[%s49 + $0xf4] sm:$0xf]
        %v5144 = vld [vmem:[%s49 + $0xf8] sm:$0xf]
        %v5145 = vld [vmem:[%s49 + $0xfc] sm:$0xf]
        %v5146 = vld [vmem:[%s49 + $0x100] sm:$0xf]
        %v5147 = vld [vmem:[%s49 + $0x104] sm:$0xf]
        %v5148 = vld [vmem:[%s49 + $0x108] sm:$0xf]
        %v5149 = vld [vmem:[%s49 + $0x10c] sm:$0xf]
        %v5150 = vld [vmem:[%s49 + $0x110] sm:$0xf]
        %v5151 = vld [vmem:[%s49 + $0x114] sm:$0xf]
        %v5152 = vld [vmem:[%s49 + $0x118] sm:$0xf]
        %v5153 = vld [vmem:[%s49 + $0x11c] sm:$0xf]
        %v5154 = vld [vmem:[%s49 + $0x120] sm:$0xf]
        %v5155 = vld [vmem:[%s49 + $0x124] sm:$0xf]
        %v5156 = vld [vmem:[%s49 + $0x128] sm:$0xf]
        %v5157 = vld [vmem:[%s49 + $0x12c] sm:$0xf]
        %v5158 = vld [vmem:[%s49 + $0x130] sm:$0xf]
        %v5159 = vld [vmem:[%s49 + $0x134] sm:$0xf]
        %v5160 = vld [vmem:[%s49 + $0x138] sm:$0xf]
        %v5161 = vld [vmem:[%s49 + $0x13c] sm:$0xf]
        %v5162 = vld [vmem:[%s49 + $0x140] sm:$0xf]
        %v5163 = vld [vmem:[%s49 + $0x144] sm:$0xf]
        %v5164 = vld [vmem:[%s49 + $0x148] sm:$0xf]
        %v5165 = vld [vmem:[%s49 + $0x14c] sm:$0xf]
        %v5166 = vld [vmem:[%s49 + $0x150] sm:$0xf]
        %v5167 = vld [vmem:[%s49 + $0x154] sm:$0xf]
        %v5168 = vld [vmem:[%s49 + $0x158] sm:$0xf]
        %v5169 = vld [vmem:[%s49 + $0x15c] sm:$0xf]
        %v5170 = vld [vmem:[%s49 + $0x160] sm:$0xf]
        %v5171 = vld [vmem:[%s49 + $0x164] sm:$0xf]
        %v5172 = vld [vmem:[%s49 + $0x168] sm:$0xf]
        %v5173 = vld [vmem:[%s49 + $0x16c] sm:$0xf]
        %v5174 = vld [vmem:[%s49 + $0x170] sm:$0xf]
        %v5175 = vld [vmem:[%s49 + $0x174] sm:$0xf]
        %v5176 = vld [vmem:[%s49 + $0x178] sm:$0xf]
        %v5177 = vld [vmem:[%s49 + $0x17c] sm:$0xf]
        %v5178 = vld [vmem:[%s49 + $0x180] sm:$0xf]
        %v5179 = vld [vmem:[%s49 + $0x184] sm:$0xf]
        %v5180 = vld [vmem:[%s49 + $0x188] sm:$0xf]
        %v5181 = vld [vmem:[%s49 + $0x18c] sm:$0xf]
        %v5182 = vld [vmem:[%s49 + $0x190] sm:$0xf]
        %v5183 = vld [vmem:[%s49 + $0x194] sm:$0xf]
        %v5184 = vld [vmem:[%s49 + $0x198] sm:$0xf]
        %v5185 = vld [vmem:[%s49 + $0x19c] sm:$0xf]
        %v5186 = vld [vmem:[%s49 + $0x1a0] sm:$0xf]
        %v5187 = vld [vmem:[%s49 + $0x1a4] sm:$0xf]
        %v5188 = vld [vmem:[%s49 + $0x1a8] sm:$0xf]
        %v5189 = vld [vmem:[%s49 + $0x1ac] sm:$0xf]
        %v5190 = vpack.c.bf16 %v5033, %v5026
        %v5191 = vpack.c.bf16 %v5034, %v5027
        %v5192 = vpack.c.bf16 %v5035, %v5028
        %v5193 = vpack.c.bf16 %v5036, %v5029
        %v5194 = vpack.c.bf16 %v5037, %v5030
        %v5195 = vpack.c.bf16 %v5038, %v5031
        %v5196 = vpack.c.bf16 %v5039, %v5032
        %v5197 = vpack.c.bf16 %v5047, %v5040
        %v5198 = vpack.c.bf16 %v5048, %v5041
        %v5199 = vpack.c.bf16 %v5049, %v5042
        %v5200 = vpack.c.bf16 %v5050, %v5043
        %v5201 = vpack.c.bf16 %v5051, %v5044
        %v5202 = vpack.c.bf16 %v5052, %v5045
        %v5203 = vpack.c.bf16 %v5053, %v5046
        %v5204 = vpack.c.bf16 %v5061, %v5054
        %v5205 = vpack.c.bf16 %v5062, %v5055
        %v5206 = vpack.c.bf16 %v5063, %v5056
        %v5207 = vpack.c.bf16 %v5064, %v5057
        %v5208 = vpack.c.bf16 %v5065, %v5058
        %v5209 = vpack.c.bf16 %v5066, %v5059
        %v5210 = vpack.c.bf16 %v5067, %v5060
        %v5211 = vpack.c.bf16 %v5075, %v5068
        %v5212 = vpack.c.bf16 %v5076, %v5069
        %v5213 = vpack.c.bf16 %v5077, %v5070
        %v5214 = vpack.c.bf16 %v5078, %v5071
        %v5215 = vpack.c.bf16 %v5079, %v5072
        %v5216 = vpack.c.bf16 %v5080, %v5073
        %v5217 = vpack.c.bf16 %v5081, %v5074
        %v5326 = vunpack.c.l.b16 %v5082
        %v5327 = vunpack.c.l.b16 %v5083
        %v5328 = vunpack.c.l.b16 %v5084
        %v5329 = vunpack.c.l.b16 %v5085
        %v5330 = vunpack.c.l.b16 %v5086
        %v5331 = vunpack.c.l.b16 %v5087
        %v5332 = vunpack.c.l.b16 %v5088
        %v5333 = vunpack.c.l.b16 %v5089
        %v5334 = vunpack.c.l.b16 %v5090
        %v5335 = vunpack.c.l.b16 %v5091
        %v5336 = vunpack.c.l.b16 %v5092
        %v5337 = vunpack.c.l.b16 %v5093
        %v5338 = vunpack.c.l.b16 %v5094
        %v5339 = vunpack.c.l.b16 %v5095
        %v5340 = vunpack.c.l.b16 %v5096
        %v5341 = vunpack.c.l.b16 %v5097
        %v5342 = vunpack.c.l.b16 %v5098
        %v5343 = vunpack.c.l.b16 %v5099
        %v5344 = vunpack.c.l.b16 %v5100
        %v5345 = vunpack.c.l.b16 %v5101
        %v5346 = vunpack.c.l.b16 %v5102
        %v5347 = vunpack.c.l.b16 %v5103
        %v5348 = vunpack.c.l.b16 %v5104
        %v5349 = vunpack.c.l.b16 %v5105
        %v5350 = vunpack.c.l.b16 %v5106
        %v5351 = vunpack.c.l.b16 %v5107
        %v5352 = vunpack.c.l.b16 %v5108
        %v5353 = vunpack.c.l.b16 %v5109
        %v5354 = vunpack.c.l.b16 %v5110
        %v5355 = vunpack.c.l.b16 %v5111
        %v5356 = vunpack.c.l.b16 %v5112
        %v5357 = vunpack.c.l.b16 %v5113
        %v5358 = vunpack.c.l.b16 %v5114
        %v5359 = vunpack.c.l.b16 %v5115
        %v5360 = vunpack.c.l.b16 %v5116
        %v5361 = vunpack.c.l.b16 %v5117
        %v5362 = vunpack.c.l.b16 %v5118
        %v5363 = vunpack.c.l.b16 %v5119
        %v5364 = vunpack.c.l.b16 %v5120
        %v5365 = vunpack.c.l.b16 %v5121
        %v5366 = vunpack.c.l.b16 %v5122
        %v5367 = vunpack.c.l.b16 %v5123
        %v5368 = vunpack.c.l.b16 %v5124
        %v5369 = vunpack.c.l.b16 %v5125
        %v5370 = vunpack.c.l.b16 %v5126
        %v5371 = vunpack.c.l.b16 %v5127
        %v5372 = vunpack.c.l.b16 %v5128
        %v5373 = vunpack.c.l.b16 %v5129
        %v5374 = vunpack.c.l.b16 %v5130
        %v5375 = vunpack.c.l.b16 %v5131
        %v5376 = vunpack.c.l.b16 %v5132
        %v5377 = vunpack.c.l.b16 %v5133
        %v5378 = vunpack.c.l.b16 %v5134
        %v5379 = vunpack.c.l.b16 %v5135
        %v5380 = vunpack.c.l.b16 %v5136
        %v5381 = vunpack.c.l.b16 %v5137
        %v5382 = vunpack.c.l.b16 %v5138
        %v5383 = vunpack.c.l.b16 %v5139
        %v5384 = vunpack.c.l.b16 %v5140
        %v5385 = vunpack.c.l.b16 %v5141
        %v5386 = vunpack.c.l.b16 %v5142
        %v5387 = vunpack.c.l.b16 %v5143
        %v5388 = vunpack.c.l.b16 %v5144
        %v5389 = vunpack.c.l.b16 %v5145
        %v5390 = vunpack.c.l.b16 %v5146
        %v5391 = vunpack.c.l.b16 %v5147
        %v5392 = vunpack.c.l.b16 %v5148
        %v5393 = vunpack.c.l.b16 %v5149
        %v5394 = vunpack.c.l.b16 %v5150
        %v5395 = vunpack.c.l.b16 %v5151
        %v5396 = vunpack.c.l.b16 %v5152
        %v5397 = vunpack.c.l.b16 %v5153
        %v5398 = vunpack.c.l.b16 %v5154
        %v5399 = vunpack.c.l.b16 %v5155
        %v5400 = vunpack.c.l.b16 %v5156
        %v5401 = vunpack.c.l.b16 %v5157
        %v5402 = vunpack.c.l.b16 %v5158
        %v5403 = vunpack.c.l.b16 %v5159
        %v5404 = vunpack.c.l.b16 %v5160
        %v5405 = vunpack.c.l.b16 %v5161
        %v5406 = vunpack.c.l.b16 %v5162
        %v5407 = vunpack.c.l.b16 %v5163
        %v5408 = vunpack.c.l.b16 %v5164
        %v5409 = vunpack.c.l.b16 %v5165
        %v5410 = vunpack.c.l.b16 %v5166
        %v5411 = vunpack.c.l.b16 %v5167
        %v5412 = vunpack.c.l.b16 %v5168
        %v5413 = vunpack.c.l.b16 %v5169
        %v5414 = vunpack.c.l.b16 %v5170
        %v5415 = vunpack.c.l.b16 %v5171
        %v5416 = vunpack.c.l.b16 %v5172
        %v5417 = vunpack.c.l.b16 %v5173
        %v5418 = vunpack.c.l.b16 %v5174
        %v5419 = vunpack.c.l.b16 %v5175
        %v5420 = vunpack.c.l.b16 %v5176
        %v5421 = vunpack.c.l.b16 %v5177
        %v5422 = vunpack.c.l.b16 %v5178
        %v5423 = vunpack.c.l.b16 %v5179
        %v5424 = vunpack.c.l.b16 %v5180
        %v5425 = vunpack.c.l.b16 %v5181
        %v5426 = vunpack.c.l.b16 %v5182
        %v5427 = vunpack.c.l.b16 %v5183
        %v5428 = vunpack.c.l.b16 %v5184
        %v5429 = vunpack.c.l.b16 %v5185
        %v5430 = vunpack.c.l.b16 %v5186
        %v5431 = vunpack.c.l.b16 %v5187
        %v5432 = vunpack.c.l.b16 %v5188
        %v5433 = vunpack.c.l.b16 %v5189
        %v5434 = vpack.c.b16 %v5327, %v5326
        %v5435 = vpack.c.b16 %v5329, %v5328
        %v5436 = vpack.c.b16 %v5331, %v5330
        %v5437 = vpack.c.b16 %v5333, %v5332
        %v5438 = vpack.c.b16 %v5335, %v5334
        %v5439 = vpack.c.b16 %v5337, %v5336
        %v5440 = vpack.c.b16 %v5339, %v5338
        %v5441 = vpack.c.b16 %v5341, %v5340
        %v5442 = vpack.c.b16 %v5343, %v5342
        %v5443 = vpack.c.b16 %v5345, %v5344
        %v5444 = vpack.c.b16 %v5347, %v5346
        %v5445 = vpack.c.b16 %v5349, %v5348
        %v5446 = vpack.c.b16 %v5351, %v5350
        %v5447 = vpack.c.b16 %v5353, %v5352
        %v5448 = vpack.c.b16 %v5355, %v5354
        %v5449 = vpack.c.b16 %v5357, %v5356
        %v5450 = vpack.c.b16 %v5359, %v5358
        %v5451 = vpack.c.b16 %v5361, %v5360
        %v5452 = vpack.c.b16 %v5363, %v5362
        %v5453 = vpack.c.b16 %v5365, %v5364
        %v5454 = vpack.c.b16 %v5367, %v5366
        %v5455 = vpack.c.b16 %v5369, %v5368
        %v5456 = vpack.c.b16 %v5371, %v5370
        %v5457 = vpack.c.b16 %v5373, %v5372
        %v5458 = vpack.c.b16 %v5375, %v5374
        %v5459 = vpack.c.b16 %v5377, %v5376
        %v5460 = vpack.c.b16 %v5379, %v5378
        %v5461 = vpack.c.b16 %v5381, %v5380
        %v5462 = vpack.c.b16 %v5383, %v5382
        %v5463 = vpack.c.b16 %v5385, %v5384
        %v5464 = vpack.c.b16 %v5387, %v5386
        %v5465 = vpack.c.b16 %v5389, %v5388
        %v5466 = vpack.c.b16 %v5391, %v5390
        %v5467 = vpack.c.b16 %v5393, %v5392
        %v5468 = vpack.c.b16 %v5395, %v5394
        %v5469 = vpack.c.b16 %v5397, %v5396
        %v5470 = vpack.c.b16 %v5399, %v5398
        %v5471 = vpack.c.b16 %v5401, %v5400
        %v5472 = vpack.c.b16 %v5403, %v5402
        %v5473 = vpack.c.b16 %v5405, %v5404
        %v5474 = vpack.c.b16 %v5407, %v5406
        %v5475 = vpack.c.b16 %v5409, %v5408
        %v5476 = vpack.c.b16 %v5411, %v5410
        %v5477 = vpack.c.b16 %v5413, %v5412
        %v5478 = vpack.c.b16 %v5415, %v5414
        %v5479 = vpack.c.b16 %v5417, %v5416
        %v5480 = vpack.c.b16 %v5419, %v5418
        %v5481 = vpack.c.b16 %v5421, %v5420
        %v5482 = vpack.c.b16 %v5423, %v5422
        %v5483 = vpack.c.b16 %v5425, %v5424
        %v5484 = vpack.c.b16 %v5427, %v5426
        %v5485 = vpack.c.b16 %v5429, %v5428
        %v5486 = vpack.c.b16 %v5431, %v5430
        %v5487 = vpack.c.b16 %v5433, %v5432
        %v5543 = vsel %vm2347, %v5196, 0
        %v5546 = vsel %vm2347, %v5203, 0
        %v5549 = vsel %vm2347, %v5210, 0
        %v5552 = vsel %vm2347, %v5217, 0
        %5554 = vmatprep.subr.bf16.mxu0 0
        %5555 = vmatpush1.bf16.msra.mxu0 %v5441
        %5556 = vmatprep.subr.bf16.mxu0 0
        %5557 = vmatpush1.bf16.msra.mxu0 %v5440
        %5558 = vmatprep.subr.bf16.mxu0 0
        %5559 = vmatpush1.bf16.msra.mxu0 %v5439
        %5560 = vmatprep.subr.bf16.mxu0 0
        %5561 = vmatpush1.bf16.msra.mxu0 %v5438
        %5562 = vmatprep.subr.bf16.mxu0 0
        %5563 = vmatpush1.bf16.msra.mxu0 %v5437
        %5564 = vmatprep.subr.bf16.mxu0 0
        %5565 = vmatpush1.bf16.msra.mxu0 %v5436
        %5566 = vmatprep.subr.bf16.mxu0 0
        %5567 = vmatpush1.bf16.msra.mxu0 %v5435
        %5568 = vmatprep.subr.bf16.mxu0 0
        %5569 = vmatpush1.bf16.msra.mxu0 %v5434
        %5570 = vmatprep.subr.bf16.mxu0 0
        %5571 = vmatpush2.bf16.msra.mxu0 %v5449
        %5572 = vmatprep.subr.bf16.mxu0 0
        %5573 = vmatpush2.bf16.msra.mxu0 %v5448
        %5574 = vmatprep.subr.bf16.mxu0 0
        %5575 = vmatpush2.bf16.msra.mxu0 %v5447
        %5576 = vmatprep.subr.bf16.mxu0 0
        %5577 = vmatpush2.bf16.msra.mxu0 %v5446
        %5578 = vmatprep.subr.bf16.mxu0 0
        %5579 = vmatpush2.bf16.msra.mxu0 %v5445
        %5580 = vmatprep.subr.bf16.mxu0 0
        %5581 = vmatpush2.bf16.msra.mxu0 %v5444
        %5582 = vmatprep.subr.bf16.mxu0 0
        %5583 = vmatpush2.bf16.msra.mxu0 %v5443
        %5584 = vmatprep.subr.bf16.mxu0 0
        %5585 = vmatpush2.bf16.msra.mxu0 %v5442
        %5586 = vmatprep.mubr.bf16.mxu0 %v5191
        %5587 = vmatmul.mubr.bf16.gmra.mxu0 %v5190
        %v5588 = vpop.f32.mrf.mxu0
        %v5589 = vadd.f32 0.0, %v5588
        %v5590 = vpop.f32.mrf.mxu0
        %v5591 = vpop.f32.mrf.mxu0
        %v5592 = vadd.f32 0.0, %v5591
        %v5593 = vpop.f32.mrf.mxu0
        %5594 = vmatprep.mubr.bf16.mxu0 %v5198
        %5595 = vmatmul.mubr.bf16.gmra.mxu0 %v5197
        %v5596 = vpop.f32.mrf.mxu0
        %v5597 = vadd.f32 0.0, %v5596
        %v5598 = vpop.f32.mrf.mxu0
        %v5599 = vpop.f32.mrf.mxu0
        %v5600 = vadd.f32 0.0, %v5599
        %v5601 = vpop.f32.mrf.mxu0
        %5602 = vmatprep.mubr.bf16.mxu0 %v5205
        %5603 = vmatmul.mubr.bf16.gmra.mxu0 %v5204
        %v5604 = vpop.f32.mrf.mxu0
        %v5605 = vadd.f32 0.0, %v5604
        %v5606 = vpop.f32.mrf.mxu0
        %v5607 = vpop.f32.mrf.mxu0
        %v5608 = vadd.f32 0.0, %v5607
        %v5609 = vpop.f32.mrf.mxu0
        %5610 = vmatprep.mubr.bf16.mxu0 %v5212
        %5611 = vmatmul.mubr.bf16.gmra.mxu0 %v5211
        %v5612 = vpop.f32.mrf.mxu0
        %v5613 = vadd.f32 0.0, %v5612
        %v5614 = vpop.f32.mrf.mxu0
        %v5615 = vpop.f32.mrf.mxu0
        %v5616 = vadd.f32 0.0, %v5615
        %v5617 = vpop.f32.mrf.mxu0
        %5618 = vdwg.mxu0
        %5619 = vmatprep.subr.bf16.mxu0 0
        %5620 = vmatpush1.bf16.msra.mxu0 %v5457
        %5621 = vmatprep.subr.bf16.mxu0 0
        %5622 = vmatpush1.bf16.msra.mxu0 %v5456
        %5623 = vmatprep.subr.bf16.mxu0 0
        %5624 = vmatpush1.bf16.msra.mxu0 %v5455
        %5625 = vmatprep.subr.bf16.mxu0 0
        %5626 = vmatpush1.bf16.msra.mxu0 %v5454
        %5627 = vmatprep.subr.bf16.mxu0 0
        %5628 = vmatpush1.bf16.msra.mxu0 %v5453
        %5629 = vmatprep.subr.bf16.mxu0 0
        %5630 = vmatpush1.bf16.msra.mxu0 %v5452
        %5631 = vmatprep.subr.bf16.mxu0 0
        %5632 = vmatpush1.bf16.msra.mxu0 %v5451
        %5633 = vmatprep.subr.bf16.mxu0 0
        %5634 = vmatpush1.bf16.msra.mxu0 %v5450
        %5635 = vmatprep.subr.bf16.mxu0 0
        %5636 = vmatpush2.bf16.msra.mxu0 %v5465
        %5637 = vmatprep.subr.bf16.mxu0 0
        %5638 = vmatpush2.bf16.msra.mxu0 %v5464
        %5639 = vmatprep.subr.bf16.mxu0 0
        %5640 = vmatpush2.bf16.msra.mxu0 %v5463
        %5641 = vmatprep.subr.bf16.mxu0 0
        %5642 = vmatpush2.bf16.msra.mxu0 %v5462
        %5643 = vmatprep.subr.bf16.mxu0 0
        %5644 = vmatpush2.bf16.msra.mxu0 %v5461
        %5645 = vmatprep.subr.bf16.mxu0 0
        %5646 = vmatpush2.bf16.msra.mxu0 %v5460
        %5647 = vmatprep.subr.bf16.mxu0 0
        %5648 = vmatpush2.bf16.msra.mxu0 %v5459
        %5649 = vmatprep.subr.bf16.mxu0 0
        %5650 = vmatpush2.bf16.msra.mxu0 %v5458
        %5651 = vmatprep.mubr.bf16.mxu0 %v5193
        %5652 = vmatmul.mubr.bf16.gmra.mxu0 %v5192
        %v5653 = vpop.f32.mrf.mxu0
        %v5654 = vadd.f32 %v5589, %v5653
        %v5655 = vpop.f32.mrf.mxu0
        %v5656 = vpop.f32.mrf.mxu0
        %v5657 = vadd.f32 %v5592, %v5656
        %v5658 = vpop.f32.mrf.mxu0
        %5659 = vmatprep.mubr.bf16.mxu0 %v5200
        %5660 = vmatmul.mubr.bf16.gmra.mxu0 %v5199
        %v5661 = vpop.f32.mrf.mxu0
        %v5662 = vadd.f32 %v5597, %v5661
        %v5663 = vpop.f32.mrf.mxu0
        %v5664 = vpop.f32.mrf.mxu0
        %v5665 = vadd.f32 %v5600, %v5664
        %v5666 = vpop.f32.mrf.mxu0
        %5667 = vmatprep.mubr.bf16.mxu0 %v5207
        %5668 = vmatmul.mubr.bf16.gmra.mxu0 %v5206
        %v5669 = vpop.f32.mrf.mxu0
        %v5670 = vadd.f32 %v5605, %v5669
        %v5671 = vpop.f32.mrf.mxu0
        %v5672 = vpop.f32.mrf.mxu0
        %v5673 = vadd.f32 %v5608, %v5672
        %v5674 = vpop.f32.mrf.mxu0
        %5675 = vmatprep.mubr.bf16.mxu0 %v5214
        %5676 = vmatmul.mubr.bf16.gmra.mxu0 %v5213
        %v5677 = vpop.f32.mrf.mxu0
        %v5678 = vadd.f32 %v5613, %v5677
        %v5679 = vpop.f32.mrf.mxu0
        %v5680 = vpop.f32.mrf.mxu0
        %v5681 = vadd.f32 %v5616, %v5680
        %v5682 = vpop.f32.mrf.mxu0
        %5683 = vdwg.mxu0
        %5684 = vmatprep.subr.bf16.mxu0 0
        %5685 = vmatpush1.bf16.msra.mxu0 %v5473
        %5686 = vmatprep.subr.bf16.mxu0 0
        %5687 = vmatpush1.bf16.msra.mxu0 %v5472
        %5688 = vmatprep.subr.bf16.mxu0 0
        %5689 = vmatpush1.bf16.msra.mxu0 %v5471
        %5690 = vmatprep.subr.bf16.mxu0 0
        %5691 = vmatpush1.bf16.msra.mxu0 %v5470
        %5692 = vmatprep.subr.bf16.mxu0 0
        %5693 = vmatpush1.bf16.msra.mxu0 %v5469
        %5694 = vmatprep.subr.bf16.mxu0 0
        %5695 = vmatpush1.bf16.msra.mxu0 %v5468
        %5696 = vmatprep.subr.bf16.mxu0 0
        %5697 = vmatpush1.bf16.msra.mxu0 %v5467
        %5698 = vmatprep.subr.bf16.mxu0 0
        %5699 = vmatpush1.bf16.msra.mxu0 %v5466
        %5700 = vmatprep.subr.bf16.mxu0 0
        %5701 = vmatpush2.bf16.msra.mxu0 %v5481
        %5702 = vmatprep.subr.bf16.mxu0 0
        %5703 = vmatpush2.bf16.msra.mxu0 %v5480
        %5704 = vmatprep.subr.bf16.mxu0 0
        %5705 = vmatpush2.bf16.msra.mxu0 %v5479
        %5706 = vmatprep.subr.bf16.mxu0 0
        %5707 = vmatpush2.bf16.msra.mxu0 %v5478
        %5708 = vmatprep.subr.bf16.mxu0 0
        %5709 = vmatpush2.bf16.msra.mxu0 %v5477
        %5710 = vmatprep.subr.bf16.mxu0 0
        %5711 = vmatpush2.bf16.msra.mxu0 %v5476
        %5712 = vmatprep.subr.bf16.mxu0 0
        %5713 = vmatpush2.bf16.msra.mxu0 %v5475
        %5714 = vmatprep.subr.bf16.mxu0 0
        %5715 = vmatpush2.bf16.msra.mxu0 %v5474
        %5716 = vmatprep.mubr.bf16.mxu0 %v5195
        %5717 = vmatmul.mubr.bf16.gmra.mxu0 %v5194
        %v5718 = vpop.f32.mrf.mxu0
        %v5719 = vadd.f32 %v5654, %v5718
        %v5720 = vpop.f32.mrf.mxu0
        %v5721 = vpop.f32.mrf.mxu0
        %v5722 = vadd.f32 %v5657, %v5721
        %v5723 = vpop.f32.mrf.mxu0
        %5724 = vmatprep.mubr.bf16.mxu0 %v5202
        %5725 = vmatmul.mubr.bf16.gmra.mxu0 %v5201
        %v5726 = vpop.f32.mrf.mxu0
        %v5727 = vadd.f32 %v5662, %v5726
        %v5728 = vpop.f32.mrf.mxu0
        %v5729 = vpop.f32.mrf.mxu0
        %v5730 = vadd.f32 %v5665, %v5729
        %v5731 = vpop.f32.mrf.mxu0
        %5732 = vmatprep.mubr.bf16.mxu0 %v5209
        %5733 = vmatmul.mubr.bf16.gmra.mxu0 %v5208
        %v5734 = vpop.f32.mrf.mxu0
        %v5735 = vadd.f32 %v5670, %v5734
        %v5736 = vpop.f32.mrf.mxu0
        %v5737 = vpop.f32.mrf.mxu0
        %v5738 = vadd.f32 %v5673, %v5737
        %v5739 = vpop.f32.mrf.mxu0
        %5740 = vmatprep.mubr.bf16.mxu0 %v5216
        %5741 = vmatmul.mubr.bf16.gmra.mxu0 %v5215
        %v5742 = vpop.f32.mrf.mxu0
        %v5743 = vadd.f32 %v5678, %v5742
        %v5744 = vpop.f32.mrf.mxu0
        %v5745 = vpop.f32.mrf.mxu0
        %v5746 = vadd.f32 %v5681, %v5745
        %v5747 = vpop.f32.mrf.mxu0
        %5748 = vdwg.mxu0
        %5749 = vmatprep.subr.bf16.mxu0 0
        %5750 = vmatpush1.bf16.msra.mxu0 0
        %5751 = vmatprep.subr.bf16.mxu0 0
        %5752 = vmatpush1.bf16.msra.mxu0 0
        %5753 = vmatprep.subr.bf16.mxu0 0
        %5754 = vmatpush1.bf16.msra.mxu0 %v5487
        %5755 = vmatprep.subr.bf16.mxu0 0
        %5756 = vmatpush1.bf16.msra.mxu0 %v5486
        %5757 = vmatprep.subr.bf16.mxu0 0
        %5758 = vmatpush1.bf16.msra.mxu0 %v5485
        %5759 = vmatprep.subr.bf16.mxu0 0
        %5760 = vmatpush1.bf16.msra.mxu0 %v5484
        %5761 = vmatprep.subr.bf16.mxu0 0
        %5762 = vmatpush1.bf16.msra.mxu0 %v5483
        %5763 = vmatprep.subr.bf16.mxu0 0
        %5764 = vmatpush1.bf16.msra.mxu0 %v5482
        %5765 = vmatprep.subr.bf16.mxu0 0
        %5766 = vmatpush2.bf16.msra.mxu0 0
        %5767 = vmatprep.subr.bf16.mxu0 0
        %5768 = vmatpush2.bf16.msra.mxu0 0
        %5769 = vmatprep.subr.bf16.mxu0 0
        %5770 = vmatpush2.bf16.msra.mxu0 0
        %5771 = vmatprep.subr.bf16.mxu0 0
        %5772 = vmatpush2.bf16.msra.mxu0 0
        %5773 = vmatprep.subr.bf16.mxu0 0
        %5774 = vmatpush2.bf16.msra.mxu0 0
        %5775 = vmatprep.subr.bf16.mxu0 0
        %5776 = vmatpush2.bf16.msra.mxu0 0
        %5777 = vmatprep.subr.bf16.mxu0 0
        %5778 = vmatpush2.bf16.msra.mxu0 0
        %5779 = vmatprep.subr.bf16.mxu0 0
        %5780 = vmatpush2.bf16.msra.mxu0 0
        %5781 = vmatprep.mubr.bf16.mxu0 0
        %5782 = vmatmul.mubr.bf16.gmra.mxu0 %v5543
        %v5783 = vpop.f32.mrf.mxu0
        %v5784 = vadd.f32 %v5719, %v5783
        %v5785 = vpop.f32.mrf.mxu0
        %v5786 = vpop.f32.mrf.mxu0
        %v5787 = vadd.f32 %v5722, %v5786
        %v5788 = vpop.f32.mrf.mxu0
        %5789 = vmatprep.mubr.bf16.mxu0 0
        %5790 = vmatmul.mubr.bf16.gmra.mxu0 %v5546
        %v5791 = vpop.f32.mrf.mxu0
        %v5792 = vadd.f32 %v5727, %v5791
        %v5793 = vpop.f32.mrf.mxu0
        %v5794 = vpop.f32.mrf.mxu0
        %v5795 = vadd.f32 %v5730, %v5794
        %v5796 = vpop.f32.mrf.mxu0
        %5797 = vmatprep.mubr.bf16.mxu0 0
        %5798 = vmatmul.mubr.bf16.gmra.mxu0 %v5549
        %v5799 = vpop.f32.mrf.mxu0
        %v5800 = vadd.f32 %v5735, %v5799
        %v5801 = vpop.f32.mrf.mxu0
        %v5802 = vpop.f32.mrf.mxu0
        %v5803 = vadd.f32 %v5738, %v5802
        %v5804 = vpop.f32.mrf.mxu0
        %5805 = vmatprep.mubr.bf16.mxu0 0
        %5806 = vmatmul.mubr.bf16.gmra.mxu0 %v5552
        %v5807 = vpop.f32.mrf.mxu0
        %v5808 = vadd.f32 %v5743, %v5807
        %v5809 = vpop.f32.mrf.mxu0
        %v5810 = vpop.f32.mrf.mxu0
        %v5811 = vadd.f32 %v5746, %v5810
        %v5812 = vpop.f32.mrf.mxu0
        %5813 = vdwg.mxu0
        %v5814 = vld [vmem:[%s51] sm:$0x1]
        %v5816 = vlaneseq
        %v5817 = vshrl.u32 %v5816, 7
        %v5818 = vsub.s32 0, %v5817
        %v5819 = vrot.slane %v5814, %v5818
        %v5821 = vmul.f32 %v5784, %v5819
        %v5822 = vmul.f32 %v5787, %v5819
        %v5823 = vmul.f32 %v5792, %v5819
        %v5824 = vmul.f32 %v5795, %v5819
        %v5825 = vmul.f32 %v5800, %v5819
        %v5826 = vmul.f32 %v5803, %v5819
        %v5827 = vmul.f32 %v5808, %v5819
        %v5828 = vmul.f32 %v5811, %v5819
        %v5829 = vld [vmem:[%s53] sm:$0x1]
        %v5831 = vlaneseq
        %v5832 = vshrl.u32 %v5831, 7
        %v5833 = vsub.s32 0, %v5832
        %v5834 = vrot.slane %v5829, %v5833
        %v5836 = vadd.f32 %v5821, %v5834
        %v5837 = vadd.f32 %v5822, %v5834
        %v5838 = vadd.f32 %v5823, %v5834
        %v5839 = vadd.f32 %v5824, %v5834
        %v5840 = vadd.f32 %v5825, %v5834
        %v5841 = vadd.f32 %v5826, %v5834
        %v5842 = vadd.f32 %v5827, %v5834
        %v5843 = vadd.f32 %v5828, %v5834
        %v5844 = vadd.f32 %v5836, %v2625
        %v5845 = vadd.f32 %v5837, %v2626
        %v5846 = vadd.f32 %v5838, %v2627
        %v5847 = vadd.f32 %v5839, %v2628
        %v5848 = vadd.f32 %v5840, %v2629
        %v5849 = vadd.f32 %v5841, %v2630
        %v5850 = vadd.f32 %v5842, %v2631
        %v5851 = vadd.f32 %v5843, %v2632
        %vm5852 = vcmp.ge.f32.partialorder %v5844, 0.0
        %vm5853 = vcmp.ge.f32.partialorder %v5845, 0.0
        %vm5854 = vcmp.ge.f32.partialorder %v5846, 0.0
        %vm5855 = vcmp.ge.f32.partialorder %v5847, 0.0
        %vm5856 = vcmp.ge.f32.partialorder %v5848, 0.0
        %vm5857 = vcmp.ge.f32.partialorder %v5849, 0.0
        %vm5858 = vcmp.ge.f32.partialorder %v5850, 0.0
        %vm5859 = vcmp.ge.f32.partialorder %v5851, 0.0
        %v5860 = vmul.f32 %v5844, 0.01
        %v5861 = vmul.f32 %v5845, 0.01
        %v5862 = vmul.f32 %v5846, 0.01
        %v5863 = vmul.f32 %v5847, 0.01
        %v5864 = vmul.f32 %v5848, 0.01
        %v5865 = vmul.f32 %v5849, 0.01
        %v5866 = vmul.f32 %v5850, 0.01
        %v5867 = vmul.f32 %v5851, 0.01
        %v5868 = vsel %vm5852, %v5844, %v5860
        %v5869 = vsel %vm5853, %v5845, %v5861
        %v5870 = vsel %vm5854, %v5846, %v5862
        %v5871 = vsel %vm5855, %v5847, %v5863
        %v5872 = vsel %vm5856, %v5848, %v5864
        %v5873 = vsel %vm5857, %v5849, %v5865
        %v5874 = vsel %vm5858, %v5850, %v5866
        %v5875 = vsel %vm5859, %v5851, %v5867
        %5876 = vst.msk [vmem:[#allocation2 + $0x15] sm:$0xff] %vm1078, %v5868
        %5877 = vst.msk [vmem:[#allocation2 + $0x1d] sm:$0xff] %vm1078, %v5869
        %5878 = vst.msk [vmem:[#allocation2 + $0x25] sm:$0xff] %vm1078, %v5870
        %5879 = vst.msk [vmem:[#allocation2 + $0x2d] sm:$0xff] %vm1078, %v5871
        %5880 = vst.msk [vmem:[#allocation2 + $0x35] sm:$0xff] %vm1078, %v5872
        %5881 = vst.msk [vmem:[#allocation2 + $0x3d] sm:$0xff] %vm1078, %v5873
        %5882 = vst.msk [vmem:[#allocation2 + $0x45] sm:$0xff] %vm1078, %v5874
        %5883 = vst.msk [vmem:[#allocation2 + $0x4d] sm:$0xff] %vm1078, %v5875
        %v5884 = vld [vmem:[#allocation2] sm:$0xff]
        %v5885 = vld [vmem:[#allocation2 + $0x8] sm:$0xff]
        %v5886 = vld [vmem:[#allocation2 + $0x10] sm:$0xff]
        %v5887 = vld [vmem:[#allocation2 + $0x18] sm:$0xff]
        %v5888 = vld [vmem:[#allocation2 + $0x20] sm:$0xff]
        %v5889 = vld [vmem:[#allocation2 + $0x28] sm:$0xff]
        %v5890 = vld [vmem:[#allocation2 + $0x30] sm:$0xff]
        %v5891 = vld [vmem:[#allocation2 + $0x38] sm:$0xff]
        %v5892 = vld [vmem:[#allocation2 + $0x1] sm:$0xff]
        %v5893 = vld [vmem:[#allocation2 + $0x9] sm:$0xff]
        %v5894 = vld [vmem:[#allocation2 + $0x11] sm:$0xff]
        %v5895 = vld [vmem:[#allocation2 + $0x19] sm:$0xff]
        %v5896 = vld [vmem:[#allocation2 + $0x21] sm:$0xff]
        %v5897 = vld [vmem:[#allocation2 + $0x29] sm:$0xff]
        %v5898 = vld [vmem:[#allocation2 + $0x31] sm:$0xff]
        %v5899 = vld [vmem:[#allocation2 + $0x39] sm:$0xff]
        %v5900 = vld [vmem:[#allocation2 + $0x2] sm:$0xff]
        %v5901 = vld [vmem:[#allocation2 + $0xa] sm:$0xff]
        %v5902 = vld [vmem:[#allocation2 + $0x12] sm:$0xff]
        %v5903 = vld [vmem:[#allocation2 + $0x1a] sm:$0xff]
        %v5904 = vld [vmem:[#allocation2 + $0x22] sm:$0xff]
        %v5905 = vld [vmem:[#allocation2 + $0x2a] sm:$0xff]
        %v5906 = vld [vmem:[#allocation2 + $0x32] sm:$0xff]
        %v5907 = vld [vmem:[#allocation2 + $0x3a] sm:$0xff]
        %v5908 = vld [vmem:[#allocation2 + $0x4] sm:$0xff]
        %v5909 = vld [vmem:[#allocation2 + $0xc] sm:$0xff]
        %v5910 = vld [vmem:[#allocation2 + $0x14] sm:$0xff]
        %v5911 = vld [vmem:[#allocation2 + $0x1c] sm:$0xff]
        %v5912 = vld [vmem:[#allocation2 + $0x24] sm:$0xff]
        %v5913 = vld [vmem:[#allocation2 + $0x2c] sm:$0xff]
        %v5914 = vld [vmem:[#allocation2 + $0x34] sm:$0xff]
        %v5915 = vld [vmem:[#allocation2 + $0x3c] sm:$0xff]
        %v5916 = vld [vmem:[#allocation2 + $0x5] sm:$0xff]
        %v5917 = vld [vmem:[#allocation2 + $0xd] sm:$0xff]
        %v5918 = vld [vmem:[#allocation2 + $0x15] sm:$0xff]
        %v5919 = vld [vmem:[#allocation2 + $0x1d] sm:$0xff]
        %v5920 = vld [vmem:[#allocation2 + $0x25] sm:$0xff]
        %v5921 = vld [vmem:[#allocation2 + $0x2d] sm:$0xff]
        %v5922 = vld [vmem:[#allocation2 + $0x35] sm:$0xff]
        %v5923 = vld [vmem:[#allocation2 + $0x3d] sm:$0xff]
        %v5924 = vld [vmem:[#allocation2 + $0x6] sm:$0xff]
        %v5925 = vld [vmem:[#allocation2 + $0xe] sm:$0xff]
        %v5926 = vld [vmem:[#allocation2 + $0x16] sm:$0xff]
        %v5927 = vld [vmem:[#allocation2 + $0x1e] sm:$0xff]
        %v5928 = vld [vmem:[#allocation2 + $0x26] sm:$0xff]
        %v5929 = vld [vmem:[#allocation2 + $0x2e] sm:$0xff]
        %v5930 = vld [vmem:[#allocation2 + $0x36] sm:$0xff]
        %v5931 = vld [vmem:[#allocation2 + $0x3e] sm:$0xff]
        %v5932 = vld [vmem:[#allocation2 + $0x40] sm:$0xff]
        %v5933 = vld [vmem:[#allocation2 + $0x41] sm:$0xff]
        %v5934 = vld [vmem:[#allocation2 + $0x42] sm:$0xff]
        %v5935 = vld [vmem:[#allocation2 + $0x48] sm:$0xff]
        %v5936 = vld [vmem:[#allocation2 + $0x49] sm:$0xff]
        %v5937 = vld [vmem:[#allocation2 + $0x4a] sm:$0xff]
        %v5938 = vld [vmem:[#allocation2 + $0x44] sm:$0xff]
        %v5939 = vld [vmem:[#allocation2 + $0x4c] sm:$0xff]
        %v5940 = vld [vmem:[#allocation2 + $0x45] sm:$0xff]
        %v5941 = vld [vmem:[#allocation2 + $0x4d] sm:$0xff]
        %v5942 = vld [vmem:[#allocation2 + $0x46] sm:$0xff]
        %v5943 = vld [vmem:[#allocation2 + $0x4e] sm:$0xff]
        %v5944 = vld [vmem:[#allocation2 + $0x50] sm:$0xff]
        %v5945 = vld [vmem:[#allocation2 + $0x51] sm:$0xff]
        %v5946 = vld [vmem:[#allocation2 + $0x52] sm:$0xff]
        %v5947 = vld [vmem:[#allocation2 + $0x58] sm:$0xff]
        %v5948 = vld [vmem:[#allocation2 + $0x59] sm:$0xff]
        %v5949 = vld [vmem:[#allocation2 + $0x5a] sm:$0xff]
        %v5950 = vld [vmem:[#allocation2 + $0x54] sm:$0xff]
        %v5951 = vld [vmem:[#allocation2 + $0x5c] sm:$0xff]
        %v5952 = vld [vmem:[#allocation2 + $0x55] sm:$0xff]
        %v5953 = vld [vmem:[#allocation2 + $0x5d] sm:$0xff]
        %v5954 = vld [vmem:[#allocation2 + $0x56] sm:$0xff]
        %v5955 = vld [vmem:[#allocation2 + $0x5e] sm:$0xff]
        %v5956 = vld [vmem:[#allocation2 + $0x60] sm:$0xff]
        %v5957 = vld [vmem:[#allocation2 + $0x61] sm:$0xff]
        %v5958 = vld [vmem:[#allocation2 + $0x62] sm:$0xff]
        %5967 = vrot.lane.b32.xlu0 %v5892, 32
        %v5968 = vpop.permute.xlu0 %5967
        %5969 = vrot.lane.b32.xlu0 %v5893, 32
        %v5970 = vpop.permute.xlu0 %5969
        %5971 = vrot.lane.b32.xlu0 %v5894, 32
        %v5972 = vpop.permute.xlu0 %5971
        %5973 = vrot.lane.b32.xlu0 %v5895, 32
        %v5974 = vpop.permute.xlu0 %5973
        %5975 = vrot.lane.b32.xlu0 %v5896, 32
        %v5976 = vpop.permute.xlu0 %5975
        %5977 = vrot.lane.b32.xlu0 %v5897, 32
        %v5978 = vpop.permute.xlu0 %5977
        %5979 = vrot.lane.b32.xlu0 %v5898, 32
        %v5980 = vpop.permute.xlu0 %5979
        %5981 = vrot.lane.b32.xlu0 %v5899, 32
        %v5982 = vpop.permute.xlu0 %5981
        %5999 = vrot.lane.b32.xlu0 %v5900, 64
        %v6000 = vpop.permute.xlu0 %5999
        %6001 = vrot.lane.b32.xlu0 %v5901, 64
        %v6002 = vpop.permute.xlu0 %6001
        %6003 = vrot.lane.b32.xlu0 %v5902, 64
        %v6004 = vpop.permute.xlu0 %6003
        %6005 = vrot.lane.b32.xlu0 %v5903, 64
        %v6006 = vpop.permute.xlu0 %6005
        %6007 = vrot.lane.b32.xlu0 %v5904, 64
        %v6008 = vpop.permute.xlu0 %6007
        %6009 = vrot.lane.b32.xlu0 %v5905, 64
        %v6010 = vpop.permute.xlu0 %6009
        %6011 = vrot.lane.b32.xlu0 %v5906, 64
        %v6012 = vpop.permute.xlu0 %6011
        %6013 = vrot.lane.b32.xlu0 %v5907, 64
        %v6014 = vpop.permute.xlu0 %6013
        %6031 = vrot.lane.b32.xlu0 %v5908, 96
        %v6032 = vpop.permute.xlu0 %6031
        %6033 = vrot.lane.b32.xlu0 %v5909, 96
        %v6034 = vpop.permute.xlu0 %6033
        %6035 = vrot.lane.b32.xlu0 %v5910, 96
        %v6036 = vpop.permute.xlu0 %6035
        %6037 = vrot.lane.b32.xlu0 %v5911, 96
        %v6038 = vpop.permute.xlu0 %6037
        %6039 = vrot.lane.b32.xlu0 %v5912, 96
        %v6040 = vpop.permute.xlu0 %6039
        %6041 = vrot.lane.b32.xlu0 %v5913, 96
        %v6042 = vpop.permute.xlu0 %6041
        %6043 = vrot.lane.b32.xlu0 %v5914, 96
        %v6044 = vpop.permute.xlu0 %6043
        %6045 = vrot.lane.b32.xlu0 %v5915, 96
        %v6046 = vpop.permute.xlu0 %6045
        %6063 = vrot.lane.b32.xlu0 %v5924, 32
        %v6064 = vpop.permute.xlu0 %6063
        %6065 = vrot.lane.b32.xlu0 %v5925, 32
        %v6066 = vpop.permute.xlu0 %6065
        %6067 = vrot.lane.b32.xlu0 %v5926, 32
        %v6068 = vpop.permute.xlu0 %6067
        %6069 = vrot.lane.b32.xlu0 %v5927, 32
        %v6070 = vpop.permute.xlu0 %6069
        %6071 = vrot.lane.b32.xlu0 %v5928, 32
        %v6072 = vpop.permute.xlu0 %6071
        %6073 = vrot.lane.b32.xlu0 %v5929, 32
        %v6074 = vpop.permute.xlu0 %6073
        %6075 = vrot.lane.b32.xlu0 %v5930, 32
        %v6076 = vpop.permute.xlu0 %6075
        %6077 = vrot.lane.b32.xlu0 %v5931, 32
        %v6078 = vpop.permute.xlu0 %6077
        %6095 = vrot.lane.b32.xlu0 %v5885, 64
        %v6096 = vpop.permute.xlu0 %6095
        %6097 = vrot.lane.b32.xlu0 %v5886, 64
        %v6098 = vpop.permute.xlu0 %6097
        %6099 = vrot.lane.b32.xlu0 %v5887, 64
        %v6100 = vpop.permute.xlu0 %6099
        %6101 = vrot.lane.b32.xlu0 %v5888, 64
        %v6102 = vpop.permute.xlu0 %6101
        %6103 = vrot.lane.b32.xlu0 %v5889, 64
        %v6104 = vpop.permute.xlu0 %6103
        %6105 = vrot.lane.b32.xlu0 %v5890, 64
        %v6106 = vpop.permute.xlu0 %6105
        %6107 = vrot.lane.b32.xlu0 %v5891, 64
        %v6108 = vpop.permute.xlu0 %6107
        %6109 = vrot.lane.b32.xlu0 %v5932, 64
        %v6110 = vpop.permute.xlu0 %6109
        %6120 = vrot.lane.b32.xlu0 %v5893, 96
        %v6121 = vpop.permute.xlu0 %6120
        %6122 = vrot.lane.b32.xlu0 %v5894, 96
        %v6123 = vpop.permute.xlu0 %6122
        %6124 = vrot.lane.b32.xlu0 %v5895, 96
        %v6125 = vpop.permute.xlu0 %6124
        %6126 = vrot.lane.b32.xlu0 %v5896, 96
        %v6127 = vpop.permute.xlu0 %6126
        %6128 = vrot.lane.b32.xlu0 %v5897, 96
        %v6129 = vpop.permute.xlu0 %6128
        %6130 = vrot.lane.b32.xlu0 %v5898, 96
        %v6131 = vpop.permute.xlu0 %6130
        %6132 = vrot.lane.b32.xlu0 %v5899, 96
        %v6133 = vpop.permute.xlu0 %6132
        %6134 = vrot.lane.b32.xlu0 %v5933, 96
        %v6135 = vpop.permute.xlu0 %6134
        %6145 = vrot.lane.b32.xlu0 %v5886, 32
        %v6146 = vpop.permute.xlu0 %6145
        %6147 = vrot.lane.b32.xlu0 %v5887, 32
        %v6148 = vpop.permute.xlu0 %6147
        %6149 = vrot.lane.b32.xlu0 %v5888, 32
        %v6150 = vpop.permute.xlu0 %6149
        %6151 = vrot.lane.b32.xlu0 %v5889, 32
        %v6152 = vpop.permute.xlu0 %6151
        %6153 = vrot.lane.b32.xlu0 %v5890, 32
        %v6154 = vpop.permute.xlu0 %6153
        %6155 = vrot.lane.b32.xlu0 %v5891, 32
        %v6156 = vpop.permute.xlu0 %6155
        %6157 = vrot.lane.b32.xlu0 %v5932, 32
        %v6158 = vpop.permute.xlu0 %6157
        %6159 = vrot.lane.b32.xlu0 %v5935, 32
        %v6160 = vpop.permute.xlu0 %6159
        %6170 = vrot.lane.b32.xlu0 %v5894, 64
        %v6171 = vpop.permute.xlu0 %6170
        %6172 = vrot.lane.b32.xlu0 %v5895, 64
        %v6173 = vpop.permute.xlu0 %6172
        %6174 = vrot.lane.b32.xlu0 %v5896, 64
        %v6175 = vpop.permute.xlu0 %6174
        %6176 = vrot.lane.b32.xlu0 %v5897, 64
        %v6177 = vpop.permute.xlu0 %6176
        %6178 = vrot.lane.b32.xlu0 %v5898, 64
        %v6179 = vpop.permute.xlu0 %6178
        %6180 = vrot.lane.b32.xlu0 %v5899, 64
        %v6181 = vpop.permute.xlu0 %6180
        %6182 = vrot.lane.b32.xlu0 %v5933, 64
        %v6183 = vpop.permute.xlu0 %6182
        %6184 = vrot.lane.b32.xlu0 %v5936, 64
        %v6185 = vpop.permute.xlu0 %6184
        %6196 = vrot.lane.b32.xlu0 %v5902, 96
        %v6197 = vpop.permute.xlu0 %6196
        %6198 = vrot.lane.b32.xlu0 %v5903, 96
        %v6199 = vpop.permute.xlu0 %6198
        %6200 = vrot.lane.b32.xlu0 %v5904, 96
        %v6201 = vpop.permute.xlu0 %6200
        %6202 = vrot.lane.b32.xlu0 %v5905, 96
        %v6203 = vpop.permute.xlu0 %6202
        %6204 = vrot.lane.b32.xlu0 %v5906, 96
        %v6205 = vpop.permute.xlu0 %6204
        %6206 = vrot.lane.b32.xlu0 %v5907, 96
        %v6207 = vpop.permute.xlu0 %6206
        %6208 = vrot.lane.b32.xlu0 %v5934, 96
        %v6209 = vpop.permute.xlu0 %6208
        %6210 = vrot.lane.b32.xlu0 %v5937, 96
        %v6211 = vpop.permute.xlu0 %6210
        %6228 = vrot.lane.b32.xlu0 %v5918, 32
        %v6229 = vpop.permute.xlu0 %6228
        %6230 = vrot.lane.b32.xlu0 %v5919, 32
        %v6231 = vpop.permute.xlu0 %6230
        %6232 = vrot.lane.b32.xlu0 %v5920, 32
        %v6233 = vpop.permute.xlu0 %6232
        %6234 = vrot.lane.b32.xlu0 %v5921, 32
        %v6235 = vpop.permute.xlu0 %6234
        %6236 = vrot.lane.b32.xlu0 %v5922, 32
        %v6237 = vpop.permute.xlu0 %6236
        %6238 = vrot.lane.b32.xlu0 %v5923, 32
        %v6239 = vpop.permute.xlu0 %6238
        %6240 = vrot.lane.b32.xlu0 %v5940, 32
        %v6241 = vpop.permute.xlu0 %6240
        %6242 = vrot.lane.b32.xlu0 %v5941, 32
        %v6243 = vpop.permute.xlu0 %6242
        %6254 = vrot.lane.b32.xlu0 %v5926, 64
        %v6255 = vpop.permute.xlu0 %6254
        %6256 = vrot.lane.b32.xlu0 %v5927, 64
        %v6257 = vpop.permute.xlu0 %6256
        %6258 = vrot.lane.b32.xlu0 %v5928, 64
        %v6259 = vpop.permute.xlu0 %6258
        %6260 = vrot.lane.b32.xlu0 %v5929, 64
        %v6261 = vpop.permute.xlu0 %6260
        %6262 = vrot.lane.b32.xlu0 %v5930, 64
        %v6263 = vpop.permute.xlu0 %6262
        %6264 = vrot.lane.b32.xlu0 %v5931, 64
        %v6265 = vpop.permute.xlu0 %6264
        %6266 = vrot.lane.b32.xlu0 %v5942, 64
        %v6267 = vpop.permute.xlu0 %6266
        %6268 = vrot.lane.b32.xlu0 %v5943, 64
        %v6269 = vpop.permute.xlu0 %6268
        %6279 = vrot.lane.b32.xlu0 %v5887, 96
        %v6280 = vpop.permute.xlu0 %6279
        %6281 = vrot.lane.b32.xlu0 %v5888, 96
        %v6282 = vpop.permute.xlu0 %6281
        %6283 = vrot.lane.b32.xlu0 %v5889, 96
        %v6284 = vpop.permute.xlu0 %6283
        %6285 = vrot.lane.b32.xlu0 %v5890, 96
        %v6286 = vpop.permute.xlu0 %6285
        %6287 = vrot.lane.b32.xlu0 %v5891, 96
        %v6288 = vpop.permute.xlu0 %6287
        %6289 = vrot.lane.b32.xlu0 %v5932, 96
        %v6290 = vpop.permute.xlu0 %6289
        %6291 = vrot.lane.b32.xlu0 %v5935, 96
        %v6292 = vpop.permute.xlu0 %6291
        %6293 = vrot.lane.b32.xlu0 %v5944, 96
        %v6294 = vpop.permute.xlu0 %6293
        %v6303 = vsel %vm1078, %v5884, %v5968
        %v6304 = vsel %vm1078, %v5885, %v5970
        %v6305 = vsel %vm1078, %v5886, %v5972
        %v6306 = vsel %vm1078, %v5887, %v5974
        %v6307 = vsel %vm1078, %v5888, %v5976
        %v6308 = vsel %vm1078, %v5889, %v5978
        %v6309 = vsel %vm1078, %v5890, %v5980
        %v6310 = vsel %vm1078, %v5891, %v5982
        %v6311 = vsel %vm1362, %v6303, %v6000
        %v6312 = vsel %vm1362, %v6304, %v6002
        %v6313 = vsel %vm1362, %v6305, %v6004
        %v6314 = vsel %vm1362, %v6306, %v6006
        %v6315 = vsel %vm1362, %v6307, %v6008
        %v6316 = vsel %vm1362, %v6308, %v6010
        %v6317 = vsel %vm1362, %v6309, %v6012
        %v6318 = vsel %vm1362, %v6310, %v6014
        %v6319 = vsel %vm2347, %v6311, %v6032
        %v6320 = vsel %vm2347, %v6312, %v6034
        %v6321 = vsel %vm2347, %v6313, %v6036
        %v6322 = vsel %vm2347, %v6314, %v6038
        %v6323 = vsel %vm2347, %v6315, %v6040
        %v6324 = vsel %vm2347, %v6316, %v6042
        %v6325 = vsel %vm2347, %v6317, %v6044
        %v6326 = vsel %vm2347, %v6318, %v6046
        %v6327 = vsel %vm1078, %v5916, %v6064
        %v6328 = vsel %vm1078, %v5917, %v6066
        %v6329 = vsel %vm1078, %v5918, %v6068
        %v6330 = vsel %vm1078, %v5919, %v6070
        %v6331 = vsel %vm1078, %v5920, %v6072
        %v6332 = vsel %vm1078, %v5921, %v6074
        %v6333 = vsel %vm1078, %v5922, %v6076
        %v6334 = vsel %vm1078, %v5923, %v6078
        %v6335 = vsel %vm1362, %v6327, %v6096
        %v6336 = vsel %vm1362, %v6328, %v6098
        %v6337 = vsel %vm1362, %v6329, %v6100
        %v6338 = vsel %vm1362, %v6330, %v6102
        %v6339 = vsel %vm1362, %v6331, %v6104
        %v6340 = vsel %vm1362, %v6332, %v6106
        %v6341 = vsel %vm1362, %v6333, %v6108
        %v6342 = vsel %vm1362, %v6334, %v6110
        %v6343 = vsel %vm2347, %v6335, %v6121
        %v6344 = vsel %vm2347, %v6336, %v6123
        %v6345 = vsel %vm2347, %v6337, %v6125
        %v6346 = vsel %vm2347, %v6338, %v6127
        %v6347 = vsel %vm2347, %v6339, %v6129
        %v6348 = vsel %vm2347, %v6340, %v6131
        %v6349 = vsel %vm2347, %v6341, %v6133
        %v6350 = vsel %vm2347, %v6342, %v6135
        %v6351 = vsel %vm1078, %v5901, %v6146
        %v6352 = vsel %vm1078, %v5902, %v6148
        %v6353 = vsel %vm1078, %v5903, %v6150
        %v6354 = vsel %vm1078, %v5904, %v6152
        %v6355 = vsel %vm1078, %v5905, %v6154
        %v6356 = vsel %vm1078, %v5906, %v6156
        %v6357 = vsel %vm1078, %v5907, %v6158
        %v6358 = vsel %vm1078, %v5934, %v6160
        %v6359 = vsel %vm1362, %v6351, %v6171
        %v6360 = vsel %vm1362, %v6352, %v6173
        %v6361 = vsel %vm1362, %v6353, %v6175
        %v6362 = vsel %vm1362, %v6354, %v6177
        %v6363 = vsel %vm1362, %v6355, %v6179
        %v6364 = vsel %vm1362, %v6356, %v6181
        %v6365 = vsel %vm1362, %v6357, %v6183
        %v6366 = vsel %vm1362, %v6358, %v6185
        %v6367 = vsel %vm2347, %v6359, %v6197
        %v6368 = vsel %vm2347, %v6360, %v6199
        %v6369 = vsel %vm2347, %v6361, %v6201
        %v6370 = vsel %vm2347, %v6362, %v6203
        %v6371 = vsel %vm2347, %v6363, %v6205
        %v6372 = vsel %vm2347, %v6364, %v6207
        %v6373 = vsel %vm2347, %v6365, %v6209
        %v6374 = vsel %vm2347, %v6366, %v6211
        %v6375 = vsel %vm1078, %v5910, %v6229
        %v6376 = vsel %vm1078, %v5911, %v6231
        %v6377 = vsel %vm1078, %v5912, %v6233
        %v6378 = vsel %vm1078, %v5913, %v6235
        %v6379 = vsel %vm1078, %v5914, %v6237
        %v6380 = vsel %vm1078, %v5915, %v6239
        %v6381 = vsel %vm1078, %v5938, %v6241
        %v6382 = vsel %vm1078, %v5939, %v6243
        %v6383 = vsel %vm1362, %v6375, %v6255
        %v6384 = vsel %vm1362, %v6376, %v6257
        %v6385 = vsel %vm1362, %v6377, %v6259
        %v6386 = vsel %vm1362, %v6378, %v6261
        %v6387 = vsel %vm1362, %v6379, %v6263
        %v6388 = vsel %vm1362, %v6380, %v6265
        %v6389 = vsel %vm1362, %v6381, %v6267
        %v6390 = vsel %vm1362, %v6382, %v6269
        %v6391 = vsel %vm2347, %v6383, %v6280
        %v6392 = vsel %vm2347, %v6384, %v6282
        %v6393 = vsel %vm2347, %v6385, %v6284
        %v6394 = vsel %vm2347, %v6386, %v6286
        %v6395 = vsel %vm2347, %v6387, %v6288
        %v6396 = vsel %vm2347, %v6388, %v6290
        %v6397 = vsel %vm2347, %v6389, %v6292
        %v6398 = vsel %vm2347, %v6390, %v6294
        %6400 = vrot.lane.b32.xlu0 %v5903, 32
        %v6401 = vpop.permute.xlu0 %6400
        %6402 = vrot.lane.b32.xlu0 %v5904, 32
        %v6403 = vpop.permute.xlu0 %6402
        %6404 = vrot.lane.b32.xlu0 %v5905, 32
        %v6405 = vpop.permute.xlu0 %6404
        %6406 = vrot.lane.b32.xlu0 %v5906, 32
        %v6407 = vpop.permute.xlu0 %6406
        %6408 = vrot.lane.b32.xlu0 %v5907, 32
        %v6409 = vpop.permute.xlu0 %6408
        %6410 = vrot.lane.b32.xlu0 %v5934, 32
        %v6411 = vpop.permute.xlu0 %6410
        %6412 = vrot.lane.b32.xlu0 %v5937, 32
        %v6413 = vpop.permute.xlu0 %6412
        %6414 = vrot.lane.b32.xlu0 %v5946, 32
        %v6415 = vpop.permute.xlu0 %6414
        %6425 = vrot.lane.b32.xlu0 %v5935, 64
        %v6426 = vpop.permute.xlu0 %6425
        %6427 = vrot.lane.b32.xlu0 %v5944, 64
        %v6428 = vpop.permute.xlu0 %6427
        %6429 = vrot.lane.b32.xlu0 %v5947, 64
        %v6430 = vpop.permute.xlu0 %6429
        %6436 = vrot.lane.b32.xlu0 %v5936, 96
        %v6437 = vpop.permute.xlu0 %6436
        %6438 = vrot.lane.b32.xlu0 %v5945, 96
        %v6439 = vpop.permute.xlu0 %6438
        %6440 = vrot.lane.b32.xlu0 %v5948, 96
        %v6441 = vpop.permute.xlu0 %6440
        %6449 = vrot.lane.b32.xlu0 %v5912, 32
        %v6450 = vpop.permute.xlu0 %6449
        %6451 = vrot.lane.b32.xlu0 %v5913, 32
        %v6452 = vpop.permute.xlu0 %6451
        %6453 = vrot.lane.b32.xlu0 %v5914, 32
        %v6454 = vpop.permute.xlu0 %6453
        %6455 = vrot.lane.b32.xlu0 %v5915, 32
        %v6456 = vpop.permute.xlu0 %6455
        %6457 = vrot.lane.b32.xlu0 %v5938, 32
        %v6458 = vpop.permute.xlu0 %6457
        %6459 = vrot.lane.b32.xlu0 %v5939, 32
        %v6460 = vpop.permute.xlu0 %6459
        %6461 = vrot.lane.b32.xlu0 %v5950, 32
        %v6462 = vpop.permute.xlu0 %6461
        %6463 = vrot.lane.b32.xlu0 %v5951, 32
        %v6464 = vpop.permute.xlu0 %6463
        %6475 = vrot.lane.b32.xlu0 %v5920, 64
        %v6476 = vpop.permute.xlu0 %6475
        %6477 = vrot.lane.b32.xlu0 %v5921, 64
        %v6478 = vpop.permute.xlu0 %6477
        %6479 = vrot.lane.b32.xlu0 %v5922, 64
        %v6480 = vpop.permute.xlu0 %6479
        %6481 = vrot.lane.b32.xlu0 %v5923, 64
        %v6482 = vpop.permute.xlu0 %6481
        %6483 = vrot.lane.b32.xlu0 %v5940, 64
        %v6484 = vpop.permute.xlu0 %6483
        %6485 = vrot.lane.b32.xlu0 %v5941, 64
        %v6486 = vpop.permute.xlu0 %6485
        %6487 = vrot.lane.b32.xlu0 %v5952, 64
        %v6488 = vpop.permute.xlu0 %6487
        %6489 = vrot.lane.b32.xlu0 %v5953, 64
        %v6490 = vpop.permute.xlu0 %6489
        %6501 = vrot.lane.b32.xlu0 %v5928, 96
        %v6502 = vpop.permute.xlu0 %6501
        %6503 = vrot.lane.b32.xlu0 %v5929, 96
        %v6504 = vpop.permute.xlu0 %6503
        %6505 = vrot.lane.b32.xlu0 %v5930, 96
        %v6506 = vpop.permute.xlu0 %6505
        %6507 = vrot.lane.b32.xlu0 %v5931, 96
        %v6508 = vpop.permute.xlu0 %6507
        %6509 = vrot.lane.b32.xlu0 %v5942, 96
        %v6510 = vpop.permute.xlu0 %6509
        %6511 = vrot.lane.b32.xlu0 %v5943, 96
        %v6512 = vpop.permute.xlu0 %6511
        %6513 = vrot.lane.b32.xlu0 %v5954, 96
        %v6514 = vpop.permute.xlu0 %6513
        %6515 = vrot.lane.b32.xlu0 %v5955, 96
        %v6516 = vpop.permute.xlu0 %6515
        %6526 = vrot.lane.b32.xlu0 %v5933, 32
        %v6527 = vpop.permute.xlu0 %6526
        %6528 = vrot.lane.b32.xlu0 %v5936, 32
        %v6529 = vpop.permute.xlu0 %6528
        %6530 = vrot.lane.b32.xlu0 %v5945, 32
        %v6531 = vpop.permute.xlu0 %6530
        %6532 = vrot.lane.b32.xlu0 %v5948, 32
        %v6533 = vpop.permute.xlu0 %6532
        %6534 = vrot.lane.b32.xlu0 %v5957, 32
        %v6535 = vpop.permute.xlu0 %6534
        %6543 = vrot.lane.b32.xlu0 %v5934, 64
        %v6544 = vpop.permute.xlu0 %6543
        %6545 = vrot.lane.b32.xlu0 %v5937, 64
        %v6546 = vpop.permute.xlu0 %6545
        %6547 = vrot.lane.b32.xlu0 %v5946, 64
        %v6548 = vpop.permute.xlu0 %6547
        %6549 = vrot.lane.b32.xlu0 %v5949, 64
        %v6550 = vpop.permute.xlu0 %6549
        %6551 = vrot.lane.b32.xlu0 %v5958, 64
        %v6552 = vpop.permute.xlu0 %6551
        %v6558 = vsel %vm1078, %v5895, %v6401
        %v6559 = vsel %vm1078, %v5896, %v6403
        %v6560 = vsel %vm1078, %v5897, %v6405
        %v6561 = vsel %vm1078, %v5898, %v6407
        %v6562 = vsel %vm1078, %v5899, %v6409
        %v6563 = vsel %vm1078, %v5933, %v6411
        %v6564 = vsel %vm1078, %v5936, %v6413
        %v6565 = vsel %vm1078, %v5945, %v6415
        %v6566 = vsel %vm1362, %v6558, %v6102
        %v6567 = vsel %vm1362, %v6559, %v6104
        %v6568 = vsel %vm1362, %v6560, %v6106
        %v6569 = vsel %vm1362, %v6561, %v6108
        %v6570 = vsel %vm1362, %v6562, %v6110
        %v6571 = vsel %vm1362, %v6563, %v6426
        %v6572 = vsel %vm1362, %v6564, %v6428
        %v6573 = vsel %vm1362, %v6565, %v6430
        %v6574 = vsel %vm2347, %v6566, %v6127
        %v6575 = vsel %vm2347, %v6567, %v6129
        %v6576 = vsel %vm2347, %v6568, %v6131
        %v6577 = vsel %vm2347, %v6569, %v6133
        %v6578 = vsel %vm2347, %v6570, %v6135
        %v6579 = vsel %vm2347, %v6571, %v6437
        %v6580 = vsel %vm2347, %v6572, %v6439
        %v6581 = vsel %vm2347, %v6573, %v6441
        %v6582 = vsel %vm1078, %v5904, %v6450
        %v6583 = vsel %vm1078, %v5905, %v6452
        %v6584 = vsel %vm1078, %v5906, %v6454
        %v6585 = vsel %vm1078, %v5907, %v6456
        %v6586 = vsel %vm1078, %v5934, %v6458
        %v6587 = vsel %vm1078, %v5937, %v6460
        %v6588 = vsel %vm1078, %v5946, %v6462
        %v6589 = vsel %vm1078, %v5949, %v6464
        %v6590 = vsel %vm1362, %v6582, %v6476
        %v6591 = vsel %vm1362, %v6583, %v6478
        %v6592 = vsel %vm1362, %v6584, %v6480
        %v6593 = vsel %vm1362, %v6585, %v6482
        %v6594 = vsel %vm1362, %v6586, %v6484
        %v6595 = vsel %vm1362, %v6587, %v6486
        %v6596 = vsel %vm1362, %v6588, %v6488
        %v6597 = vsel %vm1362, %v6589, %v6490
        %v6598 = vsel %vm2347, %v6590, %v6502
        %v6599 = vsel %vm2347, %v6591, %v6504
        %v6600 = vsel %vm2347, %v6592, %v6506
        %v6601 = vsel %vm2347, %v6593, %v6508
        %v6602 = vsel %vm2347, %v6594, %v6510
        %v6603 = vsel %vm2347, %v6595, %v6512
        %v6604 = vsel %vm2347, %v6596, %v6514
        %v6605 = vsel %vm2347, %v6597, %v6516
        %v6606 = vsel %vm1078, %v5932, %v6527
        %v6607 = vsel %vm1078, %v5935, %v6529
        %v6608 = vsel %vm1078, %v5944, %v6531
        %v6609 = vsel %vm1078, %v5947, %v6533
        %v6610 = vsel %vm1078, %v5956, %v6535
        %v6611 = vsel %vm1362, %v6606, %v6544
        %v6612 = vsel %vm1362, %v6607, %v6546
        %v6613 = vsel %vm1362, %v6608, %v6548
        %v6614 = vsel %vm1362, %v6609, %v6550
        %v6615 = vsel %vm1362, %v6610, %v6552
        %v6616 = vmul.f32 %v6319, %v2633
        %v6617 = vmul.f32 %v6343, %v2634
        %v6618 = vmul.f32 %v6367, %v2635
        %v6619 = vmul.f32 %v6391, %v2636
        %v6620 = vmul.f32 %v6574, %v2637
        %v6621 = vmul.f32 %v6598, %v2638
        %v6622 = vmul.f32 %v6316, %v2639
        %v6623 = vmul.f32 %v6320, %v2640
        %v6624 = vmul.f32 %v6344, %v2641
        %v6625 = vmul.f32 %v6368, %v2642
        %v6626 = vmul.f32 %v6392, %v2643
        %v6627 = vmul.f32 %v6575, %v2644
        %v6628 = vmul.f32 %v6599, %v2645
        %v6629 = vmul.f32 %v6317, %v2646
        %v6630 = vmul.f32 %v6321, %v2647
        %v6631 = vmul.f32 %v6345, %v2648
        %v6632 = vmul.f32 %v6369, %v2649
        %v6633 = vmul.f32 %v6393, %v2650
        %v6634 = vmul.f32 %v6576, %v2651
        %v6635 = vmul.f32 %v6600, %v2652
        %v6636 = vmul.f32 %v6318, %v2653
        %v6637 = vmul.f32 %v6322, %v2654
        %v6638 = vmul.f32 %v6346, %v2655
        %v6639 = vmul.f32 %v6370, %v2656
        %v6640 = vmul.f32 %v6394, %v2657
        %v6641 = vmul.f32 %v6577, %v2658
        %v6642 = vmul.f32 %v6601, %v2659
        %v6643 = vmul.f32 %v6611, %v2660
        %v6644 = vmul.f32 %v6323, %v2661
        %v6645 = vmul.f32 %v6347, %v2662
        %v6646 = vmul.f32 %v6371, %v2663
        %v6647 = vmul.f32 %v6395, %v2664
        %v6648 = vmul.f32 %v6578, %v2665
        %v6649 = vmul.f32 %v6602, %v2666
        %v6650 = vmul.f32 %v6612, %v2667
        %v6651 = vmul.f32 %v6324, %v2668
        %v6652 = vmul.f32 %v6348, %v2669
        %v6653 = vmul.f32 %v6372, %v2670
        %v6654 = vmul.f32 %v6396, %v2671
        %v6655 = vmul.f32 %v6579, %v2672
        %v6656 = vmul.f32 %v6603, %v2673
        %v6657 = vmul.f32 %v6613, %v2674
        %v6658 = vmul.f32 %v6325, %v2675
        %v6659 = vmul.f32 %v6349, %v2676
        %v6660 = vmul.f32 %v6373, %v2677
        %v6661 = vmul.f32 %v6397, %v2678
        %v6662 = vmul.f32 %v6580, %v2679
        %v6663 = vmul.f32 %v6604, %v2680
        %v6664 = vmul.f32 %v6614, %v2681
        %v6665 = vmul.f32 %v6326, %v2682
        %v6666 = vmul.f32 %v6350, %v2683
        %v6667 = vmul.f32 %v6374, %v2684
        %v6668 = vmul.f32 %v6398, %v2685
        %v6669 = vmul.f32 %v6581, %v2686
        %v6670 = vmul.f32 %v6605, %v2687
        %v6671 = vmul.f32 %v6615, %v2688
        %v6672 = vld [vmem:[%s55] sm:$0xf]
        %v6673 = vld [vmem:[%s55 + $0x4] sm:$0xf]
        %v6674 = vld [vmem:[%s55 + $0x8] sm:$0xf]
        %v6675 = vld [vmem:[%s55 + $0xc] sm:$0xf]
        %v6676 = vld [vmem:[%s55 + $0x10] sm:$0xf]
        %v6677 = vld [vmem:[%s55 + $0x14] sm:$0xf]
        %v6678 = vld [vmem:[%s55 + $0x18] sm:$0xf]
        %v6679 = vld [vmem:[%s55 + $0x1c] sm:$0xf]
        %v6680 = vld [vmem:[%s55 + $0x20] sm:$0xf]
        %v6681 = vld [vmem:[%s55 + $0x24] sm:$0xf]
        %v6682 = vld [vmem:[%s55 + $0x28] sm:$0xf]
        %v6683 = vld [vmem:[%s55 + $0x2c] sm:$0xf]
        %v6684 = vld [vmem:[%s55 + $0x30] sm:$0xf]
        %v6685 = vld [vmem:[%s55 + $0x34] sm:$0xf]
        %v6686 = vld [vmem:[%s55 + $0x38] sm:$0xf]
        %v6687 = vld [vmem:[%s55 + $0x3c] sm:$0xf]
        %v6688 = vld [vmem:[%s55 + $0x40] sm:$0xf]
        %v6689 = vld [vmem:[%s55 + $0x44] sm:$0xf]
        %v6690 = vld [vmem:[%s55 + $0x48] sm:$0xf]
        %v6691 = vld [vmem:[%s55 + $0x4c] sm:$0xf]
        %v6692 = vld [vmem:[%s55 + $0x50] sm:$0xf]
        %v6693 = vld [vmem:[%s55 + $0x54] sm:$0xf]
        %v6694 = vld [vmem:[%s55 + $0x58] sm:$0xf]
        %v6695 = vld [vmem:[%s55 + $0x5c] sm:$0xf]
        %v6696 = vld [vmem:[%s55 + $0x60] sm:$0xf]
        %v6697 = vld [vmem:[%s55 + $0x64] sm:$0xf]
        %v6698 = vld [vmem:[%s55 + $0x68] sm:$0xf]
        %v6699 = vld [vmem:[%s55 + $0x6c] sm:$0xf]
        %v6700 = vld [vmem:[%s55 + $0x70] sm:$0xf]
        %v6701 = vld [vmem:[%s55 + $0x74] sm:$0xf]
        %v6702 = vld [vmem:[%s55 + $0x78] sm:$0xf]
        %v6703 = vld [vmem:[%s55 + $0x7c] sm:$0xf]
        %v6704 = vld [vmem:[%s55 + $0x80] sm:$0xf]
        %v6705 = vld [vmem:[%s55 + $0x84] sm:$0xf]
        %v6706 = vld [vmem:[%s55 + $0x88] sm:$0xf]
        %v6707 = vld [vmem:[%s55 + $0x8c] sm:$0xf]
        %v6708 = vld [vmem:[%s55 + $0x90] sm:$0xf]
        %v6709 = vld [vmem:[%s55 + $0x94] sm:$0xf]
        %v6710 = vld [vmem:[%s55 + $0x98] sm:$0xf]
        %v6711 = vld [vmem:[%s55 + $0x9c] sm:$0xf]
        %v6712 = vld [vmem:[%s55 + $0xa0] sm:$0xf]
        %v6713 = vld [vmem:[%s55 + $0xa4] sm:$0xf]
        %v6714 = vld [vmem:[%s55 + $0xa8] sm:$0xf]
        %v6715 = vld [vmem:[%s55 + $0xac] sm:$0xf]
        %v6716 = vld [vmem:[%s55 + $0xb0] sm:$0xf]
        %v6717 = vld [vmem:[%s55 + $0xb4] sm:$0xf]
        %v6718 = vld [vmem:[%s55 + $0xb8] sm:$0xf]
        %v6719 = vld [vmem:[%s55 + $0xbc] sm:$0xf]
        %v6720 = vld [vmem:[%s55 + $0xc0] sm:$0xf]
        %v6721 = vld [vmem:[%s55 + $0xc4] sm:$0xf]
        %v6722 = vld [vmem:[%s55 + $0xc8] sm:$0xf]
        %v6723 = vld [vmem:[%s55 + $0xcc] sm:$0xf]
        %v6724 = vld [vmem:[%s55 + $0xd0] sm:$0xf]
        %v6725 = vld [vmem:[%s55 + $0xd4] sm:$0xf]
        %v6726 = vld [vmem:[%s55 + $0xd8] sm:$0xf]
        %v6727 = vld [vmem:[%s55 + $0xdc] sm:$0xf]
        %v6728 = vld [vmem:[%s55 + $0xe0] sm:$0xf]
        %v6729 = vld [vmem:[%s55 + $0xe4] sm:$0xf]
        %v6730 = vld [vmem:[%s55 + $0xe8] sm:$0xf]
        %v6731 = vld [vmem:[%s55 + $0xec] sm:$0xf]
        %v6732 = vld [vmem:[%s55 + $0xf0] sm:$0xf]
        %v6733 = vld [vmem:[%s55 + $0xf4] sm:$0xf]
        %v6734 = vld [vmem:[%s55 + $0xf8] sm:$0xf]
        %v6735 = vld [vmem:[%s55 + $0xfc] sm:$0xf]
        %v6736 = vld [vmem:[%s55 + $0x100] sm:$0xf]
        %v6737 = vld [vmem:[%s55 + $0x104] sm:$0xf]
        %v6738 = vld [vmem:[%s55 + $0x108] sm:$0xf]
        %v6739 = vld [vmem:[%s55 + $0x10c] sm:$0xf]
        %v6740 = vld [vmem:[%s55 + $0x110] sm:$0xf]
        %v6741 = vld [vmem:[%s55 + $0x114] sm:$0xf]
        %v6742 = vld [vmem:[%s55 + $0x118] sm:$0xf]
        %v6743 = vld [vmem:[%s55 + $0x11c] sm:$0xf]
        %v6744 = vld [vmem:[%s55 + $0x120] sm:$0xf]
        %v6745 = vld [vmem:[%s55 + $0x124] sm:$0xf]
        %v6746 = vld [vmem:[%s55 + $0x128] sm:$0xf]
        %v6747 = vld [vmem:[%s55 + $0x12c] sm:$0xf]
        %v6748 = vld [vmem:[%s55 + $0x130] sm:$0xf]
        %v6749 = vld [vmem:[%s55 + $0x134] sm:$0xf]
        %v6750 = vld [vmem:[%s55 + $0x138] sm:$0xf]
        %v6751 = vld [vmem:[%s55 + $0x13c] sm:$0xf]
        %v6752 = vld [vmem:[%s55 + $0x140] sm:$0xf]
        %v6753 = vld [vmem:[%s55 + $0x144] sm:$0xf]
        %v6754 = vld [vmem:[%s55 + $0x148] sm:$0xf]
        %v6755 = vld [vmem:[%s55 + $0x14c] sm:$0xf]
        %v6756 = vld [vmem:[%s55 + $0x150] sm:$0xf]
        %v6757 = vld [vmem:[%s55 + $0x154] sm:$0xf]
        %v6758 = vld [vmem:[%s55 + $0x158] sm:$0xf]
        %v6759 = vld [vmem:[%s55 + $0x15c] sm:$0xf]
        %v6760 = vld [vmem:[%s55 + $0x160] sm:$0xf]
        %v6761 = vld [vmem:[%s55 + $0x164] sm:$0xf]
        %v6762 = vld [vmem:[%s55 + $0x168] sm:$0xf]
        %v6763 = vld [vmem:[%s55 + $0x16c] sm:$0xf]
        %v6764 = vld [vmem:[%s55 + $0x170] sm:$0xf]
        %v6765 = vld [vmem:[%s55 + $0x174] sm:$0xf]
        %v6766 = vld [vmem:[%s55 + $0x178] sm:$0xf]
        %v6767 = vld [vmem:[%s55 + $0x17c] sm:$0xf]
        %v6768 = vld [vmem:[%s55 + $0x180] sm:$0xf]
        %v6769 = vld [vmem:[%s55 + $0x184] sm:$0xf]
        %v6770 = vld [vmem:[%s55 + $0x188] sm:$0xf]
        %v6771 = vld [vmem:[%s55 + $0x18c] sm:$0xf]
        %v6772 = vld [vmem:[%s55 + $0x190] sm:$0xf]
        %v6773 = vld [vmem:[%s55 + $0x194] sm:$0xf]
        %v6774 = vld [vmem:[%s55 + $0x198] sm:$0xf]
        %v6775 = vld [vmem:[%s55 + $0x19c] sm:$0xf]
        %v6776 = vld [vmem:[%s55 + $0x1a0] sm:$0xf]
        %v6777 = vld [vmem:[%s55 + $0x1a4] sm:$0xf]
        %v6778 = vld [vmem:[%s55 + $0x1a8] sm:$0xf]
        %v6779 = vld [vmem:[%s55 + $0x1ac] sm:$0xf]
        %v6780 = vpack.c.bf16 %v6623, %v6616
        %v6781 = vpack.c.bf16 %v6624, %v6617
        %v6782 = vpack.c.bf16 %v6625, %v6618
        %v6783 = vpack.c.bf16 %v6626, %v6619
        %v6784 = vpack.c.bf16 %v6627, %v6620
        %v6785 = vpack.c.bf16 %v6628, %v6621
        %v6786 = vpack.c.bf16 %v6629, %v6622
        %v6787 = vpack.c.bf16 %v6637, %v6630
        %v6788 = vpack.c.bf16 %v6638, %v6631
        %v6789 = vpack.c.bf16 %v6639, %v6632
        %v6790 = vpack.c.bf16 %v6640, %v6633
        %v6791 = vpack.c.bf16 %v6641, %v6634
        %v6792 = vpack.c.bf16 %v6642, %v6635
        %v6793 = vpack.c.bf16 %v6643, %v6636
        %v6794 = vpack.c.bf16 %v6651, %v6644
        %v6795 = vpack.c.bf16 %v6652, %v6645
        %v6796 = vpack.c.bf16 %v6653, %v6646
        %v6797 = vpack.c.bf16 %v6654, %v6647
        %v6798 = vpack.c.bf16 %v6655, %v6648
        %v6799 = vpack.c.bf16 %v6656, %v6649
        %v6800 = vpack.c.bf16 %v6657, %v6650
        %v6801 = vpack.c.bf16 %v6665, %v6658
        %v6802 = vpack.c.bf16 %v6666, %v6659
        %v6803 = vpack.c.bf16 %v6667, %v6660
        %v6804 = vpack.c.bf16 %v6668, %v6661
        %v6805 = vpack.c.bf16 %v6669, %v6662
        %v6806 = vpack.c.bf16 %v6670, %v6663
        %v6807 = vpack.c.bf16 %v6671, %v6664
        %v6916 = vunpack.c.l.b16 %v6672
        %v6917 = vunpack.c.l.b16 %v6673
        %v6918 = vunpack.c.l.b16 %v6674
        %v6919 = vunpack.c.l.b16 %v6675
        %v6920 = vunpack.c.l.b16 %v6676
        %v6921 = vunpack.c.l.b16 %v6677
        %v6922 = vunpack.c.l.b16 %v6678
        %v6923 = vunpack.c.l.b16 %v6679
        %v6924 = vunpack.c.l.b16 %v6680
        %v6925 = vunpack.c.l.b16 %v6681
        %v6926 = vunpack.c.l.b16 %v6682
        %v6927 = vunpack.c.l.b16 %v6683
        %v6928 = vunpack.c.l.b16 %v6684
        %v6929 = vunpack.c.l.b16 %v6685
        %v6930 = vunpack.c.l.b16 %v6686
        %v6931 = vunpack.c.l.b16 %v6687
        %v6932 = vunpack.c.l.b16 %v6688
        %v6933 = vunpack.c.l.b16 %v6689
        %v6934 = vunpack.c.l.b16 %v6690
        %v6935 = vunpack.c.l.b16 %v6691
        %v6936 = vunpack.c.l.b16 %v6692
        %v6937 = vunpack.c.l.b16 %v6693
        %v6938 = vunpack.c.l.b16 %v6694
        %v6939 = vunpack.c.l.b16 %v6695
        %v6940 = vunpack.c.l.b16 %v6696
        %v6941 = vunpack.c.l.b16 %v6697
        %v6942 = vunpack.c.l.b16 %v6698
        %v6943 = vunpack.c.l.b16 %v6699
        %v6944 = vunpack.c.l.b16 %v6700
        %v6945 = vunpack.c.l.b16 %v6701
        %v6946 = vunpack.c.l.b16 %v6702
        %v6947 = vunpack.c.l.b16 %v6703
        %v6948 = vunpack.c.l.b16 %v6704
        %v6949 = vunpack.c.l.b16 %v6705
        %v6950 = vunpack.c.l.b16 %v6706
        %v6951 = vunpack.c.l.b16 %v6707
        %v6952 = vunpack.c.l.b16 %v6708
        %v6953 = vunpack.c.l.b16 %v6709
        %v6954 = vunpack.c.l.b16 %v6710
        %v6955 = vunpack.c.l.b16 %v6711
        %v6956 = vunpack.c.l.b16 %v6712
        %v6957 = vunpack.c.l.b16 %v6713
        %v6958 = vunpack.c.l.b16 %v6714
        %v6959 = vunpack.c.l.b16 %v6715
        %v6960 = vunpack.c.l.b16 %v6716
        %v6961 = vunpack.c.l.b16 %v6717
        %v6962 = vunpack.c.l.b16 %v6718
        %v6963 = vunpack.c.l.b16 %v6719
        %v6964 = vunpack.c.l.b16 %v6720
        %v6965 = vunpack.c.l.b16 %v6721
        %v6966 = vunpack.c.l.b16 %v6722
        %v6967 = vunpack.c.l.b16 %v6723
        %v6968 = vunpack.c.l.b16 %v6724
        %v6969 = vunpack.c.l.b16 %v6725
        %v6970 = vunpack.c.l.b16 %v6726
        %v6971 = vunpack.c.l.b16 %v6727
        %v6972 = vunpack.c.l.b16 %v6728
        %v6973 = vunpack.c.l.b16 %v6729
        %v6974 = vunpack.c.l.b16 %v6730
        %v6975 = vunpack.c.l.b16 %v6731
        %v6976 = vunpack.c.l.b16 %v6732
        %v6977 = vunpack.c.l.b16 %v6733
        %v6978 = vunpack.c.l.b16 %v6734
        %v6979 = vunpack.c.l.b16 %v6735
        %v6980 = vunpack.c.l.b16 %v6736
        %v6981 = vunpack.c.l.b16 %v6737
        %v6982 = vunpack.c.l.b16 %v6738
        %v6983 = vunpack.c.l.b16 %v6739
        %v6984 = vunpack.c.l.b16 %v6740
        %v6985 = vunpack.c.l.b16 %v6741
        %v6986 = vunpack.c.l.b16 %v6742
        %v6987 = vunpack.c.l.b16 %v6743
        %v6988 = vunpack.c.l.b16 %v6744
        %v6989 = vunpack.c.l.b16 %v6745
        %v6990 = vunpack.c.l.b16 %v6746
        %v6991 = vunpack.c.l.b16 %v6747
        %v6992 = vunpack.c.l.b16 %v6748
        %v6993 = vunpack.c.l.b16 %v6749
        %v6994 = vunpack.c.l.b16 %v6750
        %v6995 = vunpack.c.l.b16 %v6751
        %v6996 = vunpack.c.l.b16 %v6752
        %v6997 = vunpack.c.l.b16 %v6753
        %v6998 = vunpack.c.l.b16 %v6754
        %v6999 = vunpack.c.l.b16 %v6755
        %v7000 = vunpack.c.l.b16 %v6756
        %v7001 = vunpack.c.l.b16 %v6757
        %v7002 = vunpack.c.l.b16 %v6758
        %v7003 = vunpack.c.l.b16 %v6759
        %v7004 = vunpack.c.l.b16 %v6760
        %v7005 = vunpack.c.l.b16 %v6761
        %v7006 = vunpack.c.l.b16 %v6762
        %v7007 = vunpack.c.l.b16 %v6763
        %v7008 = vunpack.c.l.b16 %v6764
        %v7009 = vunpack.c.l.b16 %v6765
        %v7010 = vunpack.c.l.b16 %v6766
        %v7011 = vunpack.c.l.b16 %v6767
        %v7012 = vunpack.c.l.b16 %v6768
        %v7013 = vunpack.c.l.b16 %v6769
        %v7014 = vunpack.c.l.b16 %v6770
        %v7015 = vunpack.c.l.b16 %v6771
        %v7016 = vunpack.c.l.b16 %v6772
        %v7017 = vunpack.c.l.b16 %v6773
        %v7018 = vunpack.c.l.b16 %v6774
        %v7019 = vunpack.c.l.b16 %v6775
        %v7020 = vunpack.c.l.b16 %v6776
        %v7021 = vunpack.c.l.b16 %v6777
        %v7022 = vunpack.c.l.b16 %v6778
        %v7023 = vunpack.c.l.b16 %v6779
        %v7024 = vpack.c.b16 %v6917, %v6916
        %v7025 = vpack.c.b16 %v6919, %v6918
        %v7026 = vpack.c.b16 %v6921, %v6920
        %v7027 = vpack.c.b16 %v6923, %v6922
        %v7028 = vpack.c.b16 %v6925, %v6924
        %v7029 = vpack.c.b16 %v6927, %v6926
        %v7030 = vpack.c.b16 %v6929, %v6928
        %v7031 = vpack.c.b16 %v6931, %v6930
        %v7032 = vpack.c.b16 %v6933, %v6932
        %v7033 = vpack.c.b16 %v6935, %v6934
        %v7034 = vpack.c.b16 %v6937, %v6936
        %v7035 = vpack.c.b16 %v6939, %v6938
        %v7036 = vpack.c.b16 %v6941, %v6940
        %v7037 = vpack.c.b16 %v6943, %v6942
        %v7038 = vpack.c.b16 %v6945, %v6944
        %v7039 = vpack.c.b16 %v6947, %v6946
        %v7040 = vpack.c.b16 %v6949, %v6948
        %v7041 = vpack.c.b16 %v6951, %v6950
        %v7042 = vpack.c.b16 %v6953, %v6952
        %v7043 = vpack.c.b16 %v6955, %v6954
        %v7044 = vpack.c.b16 %v6957, %v6956
        %v7045 = vpack.c.b16 %v6959, %v6958
        %v7046 = vpack.c.b16 %v6961, %v6960
        %v7047 = vpack.c.b16 %v6963, %v6962
        %v7048 = vpack.c.b16 %v6965, %v6964
        %v7049 = vpack.c.b16 %v6967, %v6966
        %v7050 = vpack.c.b16 %v6969, %v6968
        %v7051 = vpack.c.b16 %v6971, %v6970
        %v7052 = vpack.c.b16 %v6973, %v6972
        %v7053 = vpack.c.b16 %v6975, %v6974
        %v7054 = vpack.c.b16 %v6977, %v6976
        %v7055 = vpack.c.b16 %v6979, %v6978
        %v7056 = vpack.c.b16 %v6981, %v6980
        %v7057 = vpack.c.b16 %v6983, %v6982
        %v7058 = vpack.c.b16 %v6985, %v6984
        %v7059 = vpack.c.b16 %v6987, %v6986
        %v7060 = vpack.c.b16 %v6989, %v6988
        %v7061 = vpack.c.b16 %v6991, %v6990
        %v7062 = vpack.c.b16 %v6993, %v6992
        %v7063 = vpack.c.b16 %v6995, %v6994
        %v7064 = vpack.c.b16 %v6997, %v6996
        %v7065 = vpack.c.b16 %v6999, %v6998
        %v7066 = vpack.c.b16 %v7001, %v7000
        %v7067 = vpack.c.b16 %v7003, %v7002
        %v7068 = vpack.c.b16 %v7005, %v7004
        %v7069 = vpack.c.b16 %v7007, %v7006
        %v7070 = vpack.c.b16 %v7009, %v7008
        %v7071 = vpack.c.b16 %v7011, %v7010
        %v7072 = vpack.c.b16 %v7013, %v7012
        %v7073 = vpack.c.b16 %v7015, %v7014
        %v7074 = vpack.c.b16 %v7017, %v7016
        %v7075 = vpack.c.b16 %v7019, %v7018
        %v7076 = vpack.c.b16 %v7021, %v7020
        %v7077 = vpack.c.b16 %v7023, %v7022
        %v7133 = vsel %vm2347, %v6786, 0
        %v7136 = vsel %vm2347, %v6793, 0
        %v7139 = vsel %vm2347, %v6800, 0
        %v7142 = vsel %vm2347, %v6807, 0
        %7144 = vmatprep.subr.bf16.mxu0 0
        %7145 = vmatpush1.bf16.msra.mxu0 %v7031
        %7146 = vmatprep.subr.bf16.mxu0 0
        %7147 = vmatpush1.bf16.msra.mxu0 %v7030
        %7148 = vmatprep.subr.bf16.mxu0 0
        %7149 = vmatpush1.bf16.msra.mxu0 %v7029
        %7150 = vmatprep.subr.bf16.mxu0 0
        %7151 = vmatpush1.bf16.msra.mxu0 %v7028
        %7152 = vmatprep.subr.bf16.mxu0 0
        %7153 = vmatpush1.bf16.msra.mxu0 %v7027
        %7154 = vmatprep.subr.bf16.mxu0 0
        %7155 = vmatpush1.bf16.msra.mxu0 %v7026
        %7156 = vmatprep.subr.bf16.mxu0 0
        %7157 = vmatpush1.bf16.msra.mxu0 %v7025
        %7158 = vmatprep.subr.bf16.mxu0 0
        %7159 = vmatpush1.bf16.msra.mxu0 %v7024
        %7160 = vmatprep.subr.bf16.mxu0 0
        %7161 = vmatpush2.bf16.msra.mxu0 %v7039
        %7162 = vmatprep.subr.bf16.mxu0 0
        %7163 = vmatpush2.bf16.msra.mxu0 %v7038
        %7164 = vmatprep.subr.bf16.mxu0 0
        %7165 = vmatpush2.bf16.msra.mxu0 %v7037
        %7166 = vmatprep.subr.bf16.mxu0 0
        %7167 = vmatpush2.bf16.msra.mxu0 %v7036
        %7168 = vmatprep.subr.bf16.mxu0 0
        %7169 = vmatpush2.bf16.msra.mxu0 %v7035
        %7170 = vmatprep.subr.bf16.mxu0 0
        %7171 = vmatpush2.bf16.msra.mxu0 %v7034
        %7172 = vmatprep.subr.bf16.mxu0 0
        %7173 = vmatpush2.bf16.msra.mxu0 %v7033
        %7174 = vmatprep.subr.bf16.mxu0 0
        %7175 = vmatpush2.bf16.msra.mxu0 %v7032
        %7176 = vmatprep.mubr.bf16.mxu0 %v6781
        %7177 = vmatmul.mubr.bf16.gmra.mxu0 %v6780
        %v7178 = vpop.f32.mrf.mxu0
        %v7179 = vadd.f32 0.0, %v7178
        %v7180 = vpop.f32.mrf.mxu0
        %v7181 = vpop.f32.mrf.mxu0
        %v7182 = vadd.f32 0.0, %v7181
        %v7183 = vpop.f32.mrf.mxu0
        %7184 = vmatprep.mubr.bf16.mxu0 %v6788
        %7185 = vmatmul.mubr.bf16.gmra.mxu0 %v6787
        %v7186 = vpop.f32.mrf.mxu0
        %v7187 = vadd.f32 0.0, %v7186
        %v7188 = vpop.f32.mrf.mxu0
        %v7189 = vpop.f32.mrf.mxu0
        %v7190 = vadd.f32 0.0, %v7189
        %v7191 = vpop.f32.mrf.mxu0
        %7192 = vmatprep.mubr.bf16.mxu0 %v6795
        %7193 = vmatmul.mubr.bf16.gmra.mxu0 %v6794
        %v7194 = vpop.f32.mrf.mxu0
        %v7195 = vadd.f32 0.0, %v7194
        %v7196 = vpop.f32.mrf.mxu0
        %v7197 = vpop.f32.mrf.mxu0
        %v7198 = vadd.f32 0.0, %v7197
        %v7199 = vpop.f32.mrf.mxu0
        %7200 = vmatprep.mubr.bf16.mxu0 %v6802
        %7201 = vmatmul.mubr.bf16.gmra.mxu0 %v6801
        %v7202 = vpop.f32.mrf.mxu0
        %v7203 = vadd.f32 0.0, %v7202
        %v7204 = vpop.f32.mrf.mxu0
        %v7205 = vpop.f32.mrf.mxu0
        %v7206 = vadd.f32 0.0, %v7205
        %v7207 = vpop.f32.mrf.mxu0
        %7208 = vdwg.mxu0
        %7209 = vmatprep.subr.bf16.mxu0 0
        %7210 = vmatpush1.bf16.msra.mxu0 %v7047
        %7211 = vmatprep.subr.bf16.mxu0 0
        %7212 = vmatpush1.bf16.msra.mxu0 %v7046
        %7213 = vmatprep.subr.bf16.mxu0 0
        %7214 = vmatpush1.bf16.msra.mxu0 %v7045
        %7215 = vmatprep.subr.bf16.mxu0 0
        %7216 = vmatpush1.bf16.msra.mxu0 %v7044
        %7217 = vmatprep.subr.bf16.mxu0 0
        %7218 = vmatpush1.bf16.msra.mxu0 %v7043
        %7219 = vmatprep.subr.bf16.mxu0 0
        %7220 = vmatpush1.bf16.msra.mxu0 %v7042
        %7221 = vmatprep.subr.bf16.mxu0 0
        %7222 = vmatpush1.bf16.msra.mxu0 %v7041
        %7223 = vmatprep.subr.bf16.mxu0 0
        %7224 = vmatpush1.bf16.msra.mxu0 %v7040
        %7225 = vmatprep.subr.bf16.mxu0 0
        %7226 = vmatpush2.bf16.msra.mxu0 %v7055
        %7227 = vmatprep.subr.bf16.mxu0 0
        %7228 = vmatpush2.bf16.msra.mxu0 %v7054
        %7229 = vmatprep.subr.bf16.mxu0 0
        %7230 = vmatpush2.bf16.msra.mxu0 %v7053
        %7231 = vmatprep.subr.bf16.mxu0 0
        %7232 = vmatpush2.bf16.msra.mxu0 %v7052
        %7233 = vmatprep.subr.bf16.mxu0 0
        %7234 = vmatpush2.bf16.msra.mxu0 %v7051
        %7235 = vmatprep.subr.bf16.mxu0 0
        %7236 = vmatpush2.bf16.msra.mxu0 %v7050
        %7237 = vmatprep.subr.bf16.mxu0 0
        %7238 = vmatpush2.bf16.msra.mxu0 %v7049
        %7239 = vmatprep.subr.bf16.mxu0 0
        %7240 = vmatpush2.bf16.msra.mxu0 %v7048
        %7241 = vmatprep.mubr.bf16.mxu0 %v6783
        %7242 = vmatmul.mubr.bf16.gmra.mxu0 %v6782
        %v7243 = vpop.f32.mrf.mxu0
        %v7244 = vadd.f32 %v7179, %v7243
        %v7245 = vpop.f32.mrf.mxu0
        %v7246 = vpop.f32.mrf.mxu0
        %v7247 = vadd.f32 %v7182, %v7246
        %v7248 = vpop.f32.mrf.mxu0
        %7249 = vmatprep.mubr.bf16.mxu0 %v6790
        %7250 = vmatmul.mubr.bf16.gmra.mxu0 %v6789
        %v7251 = vpop.f32.mrf.mxu0
        %v7252 = vadd.f32 %v7187, %v7251
        %v7253 = vpop.f32.mrf.mxu0
        %v7254 = vpop.f32.mrf.mxu0
        %v7255 = vadd.f32 %v7190, %v7254
        %v7256 = vpop.f32.mrf.mxu0
        %7257 = vmatprep.mubr.bf16.mxu0 %v6797
        %7258 = vmatmul.mubr.bf16.gmra.mxu0 %v6796
        %v7259 = vpop.f32.mrf.mxu0
        %v7260 = vadd.f32 %v7195, %v7259
        %v7261 = vpop.f32.mrf.mxu0
        %v7262 = vpop.f32.mrf.mxu0
        %v7263 = vadd.f32 %v7198, %v7262
        %v7264 = vpop.f32.mrf.mxu0
        %7265 = vmatprep.mubr.bf16.mxu0 %v6804
        %7266 = vmatmul.mubr.bf16.gmra.mxu0 %v6803
        %v7267 = vpop.f32.mrf.mxu0
        %v7268 = vadd.f32 %v7203, %v7267
        %v7269 = vpop.f32.mrf.mxu0
        %v7270 = vpop.f32.mrf.mxu0
        %v7271 = vadd.f32 %v7206, %v7270
        %v7272 = vpop.f32.mrf.mxu0
        %7273 = vdwg.mxu0
        %7274 = vmatprep.subr.bf16.mxu0 0
        %7275 = vmatpush1.bf16.msra.mxu0 %v7063
        %7276 = vmatprep.subr.bf16.mxu0 0
        %7277 = vmatpush1.bf16.msra.mxu0 %v7062
        %7278 = vmatprep.subr.bf16.mxu0 0
        %7279 = vmatpush1.bf16.msra.mxu0 %v7061
        %7280 = vmatprep.subr.bf16.mxu0 0
        %7281 = vmatpush1.bf16.msra.mxu0 %v7060
        %7282 = vmatprep.subr.bf16.mxu0 0
        %7283 = vmatpush1.bf16.msra.mxu0 %v7059
        %7284 = vmatprep.subr.bf16.mxu0 0
        %7285 = vmatpush1.bf16.msra.mxu0 %v7058
        %7286 = vmatprep.subr.bf16.mxu0 0
        %7287 = vmatpush1.bf16.msra.mxu0 %v7057
        %7288 = vmatprep.subr.bf16.mxu0 0
        %7289 = vmatpush1.bf16.msra.mxu0 %v7056
        %7290 = vmatprep.subr.bf16.mxu0 0
        %7291 = vmatpush2.bf16.msra.mxu0 %v7071
        %7292 = vmatprep.subr.bf16.mxu0 0
        %7293 = vmatpush2.bf16.msra.mxu0 %v7070
        %7294 = vmatprep.subr.bf16.mxu0 0
        %7295 = vmatpush2.bf16.msra.mxu0 %v7069
        %7296 = vmatprep.subr.bf16.mxu0 0
        %7297 = vmatpush2.bf16.msra.mxu0 %v7068
        %7298 = vmatprep.subr.bf16.mxu0 0
        %7299 = vmatpush2.bf16.msra.mxu0 %v7067
        %7300 = vmatprep.subr.bf16.mxu0 0
        %7301 = vmatpush2.bf16.msra.mxu0 %v7066
        %7302 = vmatprep.subr.bf16.mxu0 0
        %7303 = vmatpush2.bf16.msra.mxu0 %v7065
        %7304 = vmatprep.subr.bf16.mxu0 0
        %7305 = vmatpush2.bf16.msra.mxu0 %v7064
        %7306 = vmatprep.mubr.bf16.mxu0 %v6785
        %7307 = vmatmul.mubr.bf16.gmra.mxu0 %v6784
        %v7308 = vpop.f32.mrf.mxu0
        %v7309 = vadd.f32 %v7244, %v7308
        %v7310 = vpop.f32.mrf.mxu0
        %v7311 = vpop.f32.mrf.mxu0
        %v7312 = vadd.f32 %v7247, %v7311
        %v7313 = vpop.f32.mrf.mxu0
        %7314 = vmatprep.mubr.bf16.mxu0 %v6792
        %7315 = vmatmul.mubr.bf16.gmra.mxu0 %v6791
        %v7316 = vpop.f32.mrf.mxu0
        %v7317 = vadd.f32 %v7252, %v7316
        %v7318 = vpop.f32.mrf.mxu0
        %v7319 = vpop.f32.mrf.mxu0
        %v7320 = vadd.f32 %v7255, %v7319
        %v7321 = vpop.f32.mrf.mxu0
        %7322 = vmatprep.mubr.bf16.mxu0 %v6799
        %7323 = vmatmul.mubr.bf16.gmra.mxu0 %v6798
        %v7324 = vpop.f32.mrf.mxu0
        %v7325 = vadd.f32 %v7260, %v7324
        %v7326 = vpop.f32.mrf.mxu0
        %v7327 = vpop.f32.mrf.mxu0
        %v7328 = vadd.f32 %v7263, %v7327
        %v7329 = vpop.f32.mrf.mxu0
        %7330 = vmatprep.mubr.bf16.mxu0 %v6806
        %7331 = vmatmul.mubr.bf16.gmra.mxu0 %v6805
        %v7332 = vpop.f32.mrf.mxu0
        %v7333 = vadd.f32 %v7268, %v7332
        %v7334 = vpop.f32.mrf.mxu0
        %v7335 = vpop.f32.mrf.mxu0
        %v7336 = vadd.f32 %v7271, %v7335
        %v7337 = vpop.f32.mrf.mxu0
        %7338 = vdwg.mxu0
        %7339 = vmatprep.subr.bf16.mxu0 0
        %7340 = vmatpush1.bf16.msra.mxu0 0
        %7341 = vmatprep.subr.bf16.mxu0 0
        %7342 = vmatpush1.bf16.msra.mxu0 0
        %7343 = vmatprep.subr.bf16.mxu0 0
        %7344 = vmatpush1.bf16.msra.mxu0 %v7077
        %7345 = vmatprep.subr.bf16.mxu0 0
        %7346 = vmatpush1.bf16.msra.mxu0 %v7076
        %7347 = vmatprep.subr.bf16.mxu0 0
        %7348 = vmatpush1.bf16.msra.mxu0 %v7075
        %7349 = vmatprep.subr.bf16.mxu0 0
        %7350 = vmatpush1.bf16.msra.mxu0 %v7074
        %7351 = vmatprep.subr.bf16.mxu0 0
        %7352 = vmatpush1.bf16.msra.mxu0 %v7073
        %7353 = vmatprep.subr.bf16.mxu0 0
        %7354 = vmatpush1.bf16.msra.mxu0 %v7072
        %7355 = vmatprep.subr.bf16.mxu0 0
        %7356 = vmatpush2.bf16.msra.mxu0 0
        %7357 = vmatprep.subr.bf16.mxu0 0
        %7358 = vmatpush2.bf16.msra.mxu0 0
        %7359 = vmatprep.subr.bf16.mxu0 0
        %7360 = vmatpush2.bf16.msra.mxu0 0
        %7361 = vmatprep.subr.bf16.mxu0 0
        %7362 = vmatpush2.bf16.msra.mxu0 0
        %7363 = vmatprep.subr.bf16.mxu0 0
        %7364 = vmatpush2.bf16.msra.mxu0 0
        %7365 = vmatprep.subr.bf16.mxu0 0
        %7366 = vmatpush2.bf16.msra.mxu0 0
        %7367 = vmatprep.subr.bf16.mxu0 0
        %7368 = vmatpush2.bf16.msra.mxu0 0
        %7369 = vmatprep.subr.bf16.mxu0 0
        %7370 = vmatpush2.bf16.msra.mxu0 0
        %7371 = vmatprep.mubr.bf16.mxu0 0
        %7372 = vmatmul.mubr.bf16.gmra.mxu0 %v7133
        %v7373 = vpop.f32.mrf.mxu0
        %v7374 = vadd.f32 %v7309, %v7373
        %v7375 = vpop.f32.mrf.mxu0
        %v7376 = vpop.f32.mrf.mxu0
        %v7377 = vadd.f32 %v7312, %v7376
        %v7378 = vpop.f32.mrf.mxu0
        %7379 = vmatprep.mubr.bf16.mxu0 0
        %7380 = vmatmul.mubr.bf16.gmra.mxu0 %v7136
        %v7381 = vpop.f32.mrf.mxu0
        %v7382 = vadd.f32 %v7317, %v7381
        %v7383 = vpop.f32.mrf.mxu0
        %v7384 = vpop.f32.mrf.mxu0
        %v7385 = vadd.f32 %v7320, %v7384
        %v7386 = vpop.f32.mrf.mxu0
        %7387 = vmatprep.mubr.bf16.mxu0 0
        %7388 = vmatmul.mubr.bf16.gmra.mxu0 %v7139
        %v7389 = vpop.f32.mrf.mxu0
        %v7390 = vadd.f32 %v7325, %v7389
        %v7391 = vpop.f32.mrf.mxu0
        %v7392 = vpop.f32.mrf.mxu0
        %v7393 = vadd.f32 %v7328, %v7392
        %v7394 = vpop.f32.mrf.mxu0
        %7395 = vmatprep.mubr.bf16.mxu0 0
        %7396 = vmatmul.mubr.bf16.gmra.mxu0 %v7142
        %v7397 = vpop.f32.mrf.mxu0
        %v7398 = vadd.f32 %v7333, %v7397
        %v7399 = vpop.f32.mrf.mxu0
        %v7400 = vpop.f32.mrf.mxu0
        %v7401 = vadd.f32 %v7336, %v7400
        %v7402 = vpop.f32.mrf.mxu0
        %7403 = vdwg.mxu0
        %v7404 = vld [vmem:[%s57] sm:$0x1]
        %v7406 = vlaneseq
        %v7407 = vshrl.u32 %v7406, 7
        %v7408 = vsub.s32 0, %v7407
        %v7409 = vrot.slane %v7404, %v7408
        %v7411 = vmul.f32 %v7374, %v7409
        %v7412 = vmul.f32 %v7377, %v7409
        %v7413 = vmul.f32 %v7382, %v7409
        %v7414 = vmul.f32 %v7385, %v7409
        %v7415 = vmul.f32 %v7390, %v7409
        %v7416 = vmul.f32 %v7393, %v7409
        %v7417 = vmul.f32 %v7398, %v7409
        %v7418 = vmul.f32 %v7401, %v7409
        %v7419 = vld [vmem:[%s59] sm:$0x1]
        %v7421 = vlaneseq
        %v7422 = vshrl.u32 %v7421, 7
        %v7423 = vsub.s32 0, %v7422
        %v7424 = vrot.slane %v7419, %v7423
        %v7426 = vadd.f32 %v7411, %v7424
        %v7427 = vadd.f32 %v7412, %v7424
        %v7428 = vadd.f32 %v7413, %v7424
        %v7429 = vadd.f32 %v7414, %v7424
        %v7430 = vadd.f32 %v7415, %v7424
        %v7431 = vadd.f32 %v7416, %v7424
        %v7432 = vadd.f32 %v7417, %v7424
        %v7433 = vadd.f32 %v7418, %v7424
        %vm7434 = vcmp.ge.f32.partialorder %v7426, 0.0
        %vm7435 = vcmp.ge.f32.partialorder %v7427, 0.0
        %vm7436 = vcmp.ge.f32.partialorder %v7428, 0.0
        %vm7437 = vcmp.ge.f32.partialorder %v7429, 0.0
        %vm7438 = vcmp.ge.f32.partialorder %v7430, 0.0
        %vm7439 = vcmp.ge.f32.partialorder %v7431, 0.0
        %vm7440 = vcmp.ge.f32.partialorder %v7432, 0.0
        %vm7441 = vcmp.ge.f32.partialorder %v7433, 0.0
        %v7442 = vmul.f32 %v7426, 0.01
        %v7443 = vmul.f32 %v7427, 0.01
        %v7444 = vmul.f32 %v7428, 0.01
        %v7445 = vmul.f32 %v7429, 0.01
        %v7446 = vmul.f32 %v7430, 0.01
        %v7447 = vmul.f32 %v7431, 0.01
        %v7448 = vmul.f32 %v7432, 0.01
        %v7449 = vmul.f32 %v7433, 0.01
        %v7450 = vsel %vm7434, %v7426, %v7442
        %v7451 = vsel %vm7435, %v7427, %v7443
        %v7452 = vsel %vm7436, %v7428, %v7444
        %v7453 = vsel %vm7437, %v7429, %v7445
        %v7454 = vsel %vm7438, %v7430, %v7446
        %v7455 = vsel %vm7439, %v7431, %v7447
        %v7456 = vsel %vm7440, %v7432, %v7448
        %v7457 = vsel %vm7441, %v7433, %v7449
        %7458 = vst.msk [vmem:[#allocation2 + $0x15] sm:$0xff] %vm1078, %v7450
        %7459 = vst.msk [vmem:[#allocation2 + $0x1d] sm:$0xff] %vm1078, %v7451
        %7460 = vst.msk [vmem:[#allocation2 + $0x25] sm:$0xff] %vm1078, %v7452
        %7461 = vst.msk [vmem:[#allocation2 + $0x2d] sm:$0xff] %vm1078, %v7453
        %7462 = vst.msk [vmem:[#allocation2 + $0x35] sm:$0xff] %vm1078, %v7454
        %7463 = vst.msk [vmem:[#allocation2 + $0x3d] sm:$0xff] %vm1078, %v7455
        %7464 = vst.msk [vmem:[#allocation2 + $0x45] sm:$0xff] %vm1078, %v7456
        %7465 = vst.msk [vmem:[#allocation2 + $0x4d] sm:$0xff] %vm1078, %v7457
        %v7466 = vld [vmem:[#allocation2] sm:$0xff]
        %v7467 = vld [vmem:[#allocation2 + $0x8] sm:$0xff]
        %v7468 = vld [vmem:[#allocation2 + $0x10] sm:$0xff]
        %v7469 = vld [vmem:[#allocation2 + $0x18] sm:$0xff]
        %v7470 = vld [vmem:[#allocation2 + $0x20] sm:$0xff]
        %v7471 = vld [vmem:[#allocation2 + $0x28] sm:$0xff]
        %v7472 = vld [vmem:[#allocation2 + $0x30] sm:$0xff]
        %v7473 = vld [vmem:[#allocation2 + $0x38] sm:$0xff]
        %v7474 = vld [vmem:[#allocation2 + $0x1] sm:$0xff]
        %v7475 = vld [vmem:[#allocation2 + $0x9] sm:$0xff]
        %v7476 = vld [vmem:[#allocation2 + $0x11] sm:$0xff]
        %v7477 = vld [vmem:[#allocation2 + $0x19] sm:$0xff]
        %v7478 = vld [vmem:[#allocation2 + $0x21] sm:$0xff]
        %v7479 = vld [vmem:[#allocation2 + $0x29] sm:$0xff]
        %v7480 = vld [vmem:[#allocation2 + $0x31] sm:$0xff]
        %v7481 = vld [vmem:[#allocation2 + $0x39] sm:$0xff]
        %v7482 = vld [vmem:[#allocation2 + $0x2] sm:$0xff]
        %v7483 = vld [vmem:[#allocation2 + $0xa] sm:$0xff]
        %v7484 = vld [vmem:[#allocation2 + $0x12] sm:$0xff]
        %v7485 = vld [vmem:[#allocation2 + $0x1a] sm:$0xff]
        %v7486 = vld [vmem:[#allocation2 + $0x22] sm:$0xff]
        %v7487 = vld [vmem:[#allocation2 + $0x2a] sm:$0xff]
        %v7488 = vld [vmem:[#allocation2 + $0x32] sm:$0xff]
        %v7489 = vld [vmem:[#allocation2 + $0x3a] sm:$0xff]
        %v7490 = vld [vmem:[#allocation2 + $0x4] sm:$0xff]
        %v7491 = vld [vmem:[#allocation2 + $0xc] sm:$0xff]
        %v7492 = vld [vmem:[#allocation2 + $0x14] sm:$0xff]
        %v7493 = vld [vmem:[#allocation2 + $0x1c] sm:$0xff]
        %v7494 = vld [vmem:[#allocation2 + $0x24] sm:$0xff]
        %v7495 = vld [vmem:[#allocation2 + $0x2c] sm:$0xff]
        %v7496 = vld [vmem:[#allocation2 + $0x34] sm:$0xff]
        %v7497 = vld [vmem:[#allocation2 + $0x3c] sm:$0xff]
        %v7498 = vld [vmem:[#allocation2 + $0x5] sm:$0xff]
        %v7499 = vld [vmem:[#allocation2 + $0xd] sm:$0xff]
        %v7500 = vld [vmem:[#allocation2 + $0x15] sm:$0xff]
        %v7501 = vld [vmem:[#allocation2 + $0x1d] sm:$0xff]
        %v7502 = vld [vmem:[#allocation2 + $0x25] sm:$0xff]
        %v7503 = vld [vmem:[#allocation2 + $0x2d] sm:$0xff]
        %v7504 = vld [vmem:[#allocation2 + $0x35] sm:$0xff]
        %v7505 = vld [vmem:[#allocation2 + $0x3d] sm:$0xff]
        %v7506 = vld [vmem:[#allocation2 + $0x6] sm:$0xff]
        %v7507 = vld [vmem:[#allocation2 + $0xe] sm:$0xff]
        %v7508 = vld [vmem:[#allocation2 + $0x16] sm:$0xff]
        %v7509 = vld [vmem:[#allocation2 + $0x1e] sm:$0xff]
        %v7510 = vld [vmem:[#allocation2 + $0x26] sm:$0xff]
        %v7511 = vld [vmem:[#allocation2 + $0x2e] sm:$0xff]
        %v7512 = vld [vmem:[#allocation2 + $0x36] sm:$0xff]
        %v7513 = vld [vmem:[#allocation2 + $0x3e] sm:$0xff]
        %v7514 = vld [vmem:[#allocation2 + $0x40] sm:$0xff]
        %v7515 = vld [vmem:[#allocation2 + $0x41] sm:$0xff]
        %v7516 = vld [vmem:[#allocation2 + $0x42] sm:$0xff]
        %v7517 = vld [vmem:[#allocation2 + $0x48] sm:$0xff]
        %v7518 = vld [vmem:[#allocation2 + $0x49] sm:$0xff]
        %v7519 = vld [vmem:[#allocation2 + $0x4a] sm:$0xff]
        %v7520 = vld [vmem:[#allocation2 + $0x44] sm:$0xff]
        %v7521 = vld [vmem:[#allocation2 + $0x4c] sm:$0xff]
        %v7522 = vld [vmem:[#allocation2 + $0x45] sm:$0xff]
        %v7523 = vld [vmem:[#allocation2 + $0x4d] sm:$0xff]
        %v7524 = vld [vmem:[#allocation2 + $0x46] sm:$0xff]
        %v7525 = vld [vmem:[#allocation2 + $0x4e] sm:$0xff]
        %v7526 = vld [vmem:[#allocation2 + $0x50] sm:$0xff]
        %v7527 = vld [vmem:[#allocation2 + $0x51] sm:$0xff]
        %v7528 = vld [vmem:[#allocation2 + $0x52] sm:$0xff]
        %v7529 = vld [vmem:[#allocation2 + $0x58] sm:$0xff]
        %v7530 = vld [vmem:[#allocation2 + $0x59] sm:$0xff]
        %v7531 = vld [vmem:[#allocation2 + $0x5a] sm:$0xff]
        %v7532 = vld [vmem:[#allocation2 + $0x54] sm:$0xff]
        %v7533 = vld [vmem:[#allocation2 + $0x5c] sm:$0xff]
        %v7534 = vld [vmem:[#allocation2 + $0x55] sm:$0xff]
        %v7535 = vld [vmem:[#allocation2 + $0x5d] sm:$0xff]
        %v7536 = vld [vmem:[#allocation2 + $0x56] sm:$0xff]
        %v7537 = vld [vmem:[#allocation2 + $0x5e] sm:$0xff]
        %v7538 = vld [vmem:[#allocation2 + $0x60] sm:$0xff]
        %v7539 = vld [vmem:[#allocation2 + $0x61] sm:$0xff]
        %v7540 = vld [vmem:[#allocation2 + $0x62] sm:$0xff]
        %7549 = vrot.lane.b32.xlu0 %v7474, 32
        %v7550 = vpop.permute.xlu0 %7549
        %7551 = vrot.lane.b32.xlu0 %v7475, 32
        %v7552 = vpop.permute.xlu0 %7551
        %7553 = vrot.lane.b32.xlu0 %v7476, 32
        %v7554 = vpop.permute.xlu0 %7553
        %7555 = vrot.lane.b32.xlu0 %v7477, 32
        %v7556 = vpop.permute.xlu0 %7555
        %7557 = vrot.lane.b32.xlu0 %v7478, 32
        %v7558 = vpop.permute.xlu0 %7557
        %7559 = vrot.lane.b32.xlu0 %v7479, 32
        %v7560 = vpop.permute.xlu0 %7559
        %7561 = vrot.lane.b32.xlu0 %v7480, 32
        %v7562 = vpop.permute.xlu0 %7561
        %7563 = vrot.lane.b32.xlu0 %v7481, 32
        %v7564 = vpop.permute.xlu0 %7563
        %7581 = vrot.lane.b32.xlu0 %v7482, 64
        %v7582 = vpop.permute.xlu0 %7581
        %7583 = vrot.lane.b32.xlu0 %v7483, 64
        %v7584 = vpop.permute.xlu0 %7583
        %7585 = vrot.lane.b32.xlu0 %v7484, 64
        %v7586 = vpop.permute.xlu0 %7585
        %7587 = vrot.lane.b32.xlu0 %v7485, 64
        %v7588 = vpop.permute.xlu0 %7587
        %7589 = vrot.lane.b32.xlu0 %v7486, 64
        %v7590 = vpop.permute.xlu0 %7589
        %7591 = vrot.lane.b32.xlu0 %v7487, 64
        %v7592 = vpop.permute.xlu0 %7591
        %7593 = vrot.lane.b32.xlu0 %v7488, 64
        %v7594 = vpop.permute.xlu0 %7593
        %7595 = vrot.lane.b32.xlu0 %v7489, 64
        %v7596 = vpop.permute.xlu0 %7595
        %7613 = vrot.lane.b32.xlu0 %v7490, 96
        %v7614 = vpop.permute.xlu0 %7613
        %7615 = vrot.lane.b32.xlu0 %v7491, 96
        %v7616 = vpop.permute.xlu0 %7615
        %7617 = vrot.lane.b32.xlu0 %v7492, 96
        %v7618 = vpop.permute.xlu0 %7617
        %7619 = vrot.lane.b32.xlu0 %v7493, 96
        %v7620 = vpop.permute.xlu0 %7619
        %7621 = vrot.lane.b32.xlu0 %v7494, 96
        %v7622 = vpop.permute.xlu0 %7621
        %7623 = vrot.lane.b32.xlu0 %v7495, 96
        %v7624 = vpop.permute.xlu0 %7623
        %7625 = vrot.lane.b32.xlu0 %v7496, 96
        %v7626 = vpop.permute.xlu0 %7625
        %7627 = vrot.lane.b32.xlu0 %v7497, 96
        %v7628 = vpop.permute.xlu0 %7627
        %7645 = vrot.lane.b32.xlu0 %v7506, 32
        %v7646 = vpop.permute.xlu0 %7645
        %7647 = vrot.lane.b32.xlu0 %v7507, 32
        %v7648 = vpop.permute.xlu0 %7647
        %7649 = vrot.lane.b32.xlu0 %v7508, 32
        %v7650 = vpop.permute.xlu0 %7649
        %7651 = vrot.lane.b32.xlu0 %v7509, 32
        %v7652 = vpop.permute.xlu0 %7651
        %7653 = vrot.lane.b32.xlu0 %v7510, 32
        %v7654 = vpop.permute.xlu0 %7653
        %7655 = vrot.lane.b32.xlu0 %v7511, 32
        %v7656 = vpop.permute.xlu0 %7655
        %7657 = vrot.lane.b32.xlu0 %v7512, 32
        %v7658 = vpop.permute.xlu0 %7657
        %7659 = vrot.lane.b32.xlu0 %v7513, 32
        %v7660 = vpop.permute.xlu0 %7659
        %7677 = vrot.lane.b32.xlu0 %v7467, 64
        %v7678 = vpop.permute.xlu0 %7677
        %7679 = vrot.lane.b32.xlu0 %v7468, 64
        %v7680 = vpop.permute.xlu0 %7679
        %7681 = vrot.lane.b32.xlu0 %v7469, 64
        %v7682 = vpop.permute.xlu0 %7681
        %7683 = vrot.lane.b32.xlu0 %v7470, 64
        %v7684 = vpop.permute.xlu0 %7683
        %7685 = vrot.lane.b32.xlu0 %v7471, 64
        %v7686 = vpop.permute.xlu0 %7685
        %7687 = vrot.lane.b32.xlu0 %v7472, 64
        %v7688 = vpop.permute.xlu0 %7687
        %7689 = vrot.lane.b32.xlu0 %v7473, 64
        %v7690 = vpop.permute.xlu0 %7689
        %7691 = vrot.lane.b32.xlu0 %v7514, 64
        %v7692 = vpop.permute.xlu0 %7691
        %7702 = vrot.lane.b32.xlu0 %v7475, 96
        %v7703 = vpop.permute.xlu0 %7702
        %7704 = vrot.lane.b32.xlu0 %v7476, 96
        %v7705 = vpop.permute.xlu0 %7704
        %7706 = vrot.lane.b32.xlu0 %v7477, 96
        %v7707 = vpop.permute.xlu0 %7706
        %7708 = vrot.lane.b32.xlu0 %v7478, 96
        %v7709 = vpop.permute.xlu0 %7708
        %7710 = vrot.lane.b32.xlu0 %v7479, 96
        %v7711 = vpop.permute.xlu0 %7710
        %7712 = vrot.lane.b32.xlu0 %v7480, 96
        %v7713 = vpop.permute.xlu0 %7712
        %7714 = vrot.lane.b32.xlu0 %v7481, 96
        %v7715 = vpop.permute.xlu0 %7714
        %7716 = vrot.lane.b32.xlu0 %v7515, 96
        %v7717 = vpop.permute.xlu0 %7716
        %7727 = vrot.lane.b32.xlu0 %v7468, 32
        %v7728 = vpop.permute.xlu0 %7727
        %7729 = vrot.lane.b32.xlu0 %v7469, 32
        %v7730 = vpop.permute.xlu0 %7729
        %7731 = vrot.lane.b32.xlu0 %v7470, 32
        %v7732 = vpop.permute.xlu0 %7731
        %7733 = vrot.lane.b32.xlu0 %v7471, 32
        %v7734 = vpop.permute.xlu0 %7733
        %7735 = vrot.lane.b32.xlu0 %v7472, 32
        %v7736 = vpop.permute.xlu0 %7735
        %7737 = vrot.lane.b32.xlu0 %v7473, 32
        %v7738 = vpop.permute.xlu0 %7737
        %7739 = vrot.lane.b32.xlu0 %v7514, 32
        %v7740 = vpop.permute.xlu0 %7739
        %7741 = vrot.lane.b32.xlu0 %v7517, 32
        %v7742 = vpop.permute.xlu0 %7741
        %7752 = vrot.lane.b32.xlu0 %v7476, 64
        %v7753 = vpop.permute.xlu0 %7752
        %7754 = vrot.lane.b32.xlu0 %v7477, 64
        %v7755 = vpop.permute.xlu0 %7754
        %7756 = vrot.lane.b32.xlu0 %v7478, 64
        %v7757 = vpop.permute.xlu0 %7756
        %7758 = vrot.lane.b32.xlu0 %v7479, 64
        %v7759 = vpop.permute.xlu0 %7758
        %7760 = vrot.lane.b32.xlu0 %v7480, 64
        %v7761 = vpop.permute.xlu0 %7760
        %7762 = vrot.lane.b32.xlu0 %v7481, 64
        %v7763 = vpop.permute.xlu0 %7762
        %7764 = vrot.lane.b32.xlu0 %v7515, 64
        %v7765 = vpop.permute.xlu0 %7764
        %7766 = vrot.lane.b32.xlu0 %v7518, 64
        %v7767 = vpop.permute.xlu0 %7766
        %7778 = vrot.lane.b32.xlu0 %v7484, 96
        %v7779 = vpop.permute.xlu0 %7778
        %7780 = vrot.lane.b32.xlu0 %v7485, 96
        %v7781 = vpop.permute.xlu0 %7780
        %7782 = vrot.lane.b32.xlu0 %v7486, 96
        %v7783 = vpop.permute.xlu0 %7782
        %7784 = vrot.lane.b32.xlu0 %v7487, 96
        %v7785 = vpop.permute.xlu0 %7784
        %7786 = vrot.lane.b32.xlu0 %v7488, 96
        %v7787 = vpop.permute.xlu0 %7786
        %7788 = vrot.lane.b32.xlu0 %v7489, 96
        %v7789 = vpop.permute.xlu0 %7788
        %7790 = vrot.lane.b32.xlu0 %v7516, 96
        %v7791 = vpop.permute.xlu0 %7790
        %7792 = vrot.lane.b32.xlu0 %v7519, 96
        %v7793 = vpop.permute.xlu0 %7792
        %7810 = vrot.lane.b32.xlu0 %v7500, 32
        %v7811 = vpop.permute.xlu0 %7810
        %7812 = vrot.lane.b32.xlu0 %v7501, 32
        %v7813 = vpop.permute.xlu0 %7812
        %7814 = vrot.lane.b32.xlu0 %v7502, 32
        %v7815 = vpop.permute.xlu0 %7814
        %7816 = vrot.lane.b32.xlu0 %v7503, 32
        %v7817 = vpop.permute.xlu0 %7816
        %7818 = vrot.lane.b32.xlu0 %v7504, 32
        %v7819 = vpop.permute.xlu0 %7818
        %7820 = vrot.lane.b32.xlu0 %v7505, 32
        %v7821 = vpop.permute.xlu0 %7820
        %7822 = vrot.lane.b32.xlu0 %v7522, 32
        %v7823 = vpop.permute.xlu0 %7822
        %7824 = vrot.lane.b32.xlu0 %v7523, 32
        %v7825 = vpop.permute.xlu0 %7824
        %7836 = vrot.lane.b32.xlu0 %v7508, 64
        %v7837 = vpop.permute.xlu0 %7836
        %7838 = vrot.lane.b32.xlu0 %v7509, 64
        %v7839 = vpop.permute.xlu0 %7838
        %7840 = vrot.lane.b32.xlu0 %v7510, 64
        %v7841 = vpop.permute.xlu0 %7840
        %7842 = vrot.lane.b32.xlu0 %v7511, 64
        %v7843 = vpop.permute.xlu0 %7842
        %7844 = vrot.lane.b32.xlu0 %v7512, 64
        %v7845 = vpop.permute.xlu0 %7844
        %7846 = vrot.lane.b32.xlu0 %v7513, 64
        %v7847 = vpop.permute.xlu0 %7846
        %7848 = vrot.lane.b32.xlu0 %v7524, 64
        %v7849 = vpop.permute.xlu0 %7848
        %7850 = vrot.lane.b32.xlu0 %v7525, 64
        %v7851 = vpop.permute.xlu0 %7850
        %7861 = vrot.lane.b32.xlu0 %v7469, 96
        %v7862 = vpop.permute.xlu0 %7861
        %7863 = vrot.lane.b32.xlu0 %v7470, 96
        %v7864 = vpop.permute.xlu0 %7863
        %7865 = vrot.lane.b32.xlu0 %v7471, 96
        %v7866 = vpop.permute.xlu0 %7865
        %7867 = vrot.lane.b32.xlu0 %v7472, 96
        %v7868 = vpop.permute.xlu0 %7867
        %7869 = vrot.lane.b32.xlu0 %v7473, 96
        %v7870 = vpop.permute.xlu0 %7869
        %7871 = vrot.lane.b32.xlu0 %v7514, 96
        %v7872 = vpop.permute.xlu0 %7871
        %7873 = vrot.lane.b32.xlu0 %v7517, 96
        %v7874 = vpop.permute.xlu0 %7873
        %7875 = vrot.lane.b32.xlu0 %v7526, 96
        %v7876 = vpop.permute.xlu0 %7875
        %v7885 = vsel %vm1078, %v7466, %v7550
        %v7886 = vsel %vm1078, %v7467, %v7552
        %v7887 = vsel %vm1078, %v7468, %v7554
        %v7888 = vsel %vm1078, %v7469, %v7556
        %v7889 = vsel %vm1078, %v7470, %v7558
        %v7890 = vsel %vm1078, %v7471, %v7560
        %v7891 = vsel %vm1078, %v7472, %v7562
        %v7892 = vsel %vm1078, %v7473, %v7564
        %v7893 = vsel %vm1362, %v7885, %v7582
        %v7894 = vsel %vm1362, %v7886, %v7584
        %v7895 = vsel %vm1362, %v7887, %v7586
        %v7896 = vsel %vm1362, %v7888, %v7588
        %v7897 = vsel %vm1362, %v7889, %v7590
        %v7898 = vsel %vm1362, %v7890, %v7592
        %v7899 = vsel %vm1362, %v7891, %v7594
        %v7900 = vsel %vm1362, %v7892, %v7596
        %v7901 = vsel %vm2347, %v7893, %v7614
        %v7902 = vsel %vm2347, %v7894, %v7616
        %v7903 = vsel %vm2347, %v7895, %v7618
        %v7904 = vsel %vm2347, %v7896, %v7620
        %v7905 = vsel %vm2347, %v7897, %v7622
        %v7906 = vsel %vm2347, %v7898, %v7624
        %v7907 = vsel %vm2347, %v7899, %v7626
        %v7908 = vsel %vm2347, %v7900, %v7628
        %v7909 = vsel %vm1078, %v7498, %v7646
        %v7910 = vsel %vm1078, %v7499, %v7648
        %v7911 = vsel %vm1078, %v7500, %v7650
        %v7912 = vsel %vm1078, %v7501, %v7652
        %v7913 = vsel %vm1078, %v7502, %v7654
        %v7914 = vsel %vm1078, %v7503, %v7656
        %v7915 = vsel %vm1078, %v7504, %v7658
        %v7916 = vsel %vm1078, %v7505, %v7660
        %v7917 = vsel %vm1362, %v7909, %v7678
        %v7918 = vsel %vm1362, %v7910, %v7680
        %v7919 = vsel %vm1362, %v7911, %v7682
        %v7920 = vsel %vm1362, %v7912, %v7684
        %v7921 = vsel %vm1362, %v7913, %v7686
        %v7922 = vsel %vm1362, %v7914, %v7688
        %v7923 = vsel %vm1362, %v7915, %v7690
        %v7924 = vsel %vm1362, %v7916, %v7692
        %v7925 = vsel %vm2347, %v7917, %v7703
        %v7926 = vsel %vm2347, %v7918, %v7705
        %v7927 = vsel %vm2347, %v7919, %v7707
        %v7928 = vsel %vm2347, %v7920, %v7709
        %v7929 = vsel %vm2347, %v7921, %v7711
        %v7930 = vsel %vm2347, %v7922, %v7713
        %v7931 = vsel %vm2347, %v7923, %v7715
        %v7932 = vsel %vm2347, %v7924, %v7717
        %v7933 = vsel %vm1078, %v7483, %v7728
        %v7934 = vsel %vm1078, %v7484, %v7730
        %v7935 = vsel %vm1078, %v7485, %v7732
        %v7936 = vsel %vm1078, %v7486, %v7734
        %v7937 = vsel %vm1078, %v7487, %v7736
        %v7938 = vsel %vm1078, %v7488, %v7738
        %v7939 = vsel %vm1078, %v7489, %v7740
        %v7940 = vsel %vm1078, %v7516, %v7742
        %v7941 = vsel %vm1362, %v7933, %v7753
        %v7942 = vsel %vm1362, %v7934, %v7755
        %v7943 = vsel %vm1362, %v7935, %v7757
        %v7944 = vsel %vm1362, %v7936, %v7759
        %v7945 = vsel %vm1362, %v7937, %v7761
        %v7946 = vsel %vm1362, %v7938, %v7763
        %v7947 = vsel %vm1362, %v7939, %v7765
        %v7948 = vsel %vm1362, %v7940, %v7767
        %v7949 = vsel %vm2347, %v7941, %v7779
        %v7950 = vsel %vm2347, %v7942, %v7781
        %v7951 = vsel %vm2347, %v7943, %v7783
        %v7952 = vsel %vm2347, %v7944, %v7785
        %v7953 = vsel %vm2347, %v7945, %v7787
        %v7954 = vsel %vm2347, %v7946, %v7789
        %v7955 = vsel %vm2347, %v7947, %v7791
        %v7956 = vsel %vm2347, %v7948, %v7793
        %v7957 = vsel %vm1078, %v7492, %v7811
        %v7958 = vsel %vm1078, %v7493, %v7813
        %v7959 = vsel %vm1078, %v7494, %v7815
        %v7960 = vsel %vm1078, %v7495, %v7817
        %v7961 = vsel %vm1078, %v7496, %v7819
        %v7962 = vsel %vm1078, %v7497, %v7821
        %v7963 = vsel %vm1078, %v7520, %v7823
        %v7964 = vsel %vm1078, %v7521, %v7825
        %v7965 = vsel %vm1362, %v7957, %v7837
        %v7966 = vsel %vm1362, %v7958, %v7839
        %v7967 = vsel %vm1362, %v7959, %v7841
        %v7968 = vsel %vm1362, %v7960, %v7843
        %v7969 = vsel %vm1362, %v7961, %v7845
        %v7970 = vsel %vm1362, %v7962, %v7847
        %v7971 = vsel %vm1362, %v7963, %v7849
        %v7972 = vsel %vm1362, %v7964, %v7851
        %v7973 = vsel %vm2347, %v7965, %v7862
        %v7974 = vsel %vm2347, %v7966, %v7864
        %v7975 = vsel %vm2347, %v7967, %v7866
        %v7976 = vsel %vm2347, %v7968, %v7868
        %v7977 = vsel %vm2347, %v7969, %v7870
        %v7978 = vsel %vm2347, %v7970, %v7872
        %v7979 = vsel %vm2347, %v7971, %v7874
        %v7980 = vsel %vm2347, %v7972, %v7876
        %7982 = vrot.lane.b32.xlu0 %v7485, 32
        %v7983 = vpop.permute.xlu0 %7982
        %7984 = vrot.lane.b32.xlu0 %v7486, 32
        %v7985 = vpop.permute.xlu0 %7984
        %7986 = vrot.lane.b32.xlu0 %v7487, 32
        %v7987 = vpop.permute.xlu0 %7986
        %7988 = vrot.lane.b32.xlu0 %v7488, 32
        %v7989 = vpop.permute.xlu0 %7988
        %7990 = vrot.lane.b32.xlu0 %v7489, 32
        %v7991 = vpop.permute.xlu0 %7990
        %7992 = vrot.lane.b32.xlu0 %v7516, 32
        %v7993 = vpop.permute.xlu0 %7992
        %7994 = vrot.lane.b32.xlu0 %v7519, 32
        %v7995 = vpop.permute.xlu0 %7994
        %7996 = vrot.lane.b32.xlu0 %v7528, 32
        %v7997 = vpop.permute.xlu0 %7996
        %8007 = vrot.lane.b32.xlu0 %v7517, 64
        %v8008 = vpop.permute.xlu0 %8007
        %8009 = vrot.lane.b32.xlu0 %v7526, 64
        %v8010 = vpop.permute.xlu0 %8009
        %8011 = vrot.lane.b32.xlu0 %v7529, 64
        %v8012 = vpop.permute.xlu0 %8011
        %8018 = vrot.lane.b32.xlu0 %v7518, 96
        %v8019 = vpop.permute.xlu0 %8018
        %8020 = vrot.lane.b32.xlu0 %v7527, 96
        %v8021 = vpop.permute.xlu0 %8020
        %8022 = vrot.lane.b32.xlu0 %v7530, 96
        %v8023 = vpop.permute.xlu0 %8022
        %8031 = vrot.lane.b32.xlu0 %v7494, 32
        %v8032 = vpop.permute.xlu0 %8031
        %8033 = vrot.lane.b32.xlu0 %v7495, 32
        %v8034 = vpop.permute.xlu0 %8033
        %8035 = vrot.lane.b32.xlu0 %v7496, 32
        %v8036 = vpop.permute.xlu0 %8035
        %8037 = vrot.lane.b32.xlu0 %v7497, 32
        %v8038 = vpop.permute.xlu0 %8037
        %8039 = vrot.lane.b32.xlu0 %v7520, 32
        %v8040 = vpop.permute.xlu0 %8039
        %8041 = vrot.lane.b32.xlu0 %v7521, 32
        %v8042 = vpop.permute.xlu0 %8041
        %8043 = vrot.lane.b32.xlu0 %v7532, 32
        %v8044 = vpop.permute.xlu0 %8043
        %8045 = vrot.lane.b32.xlu0 %v7533, 32
        %v8046 = vpop.permute.xlu0 %8045
        %8057 = vrot.lane.b32.xlu0 %v7502, 64
        %v8058 = vpop.permute.xlu0 %8057
        %8059 = vrot.lane.b32.xlu0 %v7503, 64
        %v8060 = vpop.permute.xlu0 %8059
        %8061 = vrot.lane.b32.xlu0 %v7504, 64
        %v8062 = vpop.permute.xlu0 %8061
        %8063 = vrot.lane.b32.xlu0 %v7505, 64
        %v8064 = vpop.permute.xlu0 %8063
        %8065 = vrot.lane.b32.xlu0 %v7522, 64
        %v8066 = vpop.permute.xlu0 %8065
        %8067 = vrot.lane.b32.xlu0 %v7523, 64
        %v8068 = vpop.permute.xlu0 %8067
        %8069 = vrot.lane.b32.xlu0 %v7534, 64
        %v8070 = vpop.permute.xlu0 %8069
        %8071 = vrot.lane.b32.xlu0 %v7535, 64
        %v8072 = vpop.permute.xlu0 %8071
        %8083 = vrot.lane.b32.xlu0 %v7510, 96
        %v8084 = vpop.permute.xlu0 %8083
        %8085 = vrot.lane.b32.xlu0 %v7511, 96
        %v8086 = vpop.permute.xlu0 %8085
        %8087 = vrot.lane.b32.xlu0 %v7512, 96
        %v8088 = vpop.permute.xlu0 %8087
        %8089 = vrot.lane.b32.xlu0 %v7513, 96
        %v8090 = vpop.permute.xlu0 %8089
        %8091 = vrot.lane.b32.xlu0 %v7524, 96
        %v8092 = vpop.permute.xlu0 %8091
        %8093 = vrot.lane.b32.xlu0 %v7525, 96
        %v8094 = vpop.permute.xlu0 %8093
        %8095 = vrot.lane.b32.xlu0 %v7536, 96
        %v8096 = vpop.permute.xlu0 %8095
        %8097 = vrot.lane.b32.xlu0 %v7537, 96
        %v8098 = vpop.permute.xlu0 %8097
        %8108 = vrot.lane.b32.xlu0 %v7515, 32
        %v8109 = vpop.permute.xlu0 %8108
        %8110 = vrot.lane.b32.xlu0 %v7518, 32
        %v8111 = vpop.permute.xlu0 %8110
        %8112 = vrot.lane.b32.xlu0 %v7527, 32
        %v8113 = vpop.permute.xlu0 %8112
        %8114 = vrot.lane.b32.xlu0 %v7530, 32
        %v8115 = vpop.permute.xlu0 %8114
        %8116 = vrot.lane.b32.xlu0 %v7539, 32
        %v8117 = vpop.permute.xlu0 %8116
        %8125 = vrot.lane.b32.xlu0 %v7516, 64
        %v8126 = vpop.permute.xlu0 %8125
        %8127 = vrot.lane.b32.xlu0 %v7519, 64
        %v8128 = vpop.permute.xlu0 %8127
        %8129 = vrot.lane.b32.xlu0 %v7528, 64
        %v8130 = vpop.permute.xlu0 %8129
        %8131 = vrot.lane.b32.xlu0 %v7531, 64
        %v8132 = vpop.permute.xlu0 %8131
        %8133 = vrot.lane.b32.xlu0 %v7540, 64
        %v8134 = vpop.permute.xlu0 %8133
        %v8140 = vsel %vm1078, %v7477, %v7983
        %v8141 = vsel %vm1078, %v7478, %v7985
        %v8142 = vsel %vm1078, %v7479, %v7987
        %v8143 = vsel %vm1078, %v7480, %v7989
        %v8144 = vsel %vm1078, %v7481, %v7991
        %v8145 = vsel %vm1078, %v7515, %v7993
        %v8146 = vsel %vm1078, %v7518, %v7995
        %v8147 = vsel %vm1078, %v7527, %v7997
        %v8148 = vsel %vm1362, %v8140, %v7684
        %v8149 = vsel %vm1362, %v8141, %v7686
        %v8150 = vsel %vm1362, %v8142, %v7688
        %v8151 = vsel %vm1362, %v8143, %v7690
        %v8152 = vsel %vm1362, %v8144, %v7692
        %v8153 = vsel %vm1362, %v8145, %v8008
        %v8154 = vsel %vm1362, %v8146, %v8010
        %v8155 = vsel %vm1362, %v8147, %v8012
        %v8156 = vsel %vm2347, %v8148, %v7709
        %v8157 = vsel %vm2347, %v8149, %v7711
        %v8158 = vsel %vm2347, %v8150, %v7713
        %v8159 = vsel %vm2347, %v8151, %v7715
        %v8160 = vsel %vm2347, %v8152, %v7717
        %v8161 = vsel %vm2347, %v8153, %v8019
        %v8162 = vsel %vm2347, %v8154, %v8021
        %v8163 = vsel %vm2347, %v8155, %v8023
        %v8164 = vsel %vm1078, %v7486, %v8032
        %v8165 = vsel %vm1078, %v7487, %v8034
        %v8166 = vsel %vm1078, %v7488, %v8036
        %v8167 = vsel %vm1078, %v7489, %v8038
        %v8168 = vsel %vm1078, %v7516, %v8040
        %v8169 = vsel %vm1078, %v7519, %v8042
        %v8170 = vsel %vm1078, %v7528, %v8044
        %v8171 = vsel %vm1078, %v7531, %v8046
        %v8172 = vsel %vm1362, %v8164, %v8058
        %v8173 = vsel %vm1362, %v8165, %v8060
        %v8174 = vsel %vm1362, %v8166, %v8062
        %v8175 = vsel %vm1362, %v8167, %v8064
        %v8176 = vsel %vm1362, %v8168, %v8066
        %v8177 = vsel %vm1362, %v8169, %v8068
        %v8178 = vsel %vm1362, %v8170, %v8070
        %v8179 = vsel %vm1362, %v8171, %v8072
        %v8180 = vsel %vm2347, %v8172, %v8084
        %v8181 = vsel %vm2347, %v8173, %v8086
        %v8182 = vsel %vm2347, %v8174, %v8088
        %v8183 = vsel %vm2347, %v8175, %v8090
        %v8184 = vsel %vm2347, %v8176, %v8092
        %v8185 = vsel %vm2347, %v8177, %v8094
        %v8186 = vsel %vm2347, %v8178, %v8096
        %v8187 = vsel %vm2347, %v8179, %v8098
        %v8188 = vsel %vm1078, %v7514, %v8109
        %v8189 = vsel %vm1078, %v7517, %v8111
        %v8190 = vsel %vm1078, %v7526, %v8113
        %v8191 = vsel %vm1078, %v7529, %v8115
        %v8192 = vsel %vm1078, %v7538, %v8117
        %v8193 = vsel %vm1362, %v8188, %v8126
        %v8194 = vsel %vm1362, %v8189, %v8128
        %v8195 = vsel %vm1362, %v8190, %v8130
        %v8196 = vsel %vm1362, %v8191, %v8132
        %v8197 = vsel %vm1362, %v8192, %v8134
        %v8198 = vmul.f32 %v7901, %v2633
        %v8199 = vmul.f32 %v7925, %v2634
        %v8200 = vmul.f32 %v7949, %v2635
        %v8201 = vmul.f32 %v7973, %v2636
        %v8202 = vmul.f32 %v8156, %v2637
        %v8203 = vmul.f32 %v8180, %v2638
        %v8204 = vmul.f32 %v7898, %v2639
        %v8205 = vmul.f32 %v7902, %v2640
        %v8206 = vmul.f32 %v7926, %v2641
        %v8207 = vmul.f32 %v7950, %v2642
        %v8208 = vmul.f32 %v7974, %v2643
        %v8209 = vmul.f32 %v8157, %v2644
        %v8210 = vmul.f32 %v8181, %v2645
        %v8211 = vmul.f32 %v7899, %v2646
        %v8212 = vmul.f32 %v7903, %v2647
        %v8213 = vmul.f32 %v7927, %v2648
        %v8214 = vmul.f32 %v7951, %v2649
        %v8215 = vmul.f32 %v7975, %v2650
        %v8216 = vmul.f32 %v8158, %v2651
        %v8217 = vmul.f32 %v8182, %v2652
        %v8218 = vmul.f32 %v7900, %v2653
        %v8219 = vmul.f32 %v7904, %v2654
        %v8220 = vmul.f32 %v7928, %v2655
        %v8221 = vmul.f32 %v7952, %v2656
        %v8222 = vmul.f32 %v7976, %v2657
        %v8223 = vmul.f32 %v8159, %v2658
        %v8224 = vmul.f32 %v8183, %v2659
        %v8225 = vmul.f32 %v8193, %v2660
        %v8226 = vmul.f32 %v7905, %v2661
        %v8227 = vmul.f32 %v7929, %v2662
        %v8228 = vmul.f32 %v7953, %v2663
        %v8229 = vmul.f32 %v7977, %v2664
        %v8230 = vmul.f32 %v8160, %v2665
        %v8231 = vmul.f32 %v8184, %v2666
        %v8232 = vmul.f32 %v8194, %v2667
        %v8233 = vmul.f32 %v7906, %v2668
        %v8234 = vmul.f32 %v7930, %v2669
        %v8235 = vmul.f32 %v7954, %v2670
        %v8236 = vmul.f32 %v7978, %v2671
        %v8237 = vmul.f32 %v8161, %v2672
        %v8238 = vmul.f32 %v8185, %v2673
        %v8239 = vmul.f32 %v8195, %v2674
        %v8240 = vmul.f32 %v7907, %v2675
        %v8241 = vmul.f32 %v7931, %v2676
        %v8242 = vmul.f32 %v7955, %v2677
        %v8243 = vmul.f32 %v7979, %v2678
        %v8244 = vmul.f32 %v8162, %v2679
        %v8245 = vmul.f32 %v8186, %v2680
        %v8246 = vmul.f32 %v8196, %v2681
        %v8247 = vmul.f32 %v7908, %v2682
        %v8248 = vmul.f32 %v7932, %v2683
        %v8249 = vmul.f32 %v7956, %v2684
        %v8250 = vmul.f32 %v7980, %v2685
        %v8251 = vmul.f32 %v8163, %v2686
        %v8252 = vmul.f32 %v8187, %v2687
        %v8253 = vmul.f32 %v8197, %v2688
        %v8254 = vld [vmem:[%s61] sm:$0xf]
        %v8255 = vld [vmem:[%s61 + $0x4] sm:$0xf]
        %v8256 = vld [vmem:[%s61 + $0x8] sm:$0xf]
        %v8257 = vld [vmem:[%s61 + $0xc] sm:$0xf]
        %v8258 = vld [vmem:[%s61 + $0x10] sm:$0xf]
        %v8259 = vld [vmem:[%s61 + $0x14] sm:$0xf]
        %v8260 = vld [vmem:[%s61 + $0x18] sm:$0xf]
        %v8261 = vld [vmem:[%s61 + $0x1c] sm:$0xf]
        %v8262 = vld [vmem:[%s61 + $0x20] sm:$0xf]
        %v8263 = vld [vmem:[%s61 + $0x24] sm:$0xf]
        %v8264 = vld [vmem:[%s61 + $0x28] sm:$0xf]
        %v8265 = vld [vmem:[%s61 + $0x2c] sm:$0xf]
        %v8266 = vld [vmem:[%s61 + $0x30] sm:$0xf]
        %v8267 = vld [vmem:[%s61 + $0x34] sm:$0xf]
        %v8268 = vld [vmem:[%s61 + $0x38] sm:$0xf]
        %v8269 = vld [vmem:[%s61 + $0x3c] sm:$0xf]
        %v8270 = vld [vmem:[%s61 + $0x40] sm:$0xf]
        %v8271 = vld [vmem:[%s61 + $0x44] sm:$0xf]
        %v8272 = vld [vmem:[%s61 + $0x48] sm:$0xf]
        %v8273 = vld [vmem:[%s61 + $0x4c] sm:$0xf]
        %v8274 = vld [vmem:[%s61 + $0x50] sm:$0xf]
        %v8275 = vld [vmem:[%s61 + $0x54] sm:$0xf]
        %v8276 = vld [vmem:[%s61 + $0x58] sm:$0xf]
        %v8277 = vld [vmem:[%s61 + $0x5c] sm:$0xf]
        %v8278 = vld [vmem:[%s61 + $0x60] sm:$0xf]
        %v8279 = vld [vmem:[%s61 + $0x64] sm:$0xf]
        %v8280 = vld [vmem:[%s61 + $0x68] sm:$0xf]
        %v8281 = vld [vmem:[%s61 + $0x6c] sm:$0xf]
        %v8282 = vld [vmem:[%s61 + $0x70] sm:$0xf]
        %v8283 = vld [vmem:[%s61 + $0x74] sm:$0xf]
        %v8284 = vld [vmem:[%s61 + $0x78] sm:$0xf]
        %v8285 = vld [vmem:[%s61 + $0x7c] sm:$0xf]
        %v8286 = vld [vmem:[%s61 + $0x80] sm:$0xf]
        %v8287 = vld [vmem:[%s61 + $0x84] sm:$0xf]
        %v8288 = vld [vmem:[%s61 + $0x88] sm:$0xf]
        %v8289 = vld [vmem:[%s61 + $0x8c] sm:$0xf]
        %v8290 = vld [vmem:[%s61 + $0x90] sm:$0xf]
        %v8291 = vld [vmem:[%s61 + $0x94] sm:$0xf]
        %v8292 = vld [vmem:[%s61 + $0x98] sm:$0xf]
        %v8293 = vld [vmem:[%s61 + $0x9c] sm:$0xf]
        %v8294 = vld [vmem:[%s61 + $0xa0] sm:$0xf]
        %v8295 = vld [vmem:[%s61 + $0xa4] sm:$0xf]
        %v8296 = vld [vmem:[%s61 + $0xa8] sm:$0xf]
        %v8297 = vld [vmem:[%s61 + $0xac] sm:$0xf]
        %v8298 = vld [vmem:[%s61 + $0xb0] sm:$0xf]
        %v8299 = vld [vmem:[%s61 + $0xb4] sm:$0xf]
        %v8300 = vld [vmem:[%s61 + $0xb8] sm:$0xf]
        %v8301 = vld [vmem:[%s61 + $0xbc] sm:$0xf]
        %v8302 = vld [vmem:[%s61 + $0xc0] sm:$0xf]
        %v8303 = vld [vmem:[%s61 + $0xc4] sm:$0xf]
        %v8304 = vld [vmem:[%s61 + $0xc8] sm:$0xf]
        %v8305 = vld [vmem:[%s61 + $0xcc] sm:$0xf]
        %v8306 = vld [vmem:[%s61 + $0xd0] sm:$0xf]
        %v8307 = vld [vmem:[%s61 + $0xd4] sm:$0xf]
        %v8308 = vld [vmem:[%s61 + $0xd8] sm:$0xf]
        %v8309 = vld [vmem:[%s61 + $0xdc] sm:$0xf]
        %v8310 = vld [vmem:[%s61 + $0xe0] sm:$0xf]
        %v8311 = vld [vmem:[%s61 + $0xe4] sm:$0xf]
        %v8312 = vld [vmem:[%s61 + $0xe8] sm:$0xf]
        %v8313 = vld [vmem:[%s61 + $0xec] sm:$0xf]
        %v8314 = vld [vmem:[%s61 + $0xf0] sm:$0xf]
        %v8315 = vld [vmem:[%s61 + $0xf4] sm:$0xf]
        %v8316 = vld [vmem:[%s61 + $0xf8] sm:$0xf]
        %v8317 = vld [vmem:[%s61 + $0xfc] sm:$0xf]
        %v8318 = vld [vmem:[%s61 + $0x100] sm:$0xf]
        %v8319 = vld [vmem:[%s61 + $0x104] sm:$0xf]
        %v8320 = vld [vmem:[%s61 + $0x108] sm:$0xf]
        %v8321 = vld [vmem:[%s61 + $0x10c] sm:$0xf]
        %v8322 = vld [vmem:[%s61 + $0x110] sm:$0xf]
        %v8323 = vld [vmem:[%s61 + $0x114] sm:$0xf]
        %v8324 = vld [vmem:[%s61 + $0x118] sm:$0xf]
        %v8325 = vld [vmem:[%s61 + $0x11c] sm:$0xf]
        %v8326 = vld [vmem:[%s61 + $0x120] sm:$0xf]
        %v8327 = vld [vmem:[%s61 + $0x124] sm:$0xf]
        %v8328 = vld [vmem:[%s61 + $0x128] sm:$0xf]
        %v8329 = vld [vmem:[%s61 + $0x12c] sm:$0xf]
        %v8330 = vld [vmem:[%s61 + $0x130] sm:$0xf]
        %v8331 = vld [vmem:[%s61 + $0x134] sm:$0xf]
        %v8332 = vld [vmem:[%s61 + $0x138] sm:$0xf]
        %v8333 = vld [vmem:[%s61 + $0x13c] sm:$0xf]
        %v8334 = vld [vmem:[%s61 + $0x140] sm:$0xf]
        %v8335 = vld [vmem:[%s61 + $0x144] sm:$0xf]
        %v8336 = vld [vmem:[%s61 + $0x148] sm:$0xf]
        %v8337 = vld [vmem:[%s61 + $0x14c] sm:$0xf]
        %v8338 = vld [vmem:[%s61 + $0x150] sm:$0xf]
        %v8339 = vld [vmem:[%s61 + $0x154] sm:$0xf]
        %v8340 = vld [vmem:[%s61 + $0x158] sm:$0xf]
        %v8341 = vld [vmem:[%s61 + $0x15c] sm:$0xf]
        %v8342 = vld [vmem:[%s61 + $0x160] sm:$0xf]
        %v8343 = vld [vmem:[%s61 + $0x164] sm:$0xf]
        %v8344 = vld [vmem:[%s61 + $0x168] sm:$0xf]
        %v8345 = vld [vmem:[%s61 + $0x16c] sm:$0xf]
        %v8346 = vld [vmem:[%s61 + $0x170] sm:$0xf]
        %v8347 = vld [vmem:[%s61 + $0x174] sm:$0xf]
        %v8348 = vld [vmem:[%s61 + $0x178] sm:$0xf]
        %v8349 = vld [vmem:[%s61 + $0x17c] sm:$0xf]
        %v8350 = vld [vmem:[%s61 + $0x180] sm:$0xf]
        %v8351 = vld [vmem:[%s61 + $0x184] sm:$0xf]
        %v8352 = vld [vmem:[%s61 + $0x188] sm:$0xf]
        %v8353 = vld [vmem:[%s61 + $0x18c] sm:$0xf]
        %v8354 = vld [vmem:[%s61 + $0x190] sm:$0xf]
        %v8355 = vld [vmem:[%s61 + $0x194] sm:$0xf]
        %v8356 = vld [vmem:[%s61 + $0x198] sm:$0xf]
        %v8357 = vld [vmem:[%s61 + $0x19c] sm:$0xf]
        %v8358 = vld [vmem:[%s61 + $0x1a0] sm:$0xf]
        %v8359 = vld [vmem:[%s61 + $0x1a4] sm:$0xf]
        %v8360 = vld [vmem:[%s61 + $0x1a8] sm:$0xf]
        %v8361 = vld [vmem:[%s61 + $0x1ac] sm:$0xf]
        %v8362 = vpack.c.bf16 %v8205, %v8198
        %v8363 = vpack.c.bf16 %v8206, %v8199
        %v8364 = vpack.c.bf16 %v8207, %v8200
        %v8365 = vpack.c.bf16 %v8208, %v8201
        %v8366 = vpack.c.bf16 %v8209, %v8202
        %v8367 = vpack.c.bf16 %v8210, %v8203
        %v8368 = vpack.c.bf16 %v8211, %v8204
        %v8369 = vpack.c.bf16 %v8219, %v8212
        %v8370 = vpack.c.bf16 %v8220, %v8213
        %v8371 = vpack.c.bf16 %v8221, %v8214
        %v8372 = vpack.c.bf16 %v8222, %v8215
        %v8373 = vpack.c.bf16 %v8223, %v8216
        %v8374 = vpack.c.bf16 %v8224, %v8217
        %v8375 = vpack.c.bf16 %v8225, %v8218
        %v8376 = vpack.c.bf16 %v8233, %v8226
        %v8377 = vpack.c.bf16 %v8234, %v8227
        %v8378 = vpack.c.bf16 %v8235, %v8228
        %v8379 = vpack.c.bf16 %v8236, %v8229
        %v8380 = vpack.c.bf16 %v8237, %v8230
        %v8381 = vpack.c.bf16 %v8238, %v8231
        %v8382 = vpack.c.bf16 %v8239, %v8232
        %v8383 = vpack.c.bf16 %v8247, %v8240
        %v8384 = vpack.c.bf16 %v8248, %v8241
        %v8385 = vpack.c.bf16 %v8249, %v8242
        %v8386 = vpack.c.bf16 %v8250, %v8243
        %v8387 = vpack.c.bf16 %v8251, %v8244
        %v8388 = vpack.c.bf16 %v8252, %v8245
        %v8389 = vpack.c.bf16 %v8253, %v8246
        %v8498 = vunpack.c.l.b16 %v8254
        %v8499 = vunpack.c.l.b16 %v8255
        %v8500 = vunpack.c.l.b16 %v8256
        %v8501 = vunpack.c.l.b16 %v8257
        %v8502 = vunpack.c.l.b16 %v8258
        %v8503 = vunpack.c.l.b16 %v8259
        %v8504 = vunpack.c.l.b16 %v8260
        %v8505 = vunpack.c.l.b16 %v8261
        %v8506 = vunpack.c.l.b16 %v8262
        %v8507 = vunpack.c.l.b16 %v8263
        %v8508 = vunpack.c.l.b16 %v8264
        %v8509 = vunpack.c.l.b16 %v8265
        %v8510 = vunpack.c.l.b16 %v8266
        %v8511 = vunpack.c.l.b16 %v8267
        %v8512 = vunpack.c.l.b16 %v8268
        %v8513 = vunpack.c.l.b16 %v8269
        %v8514 = vunpack.c.l.b16 %v8270
        %v8515 = vunpack.c.l.b16 %v8271
        %v8516 = vunpack.c.l.b16 %v8272
        %v8517 = vunpack.c.l.b16 %v8273
        %v8518 = vunpack.c.l.b16 %v8274
        %v8519 = vunpack.c.l.b16 %v8275
        %v8520 = vunpack.c.l.b16 %v8276
        %v8521 = vunpack.c.l.b16 %v8277
        %v8522 = vunpack.c.l.b16 %v8278
        %v8523 = vunpack.c.l.b16 %v8279
        %v8524 = vunpack.c.l.b16 %v8280
        %v8525 = vunpack.c.l.b16 %v8281
        %v8526 = vunpack.c.l.b16 %v8282
        %v8527 = vunpack.c.l.b16 %v8283
        %v8528 = vunpack.c.l.b16 %v8284
        %v8529 = vunpack.c.l.b16 %v8285
        %v8530 = vunpack.c.l.b16 %v8286
        %v8531 = vunpack.c.l.b16 %v8287
        %v8532 = vunpack.c.l.b16 %v8288
        %v8533 = vunpack.c.l.b16 %v8289
        %v8534 = vunpack.c.l.b16 %v8290
        %v8535 = vunpack.c.l.b16 %v8291
        %v8536 = vunpack.c.l.b16 %v8292
        %v8537 = vunpack.c.l.b16 %v8293
        %v8538 = vunpack.c.l.b16 %v8294
        %v8539 = vunpack.c.l.b16 %v8295
        %v8540 = vunpack.c.l.b16 %v8296
        %v8541 = vunpack.c.l.b16 %v8297
        %v8542 = vunpack.c.l.b16 %v8298
        %v8543 = vunpack.c.l.b16 %v8299
        %v8544 = vunpack.c.l.b16 %v8300
        %v8545 = vunpack.c.l.b16 %v8301
        %v8546 = vunpack.c.l.b16 %v8302
        %v8547 = vunpack.c.l.b16 %v8303
        %v8548 = vunpack.c.l.b16 %v8304
        %v8549 = vunpack.c.l.b16 %v8305
        %v8550 = vunpack.c.l.b16 %v8306
        %v8551 = vunpack.c.l.b16 %v8307
        %v8552 = vunpack.c.l.b16 %v8308
        %v8553 = vunpack.c.l.b16 %v8309
        %v8554 = vunpack.c.l.b16 %v8310
        %v8555 = vunpack.c.l.b16 %v8311
        %v8556 = vunpack.c.l.b16 %v8312
        %v8557 = vunpack.c.l.b16 %v8313
        %v8558 = vunpack.c.l.b16 %v8314
        %v8559 = vunpack.c.l.b16 %v8315
        %v8560 = vunpack.c.l.b16 %v8316
        %v8561 = vunpack.c.l.b16 %v8317
        %v8562 = vunpack.c.l.b16 %v8318
        %v8563 = vunpack.c.l.b16 %v8319
        %v8564 = vunpack.c.l.b16 %v8320
        %v8565 = vunpack.c.l.b16 %v8321
        %v8566 = vunpack.c.l.b16 %v8322
        %v8567 = vunpack.c.l.b16 %v8323
        %v8568 = vunpack.c.l.b16 %v8324
        %v8569 = vunpack.c.l.b16 %v8325
        %v8570 = vunpack.c.l.b16 %v8326
        %v8571 = vunpack.c.l.b16 %v8327
        %v8572 = vunpack.c.l.b16 %v8328
        %v8573 = vunpack.c.l.b16 %v8329
        %v8574 = vunpack.c.l.b16 %v8330
        %v8575 = vunpack.c.l.b16 %v8331
        %v8576 = vunpack.c.l.b16 %v8332
        %v8577 = vunpack.c.l.b16 %v8333
        %v8578 = vunpack.c.l.b16 %v8334
        %v8579 = vunpack.c.l.b16 %v8335
        %v8580 = vunpack.c.l.b16 %v8336
        %v8581 = vunpack.c.l.b16 %v8337
        %v8582 = vunpack.c.l.b16 %v8338
        %v8583 = vunpack.c.l.b16 %v8339
        %v8584 = vunpack.c.l.b16 %v8340
        %v8585 = vunpack.c.l.b16 %v8341
        %v8586 = vunpack.c.l.b16 %v8342
        %v8587 = vunpack.c.l.b16 %v8343
        %v8588 = vunpack.c.l.b16 %v8344
        %v8589 = vunpack.c.l.b16 %v8345
        %v8590 = vunpack.c.l.b16 %v8346
        %v8591 = vunpack.c.l.b16 %v8347
        %v8592 = vunpack.c.l.b16 %v8348
        %v8593 = vunpack.c.l.b16 %v8349
        %v8594 = vunpack.c.l.b16 %v8350
        %v8595 = vunpack.c.l.b16 %v8351
        %v8596 = vunpack.c.l.b16 %v8352
        %v8597 = vunpack.c.l.b16 %v8353
        %v8598 = vunpack.c.l.b16 %v8354
        %v8599 = vunpack.c.l.b16 %v8355
        %v8600 = vunpack.c.l.b16 %v8356
        %v8601 = vunpack.c.l.b16 %v8357
        %v8602 = vunpack.c.l.b16 %v8358
        %v8603 = vunpack.c.l.b16 %v8359
        %v8604 = vunpack.c.l.b16 %v8360
        %v8605 = vunpack.c.l.b16 %v8361
        %v8606 = vpack.c.b16 %v8499, %v8498
        %v8607 = vpack.c.b16 %v8501, %v8500
        %v8608 = vpack.c.b16 %v8503, %v8502
        %v8609 = vpack.c.b16 %v8505, %v8504
        %v8610 = vpack.c.b16 %v8507, %v8506
        %v8611 = vpack.c.b16 %v8509, %v8508
        %v8612 = vpack.c.b16 %v8511, %v8510
        %v8613 = vpack.c.b16 %v8513, %v8512
        %v8614 = vpack.c.b16 %v8515, %v8514
        %v8615 = vpack.c.b16 %v8517, %v8516
        %v8616 = vpack.c.b16 %v8519, %v8518
        %v8617 = vpack.c.b16 %v8521, %v8520
        %v8618 = vpack.c.b16 %v8523, %v8522
        %v8619 = vpack.c.b16 %v8525, %v8524
        %v8620 = vpack.c.b16 %v8527, %v8526
        %v8621 = vpack.c.b16 %v8529, %v8528
        %v8622 = vpack.c.b16 %v8531, %v8530
        %v8623 = vpack.c.b16 %v8533, %v8532
        %v8624 = vpack.c.b16 %v8535, %v8534
        %v8625 = vpack.c.b16 %v8537, %v8536
        %v8626 = vpack.c.b16 %v8539, %v8538
        %v8627 = vpack.c.b16 %v8541, %v8540
        %v8628 = vpack.c.b16 %v8543, %v8542
        %v8629 = vpack.c.b16 %v8545, %v8544
        %v8630 = vpack.c.b16 %v8547, %v8546
        %v8631 = vpack.c.b16 %v8549, %v8548
        %v8632 = vpack.c.b16 %v8551, %v8550
        %v8633 = vpack.c.b16 %v8553, %v8552
        %v8634 = vpack.c.b16 %v8555, %v8554
        %v8635 = vpack.c.b16 %v8557, %v8556
        %v8636 = vpack.c.b16 %v8559, %v8558
        %v8637 = vpack.c.b16 %v8561, %v8560
        %v8638 = vpack.c.b16 %v8563, %v8562
        %v8639 = vpack.c.b16 %v8565, %v8564
        %v8640 = vpack.c.b16 %v8567, %v8566
        %v8641 = vpack.c.b16 %v8569, %v8568
        %v8642 = vpack.c.b16 %v8571, %v8570
        %v8643 = vpack.c.b16 %v8573, %v8572
        %v8644 = vpack.c.b16 %v8575, %v8574
        %v8645 = vpack.c.b16 %v8577, %v8576
        %v8646 = vpack.c.b16 %v8579, %v8578
        %v8647 = vpack.c.b16 %v8581, %v8580
        %v8648 = vpack.c.b16 %v8583, %v8582
        %v8649 = vpack.c.b16 %v8585, %v8584
        %v8650 = vpack.c.b16 %v8587, %v8586
        %v8651 = vpack.c.b16 %v8589, %v8588
        %v8652 = vpack.c.b16 %v8591, %v8590
        %v8653 = vpack.c.b16 %v8593, %v8592
        %v8654 = vpack.c.b16 %v8595, %v8594
        %v8655 = vpack.c.b16 %v8597, %v8596
        %v8656 = vpack.c.b16 %v8599, %v8598
        %v8657 = vpack.c.b16 %v8601, %v8600
        %v8658 = vpack.c.b16 %v8603, %v8602
        %v8659 = vpack.c.b16 %v8605, %v8604
        %v8715 = vsel %vm2347, %v8368, 0
        %v8718 = vsel %vm2347, %v8375, 0
        %v8721 = vsel %vm2347, %v8382, 0
        %v8724 = vsel %vm2347, %v8389, 0
        %8726 = vmatprep.subr.bf16.mxu0 0
        %8727 = vmatpush1.bf16.msra.mxu0 %v8613
        %8728 = vmatprep.subr.bf16.mxu0 0
        %8729 = vmatpush1.bf16.msra.mxu0 %v8612
        %8730 = vmatprep.subr.bf16.mxu0 0
        %8731 = vmatpush1.bf16.msra.mxu0 %v8611
        %8732 = vmatprep.subr.bf16.mxu0 0
        %8733 = vmatpush1.bf16.msra.mxu0 %v8610
        %8734 = vmatprep.subr.bf16.mxu0 0
        %8735 = vmatpush1.bf16.msra.mxu0 %v8609
        %8736 = vmatprep.subr.bf16.mxu0 0
        %8737 = vmatpush1.bf16.msra.mxu0 %v8608
        %8738 = vmatprep.subr.bf16.mxu0 0
        %8739 = vmatpush1.bf16.msra.mxu0 %v8607
        %8740 = vmatprep.subr.bf16.mxu0 0
        %8741 = vmatpush1.bf16.msra.mxu0 %v8606
        %8742 = vmatprep.subr.bf16.mxu0 0
        %8743 = vmatpush2.bf16.msra.mxu0 %v8621
        %8744 = vmatprep.subr.bf16.mxu0 0
        %8745 = vmatpush2.bf16.msra.mxu0 %v8620
        %8746 = vmatprep.subr.bf16.mxu0 0
        %8747 = vmatpush2.bf16.msra.mxu0 %v8619
        %8748 = vmatprep.subr.bf16.mxu0 0
        %8749 = vmatpush2.bf16.msra.mxu0 %v8618
        %8750 = vmatprep.subr.bf16.mxu0 0
        %8751 = vmatpush2.bf16.msra.mxu0 %v8617
        %8752 = vmatprep.subr.bf16.mxu0 0
        %8753 = vmatpush2.bf16.msra.mxu0 %v8616
        %8754 = vmatprep.subr.bf16.mxu0 0
        %8755 = vmatpush2.bf16.msra.mxu0 %v8615
        %8756 = vmatprep.subr.bf16.mxu0 0
        %8757 = vmatpush2.bf16.msra.mxu0 %v8614
        %8758 = vmatprep.mubr.bf16.mxu0 %v8363
        %8759 = vmatmul.mubr.bf16.gmra.mxu0 %v8362
        %v8760 = vpop.f32.mrf.mxu0
        %v8761 = vadd.f32 0.0, %v8760
        %v8762 = vpop.f32.mrf.mxu0
        %v8763 = vpop.f32.mrf.mxu0
        %v8764 = vadd.f32 0.0, %v8763
        %v8765 = vpop.f32.mrf.mxu0
        %8766 = vmatprep.mubr.bf16.mxu0 %v8370
        %8767 = vmatmul.mubr.bf16.gmra.mxu0 %v8369
        %v8768 = vpop.f32.mrf.mxu0
        %v8769 = vadd.f32 0.0, %v8768
        %v8770 = vpop.f32.mrf.mxu0
        %v8771 = vpop.f32.mrf.mxu0
        %v8772 = vadd.f32 0.0, %v8771
        %v8773 = vpop.f32.mrf.mxu0
        %8774 = vmatprep.mubr.bf16.mxu0 %v8377
        %8775 = vmatmul.mubr.bf16.gmra.mxu0 %v8376
        %v8776 = vpop.f32.mrf.mxu0
        %v8777 = vadd.f32 0.0, %v8776
        %v8778 = vpop.f32.mrf.mxu0
        %v8779 = vpop.f32.mrf.mxu0
        %v8780 = vadd.f32 0.0, %v8779
        %v8781 = vpop.f32.mrf.mxu0
        %8782 = vmatprep.mubr.bf16.mxu0 %v8384
        %8783 = vmatmul.mubr.bf16.gmra.mxu0 %v8383
        %v8784 = vpop.f32.mrf.mxu0
        %v8785 = vadd.f32 0.0, %v8784
        %v8786 = vpop.f32.mrf.mxu0
        %v8787 = vpop.f32.mrf.mxu0
        %v8788 = vadd.f32 0.0, %v8787
        %v8789 = vpop.f32.mrf.mxu0
        %8790 = vdwg.mxu0
        %8791 = vmatprep.subr.bf16.mxu0 0
        %8792 = vmatpush1.bf16.msra.mxu0 %v8629
        %8793 = vmatprep.subr.bf16.mxu0 0
        %8794 = vmatpush1.bf16.msra.mxu0 %v8628
        %8795 = vmatprep.subr.bf16.mxu0 0
        %8796 = vmatpush1.bf16.msra.mxu0 %v8627
        %8797 = vmatprep.subr.bf16.mxu0 0
        %8798 = vmatpush1.bf16.msra.mxu0 %v8626
        %8799 = vmatprep.subr.bf16.mxu0 0
        %8800 = vmatpush1.bf16.msra.mxu0 %v8625
        %8801 = vmatprep.subr.bf16.mxu0 0
        %8802 = vmatpush1.bf16.msra.mxu0 %v8624
        %8803 = vmatprep.subr.bf16.mxu0 0
        %8804 = vmatpush1.bf16.msra.mxu0 %v8623
        %8805 = vmatprep.subr.bf16.mxu0 0
        %8806 = vmatpush1.bf16.msra.mxu0 %v8622
        %8807 = vmatprep.subr.bf16.mxu0 0
        %8808 = vmatpush2.bf16.msra.mxu0 %v8637
        %8809 = vmatprep.subr.bf16.mxu0 0
        %8810 = vmatpush2.bf16.msra.mxu0 %v8636
        %8811 = vmatprep.subr.bf16.mxu0 0
        %8812 = vmatpush2.bf16.msra.mxu0 %v8635
        %8813 = vmatprep.subr.bf16.mxu0 0
        %8814 = vmatpush2.bf16.msra.mxu0 %v8634
        %8815 = vmatprep.subr.bf16.mxu0 0
        %8816 = vmatpush2.bf16.msra.mxu0 %v8633
        %8817 = vmatprep.subr.bf16.mxu0 0
        %8818 = vmatpush2.bf16.msra.mxu0 %v8632
        %8819 = vmatprep.subr.bf16.mxu0 0
        %8820 = vmatpush2.bf16.msra.mxu0 %v8631
        %8821 = vmatprep.subr.bf16.mxu0 0
        %8822 = vmatpush2.bf16.msra.mxu0 %v8630
        %8823 = vmatprep.mubr.bf16.mxu0 %v8365
        %8824 = vmatmul.mubr.bf16.gmra.mxu0 %v8364
        %v8825 = vpop.f32.mrf.mxu0
        %v8826 = vadd.f32 %v8761, %v8825
        %v8827 = vpop.f32.mrf.mxu0
        %v8828 = vpop.f32.mrf.mxu0
        %v8829 = vadd.f32 %v8764, %v8828
        %v8830 = vpop.f32.mrf.mxu0
        %8831 = vmatprep.mubr.bf16.mxu0 %v8372
        %8832 = vmatmul.mubr.bf16.gmra.mxu0 %v8371
        %v8833 = vpop.f32.mrf.mxu0
        %v8834 = vadd.f32 %v8769, %v8833
        %v8835 = vpop.f32.mrf.mxu0
        %v8836 = vpop.f32.mrf.mxu0
        %v8837 = vadd.f32 %v8772, %v8836
        %v8838 = vpop.f32.mrf.mxu0
        %8839 = vmatprep.mubr.bf16.mxu0 %v8379
        %8840 = vmatmul.mubr.bf16.gmra.mxu0 %v8378
        %v8841 = vpop.f32.mrf.mxu0
        %v8842 = vadd.f32 %v8777, %v8841
        %v8843 = vpop.f32.mrf.mxu0
        %v8844 = vpop.f32.mrf.mxu0
        %v8845 = vadd.f32 %v8780, %v8844
        %v8846 = vpop.f32.mrf.mxu0
        %8847 = vmatprep.mubr.bf16.mxu0 %v8386
        %8848 = vmatmul.mubr.bf16.gmra.mxu0 %v8385
        %v8849 = vpop.f32.mrf.mxu0
        %v8850 = vadd.f32 %v8785, %v8849
        %v8851 = vpop.f32.mrf.mxu0
        %v8852 = vpop.f32.mrf.mxu0
        %v8853 = vadd.f32 %v8788, %v8852
        %v8854 = vpop.f32.mrf.mxu0
        %8855 = vdwg.mxu0
        %8856 = vmatprep.subr.bf16.mxu0 0
        %8857 = vmatpush1.bf16.msra.mxu0 %v8645
        %8858 = vmatprep.subr.bf16.mxu0 0
        %8859 = vmatpush1.bf16.msra.mxu0 %v8644
        %8860 = vmatprep.subr.bf16.mxu0 0
        %8861 = vmatpush1.bf16.msra.mxu0 %v8643
        %8862 = vmatprep.subr.bf16.mxu0 0
        %8863 = vmatpush1.bf16.msra.mxu0 %v8642
        %8864 = vmatprep.subr.bf16.mxu0 0
        %8865 = vmatpush1.bf16.msra.mxu0 %v8641
        %8866 = vmatprep.subr.bf16.mxu0 0
        %8867 = vmatpush1.bf16.msra.mxu0 %v8640
        %8868 = vmatprep.subr.bf16.mxu0 0
        %8869 = vmatpush1.bf16.msra.mxu0 %v8639
        %8870 = vmatprep.subr.bf16.mxu0 0
        %8871 = vmatpush1.bf16.msra.mxu0 %v8638
        %8872 = vmatprep.subr.bf16.mxu0 0
        %8873 = vmatpush2.bf16.msra.mxu0 %v8653
        %8874 = vmatprep.subr.bf16.mxu0 0
        %8875 = vmatpush2.bf16.msra.mxu0 %v8652
        %8876 = vmatprep.subr.bf16.mxu0 0
        %8877 = vmatpush2.bf16.msra.mxu0 %v8651
        %8878 = vmatprep.subr.bf16.mxu0 0
        %8879 = vmatpush2.bf16.msra.mxu0 %v8650
        %8880 = vmatprep.subr.bf16.mxu0 0
        %8881 = vmatpush2.bf16.msra.mxu0 %v8649
        %8882 = vmatprep.subr.bf16.mxu0 0
        %8883 = vmatpush2.bf16.msra.mxu0 %v8648
        %8884 = vmatprep.subr.bf16.mxu0 0
        %8885 = vmatpush2.bf16.msra.mxu0 %v8647
        %8886 = vmatprep.subr.bf16.mxu0 0
        %8887 = vmatpush2.bf16.msra.mxu0 %v8646
        %8888 = vmatprep.mubr.bf16.mxu0 %v8367
        %8889 = vmatmul.mubr.bf16.gmra.mxu0 %v8366
        %v8890 = vpop.f32.mrf.mxu0
        %v8891 = vadd.f32 %v8826, %v8890
        %v8892 = vpop.f32.mrf.mxu0
        %v8893 = vpop.f32.mrf.mxu0
        %v8894 = vadd.f32 %v8829, %v8893
        %v8895 = vpop.f32.mrf.mxu0
        %8896 = vmatprep.mubr.bf16.mxu0 %v8374
        %8897 = vmatmul.mubr.bf16.gmra.mxu0 %v8373
        %v8898 = vpop.f32.mrf.mxu0
        %v8899 = vadd.f32 %v8834, %v8898
        %v8900 = vpop.f32.mrf.mxu0
        %v8901 = vpop.f32.mrf.mxu0
        %v8902 = vadd.f32 %v8837, %v8901
        %v8903 = vpop.f32.mrf.mxu0
        %8904 = vmatprep.mubr.bf16.mxu0 %v8381
        %8905 = vmatmul.mubr.bf16.gmra.mxu0 %v8380
        %v8906 = vpop.f32.mrf.mxu0
        %v8907 = vadd.f32 %v8842, %v8906
        %v8908 = vpop.f32.mrf.mxu0
        %v8909 = vpop.f32.mrf.mxu0
        %v8910 = vadd.f32 %v8845, %v8909
        %v8911 = vpop.f32.mrf.mxu0
        %8912 = vmatprep.mubr.bf16.mxu0 %v8388
        %8913 = vmatmul.mubr.bf16.gmra.mxu0 %v8387
        %v8914 = vpop.f32.mrf.mxu0
        %v8915 = vadd.f32 %v8850, %v8914
        %v8916 = vpop.f32.mrf.mxu0
        %v8917 = vpop.f32.mrf.mxu0
        %v8918 = vadd.f32 %v8853, %v8917
        %v8919 = vpop.f32.mrf.mxu0
        %8920 = vdwg.mxu0
        %8921 = vmatprep.subr.bf16.mxu0 0
        %8922 = vmatpush1.bf16.msra.mxu0 0
        %8923 = vmatprep.subr.bf16.mxu0 0
        %8924 = vmatpush1.bf16.msra.mxu0 0
        %8925 = vmatprep.subr.bf16.mxu0 0
        %8926 = vmatpush1.bf16.msra.mxu0 %v8659
        %8927 = vmatprep.subr.bf16.mxu0 0
        %8928 = vmatpush1.bf16.msra.mxu0 %v8658
        %8929 = vmatprep.subr.bf16.mxu0 0
        %8930 = vmatpush1.bf16.msra.mxu0 %v8657
        %8931 = vmatprep.subr.bf16.mxu0 0
        %8932 = vmatpush1.bf16.msra.mxu0 %v8656
        %8933 = vmatprep.subr.bf16.mxu0 0
        %8934 = vmatpush1.bf16.msra.mxu0 %v8655
        %8935 = vmatprep.subr.bf16.mxu0 0
        %8936 = vmatpush1.bf16.msra.mxu0 %v8654
        %8937 = vmatprep.subr.bf16.mxu0 0
        %8938 = vmatpush2.bf16.msra.mxu0 0
        %8939 = vmatprep.subr.bf16.mxu0 0
        %8940 = vmatpush2.bf16.msra.mxu0 0
        %8941 = vmatprep.subr.bf16.mxu0 0
        %8942 = vmatpush2.bf16.msra.mxu0 0
        %8943 = vmatprep.subr.bf16.mxu0 0
        %8944 = vmatpush2.bf16.msra.mxu0 0
        %8945 = vmatprep.subr.bf16.mxu0 0
        %8946 = vmatpush2.bf16.msra.mxu0 0
        %8947 = vmatprep.subr.bf16.mxu0 0
        %8948 = vmatpush2.bf16.msra.mxu0 0
        %8949 = vmatprep.subr.bf16.mxu0 0
        %8950 = vmatpush2.bf16.msra.mxu0 0
        %8951 = vmatprep.subr.bf16.mxu0 0
        %8952 = vmatpush2.bf16.msra.mxu0 0
        %8953 = vmatprep.mubr.bf16.mxu0 0
        %8954 = vmatmul.mubr.bf16.gmra.mxu0 %v8715
        %v8955 = vpop.f32.mrf.mxu0
        %v8956 = vadd.f32 %v8891, %v8955
        %v8957 = vpop.f32.mrf.mxu0
        %v8958 = vpop.f32.mrf.mxu0
        %v8959 = vadd.f32 %v8894, %v8958
        %v8960 = vpop.f32.mrf.mxu0
        %8961 = vmatprep.mubr.bf16.mxu0 0
        %8962 = vmatmul.mubr.bf16.gmra.mxu0 %v8718
        %v8963 = vpop.f32.mrf.mxu0
        %v8964 = vadd.f32 %v8899, %v8963
        %v8965 = vpop.f32.mrf.mxu0
        %v8966 = vpop.f32.mrf.mxu0
        %v8967 = vadd.f32 %v8902, %v8966
        %v8968 = vpop.f32.mrf.mxu0
        %8969 = vmatprep.mubr.bf16.mxu0 0
        %8970 = vmatmul.mubr.bf16.gmra.mxu0 %v8721
        %v8971 = vpop.f32.mrf.mxu0
        %v8972 = vadd.f32 %v8907, %v8971
        %v8973 = vpop.f32.mrf.mxu0
        %v8974 = vpop.f32.mrf.mxu0
        %v8975 = vadd.f32 %v8910, %v8974
        %v8976 = vpop.f32.mrf.mxu0
        %8977 = vmatprep.mubr.bf16.mxu0 0
        %8978 = vmatmul.mubr.bf16.gmra.mxu0 %v8724
        %v8979 = vpop.f32.mrf.mxu0
        %v8980 = vadd.f32 %v8915, %v8979
        %v8981 = vpop.f32.mrf.mxu0
        %v8982 = vpop.f32.mrf.mxu0
        %v8983 = vadd.f32 %v8918, %v8982
        %v8984 = vpop.f32.mrf.mxu0
        %8985 = vdwg.mxu0
        %v8986 = vld [vmem:[%s63] sm:$0x1]
        %v8988 = vlaneseq
        %v8989 = vshrl.u32 %v8988, 7
        %v8990 = vsub.s32 0, %v8989
        %v8991 = vrot.slane %v8986, %v8990
        %v8993 = vmul.f32 %v8956, %v8991
        %v8994 = vmul.f32 %v8959, %v8991
        %v8995 = vmul.f32 %v8964, %v8991
        %v8996 = vmul.f32 %v8967, %v8991
        %v8997 = vmul.f32 %v8972, %v8991
        %v8998 = vmul.f32 %v8975, %v8991
        %v8999 = vmul.f32 %v8980, %v8991
        %v9000 = vmul.f32 %v8983, %v8991
        %v9001 = vld [vmem:[%s65] sm:$0x1]
        %v9003 = vlaneseq
        %v9004 = vshrl.u32 %v9003, 7
        %v9005 = vsub.s32 0, %v9004
        %v9006 = vrot.slane %v9001, %v9005
        %v9008 = vadd.f32 %v8993, %v9006
        %v9009 = vadd.f32 %v8994, %v9006
        %v9010 = vadd.f32 %v8995, %v9006
        %v9011 = vadd.f32 %v8996, %v9006
        %v9012 = vadd.f32 %v8997, %v9006
        %v9013 = vadd.f32 %v8998, %v9006
        %v9014 = vadd.f32 %v8999, %v9006
        %v9015 = vadd.f32 %v9000, %v9006
        %v9016 = vadd.f32 %v9008, %v5868
        %v9017 = vadd.f32 %v9009, %v5869
        %v9018 = vadd.f32 %v9010, %v5870
        %v9019 = vadd.f32 %v9011, %v5871
        %v9020 = vadd.f32 %v9012, %v5872
        %v9021 = vadd.f32 %v9013, %v5873
        %v9022 = vadd.f32 %v9014, %v5874
        %v9023 = vadd.f32 %v9015, %v5875
        %vm9024 = vcmp.ge.f32.partialorder %v9016, 0.0
        %vm9025 = vcmp.ge.f32.partialorder %v9017, 0.0
        %vm9026 = vcmp.ge.f32.partialorder %v9018, 0.0
        %vm9027 = vcmp.ge.f32.partialorder %v9019, 0.0
        %vm9028 = vcmp.ge.f32.partialorder %v9020, 0.0
        %vm9029 = vcmp.ge.f32.partialorder %v9021, 0.0
        %vm9030 = vcmp.ge.f32.partialorder %v9022, 0.0
        %vm9031 = vcmp.ge.f32.partialorder %v9023, 0.0
        %v9032 = vmul.f32 %v9016, 0.01
        %v9033 = vmul.f32 %v9017, 0.01
        %v9034 = vmul.f32 %v9018, 0.01
        %v9035 = vmul.f32 %v9019, 0.01
        %v9036 = vmul.f32 %v9020, 0.01
        %v9037 = vmul.f32 %v9021, 0.01
        %v9038 = vmul.f32 %v9022, 0.01
        %v9039 = vmul.f32 %v9023, 0.01
        %v9040 = vsel %vm9024, %v9016, %v9032
        %v9041 = vsel %vm9025, %v9017, %v9033
        %v9042 = vsel %vm9026, %v9018, %v9034
        %v9043 = vsel %vm9027, %v9019, %v9035
        %v9044 = vsel %vm9028, %v9020, %v9036
        %v9045 = vsel %vm9029, %v9021, %v9037
        %v9046 = vsel %vm9030, %v9022, %v9038
        %v9047 = vsel %vm9031, %v9023, %v9039
        %v9048 = vld [vmem:[%s67] sm:$0xf]
        %v9049 = vld [vmem:[%s67 + $0x4] sm:$0xf]
        %v9050 = vld [vmem:[%s67 + $0x8] sm:$0xf]
        %v9051 = vld [vmem:[%s67 + $0xc] sm:$0xf]
        %v9052 = vpack.c.bf16 %v9041, %v9040
        %v9053 = vpack.c.bf16 %v9043, %v9042
        %v9054 = vpack.c.bf16 %v9045, %v9044
        %v9055 = vpack.c.bf16 %v9047, %v9046
        %v9060 = vunpack.c.l.b16 %v9048
        %v9061 = vunpack.c.l.b16 %v9049
        %v9062 = vunpack.c.l.b16 %v9050
        %v9063 = vunpack.c.l.b16 %v9051
        %v9064 = vpack.c.b16 %v9061, %v9060
        %v9065 = vpack.c.b16 %v9063, %v9062
        %v9069 = vsel %vm1078, %v9052, 0
        %v9072 = vsel %vm1078, %v9053, 0
        %v9075 = vsel %vm1078, %v9054, 0
        %v9078 = vsel %vm1078, %v9055, 0
        %9080 = vmatprep.subr.bf16.mxu0 0
        %9081 = vmatpush1.bf16.msra.mxu0 0
        %9082 = vmatprep.subr.bf16.mxu0 0
        %9083 = vmatpush1.bf16.msra.mxu0 0
        %9084 = vmatprep.subr.bf16.mxu0 0
        %9085 = vmatpush1.bf16.msra.mxu0 0
        %9086 = vmatprep.subr.bf16.mxu0 0
        %9087 = vmatpush1.bf16.msra.mxu0 0
        %9088 = vmatprep.subr.bf16.mxu0 0
        %9089 = vmatpush1.bf16.msra.mxu0 0
        %9090 = vmatprep.subr.bf16.mxu0 0
        %9091 = vmatpush1.bf16.msra.mxu0 0
        %9092 = vmatprep.subr.bf16.mxu0 0
        %9093 = vmatpush1.bf16.msra.mxu0 %v9065
        %9094 = vmatprep.subr.bf16.mxu0 0
        %9095 = vmatpush1.bf16.msra.mxu0 %v9064
        %9096 = vmatprep.subr.bf16.mxu0 0
        %9097 = vmatpush2.bf16.msra.mxu0 0
        %9098 = vmatprep.subr.bf16.mxu0 0
        %9099 = vmatpush2.bf16.msra.mxu0 0
        %9100 = vmatprep.subr.bf16.mxu0 0
        %9101 = vmatpush2.bf16.msra.mxu0 0
        %9102 = vmatprep.subr.bf16.mxu0 0
        %9103 = vmatpush2.bf16.msra.mxu0 0
        %9104 = vmatprep.subr.bf16.mxu0 0
        %9105 = vmatpush2.bf16.msra.mxu0 0
        %9106 = vmatprep.subr.bf16.mxu0 0
        %9107 = vmatpush2.bf16.msra.mxu0 0
        %9108 = vmatprep.subr.bf16.mxu0 0
        %9109 = vmatpush2.bf16.msra.mxu0 0
        %9110 = vmatprep.subr.bf16.mxu0 0
        %9111 = vmatpush2.bf16.msra.mxu0 0
        %9112 = vmatprep.mubr.bf16.mxu0 0
        %9113 = vmatmul.mubr.bf16.gmra.mxu0 %v9069
        %v9114 = vpop.f32.mrf.mxu0
        %v9115 = vadd.f32 0.0, %v9114
        %v9116 = vpop.f32.mrf.mxu0
        %v9117 = vpop.f32.mrf.mxu0
        %v9118 = vadd.f32 0.0, %v9117
        %v9119 = vpop.f32.mrf.mxu0
        %9120 = vmatprep.mubr.bf16.mxu0 0
        %9121 = vmatmul.mubr.bf16.gmra.mxu0 %v9072
        %v9122 = vpop.f32.mrf.mxu0
        %v9123 = vadd.f32 0.0, %v9122
        %v9124 = vpop.f32.mrf.mxu0
        %v9125 = vpop.f32.mrf.mxu0
        %v9126 = vadd.f32 0.0, %v9125
        %v9127 = vpop.f32.mrf.mxu0
        %9128 = vmatprep.mubr.bf16.mxu0 0
        %9129 = vmatmul.mubr.bf16.gmra.mxu0 %v9075
        %v9130 = vpop.f32.mrf.mxu0
        %v9131 = vadd.f32 0.0, %v9130
        %v9132 = vpop.f32.mrf.mxu0
        %v9133 = vpop.f32.mrf.mxu0
        %v9134 = vadd.f32 0.0, %v9133
        %v9135 = vpop.f32.mrf.mxu0
        %9136 = vmatprep.mubr.bf16.mxu0 0
        %9137 = vmatmul.mubr.bf16.gmra.mxu0 %v9078
        %v9138 = vpop.f32.mrf.mxu0
        %v9139 = vadd.f32 0.0, %v9138
        %v9140 = vpop.f32.mrf.mxu0
        %v9141 = vpop.f32.mrf.mxu0
        %v9142 = vadd.f32 0.0, %v9141
        %v9143 = vpop.f32.mrf.mxu0
        %9144 = vdwg.mxu0
        %v9145 = vadd.f32 %v2625, %v9115
        %v9146 = vadd.f32 %v2626, %v9118
        %v9147 = vadd.f32 %v2627, %v9123
        %v9148 = vadd.f32 %v2628, %v9126
        %v9149 = vadd.f32 %v2629, %v9131
        %v9150 = vadd.f32 %v2630, %v9134
        %v9151 = vadd.f32 %v2631, %v9139
        %v9152 = vadd.f32 %v2632, %v9142
        %v9153 = vld [vmem:[%s69] sm:$0x1]
        %v9155 = vlaneseq
        %v9156 = vshrl.u32 %v9155, 7
        %v9157 = vsub.s32 0, %v9156
        %v9158 = vrot.slane %v9153, %v9157
        %v9160 = vadd.f32 %v9145, %v9158
        %v9161 = vadd.f32 %v9146, %v9158
        %v9162 = vadd.f32 %v9147, %v9158
        %v9163 = vadd.f32 %v9148, %v9158
        %v9164 = vadd.f32 %v9149, %v9158
        %v9165 = vadd.f32 %v9150, %v9158
        %v9166 = vadd.f32 %v9151, %v9158
        %v9167 = vadd.f32 %v9152, %v9158
        %9168 = vst.msk [vmem:[%s1063] sm:$0xff] %vm1078, %v9160
        %9169 = vst.msk [vmem:[%s1063 + $0x8] sm:$0xff] %vm1078, %v9161
        %9170 = vst.msk [vmem:[%s1063 + $0x10] sm:$0xff] %vm1078, %v9162
        %9171 = vst.msk [vmem:[%s1063 + $0x18] sm:$0xff] %vm1078, %v9163
        %9172 = vst.msk [vmem:[%s1063 + $0x20] sm:$0xff] %vm1078, %v9164
        %9173 = vst.msk [vmem:[%s1063 + $0x28] sm:$0xff] %vm1078, %v9165
        %9174 = vst.msk [vmem:[%s1063 + $0x30] sm:$0xff] %vm1078, %v9166
        %9175 = vst.msk [vmem:[%s1063 + $0x38] sm:$0xff] %vm1078, %v9167
        %s9176 = sand.u32 %s833, 1
        %s9177 = scalar_lea.sflag [#allocation4], %s9176
        %s9178 = sand.u32 %s833, 1
        %s9179 = smul.addr %s9178, 64
        %s9180 = scalar_lea.vmem [#allocation3], %s9179
        // Predicated region
        $region161: #{transformer_block_forward.1} parent=159 // pred_check
          %p9181 = pneg %p843
        $region162: #{transformer_block_forward.1} parent=159 // pred_check_branch
          %9183 = sbr.rel (%p9181) target = $region164
        $region163: #{transformer_block_forward.1} parent=159 // pred_region
          %s9185 = ssub.s32 1024, 1024
          %9186 = vsyncadd %s9177, %s9185
          %s9187 = smul.addr %s85, 8
          %s9188 = smul.addr %s9187, 128
          %s9189 = scalar_lea.hbm %s71, %s9188
          %s9190 = sshll.u32 %s9180, 4
          %s9191 = int_to_ptr.vmem [resolvable:$true] %s9190
          %9196 = dma.vmem_to_hbm [thread:$0]  %s9191, 1024, %s9189, %s9177, 128, 128, 8
        $region164: #{transformer_block_forward.1} parent=159 // pred_fallthru
          _
      $region160: #{transformer_block_forward.1} parent=5 // pred_fallthru
        _
      %p9197 = scmp.le.s32.totalorder 2, %s80
      // Predicated region
      $region165: #{transformer_block_forward.1} parent=5 // pred_check
        %p9198 = pneg %p9197
      $region166: #{transformer_block_forward.1} parent=5 // pred_check_branch
        %9200 = sbr.rel (%p9198) target = $region168
      $region167: #{transformer_block_forward.1} parent=5 // pred_region
        %s9201 = ssub.s32 %s80, 2
        // Predicated region
        $region169: #{transformer_block_forward.1} parent=167 // pred_check
          %p9202 = pneg %p849
        $region170: #{transformer_block_forward.1} parent=167 // pred_check_branch
          %9204 = sbr.rel (%p9202) target = $region172
        $region171: #{transformer_block_forward.1} parent=167 // pred_region
          %s9205 = sand.u32 %s834, 1
          %s9206 = scalar_lea.sflag [#allocation4], %s9205
          %s9207 = sand.u32 %s834, 1
          %s9208 = smul.addr %s9207, 64
          %s9209 = scalar_lea.vmem [#allocation3], %s9208
          %9210 = dma.done %s9206, 1024
        $region172: #{transformer_block_forward.1} parent=167 // pred_fallthru
          _
      $region168: #{transformer_block_forward.1} parent=5 // pred_fallthru
        _
    $region6: #{transformer_block_forward.1} parent=1 // loop_footer
      %s84 = sadd.s32 1, %s80
    $region7: #{transformer_block_forward.1} parent=1 // loop_footer_branch
      %79 = sbr.rel target = $region3
    $region8: #{transformer_block_forward.1} parent=1 // loop_exit
      _
    %9211 = vsyncpa [#allocation4], 1
    %s9212 = scalar_lea.sflag [#allocation4], 1
    %9213 = vsyncpa %s9212, 1

</llo_original>
